<compile_context>
chip_gen: v7x
topology: tpu7x:2x2x1
jax: 0.10.0
libtpu: 0.0.40
codegen_flags: <defaults>
</compile_context>

<pallas_src>
import jax
import jax.numpy as jnp
from jax.experimental import pallas as pl
from jax.experimental.pallas import tpu as pltpu

LANE = 128


def _round_up(x, m):
    return (x + m - 1) // m * m


_COMPILER_PARAMS = pltpu.CompilerParams(
    dimension_semantics=("parallel",),      # shard the 1-D M/B grid across TCs
    vmem_limit_bytes=32 * 1024 * 1024,      # fits v7x's 64 MiB VMEM with headroom
)


# ----------------------------------------------------------------------------
# Pallas kernels
# ----------------------------------------------------------------------------
def _conv_gemm_kernel(x_ref, w_ref, b_ref, o_ref):
    # x: (TILE_M, Kpad) bf16, w: (Kpad, 128) bf16, b: (1, 128) f32
    y = jnp.dot(x_ref[...], w_ref[...], preferred_element_type=jnp.float32)
    y = jnp.maximum(y + b_ref[...], 0.0)          # bias + ReLU in f32
    o_ref[...] = y.astype(o_ref.dtype)            # lane-dense (128-wide) store


def _mlp_head_kernel(x_ref, w1_ref, b1_ref, w2_ref, b2_ref, o_ref):
    # Fused fc1 + ReLU + fc2 + log_softmax (epilogue in f32).
    h = jnp.dot(x_ref[...], w1_ref[...], preferred_element_type=jnp.float32)
    h = jnp.maximum(h + b1_ref[...], 0.0)
    y = jnp.dot(h.astype(jnp.bfloat16), w2_ref[...],
                preferred_element_type=jnp.float32)
    y = y + b2_ref[...]                           # padded logit cols carry -1e30 bias
    m = jnp.max(y, axis=-1, keepdims=True)
    y = y - m
    y = y - jnp.log(jnp.sum(jnp.exp(y), axis=-1, keepdims=True))
    o_ref[...] = y.astype(o_ref.dtype)


def _maxpool2_kernel(x_ref, o_ref):
    # x: (1, Ho, 2, Wo, 2*C).  H-pairs live on a major axis (integer index),
    # W-pairs are folded into the lane axis (adjacent-W channels are lane-
    # contiguous), so the kernel needs no strided slicing anywhere.
    c = o_ref.shape[-1]
    x = x_ref[...]
    h = jnp.maximum(x[:, :, 0, :, :], x[:, :, 1, :, :])   # pool over H
    o_ref[...] = jnp.maximum(h[..., :c], h[..., c:])      # pool over W (lane halves)


# ----------------------------------------------------------------------------
# Pallas wrappers
# ----------------------------------------------------------------------------
def _pad_rows_to(x, mp):
    m = x.shape[0]
    return x if m == mp else jnp.pad(x, ((0, mp - m), (0, 0)))


def pallas_conv_gemm(cols, w_pad, b_pad, *, tile_m=512):
    """Fused (cols @ w + b) -> ReLU, tiled over M, lane-dense bf16 output."""
    M, K = cols.shape
    Kp, Np = w_pad.shape
    assert K == Kp and Np % LANE == 0
    tm = min(tile_m, _round_up(M, 8))
    Mp = _round_up(M, tm)
    cols = _pad_rows_to(cols, Mp)
    out = pl.pallas_call(
        _conv_gemm_kernel,
        out_shape=jax.ShapeDtypeStruct((Mp, Np), jnp.bfloat16),
        grid_spec=pltpu.PrefetchScalarGridSpec(
            num_scalar_prefetch=0,
            grid=(Mp // tm,),
            in_specs=[
                pl.BlockSpec((tm, Kp), lambda i: (i, 0)),     # activations, tiled
                pl.BlockSpec((Kp, Np), lambda i: (0, 0)),     # weights resident
                pl.BlockSpec((1, Np), lambda i: (0, 0)),      # bias resident
            ],
            out_specs=pl.BlockSpec((tm, Np), lambda i: (i, 0)),
        ),
        compiler_params=_COMPILER_PARAMS,
    )(cols, w_pad, b_pad)
    return out[:M]


def pallas_mlp_head(x, w1, b1, w2, b2, *, tile_m=256):
    """Fused fc1+ReLU+fc2+log_softmax, tiled over the batch (M) axis."""
    M, K = x.shape
    K1, H = w1.shape
    H2, Np = w2.shape
    assert K == K1 and H == H2
    tm = min(tile_m, _round_up(M, 8))
    Mp = _round_up(M, tm)
    x = _pad_rows_to(x, Mp)
    out = pl.pallas_call(
        _mlp_head_kernel,
        out_shape=jax.ShapeDtypeStruct((Mp, Np), jnp.float32),
        grid_spec=pltpu.PrefetchScalarGridSpec(
            num_scalar_prefetch=0,
            grid=(Mp // tm,),
            in_specs=[
                pl.BlockSpec((tm, K), lambda i: (i, 0)),
                pl.BlockSpec((K, H), lambda i: (0, 0)),
                pl.BlockSpec((1, H), lambda i: (0, 0)),
                pl.BlockSpec((H, Np), lambda i: (0, 0)),
                pl.BlockSpec((1, Np), lambda i: (0, 0)),
            ],
            out_specs=pl.BlockSpec((tm, Np), lambda i: (i, 0)),
        ),
        compiler_params=_COMPILER_PARAMS,
    )(x, w1, b1, w2, b2)
    return out[:M]


def pallas_maxpool2(x):
    """MaxPool2d(kernel_size=2, stride=2) on NHWC input (H, W even)."""
    B, H, W, C = x.shape
    Ho, Wo = H // 2, W // 2
    xr = x.reshape(B, Ho, 2, Wo, 2 * C)   # contiguity-preserving (free) reshape
    return pl.pallas_call(
        _maxpool2_kernel,
        out_shape=jax.ShapeDtypeStruct((B, Ho, Wo, C), x.dtype),
        grid_spec=pltpu.PrefetchScalarGridSpec(
            num_scalar_prefetch=0,
            grid=(B,),
            in_specs=[pl.BlockSpec((1, Ho, 2, Wo, 2 * C),
                                   lambda b: (b, 0, 0, 0, 0))],
            out_specs=pl.BlockSpec((1, Ho, Wo, C), lambda b: (b, 0, 0, 0)),
        ),
        compiler_params=_COMPILER_PARAMS,
    )(xr)


# ----------------------------------------------------------------------------
# Convolution = im2col (XLA slicing glue) + Pallas GEMM
# ----------------------------------------------------------------------------
def _im2col_nhwc(x, k, k_pad):
    # x: (B, H, W, C) -> (B*Ho*Wo, k_pad) bf16, column order (kh, kw, C)
    B, H, W, C = x.shape
    Ho, Wo = H - k + 1, W - k + 1
    patches = [x[:, di:di + Ho, dj:dj + Wo, :] for di in range(k) for dj in range(k)]
    p = jnp.stack(patches, axis=3)                       # (B, Ho, Wo, k*k, C)
    cols = p.reshape(B * Ho * Wo, k * k * C)
    cols = jnp.pad(cols, ((0, 0), (0, k_pad - k * k * C)))
    return cols.astype(jnp.bfloat16), (B, Ho, Wo)
    # TODO(synk): im2col patch extraction is still XLA-side; a fully in-kernel
    # shifted-matmul conv would avoid the k*k-inflated HBM round trip at large B.


def conv2d_relu(x, w_pad, b_pad, cout, k=3):
    cols, (B, Ho, Wo) = _im2col_nhwc(x, k, w_pad.shape[0])
    y = pallas_conv_gemm(cols, w_pad, b_pad)             # (B*Ho*Wo, 128) bf16
    return y[:, :cout].reshape(B, Ho, Wo, cout)


# ----------------------------------------------------------------------------
# Parameters
# ----------------------------------------------------------------------------
def init_params(key):
    """PyTorch-shaped parameters with the PyTorch default uniform init."""
    def u(k, shape, fan_in):
        bound = 1.0 / jnp.sqrt(fan_in)
        return jax.random.uniform(k, shape, jnp.float32, -bound, bound)

    ks = jax.random.split(key, 8)
    return {
        "conv1_w": u(ks[0], (32, 1, 3, 3), 1 * 3 * 3),
        "conv1_b": u(ks[1], (32,), 1 * 3 * 3),
        "conv2_w": u(ks[2], (64, 32, 3, 3), 32 * 3 * 3),
        "conv2_b": u(ks[3], (64,), 32 * 3 * 3),
        "fc1_w": u(ks[4], (128, 9216), 9216),
        "fc1_b": u(ks[5], (128,), 9216),
        "fc2_w": u(ks[6], (10, 128), 128),
        "fc2_b": u(ks[7], (10,), 128),
    }


def prepare_params(p):
    """Repack PyTorch-shaped params for the kernels (done once, outside jit)."""
    def conv_pack(w, b):
        cout, cin, k, _ = w.shape
        kk = k * k * cin
        k_pad = _round_up(kk, LANE)
        w2 = w.transpose(2, 3, 1, 0).reshape(kk, cout)            # rows = (kh, kw, cin)
        w2 = jnp.pad(w2, ((0, k_pad - kk), (0, LANE - cout))).astype(jnp.bfloat16)
        b2 = jnp.pad(b, (0, LANE - cout)).reshape(1, LANE).astype(jnp.float32)
        return w2, b2

    q = {}
    q["conv1_w"], q["conv1_b"] = conv_pack(p["conv1_w"], p["conv1_b"])  # K 9->128
    q["conv2_w"], q["conv2_b"] = conv_pack(p["conv2_w"], p["conv2_b"])  # K 288->384

    # fc1: reorder the 9216 inputs from PyTorch's NCHW flatten order (c,h,w) to
    # our NHWC flatten order (h,w,c); store as (in, out) bf16 (K=9216, N=128).
    w1 = p["fc1_w"].reshape(128, 64, 12, 12).transpose(2, 3, 1, 0).reshape(9216, 128)
    q["fc1_w"] = w1.astype(jnp.bfloat16)
    q["fc1_b"] = p["fc1_b"].reshape(1, 128).astype(jnp.float32)

    # fc2: (10,128) -> (128,128); padded logit columns get a huge negative bias
    # so the fused log_softmax ignores them (the real 10 columns are unaffected).
    q["fc2_w"] = jnp.pad(p["fc2_w"].T, ((0, 0), (0, LANE - 10))).astype(jnp.bfloat16)
    q["fc2_b"] = jnp.full((1, LANE), -1e30, jnp.float32).at[0, :10].set(p["fc2_b"])
    return q


# ----------------------------------------------------------------------------
# Forward pass
# ----------------------------------------------------------------------------
@jax.jit
def cnn_forward(params, x):
    """x: (B, 1, 28, 28) NCHW float32 -> (B, 10) log-probabilities."""
    x = jnp.transpose(x, (0, 2, 3, 1))                                 # NHWC
    x = conv2d_relu(x, params["conv1_w"], params["conv1_b"], 32)       # (B,26,26,32)
    x = conv2d_relu(x, params["conv2_w"], params["conv2_b"], 64)       # (B,24,24,64)
    x = pallas_maxpool2(x)                                             # (B,12,12,64)
    # dropout1 / dropout2: identity at inference.
    # TODO(synk): train-mode dropout (RNG masking) not implemented.
    B = x.shape[0]
    x = x.reshape(B, 12 * 12 * 64)                                     # NHWC flatten (bf16)
    y = pallas_mlp_head(x, params["fc1_w"], params["fc1_b"],
                        params["fc2_w"], params["fc2_b"])              # (B,128)
    return y[:, :10]


if __name__ == "__main__":
    key = jax.random.PRNGKey(0)
    pkey, xkey = jax.random.split(key)
    params = prepare_params(init_params(pkey))
    # fc1 in_features = 9216 = 64*12*12 requires 28x28 input for this architecture.
    x = jax.random.normal(xkey, (2, 1, 28, 28), dtype=jnp.float32)
    out = jax.block_until_ready(cnn_forward(params, x))
    assert out.shape == (2, 10)
    # log_softmax rows must exponentiate-sum to ~1 (normalization done in f32).
    row_sums = jnp.exp(out).sum(axis=1)
    assert bool(jnp.all(jnp.abs(row_sums - 1.0) < 1e-3))
    print("KERNEL_OK")
</pallas_src>

<mosaic_0001>
module attributes {stable_mosaic.version = 11 : i64} {
  func.func @_conv_gemm_kernel(%arg0: i32, %arg1: memref<512x128xbf16, #tpu.memory_space<vmem>>, %arg2: memref<128x128xbf16, #tpu.memory_space<vmem>>, %arg3: memref<1x128xf32, #tpu.memory_space<vmem>>, %arg4: memref<512x128xbf16, #tpu.memory_space<vmem>>) attributes {dimension_semantics = [#tpu.dimension_semantics<parallel>], iteration_bounds = array<i64: 3>, scalar_prefetch = 0 : i64, scratch_operands = 0 : i64, tpu.core_type = #tpu.core_type<tc>, window_params = [{transform_indices = @transform_0, window_bounds = array<i64: 512, 128>}, {pipeline_mode = #tpu.pipeline_mode<synchronous>, transform_indices = @transform_1, window_bounds = array<i64: 128, 128>}, {pipeline_mode = #tpu.pipeline_mode<synchronous>, transform_indices = @transform_2, window_bounds = array<i64: 1, 128>}, {transform_indices = @transform_3, window_bounds = array<i64: 512, 128>}]} {
    %c0 = arith.constant 0 : index
    %c0_0 = arith.constant 0 : index
    %0 = vector.load %arg1[%c0, %c0_0] : memref<512x128xbf16, #tpu.memory_space<vmem>>, vector<512x128xbf16>
    %c0_1 = arith.constant 0 : index
    %c0_2 = arith.constant 0 : index
    %1 = vector.load %arg2[%c0_1, %c0_2] : memref<128x128xbf16, #tpu.memory_space<vmem>>, vector<128x128xbf16>
    %cst = arith.constant dense<0.000000e+00> : vector<512x128xf32>
    %2 = tpu.matmul %0, %1, %cst {dimension_numbers = #tpu.dot_dimension_numbers<[1], [0], [0], [1], [0, 0, 1, 1], [], []>} : vector<512x128xbf16>, vector<128x128xbf16>, vector<512x128xf32> -> vector<512x128xf32>
    %c0_3 = arith.constant 0 : index
    %c0_4 = arith.constant 0 : index
    %3 = vector.load %arg3[%c0_3, %c0_4] : memref<1x128xf32, #tpu.memory_space<vmem>>, vector<1x128xf32>
    %4 = vector.broadcast %3 : vector<1x128xf32> to vector<512x128xf32>
    %5 = arith.addf %2, %4 : vector<512x128xf32>
    %cst_5 = arith.constant 0.000000e+00 : f32
    %6 = vector.broadcast %cst_5 : f32 to vector<512x128xf32>
    %7 = arith.maximumf %5, %6 : vector<512x128xf32>
    %8 = arith.truncf %7 : vector<512x128xf32> to vector<512x128xbf16>
    %c0_6 = arith.constant 0 : index
    %c0_7 = arith.constant 0 : index
    %9 = vector.load %arg4[%c0_6, %c0_7] : memref<512x128xbf16, #tpu.memory_space<vmem>>, vector<512x128xbf16>
    tpu.vector_store %arg4[%c0_6, %c0_7], %8 {strides = array<i32>} : memref<512x128xbf16, #tpu.memory_space<vmem>>, vector<512x128xbf16>,
    return
  }
  func.func @transform_0(%arg0: i32) -> (i32, i32) {
    %c0_i32 = arith.constant 0 : i32
    %c0_i32_0 = arith.constant 0 : i32
    return %arg0, %c0_i32 : i32, i32
  }
  func.func @transform_1(%arg0: i32) -> (i32, i32) {
    %c0_i32 = arith.constant 0 : i32
    %c0_i32_0 = arith.constant 0 : i32
    %c0_i32_1 = arith.constant 0 : i32
    return %c0_i32, %c0_i32_0 : i32, i32
  }
  func.func @transform_2(%arg0: i32) -> (i32, i32) {
    %c0_i32 = arith.constant 0 : i32
    %c0_i32_0 = arith.constant 0 : i32
    %c0_i32_1 = arith.constant 0 : i32
    return %c0_i32, %c0_i32_0 : i32, i32
  }
  func.func @transform_3(%arg0: i32) -> (i32, i32) {
    %c0_i32 = arith.constant 0 : i32
    %c0_i32_0 = arith.constant 0 : i32
    return %arg0, %c0_i32 : i32, i32
  }
}

module attributes {stable_mosaic.version = 11 : i64} {
  func.func @_conv_gemm_kernel(%arg0: i32, %arg1: memref<512x384xbf16, #tpu.memory_space<vmem>>, %arg2: memref<384x128xbf16, #tpu.memory_space<vmem>>, %arg3: memref<1x128xf32, #tpu.memory_space<vmem>>, %arg4: memref<512x128xbf16, #tpu.memory_space<vmem>>) attributes {dimension_semantics = [#tpu.dimension_semantics<parallel>], iteration_bounds = array<i64: 3>, scalar_prefetch = 0 : i64, scratch_operands = 0 : i64, tpu.core_type = #tpu.core_type<tc>, window_params = [{transform_indices = @transform_0, window_bounds = array<i64: 512, 384>}, {pipeline_mode = #tpu.pipeline_mode<synchronous>, transform_indices = @transform_1, window_bounds = array<i64: 384, 128>}, {pipeline_mode = #tpu.pipeline_mode<synchronous>, transform_indices = @transform_2, window_bounds = array<i64: 1, 128>}, {transform_indices = @transform_3, window_bounds = array<i64: 512, 128>}]} {
    %c0 = arith.constant 0 : index
    %c0_0 = arith.constant 0 : index
    %0 = vector.load %arg1[%c0, %c0_0] : memref<512x384xbf16, #tpu.memory_space<vmem>>, vector<512x384xbf16>
    %c0_1 = arith.constant 0 : index
    %c0_2 = arith.constant 0 : index
    %1 = vector.load %arg2[%c0_1, %c0_2] : memref<384x128xbf16, #tpu.memory_space<vmem>>, vector<384x128xbf16>
    %cst = arith.constant dense<0.000000e+00> : vector<512x128xf32>
    %2 = tpu.matmul %0, %1, %cst {dimension_numbers = #tpu.dot_dimension_numbers<[1], [0], [0], [1], [0, 0, 1, 1], [], []>} : vector<512x384xbf16>, vector<384x128xbf16>, vector<512x128xf32> -> vector<512x128xf32>
    %c0_3 = arith.constant 0 : index
    %c0_4 = arith.constant 0 : index
    %3 = vector.load %arg3[%c0_3, %c0_4] : memref<1x128xf32, #tpu.memory_space<vmem>>, vector<1x128xf32>
    %4 = vector.broadcast %3 : vector<1x128xf32> to vector<512x128xf32>
    %5 = arith.addf %2, %4 : vector<512x128xf32>
    %cst_5 = arith.constant 0.000000e+00 : f32
    %6 = vector.broadcast %cst_5 : f32 to vector<512x128xf32>
    %7 = arith.maximumf %5, %6 : vector<512x128xf32>
    %8 = arith.truncf %7 : vector<512x128xf32> to vector<512x128xbf16>
    %c0_6 = arith.constant 0 : index
    %c0_7 = arith.constant 0 : index
    %9 = vector.load %arg4[%c0_6, %c0_7] : memref<512x128xbf16, #tpu.memory_space<vmem>>, vector<512x128xbf16>
    tpu.vector_store %arg4[%c0_6, %c0_7], %8 {strides = array<i32>} : memref<512x128xbf16, #tpu.memory_space<vmem>>, vector<512x128xbf16>,
    return
  }
  func.func @transform_0(%arg0: i32) -> (i32, i32) {
    %c0_i32 = arith.constant 0 : i32
    %c0_i32_0 = arith.constant 0 : i32
    return %arg0, %c0_i32 : i32, i32
  }
  func.func @transform_1(%arg0: i32) -> (i32, i32) {
    %c0_i32 = arith.constant 0 : i32
    %c0_i32_0 = arith.constant 0 : i32
    %c0_i32_1 = arith.constant 0 : i32
    return %c0_i32, %c0_i32_0 : i32, i32
  }
  func.func @transform_2(%arg0: i32) -> (i32, i32) {
    %c0_i32 = arith.constant 0 : i32
    %c0_i32_0 = arith.constant 0 : i32
    %c0_i32_1 = arith.constant 0 : i32
    return %c0_i32, %c0_i32_0 : i32, i32
  }
  func.func @transform_3(%arg0: i32) -> (i32, i32) {
    %c0_i32 = arith.constant 0 : i32
    %c0_i32_0 = arith.constant 0 : i32
    return %arg0, %c0_i32 : i32, i32
  }
}

module attributes {stable_mosaic.version = 11 : i64} {
  func.func @_maxpool2_kernel(%arg0: i32, %arg1: memref<1x12x2x12x128xbf16, #tpu.memory_space<vmem>>, %arg2: memref<1x12x12x64xbf16, #tpu.memory_space<vmem>>) attributes {dimension_semantics = [#tpu.dimension_semantics<parallel>], iteration_bounds = array<i64: 2>, scalar_prefetch = 0 : i64, scratch_operands = 0 : i64, tpu.core_type = #tpu.core_type<tc>, window_params = [{transform_indices = @transform_0, window_bounds = array<i64: 1, 12, 2, 12, 128>}, {transform_indices = @transform_1, window_bounds = array<i64: 1, 12, 12, 64>}]} {
    %c0 = arith.constant 0 : index
    %c0_0 = arith.constant 0 : index
    %c0_1 = arith.constant 0 : index
    %c0_2 = arith.constant 0 : index
    %c0_3 = arith.constant 0 : index
    %0 = vector.load %arg1[%c0, %c0_0, %c0_1, %c0_2, %c0_3] : memref<1x12x2x12x128xbf16, #tpu.memory_space<vmem>>, vector<1x12x2x12x128xbf16>
    %1 = vector.extract_strided_slice %0 {offsets = [0, 0, 0, 0, 0], sizes = [1, 12, 1, 12, 128], strides = [1, 1, 1, 1, 1]} : vector<1x12x2x12x128xbf16> to vector<1x12x1x12x128xbf16>
    %2 = vector.shape_cast %1 : vector<1x12x1x12x128xbf16> to vector<1x12x12x128xbf16>
    %3 = vector.extract_strided_slice %0 {offsets = [0, 0, 1, 0, 0], sizes = [1, 12, 1, 12, 128], strides = [1, 1, 1, 1, 1]} : vector<1x12x2x12x128xbf16> to vector<1x12x1x12x128xbf16>
    %4 = vector.shape_cast %3 : vector<1x12x1x12x128xbf16> to vector<1x12x12x128xbf16>
    %5 = arith.maximumf %2, %4 : vector<1x12x12x128xbf16>
    %6 = vector.extract_strided_slice %5 {offsets = [0, 0, 0, 0], sizes = [1, 12, 12, 64], strides = [1, 1, 1, 1]} : vector<1x12x12x128xbf16> to vector<1x12x12x64xbf16>
    %7 = vector.extract_strided_slice %5 {offsets = [0, 0, 0, 64], sizes = [1, 12, 12, 64], strides = [1, 1, 1, 1]} : vector<1x12x12x128xbf16> to vector<1x12x12x64xbf16>
    %8 = arith.maximumf %6, %7 : vector<1x12x12x64xbf16>
    %c0_4 = arith.constant 0 : index
    %c0_5 = arith.constant 0 : index
    %c0_6 = arith.constant 0 : index
    %c0_7 = arith.constant 0 : index
    %9 = vector.load %arg2[%c0_4, %c0_5, %c0_6, %c0_7] : memref<1x12x12x64xbf16, #tpu.memory_space<vmem>>, vector<1x12x12x64xbf16>
    tpu.vector_store %arg2[%c0_4, %c0_5, %c0_6, %c0_7], %8 {strides = array<i32>} : memref<1x12x12x64xbf16, #tpu.memory_space<vmem>>, vector<1x12x12x64xbf16>,
    return
  }
  func.func @transform_0(%arg0: i32) -> (i32, i32, i32, i32, i32) {
    %c0_i32 = arith.constant 0 : i32
    %c0_i32_0 = arith.constant 0 : i32
    %c0_i32_1 = arith.constant 0 : i32
    %c0_i32_2 = arith.constant 0 : i32
    %c0_i32_3 = arith.constant 0 : i32
    return %arg0, %c0_i32, %c0_i32_0, %c0_i32_1, %c0_i32_2 : i32, i32, i32, i32, i32
  }
  func.func @transform_1(%arg0: i32) -> (i32, i32, i32, i32) {
    %c0_i32 = arith.constant 0 : i32
    %c0_i32_0 = arith.constant 0 : i32
    %c0_i32_1 = arith.constant 0 : i32
    %c0_i32_2 = arith.constant 0 : i32
    return %arg0, %c0_i32, %c0_i32_0, %c0_i32_1 : i32, i32, i32, i32
  }
}

module attributes {stable_mosaic.version = 11 : i64} {
  func.func @_mlp_head_kernel(%arg0: i32, %arg1: memref<8x9216xbf16, #tpu.memory_space<vmem>>, %arg2: memref<9216x128xbf16, #tpu.memory_space<vmem>>, %arg3: memref<1x128xf32, #tpu.memory_space<vmem>>, %arg4: memref<128x128xbf16, #tpu.memory_space<vmem>>, %arg5: memref<1x128xf32, #tpu.memory_space<vmem>>, %arg6: memref<8x128xf32, #tpu.memory_space<vmem>>) attributes {dimension_semantics = [#tpu.dimension_semantics<parallel>], iteration_bounds = array<i64: 1>, scalar_prefetch = 0 : i64, scratch_operands = 0 : i64, tpu.core_type = #tpu.core_type<tc>, window_params = [{transform_indices = @transform_0, window_bounds = array<i64: 8, 9216>}, {pipeline_mode = #tpu.pipeline_mode<synchronous>, transform_indices = @transform_1, window_bounds = array<i64: 9216, 128>}, {pipeline_mode = #tpu.pipeline_mode<synchronous>, transform_indices = @transform_2, window_bounds = array<i64: 1, 128>}, {pipeline_mode = #tpu.pipeline_mode<synchronous>, transform_indices = @transform_3, window_bounds = array<i64: 128, 128>}, {pipeline_mode = #tpu.pipeline_mode<synchronous>, transform_indices = @transform_4, window_bounds = array<i64: 1, 128>}, {transform_indices = @transform_5, window_bounds = array<i64: 8, 128>}]} {
    %c0 = arith.constant 0 : index
    %c0_0 = arith.constant 0 : index
    %0 = vector.load %arg1[%c0, %c0_0] : memref<8x9216xbf16, #tpu.memory_space<vmem>>, vector<8x9216xbf16>
    %c0_1 = arith.constant 0 : index
    %c0_2 = arith.constant 0 : index
    %1 = vector.load %arg2[%c0_1, %c0_2] : memref<9216x128xbf16, #tpu.memory_space<vmem>>, vector<9216x128xbf16>
    %cst = arith.constant dense<0.000000e+00> : vector<8x128xf32>
    %2 = tpu.matmul %0, %1, %cst {dimension_numbers = #tpu.dot_dimension_numbers<[1], [0], [0], [1], [0, 0, 1, 1], [], []>} : vector<8x9216xbf16>, vector<9216x128xbf16>, vector<8x128xf32> -> vector<8x128xf32>
    %c0_3 = arith.constant 0 : index
    %c0_4 = arith.constant 0 : index
    %3 = vector.load %arg3[%c0_3, %c0_4] : memref<1x128xf32, #tpu.memory_space<vmem>>, vector<1x128xf32>
    %4 = vector.broadcast %3 : vector<1x128xf32> to vector<8x128xf32>
    %5 = arith.addf %2, %4 : vector<8x128xf32>
    %cst_5 = arith.constant 0.000000e+00 : f32
    %6 = vector.broadcast %cst_5 : f32 to vector<8x128xf32>
    %7 = arith.maximumf %5, %6 : vector<8x128xf32>
    %8 = arith.truncf %7 : vector<8x128xf32> to vector<8x128xbf16>
    %c0_6 = arith.constant 0 : index
    %c0_7 = arith.constant 0 : index
    %9 = vector.load %arg4[%c0_6, %c0_7] : memref<128x128xbf16, #tpu.memory_space<vmem>>, vector<128x128xbf16>
    %cst_8 = arith.constant dense<0.000000e+00> : vector<8x128xf32>
    %10 = tpu.matmul %8, %9, %cst_8 {dimension_numbers = #tpu.dot_dimension_numbers<[1], [0], [0], [1], [0, 0, 1, 1], [], []>} : vector<8x128xbf16>, vector<128x128xbf16>, vector<8x128xf32> -> vector<8x128xf32>
    %c0_9 = arith.constant 0 : index
    %c0_10 = arith.constant 0 : index
    %11 = vector.load %arg5[%c0_9, %c0_10] : memref<1x128xf32, #tpu.memory_space<vmem>>, vector<1x128xf32>
    %12 = vector.broadcast %11 : vector<1x128xf32> to vector<8x128xf32>
    %13 = arith.addf %10, %12 : vector<8x128xf32>
    %cst_11 = arith.constant dense<0xFF800000> : vector<8xf32>
    %14 = vector.multi_reduction <maximumf>, %13, %cst_11 [1] : vector<8x128xf32> to vector<8xf32>
    %15 = vector.shape_cast %14 : vector<8xf32> to vector<8x1xf32>
    %16 = vector.broadcast %15 : vector<8x1xf32> to vector<8x128xf32>
    %17 = arith.subf %13, %16 : vector<8x128xf32>
    %18 = math.exp %17 : vector<8x128xf32>
    %cst_12 = arith.constant dense<0.000000e+00> : vector<8xf32>
    %19 = vector.multi_reduction <add>, %18, %cst_12 [1] : vector<8x128xf32> to vector<8xf32>
    %20 = vector.shape_cast %19 : vector<8xf32> to vector<8x1xf32>
    %21 = math.log %20 : vector<8x1xf32>
    %22 = vector.broadcast %21 : vector<8x1xf32> to vector<8x128xf32>
    %23 = arith.subf %17, %22 : vector<8x128xf32>
    %c0_13 = arith.constant 0 : index
    %c0_14 = arith.constant 0 : index
    %24 = vector.load %arg6[%c0_13, %c0_14] : memref<8x128xf32, #tpu.memory_space<vmem>>, vector<8x128xf32>
    tpu.vector_store %arg6[%c0_13, %c0_14], %23 {strides = array<i32>} : memref<8x128xf32, #tpu.memory_space<vmem>>, vector<8x128xf32>,
    return
  }
  func.func @transform_0(%arg0: i32) -> (i32, i32) {
    %c0_i32 = arith.constant 0 : i32
    %c0_i32_0 = arith.constant 0 : i32
    return %arg0, %c0_i32 : i32, i32
  }
  func.func @transform_1(%arg0: i32) -> (i32, i32) {
    %c0_i32 = arith.constant 0 : i32
    %c0_i32_0 = arith.constant 0 : i32
    %c0_i32_1 = arith.constant 0 : i32
    return %c0_i32, %c0_i32_0 : i32, i32
  }
  func.func @transform_2(%arg0: i32) -> (i32, i32) {
    %c0_i32 = arith.constant 0 : i32
    %c0_i32_0 = arith.constant 0 : i32
    %c0_i32_1 = arith.constant 0 : i32
    return %c0_i32, %c0_i32_0 : i32, i32
  }
  func.func @transform_3(%arg0: i32) -> (i32, i32) {
    %c0_i32 = arith.constant 0 : i32
    %c0_i32_0 = arith.constant 0 : i32
    %c0_i32_1 = arith.constant 0 : i32
    return %c0_i32, %c0_i32_0 : i32, i32
  }
  func.func @transform_4(%arg0: i32) -> (i32, i32) {
    %c0_i32 = arith.constant 0 : i32
    %c0_i32_0 = arith.constant 0 : i32
    %c0_i32_1 = arith.constant 0 : i32
    return %c0_i32, %c0_i32_0 : i32, i32
  }
  func.func @transform_5(%arg0: i32) -> (i32, i32) {
    %c0_i32 = arith.constant 0 : i32
    %c0_i32_0 = arith.constant 0 : i32
    return %arg0, %c0_i32 : i32, i32
  }
}

</mosaic_0001>

<llo_original>
// kernel: cnn_forward.4
$region0: #{cnn_forward.4}
  #allocation0 [shape = 'u32[]', space=smem, size = 0x4, offset = 0x4, fixed_abs, tag = 'smem constant byte address 0x4 - core index']
  #allocation1 [shape = 'u32[144,128]{1,0:T(1,128)}', space=vmem, size = 0x12000, scoped, tag = 'internal scratch']
  %s0 = inlined_call_operand.vmem [shape: bf16[1536,128], index: 0, kind: input, shape index: {}]
  %s1 = inlined_call_operand.hbm [shape: bf16[128,128], index: 1, kind: input, shape index: {}]
  %s2 = inlined_call_operand.hbm [shape: f32[1,128], index: 2, kind: input, shape index: {}]
  %s3 = inlined_call_operand.vmem [shape: bf16[1536,128], index: 3, kind: output, shape index: {}]
  %s4 = sld [smem:[#allocation0]]
  $region53: #{cnn_forward.4} parent=0
    _
  %s6 = ssub.s32 1, %s4
  %s7 = scalar_select 0, %s6, %s4
  $region1: #{cnn_forward.4} parent=0
    #allocation2 [shape = 'u8[32768]{0}', space=vmem, size = 0x8000, scoped, tag = 'input window, operand 1, single buffered']
    #allocation3 [shape = 's32[2]{0}', space=sflag, size = 0x8, scoped, tag = 'scoped memory for cnn_forward.4']
    #allocation4 [shape = 'u8[512]{0}', space=vmem, size = 0x400, scoped, tag = 'input window, operand 2, single buffered']
    #allocation5 [shape = 's32[1]{0}', space=sflag, size = 0x4, scoped, tag = 'scoped memory for cnn_forward.4']
    %8 = vsyncpa [#allocation3], 0
    %9 = vsyncpa [#allocation5], 0
    loop: start=0, step=1, limit=5
    $region2: #{cnn_forward.4} parent=1 // loop_pre_header
      _
    $region3: #{cnn_forward.4} parent=1 // loop_header
      %s11 = sphi 0, %s15
      %p12 = scmp.ge.s32.totalorder %s11, 5
      %s21 = sphi 0, %s23
      %s24 = sphi 0, %s21
      %s25 = sphi 0, %s24
      %s41 = sphi 0, %s25
      %s45 = sphi 0, %s45
      %s47 = sphi 0, %s45
      %s48 = sphi 0, %s47
      %s62 = sphi 0, %s48
      %s66 = sphi 0, %s66
      %s68 = sphi 0, %s66
      %s69 = sphi 0, %s68
      %s83 = sphi 0, %s69
      %s89 = sphi 0, %s91
      %s92 = sphi 0, %s89
      %s93 = sphi 0, %s92
      %s109 = sphi 0, %s93
    $region4: #{cnn_forward.4} parent=1 // loop_header_branch
      %14 = sbr.rel (%p12) target = $region8
    $region5: #{cnn_forward.4} parent=1 // loop_body
      %s16 = ssub.s32 %s11, 1
      %s17 = ssub.s32 %s11, 2
      %s18 = sadd.s32 %s11, 1
      %s19 = ssub.s32 %s11, %s18
      %p20 = scmp.eq.s32.totalorder %s19, 0
      %s22 = sadd.s32 %s21, 1
      %s23 = scalar_select %p20, %s21, %s22
      %p26 = pneg %p20
      %p27 = scmp.eq.s32.totalorder %s11, 2
      %p28 = por %p26, %p27
      %p29 = scmp.ne.s32.totalorder %s21, %s24
      %p30 = scmp.eq.s32.totalorder %s11, 0
      %p31 = por %p29, %p30
      %p32 = scmp.ne.s32.totalorder %s21, %s24
      %p33 = scmp.eq.s32.totalorder %s16, 2
      %p34 = por %p32, %p33
      %p35 = scmp.ne.s32.totalorder %s24, %s25
      %p36 = scmp.eq.s32.totalorder %s16, 0
      %p37 = por %p35, %p36
      %p38 = scmp.ne.s32.totalorder %s24, %s25
      %p39 = scmp.eq.s32.totalorder %s17, 2
      %p40 = por %p38, %p39
      %p42 = scmp.ne.s32.totalorder %s25, %s41
      %p43 = scmp.eq.s32.totalorder %s17, 0
      %p44 = por %p42, %p43
      %s46 = sadd.s32 %s45, 1
      %p49 = scmp.eq.s32.totalorder %s11, 2
      %p50 = scmp.ne.s32.totalorder %s45, %s47
      %p51 = scmp.eq.s32.totalorder %s11, 0
      %p52 = por %p50, %p51
      %p53 = scmp.ne.s32.totalorder %s45, %s47
      %p54 = scmp.eq.s32.totalorder %s16, 2
      %p55 = por %p53, %p54
      %p56 = scmp.ne.s32.totalorder %s47, %s48
      %p57 = scmp.eq.s32.totalorder %s16, 0
      %p58 = por %p56, %p57
      %p59 = scmp.ne.s32.totalorder %s47, %s48
      %p60 = scmp.eq.s32.totalorder %s17, 2
      %p61 = por %p59, %p60
      %p63 = scmp.ne.s32.totalorder %s48, %s62
      %p64 = scmp.eq.s32.totalorder %s17, 0
      %p65 = por %p63, %p64
      %s67 = sadd.s32 %s66, 1
      %p70 = scmp.eq.s32.totalorder %s11, 2
      %p71 = scmp.ne.s32.totalorder %s66, %s68
      %p72 = scmp.eq.s32.totalorder %s11, 0
      %p73 = por %p71, %p72
      %p74 = scmp.ne.s32.totalorder %s66, %s68
      %p75 = scmp.eq.s32.totalorder %s16, 2
      %p76 = por %p74, %p75
      %p77 = scmp.ne.s32.totalorder %s68, %s69
      %p78 = scmp.eq.s32.totalorder %s16, 0
      %p79 = por %p77, %p78
      %p80 = scmp.ne.s32.totalorder %s68, %s69
      %p81 = scmp.eq.s32.totalorder %s17, 2
      %p82 = por %p80, %p81
      %p84 = scmp.ne.s32.totalorder %s69, %s83
      %p85 = scmp.eq.s32.totalorder %s17, 0
      %p86 = por %p84, %p85
      %s87 = ssub.s32 %s11, %s18
      %p88 = scmp.eq.s32.totalorder %s87, 0
      %s90 = sadd.s32 %s89, 1
      %s91 = scalar_select %p88, %s89, %s90
      %p94 = pneg %p88
      %p95 = scmp.eq.s32.totalorder %s11, 2
      %p96 = por %p94, %p95
      %p97 = scmp.ne.s32.totalorder %s89, %s92
      %p98 = scmp.eq.s32.totalorder %s11, 0
      %p99 = por %p97, %p98
      %p100 = scmp.ne.s32.totalorder %s89, %s92
      %p101 = scmp.eq.s32.totalorder %s16, 2
      %p102 = por %p100, %p101
      %p103 = scmp.ne.s32.totalorder %s92, %s93
      %p104 = scmp.eq.s32.totalorder %s16, 0
      %p105 = por %p103, %p104
      %p106 = scmp.ne.s32.totalorder %s92, %s93
      %p107 = scmp.eq.s32.totalorder %s17, 2
      %p108 = por %p106, %p107
      %p110 = scmp.ne.s32.totalorder %s93, %s109
      %p111 = scmp.eq.s32.totalorder %s17, 0
      %p112 = por %p110, %p111
      %p113 = scmp.le.s32.totalorder 1, %s11
      %p114 = scmp.lt.s32.totalorder %s11, 4
      %p115 = pnand %p113, %p114
      %p116 = pneg %p115
      // Predicated region
      $region9: #{cnn_forward.4} parent=5 // pred_check
        _
      $region10: #{cnn_forward.4} parent=5 // pred_check_branch
        %118 = sbr.rel (%p115) target = $region12
      $region11: #{cnn_forward.4} parent=5 // pred_region
        %s119 = ssub.s32 %s11, 1
        // Predicated region
        $region13: #{cnn_forward.4} parent=11 // pred_check
          %p120 = pneg %p58
        $region14: #{cnn_forward.4} parent=11 // pred_check_branch
          %122 = sbr.rel (%p120) target = $region16
        $region15: #{cnn_forward.4} parent=11 // pred_region
          %s124 = ssub.s32 1024, 1024
          %125 = vsyncadd [#allocation3], %s124
          %s126 = sshll.u32 [#allocation2], 4
          %s127 = int_to_ptr.vmem [resolvable:$true] %s126
          %132 = dma.hbm_to_vmem [thread:$0]  %s1, 1024, %s127, [#allocation3], 64, 64, 4
        $region16: #{cnn_forward.4} parent=11 // pred_fallthru
          _
        // Predicated region
        $region17: #{cnn_forward.4} parent=11 // pred_check
          %p133 = pneg %p79
        $region18: #{cnn_forward.4} parent=11 // pred_check_branch
          %135 = sbr.rel (%p133) target = $region20
        $region19: #{cnn_forward.4} parent=11 // pred_region
          %s137 = ssub.s32 16, 16
          %138 = vsyncadd [#allocation5], %s137
          %s140 = sshll.u32 [#allocation4], 4
          %s141 = int_to_ptr.vmem [resolvable:$true] %s140
          %143 = dma.hbm_to_vmem [thread:$0]  %s2, 16, %s141, [#allocation5]
        $region20: #{cnn_forward.4} parent=11 // pred_fallthru
          _
      $region12: #{cnn_forward.4} parent=5 // pred_fallthru
        _
      %p144 = scmp.lt.s32.totalorder %s11, 3
      // Predicated region
      $region21: #{cnn_forward.4} parent=5 // pred_check
        %p145 = pneg %p144
      $region22: #{cnn_forward.4} parent=5 // pred_check_branch
        %147 = sbr.rel (%p145) target = $region24
      $region23: #{cnn_forward.4} parent=5 // pred_region
        // Predicated region
        $region25: #{cnn_forward.4} parent=23 // pred_check
          %p148 = pneg %p31
        $region26: #{cnn_forward.4} parent=23 // pred_check_branch
          %150 = sbr.rel (%p148) target = $region28
        $region27: #{cnn_forward.4} parent=23 // pred_region
          %s151 = smul.u32 64, %s11
          %p152 = scmp.lt.s32.totalorder %s151, 191
          %s153 = scalar_select %p152, %s151, 191
          %s154 = smul.addr %s153, 4
          %s155 = scalar_lea.vmem %s0, %s154
          %s156 = smul.u32 64, %s11
        $region28: #{cnn_forward.4} parent=23 // pred_fallthru
          _
      $region24: #{cnn_forward.4} parent=5 // pred_fallthru
        _
      %p157 = scmp.le.s32.totalorder 1, %s11
      %p158 = scmp.lt.s32.totalorder %s11, 4
      %p159 = pnand %p157, %p158
      %p160 = pneg %p159
      // Predicated region
      $region29: #{cnn_forward.4} parent=5 // pred_check
        _
      $region30: #{cnn_forward.4} parent=5 // pred_check_branch
        %162 = sbr.rel (%p159) target = $region32
      $region31: #{cnn_forward.4} parent=5 // pred_region
        %s163 = ssub.s32 %s11, 1
        // Predicated region
        $region33: #{cnn_forward.4} parent=31 // pred_check
          %p164 = pneg %p58
        $region34: #{cnn_forward.4} parent=31 // pred_check_branch
          %166 = sbr.rel (%p164) target = $region36
        $region35: #{cnn_forward.4} parent=31 // pred_region
          %167 = dma.done [#allocation3], 1024
        $region36: #{cnn_forward.4} parent=31 // pred_fallthru
          _
        // Predicated region
        $region37: #{cnn_forward.4} parent=31 // pred_check
          %p168 = pneg %p79
        $region38: #{cnn_forward.4} parent=31 // pred_check_branch
          %170 = sbr.rel (%p168) target = $region40
        $region39: #{cnn_forward.4} parent=31 // pred_region
          %171 = dma.done [#allocation5], 16
        $region40: #{cnn_forward.4} parent=31 // pred_fallthru
          _
        %s172 = smul.u32 64, %s16
        %p173 = scmp.lt.s32.totalorder %s172, 191
        %s174 = scalar_select %p173, %s172, 191
        %s175 = smul.addr %s174, 4
        %s176 = scalar_lea.vmem %s0, %s175
        %p177 = pneg %p37
        %p178 = pneg %p34
        %p179 = pneg %p58
        %p180 = pneg %p55
        %p181 = pneg %p79
        %p182 = pneg %p76
        %p183 = pneg %p105
        %p184 = pneg %p102
        %s185 = smul.u32 64, %s16
        %p186 = scmp.lt.s32.totalorder %s185, 191
        %s187 = scalar_select %p186, %s185, 191
        %s188 = smul.addr %s187, 4
        %s189 = scalar_lea.vmem %s3, %s188
        %s190 = smul.u32 64, %s16
        %p191 = scmp.lt.s32.totalorder %s190, 191
        %s192 = scalar_select %p191, %s190, 191
        %s193 = smul.addr %s192, 4
        %s194 = scalar_lea.vmem %s0, %s193
        %s195 = smul.u32 64, %s16
        %s196 = smul.u32 64, %s16
        %p197 = scmp.lt.s32.totalorder %s196, 191
        %s198 = scalar_select %p197, %s196, 191
        %s199 = smul.addr %s198, 4
        %s200 = scalar_lea.vmem %s3, %s199
        %s201 = smul.u32 64, %s16
        %v203 = vld [vmem:[%s194] sm:$0xf]
        %v204 = vld [vmem:[%s194 + $0x4] sm:$0xf]
        %v205 = vld [vmem:[%s194 + $0x8] sm:$0xf]
        %v206 = vld [vmem:[%s194 + $0xc] sm:$0xf]
        %v207 = vld [vmem:[%s194 + $0x10] sm:$0xf]
        %v208 = vld [vmem:[%s194 + $0x14] sm:$0xf]
        %v209 = vld [vmem:[%s194 + $0x18] sm:$0xf]
        %v210 = vld [vmem:[%s194 + $0x1c] sm:$0xf]
        %v211 = vld [vmem:[%s194 + $0x20] sm:$0xf]
        %v212 = vld [vmem:[%s194 + $0x24] sm:$0xf]
        %v213 = vld [vmem:[%s194 + $0x28] sm:$0xf]
        %v214 = vld [vmem:[%s194 + $0x2c] sm:$0xf]
        %v215 = vld [vmem:[%s194 + $0x30] sm:$0xf]
        %v216 = vld [vmem:[%s194 + $0x34] sm:$0xf]
        %v217 = vld [vmem:[%s194 + $0x38] sm:$0xf]
        %v218 = vld [vmem:[%s194 + $0x3c] sm:$0xf]
        %v219 = vld [vmem:[%s194 + $0x40] sm:$0xf]
        %v220 = vld [vmem:[%s194 + $0x44] sm:$0xf]
        %v221 = vld [vmem:[%s194 + $0x48] sm:$0xf]
        %v222 = vld [vmem:[%s194 + $0x4c] sm:$0xf]
        %v223 = vld [vmem:[%s194 + $0x50] sm:$0xf]
        %v224 = vld [vmem:[%s194 + $0x54] sm:$0xf]
        %v225 = vld [vmem:[%s194 + $0x58] sm:$0xf]
        %v226 = vld [vmem:[%s194 + $0x5c] sm:$0xf]
        %v227 = vld [vmem:[%s194 + $0x60] sm:$0xf]
        %v228 = vld [vmem:[%s194 + $0x64] sm:$0xf]
        %v229 = vld [vmem:[%s194 + $0x68] sm:$0xf]
        %v230 = vld [vmem:[%s194 + $0x6c] sm:$0xf]
        %v231 = vld [vmem:[%s194 + $0x70] sm:$0xf]
        %v232 = vld [vmem:[%s194 + $0x74] sm:$0xf]
        %v233 = vld [vmem:[%s194 + $0x78] sm:$0xf]
        %v234 = vld [vmem:[%s194 + $0x7c] sm:$0xf]
        %v235 = vld [vmem:[%s194 + $0x80] sm:$0xf]
        %v236 = vld [vmem:[%s194 + $0x84] sm:$0xf]
        %v237 = vld [vmem:[%s194 + $0x88] sm:$0xf]
        %v238 = vld [vmem:[%s194 + $0x8c] sm:$0xf]
        %v239 = vld [vmem:[%s194 + $0x90] sm:$0xf]
        %v240 = vld [vmem:[%s194 + $0x94] sm:$0xf]
        %v241 = vld [vmem:[%s194 + $0x98] sm:$0xf]
        %v242 = vld [vmem:[%s194 + $0x9c] sm:$0xf]
        %v243 = vld [vmem:[%s194 + $0xa0] sm:$0xf]
        %v244 = vld [vmem:[%s194 + $0xa4] sm:$0xf]
        %v245 = vld [vmem:[%s194 + $0xa8] sm:$0xf]
        %v246 = vld [vmem:[%s194 + $0xac] sm:$0xf]
        %v247 = vld [vmem:[%s194 + $0xb0] sm:$0xf]
        %v248 = vld [vmem:[%s194 + $0xb4] sm:$0xf]
        %v249 = vld [vmem:[%s194 + $0xb8] sm:$0xf]
        %v250 = vld [vmem:[%s194 + $0xbc] sm:$0xf]
        %v251 = vld [vmem:[%s194 + $0xc0] sm:$0xf]
        %v252 = vld [vmem:[%s194 + $0xc4] sm:$0xf]
        %v253 = vld [vmem:[%s194 + $0xc8] sm:$0xf]
        %v254 = vld [vmem:[%s194 + $0xcc] sm:$0xf]
        %v255 = vld [vmem:[%s194 + $0xd0] sm:$0xf]
        %v256 = vld [vmem:[%s194 + $0xd4] sm:$0xf]
        %v257 = vld [vmem:[%s194 + $0xd8] sm:$0xf]
        %v258 = vld [vmem:[%s194 + $0xdc] sm:$0xf]
        %v259 = vld [vmem:[%s194 + $0xe0] sm:$0xf]
        %v260 = vld [vmem:[%s194 + $0xe4] sm:$0xf]
        %v261 = vld [vmem:[%s194 + $0xe8] sm:$0xf]
        %v262 = vld [vmem:[%s194 + $0xec] sm:$0xf]
        %v263 = vld [vmem:[%s194 + $0xf0] sm:$0xf]
        %v264 = vld [vmem:[%s194 + $0xf4] sm:$0xf]
        %v265 = vld [vmem:[%s194 + $0xf8] sm:$0xf]
        %v266 = vld [vmem:[%s194 + $0xfc] sm:$0xf]
        %v267 = vld [vmem:[#allocation2] sm:$0xf]
        %v268 = vld [vmem:[#allocation2 + $0x4] sm:$0xf]
        %v269 = vld [vmem:[#allocation2 + $0x8] sm:$0xf]
        %v270 = vld [vmem:[#allocation2 + $0xc] sm:$0xf]
        %v271 = vld [vmem:[#allocation2 + $0x10] sm:$0xf]
        %v272 = vld [vmem:[#allocation2 + $0x14] sm:$0xf]
        %v273 = vld [vmem:[#allocation2 + $0x18] sm:$0xf]
        %v274 = vld [vmem:[#allocation2 + $0x1c] sm:$0xf]
        %v275 = vld [vmem:[#allocation2 + $0x20] sm:$0xf]
        %v276 = vld [vmem:[#allocation2 + $0x24] sm:$0xf]
        %v277 = vld [vmem:[#allocation2 + $0x28] sm:$0xf]
        %v278 = vld [vmem:[#allocation2 + $0x2c] sm:$0xf]
        %v279 = vld [vmem:[#allocation2 + $0x30] sm:$0xf]
        %v280 = vld [vmem:[#allocation2 + $0x34] sm:$0xf]
        %v281 = vld [vmem:[#allocation2 + $0x38] sm:$0xf]
        %v282 = vld [vmem:[#allocation2 + $0x3c] sm:$0xf]
        %v283 = vld [vmem:[#allocation4] sm:$0x1]
        %v285 = vlaneseq
        %v286 = vshrl.u32 %v285, 7
        %v287 = vsub.s32 0, %v286
        %v288 = vrot.slane %v283, %v287
        %v354 = vunpack.c.l.b16 %v203
        %v355 = vunpack.c.l.b16 %v204
        %v356 = vunpack.c.l.b16 %v205
        %v357 = vunpack.c.l.b16 %v206
        %v358 = vunpack.c.l.b16 %v207
        %v359 = vunpack.c.l.b16 %v208
        %v360 = vunpack.c.l.b16 %v209
        %v361 = vunpack.c.l.b16 %v210
        %v362 = vunpack.c.l.b16 %v211
        %v363 = vunpack.c.l.b16 %v212
        %v364 = vunpack.c.l.b16 %v213
        %v365 = vunpack.c.l.b16 %v214
        %v366 = vunpack.c.l.b16 %v215
        %v367 = vunpack.c.l.b16 %v216
        %v368 = vunpack.c.l.b16 %v217
        %v369 = vunpack.c.l.b16 %v218
        %v370 = vunpack.c.l.b16 %v219
        %v371 = vunpack.c.l.b16 %v220
        %v372 = vunpack.c.l.b16 %v221
        %v373 = vunpack.c.l.b16 %v222
        %v374 = vunpack.c.l.b16 %v223
        %v375 = vunpack.c.l.b16 %v224
        %v376 = vunpack.c.l.b16 %v225
        %v377 = vunpack.c.l.b16 %v226
        %v378 = vunpack.c.l.b16 %v227
        %v379 = vunpack.c.l.b16 %v228
        %v380 = vunpack.c.l.b16 %v229
        %v381 = vunpack.c.l.b16 %v230
        %v382 = vunpack.c.l.b16 %v231
        %v383 = vunpack.c.l.b16 %v232
        %v384 = vunpack.c.l.b16 %v233
        %v385 = vunpack.c.l.b16 %v234
        %v386 = vunpack.c.l.b16 %v235
        %v387 = vunpack.c.l.b16 %v236
        %v388 = vunpack.c.l.b16 %v237
        %v389 = vunpack.c.l.b16 %v238
        %v390 = vunpack.c.l.b16 %v239
        %v391 = vunpack.c.l.b16 %v240
        %v392 = vunpack.c.l.b16 %v241
        %v393 = vunpack.c.l.b16 %v242
        %v394 = vunpack.c.l.b16 %v243
        %v395 = vunpack.c.l.b16 %v244
        %v396 = vunpack.c.l.b16 %v245
        %v397 = vunpack.c.l.b16 %v246
        %v398 = vunpack.c.l.b16 %v247
        %v399 = vunpack.c.l.b16 %v248
        %v400 = vunpack.c.l.b16 %v249
        %v401 = vunpack.c.l.b16 %v250
        %v402 = vunpack.c.l.b16 %v251
        %v403 = vunpack.c.l.b16 %v252
        %v404 = vunpack.c.l.b16 %v253
        %v405 = vunpack.c.l.b16 %v254
        %v406 = vunpack.c.l.b16 %v255
        %v407 = vunpack.c.l.b16 %v256
        %v408 = vunpack.c.l.b16 %v257
        %v409 = vunpack.c.l.b16 %v258
        %v410 = vunpack.c.l.b16 %v259
        %v411 = vunpack.c.l.b16 %v260
        %v412 = vunpack.c.l.b16 %v261
        %v413 = vunpack.c.l.b16 %v262
        %v414 = vunpack.c.l.b16 %v263
        %v415 = vunpack.c.l.b16 %v264
        %v416 = vunpack.c.l.b16 %v265
        %v417 = vunpack.c.l.b16 %v266
        %v418 = vpack.c.b16 %v355, %v354
        %v419 = vpack.c.b16 %v357, %v356
        %v420 = vpack.c.b16 %v359, %v358
        %v421 = vpack.c.b16 %v361, %v360
        %v422 = vpack.c.b16 %v363, %v362
        %v423 = vpack.c.b16 %v365, %v364
        %v424 = vpack.c.b16 %v367, %v366
        %v425 = vpack.c.b16 %v369, %v368
        %v426 = vpack.c.b16 %v371, %v370
        %v427 = vpack.c.b16 %v373, %v372
        %v428 = vpack.c.b16 %v375, %v374
        %v429 = vpack.c.b16 %v377, %v376
        %v430 = vpack.c.b16 %v379, %v378
        %v431 = vpack.c.b16 %v381, %v380
        %v432 = vpack.c.b16 %v383, %v382
        %v433 = vpack.c.b16 %v385, %v384
        %v434 = vpack.c.b16 %v387, %v386
        %v435 = vpack.c.b16 %v389, %v388
        %v436 = vpack.c.b16 %v391, %v390
        %v437 = vpack.c.b16 %v393, %v392
        %v438 = vpack.c.b16 %v395, %v394
        %v439 = vpack.c.b16 %v397, %v396
        %v440 = vpack.c.b16 %v399, %v398
        %v441 = vpack.c.b16 %v401, %v400
        %v442 = vpack.c.b16 %v403, %v402
        %v443 = vpack.c.b16 %v405, %v404
        %v444 = vpack.c.b16 %v407, %v406
        %v445 = vpack.c.b16 %v409, %v408
        %v446 = vpack.c.b16 %v411, %v410
        %v447 = vpack.c.b16 %v413, %v412
        %v448 = vpack.c.b16 %v415, %v414
        %v449 = vpack.c.b16 %v417, %v416
        %v498 = vunpack.c.l.b16 %v267
        %v499 = vunpack.c.l.b16 %v268
        %v500 = vunpack.c.l.b16 %v269
        %v501 = vunpack.c.l.b16 %v270
        %v502 = vunpack.c.l.b16 %v271
        %v503 = vunpack.c.l.b16 %v272
        %v504 = vunpack.c.l.b16 %v273
        %v505 = vunpack.c.l.b16 %v274
        %v506 = vunpack.c.l.b16 %v275
        %v507 = vunpack.c.l.b16 %v276
        %v508 = vunpack.c.l.b16 %v277
        %v509 = vunpack.c.l.b16 %v278
        %v510 = vunpack.c.l.b16 %v279
        %v511 = vunpack.c.l.b16 %v280
        %v512 = vunpack.c.l.b16 %v281
        %v513 = vunpack.c.l.b16 %v282
        %v514 = vpack.c.b16 %v499, %v498
        %v515 = vpack.c.b16 %v501, %v500
        %v516 = vpack.c.b16 %v503, %v502
        %v517 = vpack.c.b16 %v505, %v504
        %v518 = vpack.c.b16 %v507, %v506
        %v519 = vpack.c.b16 %v509, %v508
        %v520 = vpack.c.b16 %v511, %v510
        %v521 = vpack.c.b16 %v513, %v512
        %530 = vmatprep.subr.bf16.mxu0 0
        %531 = vmatpush1.bf16.msra.mxu0 %v514
        %532 = vmatprep.subr.bf16.mxu0 0
        %533 = vmatpush1.bf16.msra.mxu0 %v515
        %534 = vmatprep.subr.bf16.mxu0 0
        %535 = vmatpush1.bf16.msra.mxu0 %v516
        %536 = vmatprep.subr.bf16.mxu0 0
        %537 = vmatpush1.bf16.msra.mxu0 %v517
        %538 = vmatprep.subr.bf16.mxu0 0
        %539 = vmatpush1.bf16.msra.mxu0 %v518
        %540 = vmatprep.subr.bf16.mxu0 0
        %541 = vmatpush1.bf16.msra.mxu0 %v519
        %542 = vmatprep.subr.bf16.mxu0 0
        %543 = vmatpush1.bf16.msra.mxu0 %v520
        %544 = vmatprep.subr.bf16.mxu0 0
        %545 = vmatpush1.bf16.msra.mxu0 %v521
        %546 = vmatprep.subr.bf16.mxu0 0
        %547 = vmatpush1.bf16.msra.mxu0 0
        %548 = vmatprep.subr.bf16.mxu0 0
        %549 = vmatpush1.bf16.msra.mxu0 0
        %550 = vmatprep.subr.bf16.mxu0 0
        %551 = vmatpush1.bf16.msra.mxu0 0
        %552 = vmatprep.subr.bf16.mxu0 0
        %553 = vmatpush1.bf16.msra.mxu0 0
        %554 = vmatprep.subr.bf16.mxu0 0
        %555 = vmatpush1.bf16.msra.mxu0 0
        %556 = vmatprep.subr.bf16.mxu0 0
        %557 = vmatpush1.bf16.msra.mxu0 0
        %558 = vmatprep.subr.bf16.mxu0 0
        %559 = vmatpush1.bf16.msra.mxu0 0
        %560 = vmatprep.subr.bf16.mxu0 0
        %561 = vmatpush1.bf16.msra.mxu0 0
        %562 = vmatprep.mubr.bf16.mxu0 0
        %563 = vmatmul.mubr.bf16.gmra.mrb[0].mxu0 %v418
        %v564 = vpop.f32.mrb[0].mxu0
        %v565 = vadd.f32 %v288, %v564
        %v566 = vpop.f32.mrb[0].mxu0
        %v567 = vpop.f32.mrb[0].mxu0
        %v568 = vadd.f32 %v288, %v567
        %v569 = vpop.f32.mrb[0].mxu0
        %570 = vmatprep.mubr.bf16.mxu0 0
        %571 = vmatmul.mubr.bf16.gmra.mrb[0].mxu0 %v419
        %v572 = vpop.f32.mrb[0].mxu0
        %v573 = vadd.f32 %v288, %v572
        %v574 = vpop.f32.mrb[0].mxu0
        %v575 = vpop.f32.mrb[0].mxu0
        %v576 = vadd.f32 %v288, %v575
        %v577 = vpop.f32.mrb[0].mxu0
        %578 = vmatprep.mubr.bf16.mxu0 0
        %579 = vmatmul.mubr.bf16.gmra.mrb[0].mxu0 %v420
        %v580 = vpop.f32.mrb[0].mxu0
        %v581 = vadd.f32 %v288, %v580
        %v582 = vpop.f32.mrb[0].mxu0
        %v583 = vpop.f32.mrb[0].mxu0
        %v584 = vadd.f32 %v288, %v583
        %v585 = vpop.f32.mrb[0].mxu0
        %586 = vmatprep.mubr.bf16.mxu0 0
        %587 = vmatmul.mubr.bf16.gmra.mrb[0].mxu0 %v421
        %v588 = vpop.f32.mrb[0].mxu0
        %v589 = vadd.f32 %v288, %v588
        %v590 = vpop.f32.mrb[0].mxu0
        %v591 = vpop.f32.mrb[0].mxu0
        %v592 = vadd.f32 %v288, %v591
        %v593 = vpop.f32.mrb[0].mxu0
        %594 = vmatprep.mubr.bf16.mxu0 0
        %595 = vmatmul.mubr.bf16.gmra.mrb[0].mxu0 %v422
        %v596 = vpop.f32.mrb[0].mxu0
        %v597 = vadd.f32 %v288, %v596
        %v598 = vpop.f32.mrb[0].mxu0
        %v599 = vpop.f32.mrb[0].mxu0
        %v600 = vadd.f32 %v288, %v599
        %v601 = vpop.f32.mrb[0].mxu0
        %602 = vmatprep.mubr.bf16.mxu0 0
        %603 = vmatmul.mubr.bf16.gmra.mrb[0].mxu0 %v423
        %v604 = vpop.f32.mrb[0].mxu0
        %v605 = vadd.f32 %v288, %v604
        %v606 = vpop.f32.mrb[0].mxu0
        %v607 = vpop.f32.mrb[0].mxu0
        %v608 = vadd.f32 %v288, %v607
        %v609 = vpop.f32.mrb[0].mxu0
        %610 = vmatprep.mubr.bf16.mxu0 0
        %611 = vmatmul.mubr.bf16.gmra.mrb[0].mxu0 %v424
        %v612 = vpop.f32.mrb[0].mxu0
        %v613 = vadd.f32 %v288, %v612
        %v614 = vpop.f32.mrb[0].mxu0
        %v615 = vpop.f32.mrb[0].mxu0
        %v616 = vadd.f32 %v288, %v615
        %v617 = vpop.f32.mrb[0].mxu0
        %618 = vmatprep.mubr.bf16.mxu0 0
        %619 = vmatmul.mubr.bf16.gmra.mrb[0].mxu0 %v425
        %v620 = vpop.f32.mrb[0].mxu0
        %v621 = vadd.f32 %v288, %v620
        %v622 = vpop.f32.mrb[0].mxu0
        %v623 = vpop.f32.mrb[0].mxu0
        %v624 = vadd.f32 %v288, %v623
        %v625 = vpop.f32.mrb[0].mxu0
        %626 = vmatprep.mubr.bf16.mxu0 0
        %627 = vmatmul.mubr.bf16.gmra.mrb[0].mxu0 %v426
        %v628 = vpop.f32.mrb[0].mxu0
        %v629 = vadd.f32 %v288, %v628
        %v630 = vpop.f32.mrb[0].mxu0
        %v631 = vpop.f32.mrb[0].mxu0
        %v632 = vadd.f32 %v288, %v631
        %v633 = vpop.f32.mrb[0].mxu0
        %634 = vmatprep.mubr.bf16.mxu0 0
        %635 = vmatmul.mubr.bf16.gmra.mrb[0].mxu0 %v427
        %v636 = vpop.f32.mrb[0].mxu0
        %v637 = vadd.f32 %v288, %v636
        %v638 = vpop.f32.mrb[0].mxu0
        %v639 = vpop.f32.mrb[0].mxu0
        %v640 = vadd.f32 %v288, %v639
        %v641 = vpop.f32.mrb[0].mxu0
        %642 = vmatprep.mubr.bf16.mxu0 0
        %643 = vmatmul.mubr.bf16.gmra.mrb[0].mxu0 %v428
        %v644 = vpop.f32.mrb[0].mxu0
        %v645 = vadd.f32 %v288, %v644
        %v646 = vpop.f32.mrb[0].mxu0
        %v647 = vpop.f32.mrb[0].mxu0
        %v648 = vadd.f32 %v288, %v647
        %v649 = vpop.f32.mrb[0].mxu0
        %650 = vmatprep.mubr.bf16.mxu0 0
        %651 = vmatmul.mubr.bf16.gmra.mrb[0].mxu0 %v429
        %v652 = vpop.f32.mrb[0].mxu0
        %v653 = vadd.f32 %v288, %v652
        %v654 = vpop.f32.mrb[0].mxu0
        %v655 = vpop.f32.mrb[0].mxu0
        %v656 = vadd.f32 %v288, %v655
        %v657 = vpop.f32.mrb[0].mxu0
        %658 = vmatprep.mubr.bf16.mxu0 0
        %659 = vmatmul.mubr.bf16.gmra.mrb[0].mxu0 %v430
        %v660 = vpop.f32.mrb[0].mxu0
        %v661 = vadd.f32 %v288, %v660
        %v662 = vpop.f32.mrb[0].mxu0
        %v663 = vpop.f32.mrb[0].mxu0
        %v664 = vadd.f32 %v288, %v663
        %v665 = vpop.f32.mrb[0].mxu0
        %666 = vmatprep.mubr.bf16.mxu0 0
        %667 = vmatmul.mubr.bf16.gmra.mrb[0].mxu0 %v431
        %v668 = vpop.f32.mrb[0].mxu0
        %v669 = vadd.f32 %v288, %v668
        %v670 = vpop.f32.mrb[0].mxu0
        %v671 = vpop.f32.mrb[0].mxu0
        %v672 = vadd.f32 %v288, %v671
        %v673 = vpop.f32.mrb[0].mxu0
        %674 = vmatprep.mubr.bf16.mxu0 0
        %675 = vmatmul.mubr.bf16.gmra.mrb[0].mxu0 %v432
        %v676 = vpop.f32.mrb[0].mxu0
        %v677 = vadd.f32 %v288, %v676
        %v678 = vpop.f32.mrb[0].mxu0
        %v679 = vpop.f32.mrb[0].mxu0
        %v680 = vadd.f32 %v288, %v679
        %v681 = vpop.f32.mrb[0].mxu0
        %682 = vmatprep.mubr.bf16.mxu0 0
        %683 = vmatmul.mubr.bf16.gmra.mrb[0].mxu0 %v433
        %v684 = vpop.f32.mrb[0].mxu0
        %v685 = vadd.f32 %v288, %v684
        %v686 = vpop.f32.mrb[0].mxu0
        %v687 = vpop.f32.mrb[0].mxu0
        %v688 = vadd.f32 %v288, %v687
        %v689 = vpop.f32.mrb[0].mxu0
        %690 = vmatprep.mubr.bf16.mxu0 0
        %691 = vmatmul.mubr.bf16.gmra.mrb[0].mxu0 %v434
        %v692 = vpop.f32.mrb[0].mxu0
        %v693 = vadd.f32 %v288, %v692
        %v694 = vpop.f32.mrb[0].mxu0
        %v695 = vpop.f32.mrb[0].mxu0
        %v696 = vadd.f32 %v288, %v695
        %v697 = vpop.f32.mrb[0].mxu0
        %698 = vmatprep.mubr.bf16.mxu0 0
        %699 = vmatmul.mubr.bf16.gmra.mrb[0].mxu0 %v435
        %v700 = vpop.f32.mrb[0].mxu0
        %v701 = vadd.f32 %v288, %v700
        %v702 = vpop.f32.mrb[0].mxu0
        %v703 = vpop.f32.mrb[0].mxu0
        %v704 = vadd.f32 %v288, %v703
        %v705 = vpop.f32.mrb[0].mxu0
        %706 = vmatprep.mubr.bf16.mxu0 0
        %707 = vmatmul.mubr.bf16.gmra.mrb[0].mxu0 %v436
        %v708 = vpop.f32.mrb[0].mxu0
        %v709 = vadd.f32 %v288, %v708
        %v710 = vpop.f32.mrb[0].mxu0
        %v711 = vpop.f32.mrb[0].mxu0
        %v712 = vadd.f32 %v288, %v711
        %v713 = vpop.f32.mrb[0].mxu0
        %714 = vmatprep.mubr.bf16.mxu0 0
        %715 = vmatmul.mubr.bf16.gmra.mrb[0].mxu0 %v437
        %v716 = vpop.f32.mrb[0].mxu0
        %v717 = vadd.f32 %v288, %v716
        %v718 = vpop.f32.mrb[0].mxu0
        %v719 = vpop.f32.mrb[0].mxu0
        %v720 = vadd.f32 %v288, %v719
        %v721 = vpop.f32.mrb[0].mxu0
        %722 = vmatprep.mubr.bf16.mxu0 0
        %723 = vmatmul.mubr.bf16.gmra.mrb[0].mxu0 %v438
        %v724 = vpop.f32.mrb[0].mxu0
        %v725 = vadd.f32 %v288, %v724
        %v726 = vpop.f32.mrb[0].mxu0
        %v727 = vpop.f32.mrb[0].mxu0
        %v728 = vadd.f32 %v288, %v727
        %v729 = vpop.f32.mrb[0].mxu0
        %730 = vmatprep.mubr.bf16.mxu0 0
        %731 = vmatmul.mubr.bf16.gmra.mrb[0].mxu0 %v439
        %v732 = vpop.f32.mrb[0].mxu0
        %v733 = vadd.f32 %v288, %v732
        %v734 = vpop.f32.mrb[0].mxu0
        %v735 = vpop.f32.mrb[0].mxu0
        %v736 = vadd.f32 %v288, %v735
        %v737 = vpop.f32.mrb[0].mxu0
        %738 = vmatprep.mubr.bf16.mxu0 0
        %739 = vmatmul.mubr.bf16.gmra.mrb[0].mxu0 %v440
        %v740 = vpop.f32.mrb[0].mxu0
        %v741 = vadd.f32 %v288, %v740
        %v742 = vpop.f32.mrb[0].mxu0
        %v743 = vpop.f32.mrb[0].mxu0
        %v744 = vadd.f32 %v288, %v743
        %v745 = vpop.f32.mrb[0].mxu0
        %746 = vmatprep.mubr.bf16.mxu0 0
        %747 = vmatmul.mubr.bf16.gmra.mrb[0].mxu0 %v441
        %v748 = vpop.f32.mrb[0].mxu0
        %v749 = vadd.f32 %v288, %v748
        %v750 = vpop.f32.mrb[0].mxu0
        %v751 = vpop.f32.mrb[0].mxu0
        %v752 = vadd.f32 %v288, %v751
        %v753 = vpop.f32.mrb[0].mxu0
        %754 = vmatprep.mubr.bf16.mxu0 0
        %755 = vmatmul.mubr.bf16.gmra.mrb[0].mxu0 %v442
        %v756 = vpop.f32.mrb[0].mxu0
        %v757 = vadd.f32 %v288, %v756
        %v758 = vpop.f32.mrb[0].mxu0
        %v759 = vpop.f32.mrb[0].mxu0
        %v760 = vadd.f32 %v288, %v759
        %v761 = vpop.f32.mrb[0].mxu0
        %762 = vmatprep.mubr.bf16.mxu0 0
        %763 = vmatmul.mubr.bf16.gmra.mrb[0].mxu0 %v443
        %v764 = vpop.f32.mrb[0].mxu0
        %v765 = vadd.f32 %v288, %v764
        %v766 = vpop.f32.mrb[0].mxu0
        %v767 = vpop.f32.mrb[0].mxu0
        %v768 = vadd.f32 %v288, %v767
        %v769 = vpop.f32.mrb[0].mxu0
        %770 = vmatprep.mubr.bf16.mxu0 0
        %771 = vmatmul.mubr.bf16.gmra.mrb[0].mxu0 %v444
        %v772 = vpop.f32.mrb[0].mxu0
        %v773 = vadd.f32 %v288, %v772
        %v774 = vpop.f32.mrb[0].mxu0
        %v775 = vpop.f32.mrb[0].mxu0
        %v776 = vadd.f32 %v288, %v775
        %v777 = vpop.f32.mrb[0].mxu0
        %778 = vmatprep.mubr.bf16.mxu0 0
        %779 = vmatmul.mubr.bf16.gmra.mrb[0].mxu0 %v445
        %v780 = vpop.f32.mrb[0].mxu0
        %v781 = vadd.f32 %v288, %v780
        %v782 = vpop.f32.mrb[0].mxu0
        %v783 = vpop.f32.mrb[0].mxu0
        %v784 = vadd.f32 %v288, %v783
        %v785 = vpop.f32.mrb[0].mxu0
        %786 = vmatprep.mubr.bf16.mxu0 0
        %787 = vmatmul.mubr.bf16.gmra.mrb[0].mxu0 %v446
        %v788 = vpop.f32.mrb[0].mxu0
        %v789 = vadd.f32 %v288, %v788
        %v790 = vpop.f32.mrb[0].mxu0
        %v791 = vpop.f32.mrb[0].mxu0
        %v792 = vadd.f32 %v288, %v791
        %v793 = vpop.f32.mrb[0].mxu0
        %794 = vmatprep.mubr.bf16.mxu0 0
        %795 = vmatmul.mubr.bf16.gmra.mrb[0].mxu0 %v447
        %v796 = vpop.f32.mrb[0].mxu0
        %v797 = vadd.f32 %v288, %v796
        %v798 = vpop.f32.mrb[0].mxu0
        %v799 = vpop.f32.mrb[0].mxu0
        %v800 = vadd.f32 %v288, %v799
        %v801 = vpop.f32.mrb[0].mxu0
        %802 = vmatprep.mubr.bf16.mxu0 0
        %803 = vmatmul.mubr.bf16.gmra.mrb[0].mxu0 %v448
        %v804 = vpop.f32.mrb[0].mxu0
        %v805 = vadd.f32 %v288, %v804
        %v806 = vpop.f32.mrb[0].mxu0
        %v807 = vpop.f32.mrb[0].mxu0
        %v808 = vadd.f32 %v288, %v807
        %v809 = vpop.f32.mrb[0].mxu0
        %810 = vmatprep.mubr.bf16.mxu0 0
        %811 = vmatmul.mubr.bf16.gmra.mrb[0].mxu0 %v449
        %v812 = vpop.f32.mrb[0].mxu0
        %v813 = vadd.f32 %v288, %v812
        %v814 = vpop.f32.mrb[0].mxu0
        %v815 = vpop.f32.mrb[0].mxu0
        %v816 = vadd.f32 %v288, %v815
        %v817 = vpop.f32.mrb[0].mxu0
        %818 = vdwg.mxu0
        %v819 = vmax.f32 %v565, 0.0
        %v820 = vmax.f32 %v568, 0.0
        %v821 = vmax.f32 %v573, 0.0
        %v822 = vmax.f32 %v576, 0.0
        %v823 = vmax.f32 %v581, 0.0
        %v824 = vmax.f32 %v584, 0.0
        %v825 = vmax.f32 %v589, 0.0
        %v826 = vmax.f32 %v592, 0.0
        %v827 = vmax.f32 %v597, 0.0
        %v828 = vmax.f32 %v600, 0.0
        %v829 = vmax.f32 %v605, 0.0
        %v830 = vmax.f32 %v608, 0.0
        %v831 = vmax.f32 %v613, 0.0
        %v832 = vmax.f32 %v616, 0.0
        %v833 = vmax.f32 %v621, 0.0
        %v834 = vmax.f32 %v624, 0.0
        %v835 = vmax.f32 %v629, 0.0
        %v836 = vmax.f32 %v632, 0.0
        %v837 = vmax.f32 %v637, 0.0
        %v838 = vmax.f32 %v640, 0.0
        %v839 = vmax.f32 %v645, 0.0
        %v840 = vmax.f32 %v648, 0.0
        %v841 = vmax.f32 %v653, 0.0
        %v842 = vmax.f32 %v656, 0.0
        %v843 = vmax.f32 %v661, 0.0
        %v844 = vmax.f32 %v664, 0.0
        %v845 = vmax.f32 %v669, 0.0
        %v846 = vmax.f32 %v672, 0.0
        %v847 = vmax.f32 %v677, 0.0
        %v848 = vmax.f32 %v680, 0.0
        %v849 = vmax.f32 %v685, 0.0
        %v850 = vmax.f32 %v688, 0.0
        %v851 = vmax.f32 %v693, 0.0
        %v852 = vmax.f32 %v696, 0.0
        %v853 = vmax.f32 %v701, 0.0
        %v854 = vmax.f32 %v704, 0.0
        %v855 = vmax.f32 %v709, 0.0
        %v856 = vmax.f32 %v712, 0.0
        %v857 = vmax.f32 %v717, 0.0
        %v858 = vmax.f32 %v720, 0.0
        %v859 = vmax.f32 %v725, 0.0
        %v860 = vmax.f32 %v728, 0.0
        %v861 = vmax.f32 %v733, 0.0
        %v862 = vmax.f32 %v736, 0.0
        %v863 = vmax.f32 %v741, 0.0
        %v864 = vmax.f32 %v744, 0.0
        %v865 = vmax.f32 %v749, 0.0
        %v866 = vmax.f32 %v752, 0.0
        %v867 = vmax.f32 %v757, 0.0
        %v868 = vmax.f32 %v760, 0.0
        %v869 = vmax.f32 %v765, 0.0
        %v870 = vmax.f32 %v768, 0.0
        %v871 = vmax.f32 %v773, 0.0
        %v872 = vmax.f32 %v776, 0.0
        %v873 = vmax.f32 %v781, 0.0
        %v874 = vmax.f32 %v784, 0.0
        %v875 = vmax.f32 %v789, 0.0
        %v876 = vmax.f32 %v792, 0.0
        %v877 = vmax.f32 %v797, 0.0
        %v878 = vmax.f32 %v800, 0.0
        %v879 = vmax.f32 %v805, 0.0
        %v880 = vmax.f32 %v808, 0.0
        %v881 = vmax.f32 %v813, 0.0
        %v882 = vmax.f32 %v816, 0.0
        %v883 = vpack.c.bf16 %v820, %v819
        %v884 = vpack.c.bf16 %v822, %v821
        %v885 = vpack.c.bf16 %v824, %v823
        %v886 = vpack.c.bf16 %v826, %v825
        %v887 = vpack.c.bf16 %v828, %v827
        %v888 = vpack.c.bf16 %v830, %v829
        %v889 = vpack.c.bf16 %v832, %v831
        %v890 = vpack.c.bf16 %v834, %v833
        %v891 = vpack.c.bf16 %v836, %v835
        %v892 = vpack.c.bf16 %v838, %v837
        %v893 = vpack.c.bf16 %v840, %v839
        %v894 = vpack.c.bf16 %v842, %v841
        %v895 = vpack.c.bf16 %v844, %v843
        %v896 = vpack.c.bf16 %v846, %v845
        %v897 = vpack.c.bf16 %v848, %v847
        %v898 = vpack.c.bf16 %v850, %v849
        %v899 = vpack.c.bf16 %v852, %v851
        %v900 = vpack.c.bf16 %v854, %v853
        %v901 = vpack.c.bf16 %v856, %v855
        %v902 = vpack.c.bf16 %v858, %v857
        %v903 = vpack.c.bf16 %v860, %v859
        %v904 = vpack.c.bf16 %v862, %v861
        %v905 = vpack.c.bf16 %v864, %v863
        %v906 = vpack.c.bf16 %v866, %v865
        %v907 = vpack.c.bf16 %v868, %v867
        %v908 = vpack.c.bf16 %v870, %v869
        %v909 = vpack.c.bf16 %v872, %v871
        %v910 = vpack.c.bf16 %v874, %v873
        %v911 = vpack.c.bf16 %v876, %v875
        %v912 = vpack.c.bf16 %v878, %v877
        %v913 = vpack.c.bf16 %v880, %v879
        %v914 = vpack.c.bf16 %v882, %v881
        %v947 = vunpack.c.l.b16 %v883
        %v948 = vunpack.c.h.b16 %v883
        %v949 = vunpack.c.l.b16 %v884
        %v950 = vunpack.c.h.b16 %v884
        %v951 = vunpack.c.l.b16 %v885
        %v952 = vunpack.c.h.b16 %v885
        %v953 = vunpack.c.l.b16 %v886
        %v954 = vunpack.c.h.b16 %v886
        %v955 = vunpack.c.l.b16 %v887
        %v956 = vunpack.c.h.b16 %v887
        %v957 = vunpack.c.l.b16 %v888
        %v958 = vunpack.c.h.b16 %v888
        %v959 = vunpack.c.l.b16 %v889
        %v960 = vunpack.c.h.b16 %v889
        %v961 = vunpack.c.l.b16 %v890
        %v962 = vunpack.c.h.b16 %v890
        %v963 = vunpack.c.l.b16 %v891
        %v964 = vunpack.c.h.b16 %v891
        %v965 = vunpack.c.l.b16 %v892
        %v966 = vunpack.c.h.b16 %v892
        %v967 = vunpack.c.l.b16 %v893
        %v968 = vunpack.c.h.b16 %v893
        %v969 = vunpack.c.l.b16 %v894
        %v970 = vunpack.c.h.b16 %v894
        %v971 = vunpack.c.l.b16 %v895
        %v972 = vunpack.c.h.b16 %v895
        %v973 = vunpack.c.l.b16 %v896
        %v974 = vunpack.c.h.b16 %v896
        %v975 = vunpack.c.l.b16 %v897
        %v976 = vunpack.c.h.b16 %v897
        %v977 = vunpack.c.l.b16 %v898
        %v978 = vunpack.c.h.b16 %v898
        %v979 = vunpack.c.l.b16 %v899
        %v980 = vunpack.c.h.b16 %v899
        %v981 = vunpack.c.l.b16 %v900
        %v982 = vunpack.c.h.b16 %v900
        %v983 = vunpack.c.l.b16 %v901
        %v984 = vunpack.c.h.b16 %v901
        %v985 = vunpack.c.l.b16 %v902
        %v986 = vunpack.c.h.b16 %v902
        %v987 = vunpack.c.l.b16 %v903
        %v988 = vunpack.c.h.b16 %v903
        %v989 = vunpack.c.l.b16 %v904
        %v990 = vunpack.c.h.b16 %v904
        %v991 = vunpack.c.l.b16 %v905
        %v992 = vunpack.c.h.b16 %v905
        %v993 = vunpack.c.l.b16 %v906
        %v994 = vunpack.c.h.b16 %v906
        %v995 = vunpack.c.l.b16 %v907
        %v996 = vunpack.c.h.b16 %v907
        %v997 = vunpack.c.l.b16 %v908
        %v998 = vunpack.c.h.b16 %v908
        %v999 = vunpack.c.l.b16 %v909
        %v1000 = vunpack.c.h.b16 %v909
        %v1001 = vunpack.c.l.b16 %v910
        %v1002 = vunpack.c.h.b16 %v910
        %v1003 = vunpack.c.l.b16 %v911
        %v1004 = vunpack.c.h.b16 %v911
        %v1005 = vunpack.c.l.b16 %v912
        %v1006 = vunpack.c.h.b16 %v912
        %v1007 = vunpack.c.l.b16 %v913
        %v1008 = vunpack.c.h.b16 %v913
        %v1009 = vunpack.c.l.b16 %v914
        %v1010 = vunpack.c.h.b16 %v914
        %v1011 = vpack.c.b16 %v947, %v947
        %v1012 = vpack.c.b16 %v948, %v948
        %v1013 = vpack.c.b16 %v949, %v949
        %v1014 = vpack.c.b16 %v950, %v950
        %v1015 = vpack.c.b16 %v951, %v951
        %v1016 = vpack.c.b16 %v952, %v952
        %v1017 = vpack.c.b16 %v953, %v953
        %v1018 = vpack.c.b16 %v954, %v954
        %v1019 = vpack.c.b16 %v955, %v955
        %v1020 = vpack.c.b16 %v956, %v956
        %v1021 = vpack.c.b16 %v957, %v957
        %v1022 = vpack.c.b16 %v958, %v958
        %v1023 = vpack.c.b16 %v959, %v959
        %v1024 = vpack.c.b16 %v960, %v960
        %v1025 = vpack.c.b16 %v961, %v961
        %v1026 = vpack.c.b16 %v962, %v962
        %v1027 = vpack.c.b16 %v963, %v963
        %v1028 = vpack.c.b16 %v964, %v964
        %v1029 = vpack.c.b16 %v965, %v965
        %v1030 = vpack.c.b16 %v966, %v966
        %v1031 = vpack.c.b16 %v967, %v967
        %v1032 = vpack.c.b16 %v968, %v968
        %v1033 = vpack.c.b16 %v969, %v969
        %v1034 = vpack.c.b16 %v970, %v970
        %v1035 = vpack.c.b16 %v971, %v971
        %v1036 = vpack.c.b16 %v972, %v972
        %v1037 = vpack.c.b16 %v973, %v973
        %v1038 = vpack.c.b16 %v974, %v974
        %v1039 = vpack.c.b16 %v975, %v975
        %v1040 = vpack.c.b16 %v976, %v976
        %v1041 = vpack.c.b16 %v977, %v977
        %v1042 = vpack.c.b16 %v978, %v978
        %v1043 = vpack.c.b16 %v979, %v979
        %v1044 = vpack.c.b16 %v980, %v980
        %v1045 = vpack.c.b16 %v981, %v981
        %v1046 = vpack.c.b16 %v982, %v982
        %v1047 = vpack.c.b16 %v983, %v983
        %v1048 = vpack.c.b16 %v984, %v984
        %v1049 = vpack.c.b16 %v985, %v985
        %v1050 = vpack.c.b16 %v986, %v986
        %v1051 = vpack.c.b16 %v987, %v987
        %v1052 = vpack.c.b16 %v988, %v988
        %v1053 = vpack.c.b16 %v989, %v989
        %v1054 = vpack.c.b16 %v990, %v990
        %v1055 = vpack.c.b16 %v991, %v991
        %v1056 = vpack.c.b16 %v992, %v992
        %v1057 = vpack.c.b16 %v993, %v993
        %v1058 = vpack.c.b16 %v994, %v994
        %v1059 = vpack.c.b16 %v995, %v995
        %v1060 = vpack.c.b16 %v996, %v996
        %v1061 = vpack.c.b16 %v997, %v997
        %v1062 = vpack.c.b16 %v998, %v998
        %v1063 = vpack.c.b16 %v999, %v999
        %v1064 = vpack.c.b16 %v1000, %v1000
        %v1065 = vpack.c.b16 %v1001, %v1001
        %v1066 = vpack.c.b16 %v1002, %v1002
        %v1067 = vpack.c.b16 %v1003, %v1003
        %v1068 = vpack.c.b16 %v1004, %v1004
        %v1069 = vpack.c.b16 %v1005, %v1005
        %v1070 = vpack.c.b16 %v1006, %v1006
        %v1071 = vpack.c.b16 %v1007, %v1007
        %v1072 = vpack.c.b16 %v1008, %v1008
        %v1073 = vpack.c.b16 %v1009, %v1009
        %v1074 = vpack.c.b16 %v1010, %v1010
        %1139 = vst [vmem:[%s200] sm:$0xf] %v1011
        %1140 = vst [vmem:[%s200 + $0x4] sm:$0xf] %v1012
        %1141 = vst [vmem:[%s200 + $0x8] sm:$0xf] %v1013
        %1142 = vst [vmem:[%s200 + $0xc] sm:$0xf] %v1014
        %1143 = vst [vmem:[%s200 + $0x10] sm:$0xf] %v1015
        %1144 = vst [vmem:[%s200 + $0x14] sm:$0xf] %v1016
        %1145 = vst [vmem:[%s200 + $0x18] sm:$0xf] %v1017
        %1146 = vst [vmem:[%s200 + $0x1c] sm:$0xf] %v1018
        %1147 = vst [vmem:[%s200 + $0x20] sm:$0xf] %v1019
        %1148 = vst [vmem:[%s200 + $0x24] sm:$0xf] %v1020
        %1149 = vst [vmem:[%s200 + $0x28] sm:$0xf] %v1021
        %1150 = vst [vmem:[%s200 + $0x2c] sm:$0xf] %v1022
        %1151 = vst [vmem:[%s200 + $0x30] sm:$0xf] %v1023
        %1152 = vst [vmem:[%s200 + $0x34] sm:$0xf] %v1024
        %1153 = vst [vmem:[%s200 + $0x38] sm:$0xf] %v1025
        %1154 = vst [vmem:[%s200 + $0x3c] sm:$0xf] %v1026
        %1155 = vst [vmem:[%s200 + $0x40] sm:$0xf] %v1027
        %1156 = vst [vmem:[%s200 + $0x44] sm:$0xf] %v1028
        %1157 = vst [vmem:[%s200 + $0x48] sm:$0xf] %v1029
        %1158 = vst [vmem:[%s200 + $0x4c] sm:$0xf] %v1030
        %1159 = vst [vmem:[%s200 + $0x50] sm:$0xf] %v1031
        %1160 = vst [vmem:[%s200 + $0x54] sm:$0xf] %v1032
        %1161 = vst [vmem:[%s200 + $0x58] sm:$0xf] %v1033
        %1162 = vst [vmem:[%s200 + $0x5c] sm:$0xf] %v1034
        %1163 = vst [vmem:[%s200 + $0x60] sm:$0xf] %v1035
        %1164 = vst [vmem:[%s200 + $0x64] sm:$0xf] %v1036
        %1165 = vst [vmem:[%s200 + $0x68] sm:$0xf] %v1037
        %1166 = vst [vmem:[%s200 + $0x6c] sm:$0xf] %v1038
        %1167 = vst [vmem:[%s200 + $0x70] sm:$0xf] %v1039
        %1168 = vst [vmem:[%s200 + $0x74] sm:$0xf] %v1040
        %1169 = vst [vmem:[%s200 + $0x78] sm:$0xf] %v1041
        %1170 = vst [vmem:[%s200 + $0x7c] sm:$0xf] %v1042
        %1171 = vst [vmem:[%s200 + $0x80] sm:$0xf] %v1043
        %1172 = vst [vmem:[%s200 + $0x84] sm:$0xf] %v1044
        %1173 = vst [vmem:[%s200 + $0x88] sm:$0xf] %v1045
        %1174 = vst [vmem:[%s200 + $0x8c] sm:$0xf] %v1046
        %1175 = vst [vmem:[%s200 + $0x90] sm:$0xf] %v1047
        %1176 = vst [vmem:[%s200 + $0x94] sm:$0xf] %v1048
        %1177 = vst [vmem:[%s200 + $0x98] sm:$0xf] %v1049
        %1178 = vst [vmem:[%s200 + $0x9c] sm:$0xf] %v1050
        %1179 = vst [vmem:[%s200 + $0xa0] sm:$0xf] %v1051
        %1180 = vst [vmem:[%s200 + $0xa4] sm:$0xf] %v1052
        %1181 = vst [vmem:[%s200 + $0xa8] sm:$0xf] %v1053
        %1182 = vst [vmem:[%s200 + $0xac] sm:$0xf] %v1054
        %1183 = vst [vmem:[%s200 + $0xb0] sm:$0xf] %v1055
        %1184 = vst [vmem:[%s200 + $0xb4] sm:$0xf] %v1056
        %1185 = vst [vmem:[%s200 + $0xb8] sm:$0xf] %v1057
        %1186 = vst [vmem:[%s200 + $0xbc] sm:$0xf] %v1058
        %1187 = vst [vmem:[%s200 + $0xc0] sm:$0xf] %v1059
        %1188 = vst [vmem:[%s200 + $0xc4] sm:$0xf] %v1060
        %1189 = vst [vmem:[%s200 + $0xc8] sm:$0xf] %v1061
        %1190 = vst [vmem:[%s200 + $0xcc] sm:$0xf] %v1062
        %1191 = vst [vmem:[%s200 + $0xd0] sm:$0xf] %v1063
        %1192 = vst [vmem:[%s200 + $0xd4] sm:$0xf] %v1064
        %1193 = vst [vmem:[%s200 + $0xd8] sm:$0xf] %v1065
        %1194 = vst [vmem:[%s200 + $0xdc] sm:$0xf] %v1066
        %1195 = vst [vmem:[%s200 + $0xe0] sm:$0xf] %v1067
        %1196 = vst [vmem:[%s200 + $0xe4] sm:$0xf] %v1068
        %1197 = vst [vmem:[%s200 + $0xe8] sm:$0xf] %v1069
        %1198 = vst [vmem:[%s200 + $0xec] sm:$0xf] %v1070
        %1199 = vst [vmem:[%s200 + $0xf0] sm:$0xf] %v1071
        %1200 = vst [vmem:[%s200 + $0xf4] sm:$0xf] %v1072
        %1201 = vst [vmem:[%s200 + $0xf8] sm:$0xf] %v1073
        %1202 = vst [vmem:[%s200 + $0xfc] sm:$0xf] %v1074
        %s1203 = smul.u32 64, %s16
        %p1204 = scmp.lt.s32.totalorder %s1203, 191
        %s1205 = scalar_select %p1204, %s1203, 191
        %s1206 = smul.addr %s1205, 4
        %s1207 = scalar_lea.vmem %s3, %s1206
        // Predicated region
        $region41: #{cnn_forward.4} parent=31 // pred_check
          %p1208 = pneg %p102
        $region42: #{cnn_forward.4} parent=31 // pred_check_branch
          %1210 = sbr.rel (%p1208) target = $region44
        $region43: #{cnn_forward.4} parent=31 // pred_region
          %s1211 = smul.u32 64, %s16
        $region44: #{cnn_forward.4} parent=31 // pred_fallthru
          _
      $region32: #{cnn_forward.4} parent=5 // pred_fallthru
        _
      %p1212 = scmp.le.s32.totalorder 2, %s11
      // Predicated region
      $region45: #{cnn_forward.4} parent=5 // pred_check
        %p1213 = pneg %p1212
      $region46: #{cnn_forward.4} parent=5 // pred_check_branch
        %1215 = sbr.rel (%p1213) target = $region48
      $region47: #{cnn_forward.4} parent=5 // pred_region
        %s1216 = ssub.s32 %s11, 2
        // Predicated region
        $region49: #{cnn_forward.4} parent=47 // pred_check
          %p1217 = pneg %p108
        $region50: #{cnn_forward.4} parent=47 // pred_check_branch
          %1219 = sbr.rel (%p1217) target = $region52
        $region51: #{cnn_forward.4} parent=47 // pred_region
          %s1220 = smul.u32 64, %s17
          %p1221 = scmp.lt.s32.totalorder %s1220, 191
          %s1222 = scalar_select %p1221, %s1220, 191
          %s1223 = smul.addr %s1222, 4
          %s1224 = scalar_lea.vmem %s3, %s1223
        $region52: #{cnn_forward.4} parent=47 // pred_fallthru
          _
      $region48: #{cnn_forward.4} parent=5 // pred_fallthru
        _
    $region6: #{cnn_forward.4} parent=1 // loop_footer
      %s15 = sadd.s32 1, %s11
    $region7: #{cnn_forward.4} parent=1 // loop_footer_branch
      %10 = sbr.rel target = $region3
    $region8: #{cnn_forward.4} parent=1 // loop_exit
      _
    %1225 = vsyncpa [#allocation3], 1
    %s1226 = scalar_lea.sflag [#allocation3], 1
    %1227 = vsyncpa %s1226, 1
    %1228 = vsyncpa [#allocation5], 1

// kernel: cnn_forward.5
$region0: #{cnn_forward.5}
  #allocation0 [shape = 'u32[]', space=smem, size = 0x4, offset = 0x4, fixed_abs, tag = 'smem constant byte address 0x4 - core index']
  #allocation1 [shape = 'u32[144,128]{1,0:T(1,128)}', space=vmem, size = 0x12000, scoped, tag = 'internal scratch']
  %s0 = inlined_call_operand.vmem [shape: bf16[1536,384], index: 0, kind: input, shape index: {}]
  %s1 = inlined_call_operand.vmem [shape: bf16[384,128], index: 1, kind: input, shape index: {}]
  %s2 = inlined_call_operand.vmem [shape: f32[1,128], index: 2, kind: input, shape index: {}]
  %s3 = inlined_call_operand.vmem [shape: bf16[1536,128], index: 3, kind: output, shape index: {}]
  %s4 = sld [smem:[#allocation0]]
  $region45: #{cnn_forward.5} parent=0
    _
  %s6 = ssub.s32 1, %s4
  %s7 = scalar_select 0, %s6, %s4
  loop: start=0, step=1, limit=5
  $region2: #{cnn_forward.5} parent=0 // loop_pre_header
    _
  $region3: #{cnn_forward.5} parent=0 // loop_header
    %s9 = sphi 0, %s13
    %p10 = scmp.ge.s32.totalorder %s9, 5
    %s19 = sphi 0, %s21
    %s22 = sphi 0, %s19
    %s23 = sphi 0, %s22
    %s39 = sphi 0, %s23
    %s43 = sphi 0, %s43
    %s45 = sphi 0, %s43
    %s46 = sphi 0, %s45
    %s60 = sphi 0, %s46
    %s64 = sphi 0, %s64
    %s66 = sphi 0, %s64
    %s67 = sphi 0, %s66
    %s81 = sphi 0, %s67
    %s87 = sphi 0, %s89
    %s90 = sphi 0, %s87
    %s91 = sphi 0, %s90
    %s107 = sphi 0, %s91
  $region4: #{cnn_forward.5} parent=0 // loop_header_branch
    %12 = sbr.rel (%p10) target = $region8
  $region5: #{cnn_forward.5} parent=0 // loop_body
    %s14 = ssub.s32 %s9, 1
    %s15 = ssub.s32 %s9, 2
    %s16 = sadd.s32 %s9, 1
    %s17 = ssub.s32 %s9, %s16
    %p18 = scmp.eq.s32.totalorder %s17, 0
    %s20 = sadd.s32 %s19, 1
    %s21 = scalar_select %p18, %s19, %s20
    %p24 = pneg %p18
    %p25 = scmp.eq.s32.totalorder %s9, 2
    %p26 = por %p24, %p25
    %p27 = scmp.ne.s32.totalorder %s19, %s22
    %p28 = scmp.eq.s32.totalorder %s9, 0
    %p29 = por %p27, %p28
    %p30 = scmp.ne.s32.totalorder %s19, %s22
    %p31 = scmp.eq.s32.totalorder %s14, 2
    %p32 = por %p30, %p31
    %p33 = scmp.ne.s32.totalorder %s22, %s23
    %p34 = scmp.eq.s32.totalorder %s14, 0
    %p35 = por %p33, %p34
    %p36 = scmp.ne.s32.totalorder %s22, %s23
    %p37 = scmp.eq.s32.totalorder %s15, 2
    %p38 = por %p36, %p37
    %p40 = scmp.ne.s32.totalorder %s23, %s39
    %p41 = scmp.eq.s32.totalorder %s15, 0
    %p42 = por %p40, %p41
    %s44 = sadd.s32 %s43, 1
    %p47 = scmp.eq.s32.totalorder %s9, 2
    %p48 = scmp.ne.s32.totalorder %s43, %s45
    %p49 = scmp.eq.s32.totalorder %s9, 0
    %p50 = por %p48, %p49
    %p51 = scmp.ne.s32.totalorder %s43, %s45
    %p52 = scmp.eq.s32.totalorder %s14, 2
    %p53 = por %p51, %p52
    %p54 = scmp.ne.s32.totalorder %s45, %s46
    %p55 = scmp.eq.s32.totalorder %s14, 0
    %p56 = por %p54, %p55
    %p57 = scmp.ne.s32.totalorder %s45, %s46
    %p58 = scmp.eq.s32.totalorder %s15, 2
    %p59 = por %p57, %p58
    %p61 = scmp.ne.s32.totalorder %s46, %s60
    %p62 = scmp.eq.s32.totalorder %s15, 0
    %p63 = por %p61, %p62
    %s65 = sadd.s32 %s64, 1
    %p68 = scmp.eq.s32.totalorder %s9, 2
    %p69 = scmp.ne.s32.totalorder %s64, %s66
    %p70 = scmp.eq.s32.totalorder %s9, 0
    %p71 = por %p69, %p70
    %p72 = scmp.ne.s32.totalorder %s64, %s66
    %p73 = scmp.eq.s32.totalorder %s14, 2
    %p74 = por %p72, %p73
    %p75 = scmp.ne.s32.totalorder %s66, %s67
    %p76 = scmp.eq.s32.totalorder %s14, 0
    %p77 = por %p75, %p76
    %p78 = scmp.ne.s32.totalorder %s66, %s67
    %p79 = scmp.eq.s32.totalorder %s15, 2
    %p80 = por %p78, %p79
    %p82 = scmp.ne.s32.totalorder %s67, %s81
    %p83 = scmp.eq.s32.totalorder %s15, 0
    %p84 = por %p82, %p83
    %s85 = ssub.s32 %s9, %s16
    %p86 = scmp.eq.s32.totalorder %s85, 0
    %s88 = sadd.s32 %s87, 1
    %s89 = scalar_select %p86, %s87, %s88
    %p92 = pneg %p86
    %p93 = scmp.eq.s32.totalorder %s9, 2
    %p94 = por %p92, %p93
    %p95 = scmp.ne.s32.totalorder %s87, %s90
    %p96 = scmp.eq.s32.totalorder %s9, 0
    %p97 = por %p95, %p96
    %p98 = scmp.ne.s32.totalorder %s87, %s90
    %p99 = scmp.eq.s32.totalorder %s14, 2
    %p100 = por %p98, %p99
    %p101 = scmp.ne.s32.totalorder %s90, %s91
    %p102 = scmp.eq.s32.totalorder %s14, 0
    %p103 = por %p101, %p102
    %p104 = scmp.ne.s32.totalorder %s90, %s91
    %p105 = scmp.eq.s32.totalorder %s15, 2
    %p106 = por %p104, %p105
    %p108 = scmp.ne.s32.totalorder %s91, %s107
    %p109 = scmp.eq.s32.totalorder %s15, 0
    %p110 = por %p108, %p109
    %p111 = scmp.le.s32.totalorder 1, %s9
    %p112 = scmp.lt.s32.totalorder %s9, 4
    %p113 = pnand %p111, %p112
    %p114 = pneg %p113
    // Predicated region
    $region9: #{cnn_forward.5} parent=5 // pred_check
      _
    $region10: #{cnn_forward.5} parent=5 // pred_check_branch
      %116 = sbr.rel (%p113) target = $region12
    $region11: #{cnn_forward.5} parent=5 // pred_region
      %s117 = ssub.s32 %s9, 1
      // Predicated region
      $region13: #{cnn_forward.5} parent=11 // pred_check
        %p118 = pneg %p56
      $region14: #{cnn_forward.5} parent=11 // pred_check_branch
        %120 = sbr.rel (%p118) target = $region16
      $region15: #{cnn_forward.5} parent=11 // pred_region
        _
      $region16: #{cnn_forward.5} parent=11 // pred_fallthru
        _
      // Predicated region
      $region17: #{cnn_forward.5} parent=11 // pred_check
        %p121 = pneg %p77
      $region18: #{cnn_forward.5} parent=11 // pred_check_branch
        %123 = sbr.rel (%p121) target = $region20
      $region19: #{cnn_forward.5} parent=11 // pred_region
        _
      $region20: #{cnn_forward.5} parent=11 // pred_fallthru
        _
    $region12: #{cnn_forward.5} parent=5 // pred_fallthru
      _
    %p124 = scmp.lt.s32.totalorder %s9, 3
    // Predicated region
    $region21: #{cnn_forward.5} parent=5 // pred_check
      %p125 = pneg %p124
    $region22: #{cnn_forward.5} parent=5 // pred_check_branch
      %127 = sbr.rel (%p125) target = $region24
    $region23: #{cnn_forward.5} parent=5 // pred_region
      // Predicated region
      $region25: #{cnn_forward.5} parent=23 // pred_check
        %p128 = pneg %p29
      $region26: #{cnn_forward.5} parent=23 // pred_check_branch
        %130 = sbr.rel (%p128) target = $region28
      $region27: #{cnn_forward.5} parent=23 // pred_region
        %s131 = smul.u32 64, %s9
        %p132 = scmp.lt.s32.totalorder %s131, 191
        %s133 = scalar_select %p132, %s131, 191
        %s134 = smul.addr %s133, 3
        %s135 = smul.addr %s134, 4
        %s136 = scalar_lea.vmem %s0, %s135
        %s137 = smul.u32 64, %s9
      $region28: #{cnn_forward.5} parent=23 // pred_fallthru
        _
    $region24: #{cnn_forward.5} parent=5 // pred_fallthru
      _
    %p138 = scmp.le.s32.totalorder 1, %s9
    %p139 = scmp.lt.s32.totalorder %s9, 4
    %p140 = pnand %p138, %p139
    %p141 = pneg %p140
    // Predicated region
    $region29: #{cnn_forward.5} parent=5 // pred_check
      _
    $region30: #{cnn_forward.5} parent=5 // pred_check_branch
      %143 = sbr.rel (%p140) target = $region32
    $region31: #{cnn_forward.5} parent=5 // pred_region
      %s144 = ssub.s32 %s9, 1
      %s145 = smul.u32 64, %s14
      %p146 = scmp.lt.s32.totalorder %s145, 191
      %s147 = scalar_select %p146, %s145, 191
      %s148 = smul.addr %s147, 3
      %s149 = smul.addr %s148, 4
      %s150 = scalar_lea.vmem %s0, %s149
      %p151 = pneg %p35
      %p152 = pneg %p32
      %p153 = pneg %p56
      %p154 = pneg %p53
      %p155 = pneg %p77
      %p156 = pneg %p74
      %p157 = pneg %p103
      %p158 = pneg %p100
      %s159 = smul.u32 64, %s14
      %p160 = scmp.lt.s32.totalorder %s159, 191
      %s161 = scalar_select %p160, %s159, 191
      %s162 = smul.addr %s161, 4
      %s163 = scalar_lea.vmem %s3, %s162
      %s164 = smul.u32 64, %s14
      %p165 = scmp.lt.s32.totalorder %s164, 191
      %s166 = scalar_select %p165, %s164, 191
      %s167 = smul.addr %s166, 3
      %s168 = smul.addr %s167, 4
      %s169 = scalar_lea.vmem %s0, %s168
      %s170 = smul.u32 64, %s14
      %s171 = smul.u32 64, %s14
      %p172 = scmp.lt.s32.totalorder %s171, 191
      %s173 = scalar_select %p172, %s171, 191
      %s174 = smul.addr %s173, 4
      %s175 = scalar_lea.vmem %s3, %s174
      %s176 = smul.u32 64, %s14
      %v178 = vld [vmem:[%s169] sm:$0xff]
      %v179 = vld [vmem:[%s169 + $0x8] sm:$0xf]
      %v180 = vld [vmem:[%s169 + $0xc] sm:$0xff]
      %v181 = vld [vmem:[%s169 + $0x14] sm:$0xf]
      %v182 = vld [vmem:[%s169 + $0x18] sm:$0xff]
      %v183 = vld [vmem:[%s169 + $0x20] sm:$0xf]
      %v184 = vld [vmem:[%s169 + $0x24] sm:$0xff]
      %v185 = vld [vmem:[%s169 + $0x2c] sm:$0xf]
      %v186 = vld [vmem:[%s169 + $0x30] sm:$0xff]
      %v187 = vld [vmem:[%s169 + $0x38] sm:$0xf]
      %v188 = vld [vmem:[%s169 + $0x3c] sm:$0xff]
      %v189 = vld [vmem:[%s169 + $0x44] sm:$0xf]
      %v190 = vld [vmem:[%s169 + $0x48] sm:$0xff]
      %v191 = vld [vmem:[%s169 + $0x50] sm:$0xf]
      %v192 = vld [vmem:[%s169 + $0x54] sm:$0xff]
      %v193 = vld [vmem:[%s169 + $0x5c] sm:$0xf]
      %v194 = vld [vmem:[%s169 + $0x60] sm:$0xff]
      %v195 = vld [vmem:[%s169 + $0x68] sm:$0xf]
      %v196 = vld [vmem:[%s169 + $0x6c] sm:$0xff]
      %v197 = vld [vmem:[%s169 + $0x74] sm:$0xf]
      %v198 = vld [vmem:[%s169 + $0x78] sm:$0xff]
      %v199 = vld [vmem:[%s169 + $0x80] sm:$0xf]
      %v200 = vld [vmem:[%s169 + $0x84] sm:$0xff]
      %v201 = vld [vmem:[%s169 + $0x8c] sm:$0xf]
      %v202 = vld [vmem:[%s169 + $0x90] sm:$0xff]
      %v203 = vld [vmem:[%s169 + $0x98] sm:$0xf]
      %v204 = vld [vmem:[%s169 + $0x9c] sm:$0xff]
      %v205 = vld [vmem:[%s169 + $0xa4] sm:$0xf]
      %v206 = vld [vmem:[%s169 + $0xa8] sm:$0xff]
      %v207 = vld [vmem:[%s169 + $0xb0] sm:$0xf]
      %v208 = vld [vmem:[%s169 + $0xb4] sm:$0xff]
      %v209 = vld [vmem:[%s169 + $0xbc] sm:$0xf]
      %v210 = vld [vmem:[%s169 + $0xc0] sm:$0xff]
      %v211 = vld [vmem:[%s169 + $0xc8] sm:$0xf]
      %v212 = vld [vmem:[%s169 + $0xcc] sm:$0xff]
      %v213 = vld [vmem:[%s169 + $0xd4] sm:$0xf]
      %v214 = vld [vmem:[%s169 + $0xd8] sm:$0xff]
      %v215 = vld [vmem:[%s169 + $0xe0] sm:$0xf]
      %v216 = vld [vmem:[%s169 + $0xe4] sm:$0xff]
      %v217 = vld [vmem:[%s169 + $0xec] sm:$0xf]
      %v218 = vld [vmem:[%s169 + $0xf0] sm:$0xff]
      %v219 = vld [vmem:[%s169 + $0xf8] sm:$0xf]
      %v220 = vld [vmem:[%s169 + $0xfc] sm:$0xff]
      %v221 = vld [vmem:[%s169 + $0x104] sm:$0xf]
      %v222 = vld [vmem:[%s169 + $0x108] sm:$0xff]
      %v223 = vld [vmem:[%s169 + $0x110] sm:$0xf]
      %v224 = vld [vmem:[%s169 + $0x114] sm:$0xff]
      %v225 = vld [vmem:[%s169 + $0x11c] sm:$0xf]
      %v226 = vld [vmem:[%s169 + $0x120] sm:$0xff]
      %v227 = vld [vmem:[%s169 + $0x128] sm:$0xf]
      %v228 = vld [vmem:[%s169 + $0x12c] sm:$0xff]
      %v229 = vld [vmem:[%s169 + $0x134] sm:$0xf]
      %v230 = vld [vmem:[%s169 + $0x138] sm:$0xff]
      %v231 = vld [vmem:[%s169 + $0x140] sm:$0xf]
      %v232 = vld [vmem:[%s169 + $0x144] sm:$0xff]
      %v233 = vld [vmem:[%s169 + $0x14c] sm:$0xf]
      %v234 = vld [vmem:[%s169 + $0x150] sm:$0xff]
      %v235 = vld [vmem:[%s169 + $0x158] sm:$0xf]
      %v236 = vld [vmem:[%s169 + $0x15c] sm:$0xff]
      %v237 = vld [vmem:[%s169 + $0x164] sm:$0xf]
      %v238 = vld [vmem:[%s169 + $0x168] sm:$0xff]
      %v239 = vld [vmem:[%s169 + $0x170] sm:$0xf]
      %v240 = vld [vmem:[%s169 + $0x174] sm:$0xff]
      %v241 = vld [vmem:[%s169 + $0x17c] sm:$0xf]
      %v242 = vld [vmem:[%s169 + $0x180] sm:$0xff]
      %v243 = vld [vmem:[%s169 + $0x188] sm:$0xf]
      %v244 = vld [vmem:[%s169 + $0x18c] sm:$0xff]
      %v245 = vld [vmem:[%s169 + $0x194] sm:$0xf]
      %v246 = vld [vmem:[%s169 + $0x198] sm:$0xff]
      %v247 = vld [vmem:[%s169 + $0x1a0] sm:$0xf]
      %v248 = vld [vmem:[%s169 + $0x1a4] sm:$0xff]
      %v249 = vld [vmem:[%s169 + $0x1ac] sm:$0xf]
      %v250 = vld [vmem:[%s169 + $0x1b0] sm:$0xff]
      %v251 = vld [vmem:[%s169 + $0x1b8] sm:$0xf]
      %v252 = vld [vmem:[%s169 + $0x1bc] sm:$0xff]
      %v253 = vld [vmem:[%s169 + $0x1c4] sm:$0xf]
      %v254 = vld [vmem:[%s169 + $0x1c8] sm:$0xff]
      %v255 = vld [vmem:[%s169 + $0x1d0] sm:$0xf]
      %v256 = vld [vmem:[%s169 + $0x1d4] sm:$0xff]
      %v257 = vld [vmem:[%s169 + $0x1dc] sm:$0xf]
      %v258 = vld [vmem:[%s169 + $0x1e0] sm:$0xff]
      %v259 = vld [vmem:[%s169 + $0x1e8] sm:$0xf]
      %v260 = vld [vmem:[%s169 + $0x1ec] sm:$0xff]
      %v261 = vld [vmem:[%s169 + $0x1f4] sm:$0xf]
      %v262 = vld [vmem:[%s169 + $0x1f8] sm:$0xff]
      %v263 = vld [vmem:[%s169 + $0x200] sm:$0xf]
      %v264 = vld [vmem:[%s169 + $0x204] sm:$0xff]
      %v265 = vld [vmem:[%s169 + $0x20c] sm:$0xf]
      %v266 = vld [vmem:[%s169 + $0x210] sm:$0xff]
      %v267 = vld [vmem:[%s169 + $0x218] sm:$0xf]
      %v268 = vld [vmem:[%s169 + $0x21c] sm:$0xff]
      %v269 = vld [vmem:[%s169 + $0x224] sm:$0xf]
      %v270 = vld [vmem:[%s169 + $0x228] sm:$0xff]
      %v271 = vld [vmem:[%s169 + $0x230] sm:$0xf]
      %v272 = vld [vmem:[%s169 + $0x234] sm:$0xff]
      %v273 = vld [vmem:[%s169 + $0x23c] sm:$0xf]
      %v274 = vld [vmem:[%s169 + $0x240] sm:$0xff]
      %v275 = vld [vmem:[%s169 + $0x248] sm:$0xf]
      %v276 = vld [vmem:[%s169 + $0x24c] sm:$0xff]
      %v277 = vld [vmem:[%s169 + $0x254] sm:$0xf]
      %v278 = vld [vmem:[%s169 + $0x258] sm:$0xff]
      %v279 = vld [vmem:[%s169 + $0x260] sm:$0xf]
      %v280 = vld [vmem:[%s169 + $0x264] sm:$0xff]
      %v281 = vld [vmem:[%s169 + $0x26c] sm:$0xf]
      %v282 = vld [vmem:[%s169 + $0x270] sm:$0xff]
      %v283 = vld [vmem:[%s169 + $0x278] sm:$0xf]
      %v284 = vld [vmem:[%s169 + $0x27c] sm:$0xff]
      %v285 = vld [vmem:[%s169 + $0x284] sm:$0xf]
      %v286 = vld [vmem:[%s169 + $0x288] sm:$0xff]
      %v287 = vld [vmem:[%s169 + $0x290] sm:$0xf]
      %v288 = vld [vmem:[%s169 + $0x294] sm:$0xff]
      %v289 = vld [vmem:[%s169 + $0x29c] sm:$0xf]
      %v290 = vld [vmem:[%s169 + $0x2a0] sm:$0xff]
      %v291 = vld [vmem:[%s169 + $0x2a8] sm:$0xf]
      %v292 = vld [vmem:[%s169 + $0x2ac] sm:$0xff]
      %v293 = vld [vmem:[%s169 + $0x2b4] sm:$0xf]
      %v294 = vld [vmem:[%s169 + $0x2b8] sm:$0xff]
      %v295 = vld [vmem:[%s169 + $0x2c0] sm:$0xf]
      %v296 = vld [vmem:[%s169 + $0x2c4] sm:$0xff]
      %v297 = vld [vmem:[%s169 + $0x2cc] sm:$0xf]
      %v298 = vld [vmem:[%s169 + $0x2d0] sm:$0xff]
      %v299 = vld [vmem:[%s169 + $0x2d8] sm:$0xf]
      %v300 = vld [vmem:[%s169 + $0x2dc] sm:$0xff]
      %v301 = vld [vmem:[%s169 + $0x2e4] sm:$0xf]
      %v302 = vld [vmem:[%s169 + $0x2e8] sm:$0xff]
      %v303 = vld [vmem:[%s169 + $0x2f0] sm:$0xf]
      %v304 = vld [vmem:[%s169 + $0x2f4] sm:$0xff]
      %v305 = vld [vmem:[%s169 + $0x2fc] sm:$0xf]
      %v306 = vld [vmem:[%s1] sm:$0xf]
      %v307 = vld [vmem:[%s1 + $0x4] sm:$0xf]
      %v308 = vld [vmem:[%s1 + $0x8] sm:$0xf]
      %v309 = vld [vmem:[%s1 + $0xc] sm:$0xf]
      %v310 = vld [vmem:[%s1 + $0x10] sm:$0xf]
      %v311 = vld [vmem:[%s1 + $0x14] sm:$0xf]
      %v312 = vld [vmem:[%s1 + $0x18] sm:$0xf]
      %v313 = vld [vmem:[%s1 + $0x1c] sm:$0xf]
      %v314 = vld [vmem:[%s1 + $0x20] sm:$0xf]
      %v315 = vld [vmem:[%s1 + $0x24] sm:$0xf]
      %v316 = vld [vmem:[%s1 + $0x28] sm:$0xf]
      %v317 = vld [vmem:[%s1 + $0x2c] sm:$0xf]
      %v318 = vld [vmem:[%s1 + $0x30] sm:$0xf]
      %v319 = vld [vmem:[%s1 + $0x34] sm:$0xf]
      %v320 = vld [vmem:[%s1 + $0x38] sm:$0xf]
      %v321 = vld [vmem:[%s1 + $0x3c] sm:$0xf]
      %v322 = vld [vmem:[%s1 + $0x40] sm:$0xf]
      %v323 = vld [vmem:[%s1 + $0x44] sm:$0xf]
      %v324 = vld [vmem:[%s1 + $0x48] sm:$0xf]
      %v325 = vld [vmem:[%s1 + $0x4c] sm:$0xf]
      %v326 = vld [vmem:[%s1 + $0x50] sm:$0xf]
      %v327 = vld [vmem:[%s1 + $0x54] sm:$0xf]
      %v328 = vld [vmem:[%s1 + $0x58] sm:$0xf]
      %v329 = vld [vmem:[%s1 + $0x5c] sm:$0xf]
      %v330 = vld [vmem:[%s1 + $0x60] sm:$0xf]
      %v331 = vld [vmem:[%s1 + $0x64] sm:$0xf]
      %v332 = vld [vmem:[%s1 + $0x68] sm:$0xf]
      %v333 = vld [vmem:[%s1 + $0x6c] sm:$0xf]
      %v334 = vld [vmem:[%s1 + $0x70] sm:$0xf]
      %v335 = vld [vmem:[%s1 + $0x74] sm:$0xf]
      %v336 = vld [vmem:[%s1 + $0x78] sm:$0xf]
      %v337 = vld [vmem:[%s1 + $0x7c] sm:$0xf]
      %v338 = vld [vmem:[%s1 + $0x80] sm:$0xf]
      %v339 = vld [vmem:[%s1 + $0x84] sm:$0xf]
      %v340 = vld [vmem:[%s1 + $0x88] sm:$0xf]
      %v341 = vld [vmem:[%s1 + $0x8c] sm:$0xf]
      %v342 = vld [vmem:[%s1 + $0x90] sm:$0xf]
      %v343 = vld [vmem:[%s1 + $0x94] sm:$0xf]
      %v344 = vld [vmem:[%s1 + $0x98] sm:$0xf]
      %v345 = vld [vmem:[%s1 + $0x9c] sm:$0xf]
      %v346 = vld [vmem:[%s1 + $0xa0] sm:$0xf]
      %v347 = vld [vmem:[%s1 + $0xa4] sm:$0xf]
      %v348 = vld [vmem:[%s1 + $0xa8] sm:$0xf]
      %v349 = vld [vmem:[%s1 + $0xac] sm:$0xf]
      %v350 = vld [vmem:[%s1 + $0xb0] sm:$0xf]
      %v351 = vld [vmem:[%s1 + $0xb4] sm:$0xf]
      %v352 = vld [vmem:[%s1 + $0xb8] sm:$0xf]
      %v353 = vld [vmem:[%s1 + $0xbc] sm:$0xf]
      %v354 = vld [vmem:[%s2] sm:$0x1]
      %v356 = vlaneseq
      %v357 = vshrl.u32 %v356, 7
      %v358 = vsub.s32 0, %v357
      %v359 = vrot.slane %v354, %v358
      %v489 = vunpack.c.l.b16 %v178
      %v490 = vunpack.c.h.b16 %v178
      %v491 = vunpack.c.l.b16 %v179
      %v492 = vunpack.c.l.b16 %v180
      %v493 = vunpack.c.h.b16 %v180
      %v494 = vunpack.c.l.b16 %v181
      %v495 = vunpack.c.l.b16 %v182
      %v496 = vunpack.c.h.b16 %v182
      %v497 = vunpack.c.l.b16 %v183
      %v498 = vunpack.c.l.b16 %v184
      %v499 = vunpack.c.h.b16 %v184
      %v500 = vunpack.c.l.b16 %v185
      %v501 = vunpack.c.l.b16 %v186
      %v502 = vunpack.c.h.b16 %v186
      %v503 = vunpack.c.l.b16 %v187
      %v504 = vunpack.c.l.b16 %v188
      %v505 = vunpack.c.h.b16 %v188
      %v506 = vunpack.c.l.b16 %v189
      %v507 = vunpack.c.l.b16 %v190
      %v508 = vunpack.c.h.b16 %v190
      %v509 = vunpack.c.l.b16 %v191
      %v510 = vunpack.c.l.b16 %v192
      %v511 = vunpack.c.h.b16 %v192
      %v512 = vunpack.c.l.b16 %v193
      %v513 = vunpack.c.l.b16 %v194
      %v514 = vunpack.c.h.b16 %v194
      %v515 = vunpack.c.l.b16 %v195
      %v516 = vunpack.c.l.b16 %v196
      %v517 = vunpack.c.h.b16 %v196
      %v518 = vunpack.c.l.b16 %v197
      %v519 = vunpack.c.l.b16 %v198
      %v520 = vunpack.c.h.b16 %v198
      %v521 = vunpack.c.l.b16 %v199
      %v522 = vunpack.c.l.b16 %v200
      %v523 = vunpack.c.h.b16 %v200
      %v524 = vunpack.c.l.b16 %v201
      %v525 = vunpack.c.l.b16 %v202
      %v526 = vunpack.c.h.b16 %v202
      %v527 = vunpack.c.l.b16 %v203
      %v528 = vunpack.c.l.b16 %v204
      %v529 = vunpack.c.h.b16 %v204
      %v530 = vunpack.c.l.b16 %v205
      %v531 = vunpack.c.l.b16 %v206
      %v532 = vunpack.c.h.b16 %v206
      %v533 = vunpack.c.l.b16 %v207
      %v534 = vunpack.c.l.b16 %v208
      %v535 = vunpack.c.h.b16 %v208
      %v536 = vunpack.c.l.b16 %v209
      %v537 = vunpack.c.l.b16 %v210
      %v538 = vunpack.c.h.b16 %v210
      %v539 = vunpack.c.l.b16 %v211
      %v540 = vunpack.c.l.b16 %v212
      %v541 = vunpack.c.h.b16 %v212
      %v542 = vunpack.c.l.b16 %v213
      %v543 = vunpack.c.l.b16 %v214
      %v544 = vunpack.c.h.b16 %v214
      %v545 = vunpack.c.l.b16 %v215
      %v546 = vunpack.c.l.b16 %v216
      %v547 = vunpack.c.h.b16 %v216
      %v548 = vunpack.c.l.b16 %v217
      %v549 = vunpack.c.l.b16 %v218
      %v550 = vunpack.c.h.b16 %v218
      %v551 = vunpack.c.l.b16 %v219
      %v552 = vunpack.c.l.b16 %v220
      %v553 = vunpack.c.h.b16 %v220
      %v554 = vunpack.c.l.b16 %v221
      %v555 = vunpack.c.l.b16 %v222
      %v556 = vunpack.c.h.b16 %v222
      %v557 = vunpack.c.l.b16 %v223
      %v558 = vunpack.c.l.b16 %v224
      %v559 = vunpack.c.h.b16 %v224
      %v560 = vunpack.c.l.b16 %v225
      %v561 = vunpack.c.l.b16 %v226
      %v562 = vunpack.c.h.b16 %v226
      %v563 = vunpack.c.l.b16 %v227
      %v564 = vunpack.c.l.b16 %v228
      %v565 = vunpack.c.h.b16 %v228
      %v566 = vunpack.c.l.b16 %v229
      %v567 = vunpack.c.l.b16 %v230
      %v568 = vunpack.c.h.b16 %v230
      %v569 = vunpack.c.l.b16 %v231
      %v570 = vunpack.c.l.b16 %v232
      %v571 = vunpack.c.h.b16 %v232
      %v572 = vunpack.c.l.b16 %v233
      %v573 = vunpack.c.l.b16 %v234
      %v574 = vunpack.c.h.b16 %v234
      %v575 = vunpack.c.l.b16 %v235
      %v576 = vunpack.c.l.b16 %v236
      %v577 = vunpack.c.h.b16 %v236
      %v578 = vunpack.c.l.b16 %v237
      %v579 = vunpack.c.l.b16 %v238
      %v580 = vunpack.c.h.b16 %v238
      %v581 = vunpack.c.l.b16 %v239
      %v582 = vunpack.c.l.b16 %v240
      %v583 = vunpack.c.h.b16 %v240
      %v584 = vunpack.c.l.b16 %v241
      %v585 = vunpack.c.l.b16 %v242
      %v586 = vunpack.c.h.b16 %v242
      %v587 = vunpack.c.l.b16 %v243
      %v588 = vunpack.c.l.b16 %v244
      %v589 = vunpack.c.h.b16 %v244
      %v590 = vunpack.c.l.b16 %v245
      %v591 = vunpack.c.l.b16 %v246
      %v592 = vunpack.c.h.b16 %v246
      %v593 = vunpack.c.l.b16 %v247
      %v594 = vunpack.c.l.b16 %v248
      %v595 = vunpack.c.h.b16 %v248
      %v596 = vunpack.c.l.b16 %v249
      %v597 = vunpack.c.l.b16 %v250
      %v598 = vunpack.c.h.b16 %v250
      %v599 = vunpack.c.l.b16 %v251
      %v600 = vunpack.c.l.b16 %v252
      %v601 = vunpack.c.h.b16 %v252
      %v602 = vunpack.c.l.b16 %v253
      %v603 = vunpack.c.l.b16 %v254
      %v604 = vunpack.c.h.b16 %v254
      %v605 = vunpack.c.l.b16 %v255
      %v606 = vunpack.c.l.b16 %v256
      %v607 = vunpack.c.h.b16 %v256
      %v608 = vunpack.c.l.b16 %v257
      %v609 = vunpack.c.l.b16 %v258
      %v610 = vunpack.c.h.b16 %v258
      %v611 = vunpack.c.l.b16 %v259
      %v612 = vunpack.c.l.b16 %v260
      %v613 = vunpack.c.h.b16 %v260
      %v614 = vunpack.c.l.b16 %v261
      %v615 = vunpack.c.l.b16 %v262
      %v616 = vunpack.c.h.b16 %v262
      %v617 = vunpack.c.l.b16 %v263
      %v618 = vunpack.c.l.b16 %v264
      %v619 = vunpack.c.h.b16 %v264
      %v620 = vunpack.c.l.b16 %v265
      %v621 = vunpack.c.l.b16 %v266
      %v622 = vunpack.c.h.b16 %v266
      %v623 = vunpack.c.l.b16 %v267
      %v624 = vunpack.c.l.b16 %v268
      %v625 = vunpack.c.h.b16 %v268
      %v626 = vunpack.c.l.b16 %v269
      %v627 = vunpack.c.l.b16 %v270
      %v628 = vunpack.c.h.b16 %v270
      %v629 = vunpack.c.l.b16 %v271
      %v630 = vunpack.c.l.b16 %v272
      %v631 = vunpack.c.h.b16 %v272
      %v632 = vunpack.c.l.b16 %v273
      %v633 = vunpack.c.l.b16 %v274
      %v634 = vunpack.c.h.b16 %v274
      %v635 = vunpack.c.l.b16 %v275
      %v636 = vunpack.c.l.b16 %v276
      %v637 = vunpack.c.h.b16 %v276
      %v638 = vunpack.c.l.b16 %v277
      %v639 = vunpack.c.l.b16 %v278
      %v640 = vunpack.c.h.b16 %v278
      %v641 = vunpack.c.l.b16 %v279
      %v642 = vunpack.c.l.b16 %v280
      %v643 = vunpack.c.h.b16 %v280
      %v644 = vunpack.c.l.b16 %v281
      %v645 = vunpack.c.l.b16 %v282
      %v646 = vunpack.c.h.b16 %v282
      %v647 = vunpack.c.l.b16 %v283
      %v648 = vunpack.c.l.b16 %v284
      %v649 = vunpack.c.h.b16 %v284
      %v650 = vunpack.c.l.b16 %v285
      %v651 = vunpack.c.l.b16 %v286
      %v652 = vunpack.c.h.b16 %v286
      %v653 = vunpack.c.l.b16 %v287
      %v654 = vunpack.c.l.b16 %v288
      %v655 = vunpack.c.h.b16 %v288
      %v656 = vunpack.c.l.b16 %v289
      %v657 = vunpack.c.l.b16 %v290
      %v658 = vunpack.c.h.b16 %v290
      %v659 = vunpack.c.l.b16 %v291
      %v660 = vunpack.c.l.b16 %v292
      %v661 = vunpack.c.h.b16 %v292
      %v662 = vunpack.c.l.b16 %v293
      %v663 = vunpack.c.l.b16 %v294
      %v664 = vunpack.c.h.b16 %v294
      %v665 = vunpack.c.l.b16 %v295
      %v666 = vunpack.c.l.b16 %v296
      %v667 = vunpack.c.h.b16 %v296
      %v668 = vunpack.c.l.b16 %v297
      %v669 = vunpack.c.l.b16 %v298
      %v670 = vunpack.c.h.b16 %v298
      %v671 = vunpack.c.l.b16 %v299
      %v672 = vunpack.c.l.b16 %v300
      %v673 = vunpack.c.h.b16 %v300
      %v674 = vunpack.c.l.b16 %v301
      %v675 = vunpack.c.l.b16 %v302
      %v676 = vunpack.c.h.b16 %v302
      %v677 = vunpack.c.l.b16 %v303
      %v678 = vunpack.c.l.b16 %v304
      %v679 = vunpack.c.h.b16 %v304
      %v680 = vunpack.c.l.b16 %v305
      %v681 = vpack.c.b16 %v492, %v489
      %v682 = vpack.c.b16 %v493, %v490
      %v683 = vpack.c.b16 %v494, %v491
      %v684 = vpack.c.b16 %v498, %v495
      %v685 = vpack.c.b16 %v499, %v496
      %v686 = vpack.c.b16 %v500, %v497
      %v687 = vpack.c.b16 %v504, %v501
      %v688 = vpack.c.b16 %v505, %v502
      %v689 = vpack.c.b16 %v506, %v503
      %v690 = vpack.c.b16 %v510, %v507
      %v691 = vpack.c.b16 %v511, %v508
      %v692 = vpack.c.b16 %v512, %v509
      %v693 = vpack.c.b16 %v516, %v513
      %v694 = vpack.c.b16 %v517, %v514
      %v695 = vpack.c.b16 %v518, %v515
      %v696 = vpack.c.b16 %v522, %v519
      %v697 = vpack.c.b16 %v523, %v520
      %v698 = vpack.c.b16 %v524, %v521
      %v699 = vpack.c.b16 %v528, %v525
      %v700 = vpack.c.b16 %v529, %v526
      %v701 = vpack.c.b16 %v530, %v527
      %v702 = vpack.c.b16 %v534, %v531
      %v703 = vpack.c.b16 %v535, %v532
      %v704 = vpack.c.b16 %v536, %v533
      %v705 = vpack.c.b16 %v540, %v537
      %v706 = vpack.c.b16 %v541, %v538
      %v707 = vpack.c.b16 %v542, %v539
      %v708 = vpack.c.b16 %v546, %v543
      %v709 = vpack.c.b16 %v547, %v544
      %v710 = vpack.c.b16 %v548, %v545
      %v711 = vpack.c.b16 %v552, %v549
      %v712 = vpack.c.b16 %v553, %v550
      %v713 = vpack.c.b16 %v554, %v551
      %v714 = vpack.c.b16 %v558, %v555
      %v715 = vpack.c.b16 %v559, %v556
      %v716 = vpack.c.b16 %v560, %v557
      %v717 = vpack.c.b16 %v564, %v561
      %v718 = vpack.c.b16 %v565, %v562
      %v719 = vpack.c.b16 %v566, %v563
      %v720 = vpack.c.b16 %v570, %v567
      %v721 = vpack.c.b16 %v571, %v568
      %v722 = vpack.c.b16 %v572, %v569
      %v723 = vpack.c.b16 %v576, %v573
      %v724 = vpack.c.b16 %v577, %v574
      %v725 = vpack.c.b16 %v578, %v575
      %v726 = vpack.c.b16 %v582, %v579
      %v727 = vpack.c.b16 %v583, %v580
      %v728 = vpack.c.b16 %v584, %v581
      %v729 = vpack.c.b16 %v588, %v585
      %v730 = vpack.c.b16 %v589, %v586
      %v731 = vpack.c.b16 %v590, %v587
      %v732 = vpack.c.b16 %v594, %v591
      %v733 = vpack.c.b16 %v595, %v592
      %v734 = vpack.c.b16 %v596, %v593
      %v735 = vpack.c.b16 %v600, %v597
      %v736 = vpack.c.b16 %v601, %v598
      %v737 = vpack.c.b16 %v602, %v599
      %v738 = vpack.c.b16 %v606, %v603
      %v739 = vpack.c.b16 %v607, %v604
      %v740 = vpack.c.b16 %v608, %v605
      %v741 = vpack.c.b16 %v612, %v609
      %v742 = vpack.c.b16 %v613, %v610
      %v743 = vpack.c.b16 %v614, %v611
      %v744 = vpack.c.b16 %v618, %v615
      %v745 = vpack.c.b16 %v619, %v616
      %v746 = vpack.c.b16 %v620, %v617
      %v747 = vpack.c.b16 %v624, %v621
      %v748 = vpack.c.b16 %v625, %v622
      %v749 = vpack.c.b16 %v626, %v623
      %v750 = vpack.c.b16 %v630, %v627
      %v751 = vpack.c.b16 %v631, %v628
      %v752 = vpack.c.b16 %v632, %v629
      %v753 = vpack.c.b16 %v636, %v633
      %v754 = vpack.c.b16 %v637, %v634
      %v755 = vpack.c.b16 %v638, %v635
      %v756 = vpack.c.b16 %v642, %v639
      %v757 = vpack.c.b16 %v643, %v640
      %v758 = vpack.c.b16 %v644, %v641
      %v759 = vpack.c.b16 %v648, %v645
      %v760 = vpack.c.b16 %v649, %v646
      %v761 = vpack.c.b16 %v650, %v647
      %v762 = vpack.c.b16 %v654, %v651
      %v763 = vpack.c.b16 %v655, %v652
      %v764 = vpack.c.b16 %v656, %v653
      %v765 = vpack.c.b16 %v660, %v657
      %v766 = vpack.c.b16 %v661, %v658
      %v767 = vpack.c.b16 %v662, %v659
      %v768 = vpack.c.b16 %v666, %v663
      %v769 = vpack.c.b16 %v667, %v664
      %v770 = vpack.c.b16 %v668, %v665
      %v771 = vpack.c.b16 %v672, %v669
      %v772 = vpack.c.b16 %v673, %v670
      %v773 = vpack.c.b16 %v674, %v671
      %v774 = vpack.c.b16 %v678, %v675
      %v775 = vpack.c.b16 %v679, %v676
      %v776 = vpack.c.b16 %v680, %v677
      %v921 = vunpack.c.l.b16 %v306
      %v922 = vunpack.c.l.b16 %v307
      %v923 = vunpack.c.l.b16 %v308
      %v924 = vunpack.c.l.b16 %v309
      %v925 = vunpack.c.l.b16 %v310
      %v926 = vunpack.c.l.b16 %v311
      %v927 = vunpack.c.l.b16 %v312
      %v928 = vunpack.c.l.b16 %v313
      %v929 = vunpack.c.l.b16 %v314
      %v930 = vunpack.c.l.b16 %v315
      %v931 = vunpack.c.l.b16 %v316
      %v932 = vunpack.c.l.b16 %v317
      %v933 = vunpack.c.l.b16 %v318
      %v934 = vunpack.c.l.b16 %v319
      %v935 = vunpack.c.l.b16 %v320
      %v936 = vunpack.c.l.b16 %v321
      %v937 = vunpack.c.l.b16 %v322
      %v938 = vunpack.c.l.b16 %v323
      %v939 = vunpack.c.l.b16 %v324
      %v940 = vunpack.c.l.b16 %v325
      %v941 = vunpack.c.l.b16 %v326
      %v942 = vunpack.c.l.b16 %v327
      %v943 = vunpack.c.l.b16 %v328
      %v944 = vunpack.c.l.b16 %v329
      %v945 = vunpack.c.l.b16 %v330
      %v946 = vunpack.c.l.b16 %v331
      %v947 = vunpack.c.l.b16 %v332
      %v948 = vunpack.c.l.b16 %v333
      %v949 = vunpack.c.l.b16 %v334
      %v950 = vunpack.c.l.b16 %v335
      %v951 = vunpack.c.l.b16 %v336
      %v952 = vunpack.c.l.b16 %v337
      %v953 = vunpack.c.l.b16 %v338
      %v954 = vunpack.c.l.b16 %v339
      %v955 = vunpack.c.l.b16 %v340
      %v956 = vunpack.c.l.b16 %v341
      %v957 = vunpack.c.l.b16 %v342
      %v958 = vunpack.c.l.b16 %v343
      %v959 = vunpack.c.l.b16 %v344
      %v960 = vunpack.c.l.b16 %v345
      %v961 = vunpack.c.l.b16 %v346
      %v962 = vunpack.c.l.b16 %v347
      %v963 = vunpack.c.l.b16 %v348
      %v964 = vunpack.c.l.b16 %v349
      %v965 = vunpack.c.l.b16 %v350
      %v966 = vunpack.c.l.b16 %v351
      %v967 = vunpack.c.l.b16 %v352
      %v968 = vunpack.c.l.b16 %v353
      %v969 = vpack.c.b16 %v922, %v921
      %v970 = vpack.c.b16 %v924, %v923
      %v971 = vpack.c.b16 %v926, %v925
      %v972 = vpack.c.b16 %v928, %v927
      %v973 = vpack.c.b16 %v930, %v929
      %v974 = vpack.c.b16 %v932, %v931
      %v975 = vpack.c.b16 %v934, %v933
      %v976 = vpack.c.b16 %v936, %v935
      %v977 = vpack.c.b16 %v938, %v937
      %v978 = vpack.c.b16 %v940, %v939
      %v979 = vpack.c.b16 %v942, %v941
      %v980 = vpack.c.b16 %v944, %v943
      %v981 = vpack.c.b16 %v946, %v945
      %v982 = vpack.c.b16 %v948, %v947
      %v983 = vpack.c.b16 %v950, %v949
      %v984 = vpack.c.b16 %v952, %v951
      %v985 = vpack.c.b16 %v954, %v953
      %v986 = vpack.c.b16 %v956, %v955
      %v987 = vpack.c.b16 %v958, %v957
      %v988 = vpack.c.b16 %v960, %v959
      %v989 = vpack.c.b16 %v962, %v961
      %v990 = vpack.c.b16 %v964, %v963
      %v991 = vpack.c.b16 %v966, %v965
      %v992 = vpack.c.b16 %v968, %v967
      %1017 = vmatprep.subr.bf16.mxu0 0
      %1018 = vmatpush1.bf16.msra.mxu0 %v969
      %1019 = vmatprep.subr.bf16.mxu0 0
      %1020 = vmatpush1.bf16.msra.mxu0 %v970
      %1021 = vmatprep.subr.bf16.mxu0 0
      %1022 = vmatpush1.bf16.msra.mxu0 %v971
      %1023 = vmatprep.subr.bf16.mxu0 0
      %1024 = vmatpush1.bf16.msra.mxu0 %v972
      %1025 = vmatprep.subr.bf16.mxu0 0
      %1026 = vmatpush1.bf16.msra.mxu0 %v973
      %1027 = vmatprep.subr.bf16.mxu0 0
      %1028 = vmatpush1.bf16.msra.mxu0 %v974
      %1029 = vmatprep.subr.bf16.mxu0 0
      %1030 = vmatpush1.bf16.msra.mxu0 %v975
      %1031 = vmatprep.subr.bf16.mxu0 0
      %1032 = vmatpush1.bf16.msra.mxu0 %v976
      %1033 = vmatprep.subr.bf16.mxu0 0
      %1034 = vmatpush1.bf16.msra.mxu0 %v977
      %1035 = vmatprep.subr.bf16.mxu0 0
      %1036 = vmatpush1.bf16.msra.mxu0 %v978
      %1037 = vmatprep.subr.bf16.mxu0 0
      %1038 = vmatpush1.bf16.msra.mxu0 %v979
      %1039 = vmatprep.subr.bf16.mxu0 0
      %1040 = vmatpush1.bf16.msra.mxu0 %v980
      %1041 = vmatprep.subr.bf16.mxu0 0
      %1042 = vmatpush1.bf16.msra.mxu0 %v981
      %1043 = vmatprep.subr.bf16.mxu0 0
      %1044 = vmatpush1.bf16.msra.mxu0 %v982
      %1045 = vmatprep.subr.bf16.mxu0 0
      %1046 = vmatpush1.bf16.msra.mxu0 %v983
      %1047 = vmatprep.subr.bf16.mxu0 0
      %1048 = vmatpush1.bf16.msra.mxu0 %v984
      %1049 = vmatprep.mubr.bf16.mxu0 %v682
      %1050 = vmatmul.mubr.bf16.gmra.mrb[0].mxu0 %v681
      %v1051 = vpop.f32.mrb[0].mxu0
      %v1052 = vadd.f32 %v359, %v1051
      %v1053 = vpop.f32.mrb[0].mxu0
      %v1054 = vpop.f32.mrb[0].mxu0
      %v1055 = vadd.f32 %v359, %v1054
      %v1056 = vpop.f32.mrb[0].mxu0
      %1057 = vmatprep.mubr.bf16.mxu0 %v685
      %1058 = vmatmul.mubr.bf16.gmra.mrb[0].mxu0 %v684
      %v1059 = vpop.f32.mrb[0].mxu0
      %v1060 = vadd.f32 %v359, %v1059
      %v1061 = vpop.f32.mrb[0].mxu0
      %v1062 = vpop.f32.mrb[0].mxu0
      %v1063 = vadd.f32 %v359, %v1062
      %v1064 = vpop.f32.mrb[0].mxu0
      %1065 = vmatprep.mubr.bf16.mxu0 %v688
      %1066 = vmatmul.mubr.bf16.gmra.mrb[0].mxu0 %v687
      %v1067 = vpop.f32.mrb[0].mxu0
      %v1068 = vadd.f32 %v359, %v1067
      %v1069 = vpop.f32.mrb[0].mxu0
      %v1070 = vpop.f32.mrb[0].mxu0
      %v1071 = vadd.f32 %v359, %v1070
      %v1072 = vpop.f32.mrb[0].mxu0
      %1073 = vmatprep.mubr.bf16.mxu0 %v691
      %1074 = vmatmul.mubr.bf16.gmra.mrb[0].mxu0 %v690
      %v1075 = vpop.f32.mrb[0].mxu0
      %v1076 = vadd.f32 %v359, %v1075
      %v1077 = vpop.f32.mrb[0].mxu0
      %v1078 = vpop.f32.mrb[0].mxu0
      %v1079 = vadd.f32 %v359, %v1078
      %v1080 = vpop.f32.mrb[0].mxu0
      %1081 = vmatprep.mubr.bf16.mxu0 %v694
      %1082 = vmatmul.mubr.bf16.gmra.mrb[0].mxu0 %v693
      %v1083 = vpop.f32.mrb[0].mxu0
      %v1084 = vadd.f32 %v359, %v1083
      %v1085 = vpop.f32.mrb[0].mxu0
      %v1086 = vpop.f32.mrb[0].mxu0
      %v1087 = vadd.f32 %v359, %v1086
      %v1088 = vpop.f32.mrb[0].mxu0
      %1089 = vmatprep.mubr.bf16.mxu0 %v697
      %1090 = vmatmul.mubr.bf16.gmra.mrb[0].mxu0 %v696
      %v1091 = vpop.f32.mrb[0].mxu0
      %v1092 = vadd.f32 %v359, %v1091
      %v1093 = vpop.f32.mrb[0].mxu0
      %v1094 = vpop.f32.mrb[0].mxu0
      %v1095 = vadd.f32 %v359, %v1094
      %v1096 = vpop.f32.mrb[0].mxu0
      %1097 = vmatprep.mubr.bf16.mxu0 %v700
      %1098 = vmatmul.mubr.bf16.gmra.mrb[0].mxu0 %v699
      %v1099 = vpop.f32.mrb[0].mxu0
      %v1100 = vadd.f32 %v359, %v1099
      %v1101 = vpop.f32.mrb[0].mxu0
      %v1102 = vpop.f32.mrb[0].mxu0
      %v1103 = vadd.f32 %v359, %v1102
      %v1104 = vpop.f32.mrb[0].mxu0
      %1105 = vmatprep.mubr.bf16.mxu0 %v703
      %1106 = vmatmul.mubr.bf16.gmra.mrb[0].mxu0 %v702
      %v1107 = vpop.f32.mrb[0].mxu0
      %v1108 = vadd.f32 %v359, %v1107
      %v1109 = vpop.f32.mrb[0].mxu0
      %v1110 = vpop.f32.mrb[0].mxu0
      %v1111 = vadd.f32 %v359, %v1110
      %v1112 = vpop.f32.mrb[0].mxu0
      %1113 = vmatprep.mubr.bf16.mxu0 %v706
      %1114 = vmatmul.mubr.bf16.gmra.mrb[0].mxu0 %v705
      %v1115 = vpop.f32.mrb[0].mxu0
      %v1116 = vadd.f32 %v359, %v1115
      %v1117 = vpop.f32.mrb[0].mxu0
      %v1118 = vpop.f32.mrb[0].mxu0
      %v1119 = vadd.f32 %v359, %v1118
      %v1120 = vpop.f32.mrb[0].mxu0
      %1121 = vmatprep.mubr.bf16.mxu0 %v709
      %1122 = vmatmul.mubr.bf16.gmra.mrb[0].mxu0 %v708
      %v1123 = vpop.f32.mrb[0].mxu0
      %v1124 = vadd.f32 %v359, %v1123
      %v1125 = vpop.f32.mrb[0].mxu0
      %v1126 = vpop.f32.mrb[0].mxu0
      %v1127 = vadd.f32 %v359, %v1126
      %v1128 = vpop.f32.mrb[0].mxu0
      %1129 = vmatprep.mubr.bf16.mxu0 %v712
      %1130 = vmatmul.mubr.bf16.gmra.mrb[0].mxu0 %v711
      %v1131 = vpop.f32.mrb[0].mxu0
      %v1132 = vadd.f32 %v359, %v1131
      %v1133 = vpop.f32.mrb[0].mxu0
      %v1134 = vpop.f32.mrb[0].mxu0
      %v1135 = vadd.f32 %v359, %v1134
      %v1136 = vpop.f32.mrb[0].mxu0
      %1137 = vmatprep.mubr.bf16.mxu0 %v715
      %1138 = vmatmul.mubr.bf16.gmra.mrb[0].mxu0 %v714
      %v1139 = vpop.f32.mrb[0].mxu0
      %v1140 = vadd.f32 %v359, %v1139
      %v1141 = vpop.f32.mrb[0].mxu0
      %v1142 = vpop.f32.mrb[0].mxu0
      %v1143 = vadd.f32 %v359, %v1142
      %v1144 = vpop.f32.mrb[0].mxu0
      %1145 = vmatprep.mubr.bf16.mxu0 %v718
      %1146 = vmatmul.mubr.bf16.gmra.mrb[0].mxu0 %v717
      %v1147 = vpop.f32.mrb[0].mxu0
      %v1148 = vadd.f32 %v359, %v1147
      %v1149 = vpop.f32.mrb[0].mxu0
      %v1150 = vpop.f32.mrb[0].mxu0
      %v1151 = vadd.f32 %v359, %v1150
      %v1152 = vpop.f32.mrb[0].mxu0
      %1153 = vmatprep.mubr.bf16.mxu0 %v721
      %1154 = vmatmul.mubr.bf16.gmra.mrb[0].mxu0 %v720
      %v1155 = vpop.f32.mrb[0].mxu0
      %v1156 = vadd.f32 %v359, %v1155
      %v1157 = vpop.f32.mrb[0].mxu0
      %v1158 = vpop.f32.mrb[0].mxu0
      %v1159 = vadd.f32 %v359, %v1158
      %v1160 = vpop.f32.mrb[0].mxu0
      %1161 = vmatprep.mubr.bf16.mxu0 %v724
      %1162 = vmatmul.mubr.bf16.gmra.mrb[0].mxu0 %v723
      %v1163 = vpop.f32.mrb[0].mxu0
      %v1164 = vadd.f32 %v359, %v1163
      %v1165 = vpop.f32.mrb[0].mxu0
      %v1166 = vpop.f32.mrb[0].mxu0
      %v1167 = vadd.f32 %v359, %v1166
      %v1168 = vpop.f32.mrb[0].mxu0
      %1169 = vmatprep.mubr.bf16.mxu0 %v727
      %1170 = vmatmul.mubr.bf16.gmra.mrb[0].mxu0 %v726
      %v1171 = vpop.f32.mrb[0].mxu0
      %v1172 = vadd.f32 %v359, %v1171
      %v1173 = vpop.f32.mrb[0].mxu0
      %v1174 = vpop.f32.mrb[0].mxu0
      %v1175 = vadd.f32 %v359, %v1174
      %v1176 = vpop.f32.mrb[0].mxu0
      %1177 = vmatprep.mubr.bf16.mxu0 %v730
      %1178 = vmatmul.mubr.bf16.gmra.mrb[0].mxu0 %v729
      %v1179 = vpop.f32.mrb[0].mxu0
      %v1180 = vadd.f32 %v359, %v1179
      %v1181 = vpop.f32.mrb[0].mxu0
      %v1182 = vpop.f32.mrb[0].mxu0
      %v1183 = vadd.f32 %v359, %v1182
      %v1184 = vpop.f32.mrb[0].mxu0
      %1185 = vmatprep.mubr.bf16.mxu0 %v733
      %1186 = vmatmul.mubr.bf16.gmra.mrb[0].mxu0 %v732
      %v1187 = vpop.f32.mrb[0].mxu0
      %v1188 = vadd.f32 %v359, %v1187
      %v1189 = vpop.f32.mrb[0].mxu0
      %v1190 = vpop.f32.mrb[0].mxu0
      %v1191 = vadd.f32 %v359, %v1190
      %v1192 = vpop.f32.mrb[0].mxu0
      %1193 = vmatprep.mubr.bf16.mxu0 %v736
      %1194 = vmatmul.mubr.bf16.gmra.mrb[0].mxu0 %v735
      %v1195 = vpop.f32.mrb[0].mxu0
      %v1196 = vadd.f32 %v359, %v1195
      %v1197 = vpop.f32.mrb[0].mxu0
      %v1198 = vpop.f32.mrb[0].mxu0
      %v1199 = vadd.f32 %v359, %v1198
      %v1200 = vpop.f32.mrb[0].mxu0
      %1201 = vmatprep.mubr.bf16.mxu0 %v739
      %1202 = vmatmul.mubr.bf16.gmra.mrb[0].mxu0 %v738
      %v1203 = vpop.f32.mrb[0].mxu0
      %v1204 = vadd.f32 %v359, %v1203
      %v1205 = vpop.f32.mrb[0].mxu0
      %v1206 = vpop.f32.mrb[0].mxu0
      %v1207 = vadd.f32 %v359, %v1206
      %v1208 = vpop.f32.mrb[0].mxu0
      %1209 = vmatprep.mubr.bf16.mxu0 %v742
      %1210 = vmatmul.mubr.bf16.gmra.mrb[0].mxu0 %v741
      %v1211 = vpop.f32.mrb[0].mxu0
      %v1212 = vadd.f32 %v359, %v1211
      %v1213 = vpop.f32.mrb[0].mxu0
      %v1214 = vpop.f32.mrb[0].mxu0
      %v1215 = vadd.f32 %v359, %v1214
      %v1216 = vpop.f32.mrb[0].mxu0
      %1217 = vmatprep.mubr.bf16.mxu0 %v745
      %1218 = vmatmul.mubr.bf16.gmra.mrb[0].mxu0 %v744
      %v1219 = vpop.f32.mrb[0].mxu0
      %v1220 = vadd.f32 %v359, %v1219
      %v1221 = vpop.f32.mrb[0].mxu0
      %v1222 = vpop.f32.mrb[0].mxu0
      %v1223 = vadd.f32 %v359, %v1222
      %v1224 = vpop.f32.mrb[0].mxu0
      %1225 = vmatprep.mubr.bf16.mxu0 %v748
      %1226 = vmatmul.mubr.bf16.gmra.mrb[0].mxu0 %v747
      %v1227 = vpop.f32.mrb[0].mxu0
      %v1228 = vadd.f32 %v359, %v1227
      %v1229 = vpop.f32.mrb[0].mxu0
      %v1230 = vpop.f32.mrb[0].mxu0
      %v1231 = vadd.f32 %v359, %v1230
      %v1232 = vpop.f32.mrb[0].mxu0
      %1233 = vmatprep.mubr.bf16.mxu0 %v751
      %1234 = vmatmul.mubr.bf16.gmra.mrb[0].mxu0 %v750
      %v1235 = vpop.f32.mrb[0].mxu0
      %v1236 = vadd.f32 %v359, %v1235
      %v1237 = vpop.f32.mrb[0].mxu0
      %v1238 = vpop.f32.mrb[0].mxu0
      %v1239 = vadd.f32 %v359, %v1238
      %v1240 = vpop.f32.mrb[0].mxu0
      %1241 = vmatprep.mubr.bf16.mxu0 %v754
      %1242 = vmatmul.mubr.bf16.gmra.mrb[0].mxu0 %v753
      %v1243 = vpop.f32.mrb[0].mxu0
      %v1244 = vadd.f32 %v359, %v1243
      %v1245 = vpop.f32.mrb[0].mxu0
      %v1246 = vpop.f32.mrb[0].mxu0
      %v1247 = vadd.f32 %v359, %v1246
      %v1248 = vpop.f32.mrb[0].mxu0
      %1249 = vmatprep.mubr.bf16.mxu0 %v757
      %1250 = vmatmul.mubr.bf16.gmra.mrb[0].mxu0 %v756
      %v1251 = vpop.f32.mrb[0].mxu0
      %v1252 = vadd.f32 %v359, %v1251
      %v1253 = vpop.f32.mrb[0].mxu0
      %v1254 = vpop.f32.mrb[0].mxu0
      %v1255 = vadd.f32 %v359, %v1254
      %v1256 = vpop.f32.mrb[0].mxu0
      %1257 = vmatprep.mubr.bf16.mxu0 %v760
      %1258 = vmatmul.mubr.bf16.gmra.mrb[0].mxu0 %v759
      %v1259 = vpop.f32.mrb[0].mxu0
      %v1260 = vadd.f32 %v359, %v1259
      %v1261 = vpop.f32.mrb[0].mxu0
      %v1262 = vpop.f32.mrb[0].mxu0
      %v1263 = vadd.f32 %v359, %v1262
      %v1264 = vpop.f32.mrb[0].mxu0
      %1265 = vmatprep.mubr.bf16.mxu0 %v763
      %1266 = vmatmul.mubr.bf16.gmra.mrb[0].mxu0 %v762
      %v1267 = vpop.f32.mrb[0].mxu0
      %v1268 = vadd.f32 %v359, %v1267
      %v1269 = vpop.f32.mrb[0].mxu0
      %v1270 = vpop.f32.mrb[0].mxu0
      %v1271 = vadd.f32 %v359, %v1270
      %v1272 = vpop.f32.mrb[0].mxu0
      %1273 = vmatprep.mubr.bf16.mxu0 %v766
      %1274 = vmatmul.mubr.bf16.gmra.mrb[0].mxu0 %v765
      %v1275 = vpop.f32.mrb[0].mxu0
      %v1276 = vadd.f32 %v359, %v1275
      %v1277 = vpop.f32.mrb[0].mxu0
      %v1278 = vpop.f32.mrb[0].mxu0
      %v1279 = vadd.f32 %v359, %v1278
      %v1280 = vpop.f32.mrb[0].mxu0
      %1281 = vmatprep.mubr.bf16.mxu0 %v769
      %1282 = vmatmul.mubr.bf16.gmra.mrb[0].mxu0 %v768
      %v1283 = vpop.f32.mrb[0].mxu0
      %v1284 = vadd.f32 %v359, %v1283
      %v1285 = vpop.f32.mrb[0].mxu0
      %v1286 = vpop.f32.mrb[0].mxu0
      %v1287 = vadd.f32 %v359, %v1286
      %v1288 = vpop.f32.mrb[0].mxu0
      %1289 = vmatprep.mubr.bf16.mxu0 %v772
      %1290 = vmatmul.mubr.bf16.gmra.mrb[0].mxu0 %v771
      %v1291 = vpop.f32.mrb[0].mxu0
      %v1292 = vadd.f32 %v359, %v1291
      %v1293 = vpop.f32.mrb[0].mxu0
      %v1294 = vpop.f32.mrb[0].mxu0
      %v1295 = vadd.f32 %v359, %v1294
      %v1296 = vpop.f32.mrb[0].mxu0
      %1297 = vmatprep.mubr.bf16.mxu0 %v775
      %1298 = vmatmul.mubr.bf16.gmra.mrb[0].mxu0 %v774
      %v1299 = vpop.f32.mrb[0].mxu0
      %v1300 = vadd.f32 %v359, %v1299
      %v1301 = vpop.f32.mrb[0].mxu0
      %v1302 = vpop.f32.mrb[0].mxu0
      %v1303 = vadd.f32 %v359, %v1302
      %v1304 = vpop.f32.mrb[0].mxu0
      %1305 = vdwg.mxu0
      %1306 = vmatprep.subr.bf16.mxu0 0
      %1307 = vmatpush1.bf16.msra.mxu0 %v985
      %1308 = vmatprep.subr.bf16.mxu0 0
      %1309 = vmatpush1.bf16.msra.mxu0 %v986
      %1310 = vmatprep.subr.bf16.mxu0 0
      %1311 = vmatpush1.bf16.msra.mxu0 %v987
      %1312 = vmatprep.subr.bf16.mxu0 0
      %1313 = vmatpush1.bf16.msra.mxu0 %v988
      %1314 = vmatprep.subr.bf16.mxu0 0
      %1315 = vmatpush1.bf16.msra.mxu0 %v989
      %1316 = vmatprep.subr.bf16.mxu0 0
      %1317 = vmatpush1.bf16.msra.mxu0 %v990
      %1318 = vmatprep.subr.bf16.mxu0 0
      %1319 = vmatpush1.bf16.msra.mxu0 %v991
      %1320 = vmatprep.subr.bf16.mxu0 0
      %1321 = vmatpush1.bf16.msra.mxu0 %v992
      %1322 = vmatprep.subr.bf16.mxu0 0
      %1323 = vmatpush1.bf16.msra.mxu0 0
      %1324 = vmatprep.subr.bf16.mxu0 0
      %1325 = vmatpush1.bf16.msra.mxu0 0
      %1326 = vmatprep.subr.bf16.mxu0 0
      %1327 = vmatpush1.bf16.msra.mxu0 0
      %1328 = vmatprep.subr.bf16.mxu0 0
      %1329 = vmatpush1.bf16.msra.mxu0 0
      %1330 = vmatprep.subr.bf16.mxu0 0
      %1331 = vmatpush1.bf16.msra.mxu0 0
      %1332 = vmatprep.subr.bf16.mxu0 0
      %1333 = vmatpush1.bf16.msra.mxu0 0
      %1334 = vmatprep.subr.bf16.mxu0 0
      %1335 = vmatpush1.bf16.msra.mxu0 0
      %1336 = vmatprep.subr.bf16.mxu0 0
      %1337 = vmatpush1.bf16.msra.mxu0 0
      %1338 = vmatprep.mubr.bf16.mxu0 0
      %1339 = vmatmul.mubr.bf16.gmra.mrb[0].mxu0 %v683
      %v1340 = vpop.f32.mrb[0].mxu0
      %v1341 = vadd.f32 %v1052, %v1340
      %v1342 = vpop.f32.mrb[0].mxu0
      %v1343 = vpop.f32.mrb[0].mxu0
      %v1344 = vadd.f32 %v1055, %v1343
      %v1345 = vpop.f32.mrb[0].mxu0
      %1346 = vmatprep.mubr.bf16.mxu0 0
      %1347 = vmatmul.mubr.bf16.gmra.mrb[0].mxu0 %v686
      %v1348 = vpop.f32.mrb[0].mxu0
      %v1349 = vadd.f32 %v1060, %v1348
      %v1350 = vpop.f32.mrb[0].mxu0
      %v1351 = vpop.f32.mrb[0].mxu0
      %v1352 = vadd.f32 %v1063, %v1351
      %v1353 = vpop.f32.mrb[0].mxu0
      %1354 = vmatprep.mubr.bf16.mxu0 0
      %1355 = vmatmul.mubr.bf16.gmra.mrb[0].mxu0 %v689
      %v1356 = vpop.f32.mrb[0].mxu0
      %v1357 = vadd.f32 %v1068, %v1356
      %v1358 = vpop.f32.mrb[0].mxu0
      %v1359 = vpop.f32.mrb[0].mxu0
      %v1360 = vadd.f32 %v1071, %v1359
      %v1361 = vpop.f32.mrb[0].mxu0
      %1362 = vmatprep.mubr.bf16.mxu0 0
      %1363 = vmatmul.mubr.bf16.gmra.mrb[0].mxu0 %v692
      %v1364 = vpop.f32.mrb[0].mxu0
      %v1365 = vadd.f32 %v1076, %v1364
      %v1366 = vpop.f32.mrb[0].mxu0
      %v1367 = vpop.f32.mrb[0].mxu0
      %v1368 = vadd.f32 %v1079, %v1367
      %v1369 = vpop.f32.mrb[0].mxu0
      %1370 = vmatprep.mubr.bf16.mxu0 0
      %1371 = vmatmul.mubr.bf16.gmra.mrb[0].mxu0 %v695
      %v1372 = vpop.f32.mrb[0].mxu0
      %v1373 = vadd.f32 %v1084, %v1372
      %v1374 = vpop.f32.mrb[0].mxu0
      %v1375 = vpop.f32.mrb[0].mxu0
      %v1376 = vadd.f32 %v1087, %v1375
      %v1377 = vpop.f32.mrb[0].mxu0
      %1378 = vmatprep.mubr.bf16.mxu0 0
      %1379 = vmatmul.mubr.bf16.gmra.mrb[0].mxu0 %v698
      %v1380 = vpop.f32.mrb[0].mxu0
      %v1381 = vadd.f32 %v1092, %v1380
      %v1382 = vpop.f32.mrb[0].mxu0
      %v1383 = vpop.f32.mrb[0].mxu0
      %v1384 = vadd.f32 %v1095, %v1383
      %v1385 = vpop.f32.mrb[0].mxu0
      %1386 = vmatprep.mubr.bf16.mxu0 0
      %1387 = vmatmul.mubr.bf16.gmra.mrb[0].mxu0 %v701
      %v1388 = vpop.f32.mrb[0].mxu0
      %v1389 = vadd.f32 %v1100, %v1388
      %v1390 = vpop.f32.mrb[0].mxu0
      %v1391 = vpop.f32.mrb[0].mxu0
      %v1392 = vadd.f32 %v1103, %v1391
      %v1393 = vpop.f32.mrb[0].mxu0
      %1394 = vmatprep.mubr.bf16.mxu0 0
      %1395 = vmatmul.mubr.bf16.gmra.mrb[0].mxu0 %v704
      %v1396 = vpop.f32.mrb[0].mxu0
      %v1397 = vadd.f32 %v1108, %v1396
      %v1398 = vpop.f32.mrb[0].mxu0
      %v1399 = vpop.f32.mrb[0].mxu0
      %v1400 = vadd.f32 %v1111, %v1399
      %v1401 = vpop.f32.mrb[0].mxu0
      %1402 = vmatprep.mubr.bf16.mxu0 0
      %1403 = vmatmul.mubr.bf16.gmra.mrb[0].mxu0 %v707
      %v1404 = vpop.f32.mrb[0].mxu0
      %v1405 = vadd.f32 %v1116, %v1404
      %v1406 = vpop.f32.mrb[0].mxu0
      %v1407 = vpop.f32.mrb[0].mxu0
      %v1408 = vadd.f32 %v1119, %v1407
      %v1409 = vpop.f32.mrb[0].mxu0
      %1410 = vmatprep.mubr.bf16.mxu0 0
      %1411 = vmatmul.mubr.bf16.gmra.mrb[0].mxu0 %v710
      %v1412 = vpop.f32.mrb[0].mxu0
      %v1413 = vadd.f32 %v1124, %v1412
      %v1414 = vpop.f32.mrb[0].mxu0
      %v1415 = vpop.f32.mrb[0].mxu0
      %v1416 = vadd.f32 %v1127, %v1415
      %v1417 = vpop.f32.mrb[0].mxu0
      %1418 = vmatprep.mubr.bf16.mxu0 0
      %1419 = vmatmul.mubr.bf16.gmra.mrb[0].mxu0 %v713
      %v1420 = vpop.f32.mrb[0].mxu0
      %v1421 = vadd.f32 %v1132, %v1420
      %v1422 = vpop.f32.mrb[0].mxu0
      %v1423 = vpop.f32.mrb[0].mxu0
      %v1424 = vadd.f32 %v1135, %v1423
      %v1425 = vpop.f32.mrb[0].mxu0
      %1426 = vmatprep.mubr.bf16.mxu0 0
      %1427 = vmatmul.mubr.bf16.gmra.mrb[0].mxu0 %v716
      %v1428 = vpop.f32.mrb[0].mxu0
      %v1429 = vadd.f32 %v1140, %v1428
      %v1430 = vpop.f32.mrb[0].mxu0
      %v1431 = vpop.f32.mrb[0].mxu0
      %v1432 = vadd.f32 %v1143, %v1431
      %v1433 = vpop.f32.mrb[0].mxu0
      %1434 = vmatprep.mubr.bf16.mxu0 0
      %1435 = vmatmul.mubr.bf16.gmra.mrb[0].mxu0 %v719
      %v1436 = vpop.f32.mrb[0].mxu0
      %v1437 = vadd.f32 %v1148, %v1436
      %v1438 = vpop.f32.mrb[0].mxu0
      %v1439 = vpop.f32.mrb[0].mxu0
      %v1440 = vadd.f32 %v1151, %v1439
      %v1441 = vpop.f32.mrb[0].mxu0
      %1442 = vmatprep.mubr.bf16.mxu0 0
      %1443 = vmatmul.mubr.bf16.gmra.mrb[0].mxu0 %v722
      %v1444 = vpop.f32.mrb[0].mxu0
      %v1445 = vadd.f32 %v1156, %v1444
      %v1446 = vpop.f32.mrb[0].mxu0
      %v1447 = vpop.f32.mrb[0].mxu0
      %v1448 = vadd.f32 %v1159, %v1447
      %v1449 = vpop.f32.mrb[0].mxu0
      %1450 = vmatprep.mubr.bf16.mxu0 0
      %1451 = vmatmul.mubr.bf16.gmra.mrb[0].mxu0 %v725
      %v1452 = vpop.f32.mrb[0].mxu0
      %v1453 = vadd.f32 %v1164, %v1452
      %v1454 = vpop.f32.mrb[0].mxu0
      %v1455 = vpop.f32.mrb[0].mxu0
      %v1456 = vadd.f32 %v1167, %v1455
      %v1457 = vpop.f32.mrb[0].mxu0
      %1458 = vmatprep.mubr.bf16.mxu0 0
      %1459 = vmatmul.mubr.bf16.gmra.mrb[0].mxu0 %v728
      %v1460 = vpop.f32.mrb[0].mxu0
      %v1461 = vadd.f32 %v1172, %v1460
      %v1462 = vpop.f32.mrb[0].mxu0
      %v1463 = vpop.f32.mrb[0].mxu0
      %v1464 = vadd.f32 %v1175, %v1463
      %v1465 = vpop.f32.mrb[0].mxu0
      %1466 = vmatprep.mubr.bf16.mxu0 0
      %1467 = vmatmul.mubr.bf16.gmra.mrb[0].mxu0 %v731
      %v1468 = vpop.f32.mrb[0].mxu0
      %v1469 = vadd.f32 %v1180, %v1468
      %v1470 = vpop.f32.mrb[0].mxu0
      %v1471 = vpop.f32.mrb[0].mxu0
      %v1472 = vadd.f32 %v1183, %v1471
      %v1473 = vpop.f32.mrb[0].mxu0
      %1474 = vmatprep.mubr.bf16.mxu0 0
      %1475 = vmatmul.mubr.bf16.gmra.mrb[0].mxu0 %v734
      %v1476 = vpop.f32.mrb[0].mxu0
      %v1477 = vadd.f32 %v1188, %v1476
      %v1478 = vpop.f32.mrb[0].mxu0
      %v1479 = vpop.f32.mrb[0].mxu0
      %v1480 = vadd.f32 %v1191, %v1479
      %v1481 = vpop.f32.mrb[0].mxu0
      %1482 = vmatprep.mubr.bf16.mxu0 0
      %1483 = vmatmul.mubr.bf16.gmra.mrb[0].mxu0 %v737
      %v1484 = vpop.f32.mrb[0].mxu0
      %v1485 = vadd.f32 %v1196, %v1484
      %v1486 = vpop.f32.mrb[0].mxu0
      %v1487 = vpop.f32.mrb[0].mxu0
      %v1488 = vadd.f32 %v1199, %v1487
      %v1489 = vpop.f32.mrb[0].mxu0
      %1490 = vmatprep.mubr.bf16.mxu0 0
      %1491 = vmatmul.mubr.bf16.gmra.mrb[0].mxu0 %v740
      %v1492 = vpop.f32.mrb[0].mxu0
      %v1493 = vadd.f32 %v1204, %v1492
      %v1494 = vpop.f32.mrb[0].mxu0
      %v1495 = vpop.f32.mrb[0].mxu0
      %v1496 = vadd.f32 %v1207, %v1495
      %v1497 = vpop.f32.mrb[0].mxu0
      %1498 = vmatprep.mubr.bf16.mxu0 0
      %1499 = vmatmul.mubr.bf16.gmra.mrb[0].mxu0 %v743
      %v1500 = vpop.f32.mrb[0].mxu0
      %v1501 = vadd.f32 %v1212, %v1500
      %v1502 = vpop.f32.mrb[0].mxu0
      %v1503 = vpop.f32.mrb[0].mxu0
      %v1504 = vadd.f32 %v1215, %v1503
      %v1505 = vpop.f32.mrb[0].mxu0
      %1506 = vmatprep.mubr.bf16.mxu0 0
      %1507 = vmatmul.mubr.bf16.gmra.mrb[0].mxu0 %v746
      %v1508 = vpop.f32.mrb[0].mxu0
      %v1509 = vadd.f32 %v1220, %v1508
      %v1510 = vpop.f32.mrb[0].mxu0
      %v1511 = vpop.f32.mrb[0].mxu0
      %v1512 = vadd.f32 %v1223, %v1511
      %v1513 = vpop.f32.mrb[0].mxu0
      %1514 = vmatprep.mubr.bf16.mxu0 0
      %1515 = vmatmul.mubr.bf16.gmra.mrb[0].mxu0 %v749
      %v1516 = vpop.f32.mrb[0].mxu0
      %v1517 = vadd.f32 %v1228, %v1516
      %v1518 = vpop.f32.mrb[0].mxu0
      %v1519 = vpop.f32.mrb[0].mxu0
      %v1520 = vadd.f32 %v1231, %v1519
      %v1521 = vpop.f32.mrb[0].mxu0
      %1522 = vmatprep.mubr.bf16.mxu0 0
      %1523 = vmatmul.mubr.bf16.gmra.mrb[0].mxu0 %v752
      %v1524 = vpop.f32.mrb[0].mxu0
      %v1525 = vadd.f32 %v1236, %v1524
      %v1526 = vpop.f32.mrb[0].mxu0
      %v1527 = vpop.f32.mrb[0].mxu0
      %v1528 = vadd.f32 %v1239, %v1527
      %v1529 = vpop.f32.mrb[0].mxu0
      %1530 = vmatprep.mubr.bf16.mxu0 0
      %1531 = vmatmul.mubr.bf16.gmra.mrb[0].mxu0 %v755
      %v1532 = vpop.f32.mrb[0].mxu0
      %v1533 = vadd.f32 %v1244, %v1532
      %v1534 = vpop.f32.mrb[0].mxu0
      %v1535 = vpop.f32.mrb[0].mxu0
      %v1536 = vadd.f32 %v1247, %v1535
      %v1537 = vpop.f32.mrb[0].mxu0
      %1538 = vmatprep.mubr.bf16.mxu0 0
      %1539 = vmatmul.mubr.bf16.gmra.mrb[0].mxu0 %v758
      %v1540 = vpop.f32.mrb[0].mxu0
      %v1541 = vadd.f32 %v1252, %v1540
      %v1542 = vpop.f32.mrb[0].mxu0
      %v1543 = vpop.f32.mrb[0].mxu0
      %v1544 = vadd.f32 %v1255, %v1543
      %v1545 = vpop.f32.mrb[0].mxu0
      %1546 = vmatprep.mubr.bf16.mxu0 0
      %1547 = vmatmul.mubr.bf16.gmra.mrb[0].mxu0 %v761
      %v1548 = vpop.f32.mrb[0].mxu0
      %v1549 = vadd.f32 %v1260, %v1548
      %v1550 = vpop.f32.mrb[0].mxu0
      %v1551 = vpop.f32.mrb[0].mxu0
      %v1552 = vadd.f32 %v1263, %v1551
      %v1553 = vpop.f32.mrb[0].mxu0
      %1554 = vmatprep.mubr.bf16.mxu0 0
      %1555 = vmatmul.mubr.bf16.gmra.mrb[0].mxu0 %v764
      %v1556 = vpop.f32.mrb[0].mxu0
      %v1557 = vadd.f32 %v1268, %v1556
      %v1558 = vpop.f32.mrb[0].mxu0
      %v1559 = vpop.f32.mrb[0].mxu0
      %v1560 = vadd.f32 %v1271, %v1559
      %v1561 = vpop.f32.mrb[0].mxu0
      %1562 = vmatprep.mubr.bf16.mxu0 0
      %1563 = vmatmul.mubr.bf16.gmra.mrb[0].mxu0 %v767
      %v1564 = vpop.f32.mrb[0].mxu0
      %v1565 = vadd.f32 %v1276, %v1564
      %v1566 = vpop.f32.mrb[0].mxu0
      %v1567 = vpop.f32.mrb[0].mxu0
      %v1568 = vadd.f32 %v1279, %v1567
      %v1569 = vpop.f32.mrb[0].mxu0
      %1570 = vmatprep.mubr.bf16.mxu0 0
      %1571 = vmatmul.mubr.bf16.gmra.mrb[0].mxu0 %v770
      %v1572 = vpop.f32.mrb[0].mxu0
      %v1573 = vadd.f32 %v1284, %v1572
      %v1574 = vpop.f32.mrb[0].mxu0
      %v1575 = vpop.f32.mrb[0].mxu0
      %v1576 = vadd.f32 %v1287, %v1575
      %v1577 = vpop.f32.mrb[0].mxu0
      %1578 = vmatprep.mubr.bf16.mxu0 0
      %1579 = vmatmul.mubr.bf16.gmra.mrb[0].mxu0 %v773
      %v1580 = vpop.f32.mrb[0].mxu0
      %v1581 = vadd.f32 %v1292, %v1580
      %v1582 = vpop.f32.mrb[0].mxu0
      %v1583 = vpop.f32.mrb[0].mxu0
      %v1584 = vadd.f32 %v1295, %v1583
      %v1585 = vpop.f32.mrb[0].mxu0
      %1586 = vmatprep.mubr.bf16.mxu0 0
      %1587 = vmatmul.mubr.bf16.gmra.mrb[0].mxu0 %v776
      %v1588 = vpop.f32.mrb[0].mxu0
      %v1589 = vadd.f32 %v1300, %v1588
      %v1590 = vpop.f32.mrb[0].mxu0
      %v1591 = vpop.f32.mrb[0].mxu0
      %v1592 = vadd.f32 %v1303, %v1591
      %v1593 = vpop.f32.mrb[0].mxu0
      %1594 = vdwg.mxu0
      %v1595 = vmax.f32 %v1341, 0.0
      %v1596 = vmax.f32 %v1344, 0.0
      %v1597 = vmax.f32 %v1349, 0.0
      %v1598 = vmax.f32 %v1352, 0.0
      %v1599 = vmax.f32 %v1357, 0.0
      %v1600 = vmax.f32 %v1360, 0.0
      %v1601 = vmax.f32 %v1365, 0.0
      %v1602 = vmax.f32 %v1368, 0.0
      %v1603 = vmax.f32 %v1373, 0.0
      %v1604 = vmax.f32 %v1376, 0.0
      %v1605 = vmax.f32 %v1381, 0.0
      %v1606 = vmax.f32 %v1384, 0.0
      %v1607 = vmax.f32 %v1389, 0.0
      %v1608 = vmax.f32 %v1392, 0.0
      %v1609 = vmax.f32 %v1397, 0.0
      %v1610 = vmax.f32 %v1400, 0.0
      %v1611 = vmax.f32 %v1405, 0.0
      %v1612 = vmax.f32 %v1408, 0.0
      %v1613 = vmax.f32 %v1413, 0.0
      %v1614 = vmax.f32 %v1416, 0.0
      %v1615 = vmax.f32 %v1421, 0.0
      %v1616 = vmax.f32 %v1424, 0.0
      %v1617 = vmax.f32 %v1429, 0.0
      %v1618 = vmax.f32 %v1432, 0.0
      %v1619 = vmax.f32 %v1437, 0.0
      %v1620 = vmax.f32 %v1440, 0.0
      %v1621 = vmax.f32 %v1445, 0.0
      %v1622 = vmax.f32 %v1448, 0.0
      %v1623 = vmax.f32 %v1453, 0.0
      %v1624 = vmax.f32 %v1456, 0.0
      %v1625 = vmax.f32 %v1461, 0.0
      %v1626 = vmax.f32 %v1464, 0.0
      %v1627 = vmax.f32 %v1469, 0.0
      %v1628 = vmax.f32 %v1472, 0.0
      %v1629 = vmax.f32 %v1477, 0.0
      %v1630 = vmax.f32 %v1480, 0.0
      %v1631 = vmax.f32 %v1485, 0.0
      %v1632 = vmax.f32 %v1488, 0.0
      %v1633 = vmax.f32 %v1493, 0.0
      %v1634 = vmax.f32 %v1496, 0.0
      %v1635 = vmax.f32 %v1501, 0.0
      %v1636 = vmax.f32 %v1504, 0.0
      %v1637 = vmax.f32 %v1509, 0.0
      %v1638 = vmax.f32 %v1512, 0.0
      %v1639 = vmax.f32 %v1517, 0.0
      %v1640 = vmax.f32 %v1520, 0.0
      %v1641 = vmax.f32 %v1525, 0.0
      %v1642 = vmax.f32 %v1528, 0.0
      %v1643 = vmax.f32 %v1533, 0.0
      %v1644 = vmax.f32 %v1536, 0.0
      %v1645 = vmax.f32 %v1541, 0.0
      %v1646 = vmax.f32 %v1544, 0.0
      %v1647 = vmax.f32 %v1549, 0.0
      %v1648 = vmax.f32 %v1552, 0.0
      %v1649 = vmax.f32 %v1557, 0.0
      %v1650 = vmax.f32 %v1560, 0.0
      %v1651 = vmax.f32 %v1565, 0.0
      %v1652 = vmax.f32 %v1568, 0.0
      %v1653 = vmax.f32 %v1573, 0.0
      %v1654 = vmax.f32 %v1576, 0.0
      %v1655 = vmax.f32 %v1581, 0.0
      %v1656 = vmax.f32 %v1584, 0.0
      %v1657 = vmax.f32 %v1589, 0.0
      %v1658 = vmax.f32 %v1592, 0.0
      %v1659 = vpack.c.bf16 %v1596, %v1595
      %v1660 = vpack.c.bf16 %v1598, %v1597
      %v1661 = vpack.c.bf16 %v1600, %v1599
      %v1662 = vpack.c.bf16 %v1602, %v1601
      %v1663 = vpack.c.bf16 %v1604, %v1603
      %v1664 = vpack.c.bf16 %v1606, %v1605
      %v1665 = vpack.c.bf16 %v1608, %v1607
      %v1666 = vpack.c.bf16 %v1610, %v1609
      %v1667 = vpack.c.bf16 %v1612, %v1611
      %v1668 = vpack.c.bf16 %v1614, %v1613
      %v1669 = vpack.c.bf16 %v1616, %v1615
      %v1670 = vpack.c.bf16 %v1618, %v1617
      %v1671 = vpack.c.bf16 %v1620, %v1619
      %v1672 = vpack.c.bf16 %v1622, %v1621
      %v1673 = vpack.c.bf16 %v1624, %v1623
      %v1674 = vpack.c.bf16 %v1626, %v1625
      %v1675 = vpack.c.bf16 %v1628, %v1627
      %v1676 = vpack.c.bf16 %v1630, %v1629
      %v1677 = vpack.c.bf16 %v1632, %v1631
      %v1678 = vpack.c.bf16 %v1634, %v1633
      %v1679 = vpack.c.bf16 %v1636, %v1635
      %v1680 = vpack.c.bf16 %v1638, %v1637
      %v1681 = vpack.c.bf16 %v1640, %v1639
      %v1682 = vpack.c.bf16 %v1642, %v1641
      %v1683 = vpack.c.bf16 %v1644, %v1643
      %v1684 = vpack.c.bf16 %v1646, %v1645
      %v1685 = vpack.c.bf16 %v1648, %v1647
      %v1686 = vpack.c.bf16 %v1650, %v1649
      %v1687 = vpack.c.bf16 %v1652, %v1651
      %v1688 = vpack.c.bf16 %v1654, %v1653
      %v1689 = vpack.c.bf16 %v1656, %v1655
      %v1690 = vpack.c.bf16 %v1658, %v1657
      %v1723 = vunpack.c.l.b16 %v1659
      %v1724 = vunpack.c.h.b16 %v1659
      %v1725 = vunpack.c.l.b16 %v1660
      %v1726 = vunpack.c.h.b16 %v1660
      %v1727 = vunpack.c.l.b16 %v1661
      %v1728 = vunpack.c.h.b16 %v1661
      %v1729 = vunpack.c.l.b16 %v1662
      %v1730 = vunpack.c.h.b16 %v1662
      %v1731 = vunpack.c.l.b16 %v1663
      %v1732 = vunpack.c.h.b16 %v1663
      %v1733 = vunpack.c.l.b16 %v1664
      %v1734 = vunpack.c.h.b16 %v1664
      %v1735 = vunpack.c.l.b16 %v1665
      %v1736 = vunpack.c.h.b16 %v1665
      %v1737 = vunpack.c.l.b16 %v1666
      %v1738 = vunpack.c.h.b16 %v1666
      %v1739 = vunpack.c.l.b16 %v1667
      %v1740 = vunpack.c.h.b16 %v1667
      %v1741 = vunpack.c.l.b16 %v1668
      %v1742 = vunpack.c.h.b16 %v1668
      %v1743 = vunpack.c.l.b16 %v1669
      %v1744 = vunpack.c.h.b16 %v1669
      %v1745 = vunpack.c.l.b16 %v1670
      %v1746 = vunpack.c.h.b16 %v1670
      %v1747 = vunpack.c.l.b16 %v1671
      %v1748 = vunpack.c.h.b16 %v1671
      %v1749 = vunpack.c.l.b16 %v1672
      %v1750 = vunpack.c.h.b16 %v1672
      %v1751 = vunpack.c.l.b16 %v1673
      %v1752 = vunpack.c.h.b16 %v1673
      %v1753 = vunpack.c.l.b16 %v1674
      %v1754 = vunpack.c.h.b16 %v1674
      %v1755 = vunpack.c.l.b16 %v1675
      %v1756 = vunpack.c.h.b16 %v1675
      %v1757 = vunpack.c.l.b16 %v1676
      %v1758 = vunpack.c.h.b16 %v1676
      %v1759 = vunpack.c.l.b16 %v1677
      %v1760 = vunpack.c.h.b16 %v1677
      %v1761 = vunpack.c.l.b16 %v1678
      %v1762 = vunpack.c.h.b16 %v1678
      %v1763 = vunpack.c.l.b16 %v1679
      %v1764 = vunpack.c.h.b16 %v1679
      %v1765 = vunpack.c.l.b16 %v1680
      %v1766 = vunpack.c.h.b16 %v1680
      %v1767 = vunpack.c.l.b16 %v1681
      %v1768 = vunpack.c.h.b16 %v1681
      %v1769 = vunpack.c.l.b16 %v1682
      %v1770 = vunpack.c.h.b16 %v1682
      %v1771 = vunpack.c.l.b16 %v1683
      %v1772 = vunpack.c.h.b16 %v1683
      %v1773 = vunpack.c.l.b16 %v1684
      %v1774 = vunpack.c.h.b16 %v1684
      %v1775 = vunpack.c.l.b16 %v1685
      %v1776 = vunpack.c.h.b16 %v1685
      %v1777 = vunpack.c.l.b16 %v1686
      %v1778 = vunpack.c.h.b16 %v1686
      %v1779 = vunpack.c.l.b16 %v1687
      %v1780 = vunpack.c.h.b16 %v1687
      %v1781 = vunpack.c.l.b16 %v1688
      %v1782 = vunpack.c.h.b16 %v1688
      %v1783 = vunpack.c.l.b16 %v1689
      %v1784 = vunpack.c.h.b16 %v1689
      %v1785 = vunpack.c.l.b16 %v1690
      %v1786 = vunpack.c.h.b16 %v1690
      %v1787 = vpack.c.b16 %v1723, %v1723
      %v1788 = vpack.c.b16 %v1724, %v1724
      %v1789 = vpack.c.b16 %v1725, %v1725
      %v1790 = vpack.c.b16 %v1726, %v1726
      %v1791 = vpack.c.b16 %v1727, %v1727
      %v1792 = vpack.c.b16 %v1728, %v1728
      %v1793 = vpack.c.b16 %v1729, %v1729
      %v1794 = vpack.c.b16 %v1730, %v1730
      %v1795 = vpack.c.b16 %v1731, %v1731
      %v1796 = vpack.c.b16 %v1732, %v1732
      %v1797 = vpack.c.b16 %v1733, %v1733
      %v1798 = vpack.c.b16 %v1734, %v1734
      %v1799 = vpack.c.b16 %v1735, %v1735
      %v1800 = vpack.c.b16 %v1736, %v1736
      %v1801 = vpack.c.b16 %v1737, %v1737
      %v1802 = vpack.c.b16 %v1738, %v1738
      %v1803 = vpack.c.b16 %v1739, %v1739
      %v1804 = vpack.c.b16 %v1740, %v1740
      %v1805 = vpack.c.b16 %v1741, %v1741
      %v1806 = vpack.c.b16 %v1742, %v1742
      %v1807 = vpack.c.b16 %v1743, %v1743
      %v1808 = vpack.c.b16 %v1744, %v1744
      %v1809 = vpack.c.b16 %v1745, %v1745
      %v1810 = vpack.c.b16 %v1746, %v1746
      %v1811 = vpack.c.b16 %v1747, %v1747
      %v1812 = vpack.c.b16 %v1748, %v1748
      %v1813 = vpack.c.b16 %v1749, %v1749
      %v1814 = vpack.c.b16 %v1750, %v1750
      %v1815 = vpack.c.b16 %v1751, %v1751
      %v1816 = vpack.c.b16 %v1752, %v1752
      %v1817 = vpack.c.b16 %v1753, %v1753
      %v1818 = vpack.c.b16 %v1754, %v1754
      %v1819 = vpack.c.b16 %v1755, %v1755
      %v1820 = vpack.c.b16 %v1756, %v1756
      %v1821 = vpack.c.b16 %v1757, %v1757
      %v1822 = vpack.c.b16 %v1758, %v1758
      %v1823 = vpack.c.b16 %v1759, %v1759
      %v1824 = vpack.c.b16 %v1760, %v1760
      %v1825 = vpack.c.b16 %v1761, %v1761
      %v1826 = vpack.c.b16 %v1762, %v1762
      %v1827 = vpack.c.b16 %v1763, %v1763
      %v1828 = vpack.c.b16 %v1764, %v1764
      %v1829 = vpack.c.b16 %v1765, %v1765
      %v1830 = vpack.c.b16 %v1766, %v1766
      %v1831 = vpack.c.b16 %v1767, %v1767
      %v1832 = vpack.c.b16 %v1768, %v1768
      %v1833 = vpack.c.b16 %v1769, %v1769
      %v1834 = vpack.c.b16 %v1770, %v1770
      %v1835 = vpack.c.b16 %v1771, %v1771
      %v1836 = vpack.c.b16 %v1772, %v1772
      %v1837 = vpack.c.b16 %v1773, %v1773
      %v1838 = vpack.c.b16 %v1774, %v1774
      %v1839 = vpack.c.b16 %v1775, %v1775
      %v1840 = vpack.c.b16 %v1776, %v1776
      %v1841 = vpack.c.b16 %v1777, %v1777
      %v1842 = vpack.c.b16 %v1778, %v1778
      %v1843 = vpack.c.b16 %v1779, %v1779
      %v1844 = vpack.c.b16 %v1780, %v1780
      %v1845 = vpack.c.b16 %v1781, %v1781
      %v1846 = vpack.c.b16 %v1782, %v1782
      %v1847 = vpack.c.b16 %v1783, %v1783
      %v1848 = vpack.c.b16 %v1784, %v1784
      %v1849 = vpack.c.b16 %v1785, %v1785
      %v1850 = vpack.c.b16 %v1786, %v1786
      %1915 = vst [vmem:[%s175] sm:$0xf] %v1787
      %1916 = vst [vmem:[%s175 + $0x4] sm:$0xf] %v1788
      %1917 = vst [vmem:[%s175 + $0x8] sm:$0xf] %v1789
      %1918 = vst [vmem:[%s175 + $0xc] sm:$0xf] %v1790
      %1919 = vst [vmem:[%s175 + $0x10] sm:$0xf] %v1791
      %1920 = vst [vmem:[%s175 + $0x14] sm:$0xf] %v1792
      %1921 = vst [vmem:[%s175 + $0x18] sm:$0xf] %v1793
      %1922 = vst [vmem:[%s175 + $0x1c] sm:$0xf] %v1794
      %1923 = vst [vmem:[%s175 + $0x20] sm:$0xf] %v1795
      %1924 = vst [vmem:[%s175 + $0x24] sm:$0xf] %v1796
      %1925 = vst [vmem:[%s175 + $0x28] sm:$0xf] %v1797
      %1926 = vst [vmem:[%s175 + $0x2c] sm:$0xf] %v1798
      %1927 = vst [vmem:[%s175 + $0x30] sm:$0xf] %v1799
      %1928 = vst [vmem:[%s175 + $0x34] sm:$0xf] %v1800
      %1929 = vst [vmem:[%s175 + $0x38] sm:$0xf] %v1801
      %1930 = vst [vmem:[%s175 + $0x3c] sm:$0xf] %v1802
      %1931 = vst [vmem:[%s175 + $0x40] sm:$0xf] %v1803
      %1932 = vst [vmem:[%s175 + $0x44] sm:$0xf] %v1804
      %1933 = vst [vmem:[%s175 + $0x48] sm:$0xf] %v1805
      %1934 = vst [vmem:[%s175 + $0x4c] sm:$0xf] %v1806
      %1935 = vst [vmem:[%s175 + $0x50] sm:$0xf] %v1807
      %1936 = vst [vmem:[%s175 + $0x54] sm:$0xf] %v1808
      %1937 = vst [vmem:[%s175 + $0x58] sm:$0xf] %v1809
      %1938 = vst [vmem:[%s175 + $0x5c] sm:$0xf] %v1810
      %1939 = vst [vmem:[%s175 + $0x60] sm:$0xf] %v1811
      %1940 = vst [vmem:[%s175 + $0x64] sm:$0xf] %v1812
      %1941 = vst [vmem:[%s175 + $0x68] sm:$0xf] %v1813
      %1942 = vst [vmem:[%s175 + $0x6c] sm:$0xf] %v1814
      %1943 = vst [vmem:[%s175 + $0x70] sm:$0xf] %v1815
      %1944 = vst [vmem:[%s175 + $0x74] sm:$0xf] %v1816
      %1945 = vst [vmem:[%s175 + $0x78] sm:$0xf] %v1817
      %1946 = vst [vmem:[%s175 + $0x7c] sm:$0xf] %v1818
      %1947 = vst [vmem:[%s175 + $0x80] sm:$0xf] %v1819
      %1948 = vst [vmem:[%s175 + $0x84] sm:$0xf] %v1820
      %1949 = vst [vmem:[%s175 + $0x88] sm:$0xf] %v1821
      %1950 = vst [vmem:[%s175 + $0x8c] sm:$0xf] %v1822
      %1951 = vst [vmem:[%s175 + $0x90] sm:$0xf] %v1823
      %1952 = vst [vmem:[%s175 + $0x94] sm:$0xf] %v1824
      %1953 = vst [vmem:[%s175 + $0x98] sm:$0xf] %v1825
      %1954 = vst [vmem:[%s175 + $0x9c] sm:$0xf] %v1826
      %1955 = vst [vmem:[%s175 + $0xa0] sm:$0xf] %v1827
      %1956 = vst [vmem:[%s175 + $0xa4] sm:$0xf] %v1828
      %1957 = vst [vmem:[%s175 + $0xa8] sm:$0xf] %v1829
      %1958 = vst [vmem:[%s175 + $0xac] sm:$0xf] %v1830
      %1959 = vst [vmem:[%s175 + $0xb0] sm:$0xf] %v1831
      %1960 = vst [vmem:[%s175 + $0xb4] sm:$0xf] %v1832
      %1961 = vst [vmem:[%s175 + $0xb8] sm:$0xf] %v1833
      %1962 = vst [vmem:[%s175 + $0xbc] sm:$0xf] %v1834
      %1963 = vst [vmem:[%s175 + $0xc0] sm:$0xf] %v1835
      %1964 = vst [vmem:[%s175 + $0xc4] sm:$0xf] %v1836
      %1965 = vst [vmem:[%s175 + $0xc8] sm:$0xf] %v1837
      %1966 = vst [vmem:[%s175 + $0xcc] sm:$0xf] %v1838
      %1967 = vst [vmem:[%s175 + $0xd0] sm:$0xf] %v1839
      %1968 = vst [vmem:[%s175 + $0xd4] sm:$0xf] %v1840
      %1969 = vst [vmem:[%s175 + $0xd8] sm:$0xf] %v1841
      %1970 = vst [vmem:[%s175 + $0xdc] sm:$0xf] %v1842
      %1971 = vst [vmem:[%s175 + $0xe0] sm:$0xf] %v1843
      %1972 = vst [vmem:[%s175 + $0xe4] sm:$0xf] %v1844
      %1973 = vst [vmem:[%s175 + $0xe8] sm:$0xf] %v1845
      %1974 = vst [vmem:[%s175 + $0xec] sm:$0xf] %v1846
      %1975 = vst [vmem:[%s175 + $0xf0] sm:$0xf] %v1847
      %1976 = vst [vmem:[%s175 + $0xf4] sm:$0xf] %v1848
      %1977 = vst [vmem:[%s175 + $0xf8] sm:$0xf] %v1849
      %1978 = vst [vmem:[%s175 + $0xfc] sm:$0xf] %v1850
      %s1979 = smul.u32 64, %s14
      %p1980 = scmp.lt.s32.totalorder %s1979, 191
      %s1981 = scalar_select %p1980, %s1979, 191
      %s1982 = smul.addr %s1981, 4
      %s1983 = scalar_lea.vmem %s3, %s1982
      // Predicated region
      $region33: #{cnn_forward.5} parent=31 // pred_check
        %p1984 = pneg %p100
      $region34: #{cnn_forward.5} parent=31 // pred_check_branch
        %1986 = sbr.rel (%p1984) target = $region36
      $region35: #{cnn_forward.5} parent=31 // pred_region
        %s1987 = smul.u32 64, %s14
      $region36: #{cnn_forward.5} parent=31 // pred_fallthru
        _
    $region32: #{cnn_forward.5} parent=5 // pred_fallthru
      _
    %p1988 = scmp.le.s32.totalorder 2, %s9
    // Predicated region
    $region37: #{cnn_forward.5} parent=5 // pred_check
      %p1989 = pneg %p1988
    $region38: #{cnn_forward.5} parent=5 // pred_check_branch
      %1991 = sbr.rel (%p1989) target = $region40
    $region39: #{cnn_forward.5} parent=5 // pred_region
      %s1992 = ssub.s32 %s9, 2
      // Predicated region
      $region41: #{cnn_forward.5} parent=39 // pred_check
        %p1993 = pneg %p106
      $region42: #{cnn_forward.5} parent=39 // pred_check_branch
        %1995 = sbr.rel (%p1993) target = $region44
      $region43: #{cnn_forward.5} parent=39 // pred_region
        %s1996 = smul.u32 64, %s15
        %p1997 = scmp.lt.s32.totalorder %s1996, 191
        %s1998 = scalar_select %p1997, %s1996, 191
        %s1999 = smul.addr %s1998, 4
        %s2000 = scalar_lea.vmem %s3, %s1999
      $region44: #{cnn_forward.5} parent=39 // pred_fallthru
        _
    $region40: #{cnn_forward.5} parent=5 // pred_fallthru
      _
  $region6: #{cnn_forward.5} parent=0 // loop_footer
    %s13 = sadd.s32 1, %s9
  $region7: #{cnn_forward.5} parent=0 // loop_footer_branch
    %8 = sbr.rel target = $region3
  $region8: #{cnn_forward.5} parent=0 // loop_exit
    _

// kernel: cnn_forward.6
$region0: #{cnn_forward.6}
  #allocation0 [shape = 'u32[]', space=smem, size = 0x4, offset = 0x4, fixed_abs, tag = 'smem constant byte address 0x4 - core index']
  #allocation1 [shape = 'u32[144,128]{1,0:T(1,128)}', space=vmem, size = 0x12000, scoped, tag = 'internal scratch']
  %s0 = inlined_call_operand.vmem [shape: bf16[2,12,2,12,128], index: 0, kind: input, shape index: {}]
  %s1 = inlined_call_operand.vmem [shape: bf16[2,12,12,64], index: 1, kind: output, shape index: {}]
  %s2 = sld [smem:[#allocation0]]
  $region37: #{cnn_forward.6} parent=0
    _
  %s4 = ssub.s32 1, %s2
  %s5 = scalar_select 0, %s4, %s2
  loop: start=0, step=1, limit=4
  $region2: #{cnn_forward.6} parent=0 // loop_pre_header
    _
  $region3: #{cnn_forward.6} parent=0 // loop_header
    %s7 = sphi 0, %s11
    %p8 = scmp.ge.s32.totalorder %s7, 4
    %s17 = sphi 0, %s19
    %s20 = sphi 0, %s17
    %s21 = sphi 0, %s20
    %s37 = sphi 0, %s21
    %s43 = sphi 0, %s45
    %s46 = sphi 0, %s43
    %s47 = sphi 0, %s46
    %s63 = sphi 0, %s47
  $region4: #{cnn_forward.6} parent=0 // loop_header_branch
    %10 = sbr.rel (%p8) target = $region8
  $region5: #{cnn_forward.6} parent=0 // loop_body
    %s12 = ssub.s32 %s7, 1
    %s13 = ssub.s32 %s7, 2
    %s14 = sadd.s32 %s7, 1
    %s15 = ssub.s32 %s7, %s14
    %p16 = scmp.eq.s32.totalorder %s15, 0
    %s18 = sadd.s32 %s17, 1
    %s19 = scalar_select %p16, %s17, %s18
    %p22 = pneg %p16
    %p23 = scmp.eq.s32.totalorder %s7, 1
    %p24 = por %p22, %p23
    %p25 = scmp.ne.s32.totalorder %s17, %s20
    %p26 = scmp.eq.s32.totalorder %s7, 0
    %p27 = por %p25, %p26
    %p28 = scmp.ne.s32.totalorder %s17, %s20
    %p29 = scmp.eq.s32.totalorder %s12, 1
    %p30 = por %p28, %p29
    %p31 = scmp.ne.s32.totalorder %s20, %s21
    %p32 = scmp.eq.s32.totalorder %s12, 0
    %p33 = por %p31, %p32
    %p34 = scmp.ne.s32.totalorder %s20, %s21
    %p35 = scmp.eq.s32.totalorder %s13, 1
    %p36 = por %p34, %p35
    %p38 = scmp.ne.s32.totalorder %s21, %s37
    %p39 = scmp.eq.s32.totalorder %s13, 0
    %p40 = por %p38, %p39
    %s41 = ssub.s32 %s7, %s14
    %p42 = scmp.eq.s32.totalorder %s41, 0
    %s44 = sadd.s32 %s43, 1
    %s45 = scalar_select %p42, %s43, %s44
    %p48 = pneg %p42
    %p49 = scmp.eq.s32.totalorder %s7, 1
    %p50 = por %p48, %p49
    %p51 = scmp.ne.s32.totalorder %s43, %s46
    %p52 = scmp.eq.s32.totalorder %s7, 0
    %p53 = por %p51, %p52
    %p54 = scmp.ne.s32.totalorder %s43, %s46
    %p55 = scmp.eq.s32.totalorder %s12, 1
    %p56 = por %p54, %p55
    %p57 = scmp.ne.s32.totalorder %s46, %s47
    %p58 = scmp.eq.s32.totalorder %s12, 0
    %p59 = por %p57, %p58
    %p60 = scmp.ne.s32.totalorder %s46, %s47
    %p61 = scmp.eq.s32.totalorder %s13, 1
    %p62 = por %p60, %p61
    %p64 = scmp.ne.s32.totalorder %s47, %s63
    %p65 = scmp.eq.s32.totalorder %s13, 0
    %p66 = por %p64, %p65
    %p67 = scmp.le.s32.totalorder 1, %s7
    %p68 = scmp.lt.s32.totalorder %s7, 3
    %p69 = pnand %p67, %p68
    %p70 = pneg %p69
    // Predicated region
    $region9: #{cnn_forward.6} parent=5 // pred_check
      _
    $region10: #{cnn_forward.6} parent=5 // pred_check_branch
      %72 = sbr.rel (%p69) target = $region12
    $region11: #{cnn_forward.6} parent=5 // pred_region
      %s73 = ssub.s32 %s7, 1
    $region12: #{cnn_forward.6} parent=5 // pred_fallthru
      _
    %p74 = scmp.lt.s32.totalorder %s7, 2
    // Predicated region
    $region13: #{cnn_forward.6} parent=5 // pred_check
      %p75 = pneg %p74
    $region14: #{cnn_forward.6} parent=5 // pred_check_branch
      %77 = sbr.rel (%p75) target = $region16
    $region15: #{cnn_forward.6} parent=5 // pred_region
      // Predicated region
      $region17: #{cnn_forward.6} parent=15 // pred_check
        %p78 = pneg %p27
      $region18: #{cnn_forward.6} parent=15 // pred_check_branch
        %80 = sbr.rel (%p78) target = $region20
      $region19: #{cnn_forward.6} parent=15 // pred_region
        %p81 = scmp.lt.s32.totalorder %s7, 1
        %s82 = scalar_select %p81, %s7, 1
        %s83 = smul.addr %s82, 48
        %s84 = smul.addr %s83, 4
        %s85 = scalar_lea.vmem %s0, %s84
      $region20: #{cnn_forward.6} parent=15 // pred_fallthru
        _
    $region16: #{cnn_forward.6} parent=5 // pred_fallthru
      _
    %p86 = scmp.le.s32.totalorder 1, %s7
    %p87 = scmp.lt.s32.totalorder %s7, 3
    %p88 = pnand %p86, %p87
    %p89 = pneg %p88
    // Predicated region
    $region21: #{cnn_forward.6} parent=5 // pred_check
      _
    $region22: #{cnn_forward.6} parent=5 // pred_check_branch
      %91 = sbr.rel (%p88) target = $region24
    $region23: #{cnn_forward.6} parent=5 // pred_region
      %s92 = ssub.s32 %s7, 1
      %p93 = scmp.lt.s32.totalorder %s12, 1
      %s94 = scalar_select %p93, %s12, 1
      %s95 = smul.addr %s94, 48
      %s96 = smul.addr %s95, 4
      %s97 = scalar_lea.vmem %s0, %s96
      %p98 = pneg %p33
      %p99 = pneg %p30
      %p100 = pneg %p59
      %p101 = pneg %p56
      %p102 = scmp.lt.s32.totalorder %s12, 1
      %s103 = scalar_select %p102, %s12, 1
      %s104 = smul.addr %s103, 24
      %s105 = smul.addr %s104, 4
      %s106 = scalar_lea.vmem %s1, %s105
      %p107 = scmp.lt.s32.totalorder %s12, 1
      %s108 = scalar_select %p107, %s12, 1
      %s109 = smul.addr %s108, 48
      %s110 = smul.addr %s109, 4
      %s111 = scalar_lea.vmem %s0, %s110
      %p112 = scmp.lt.s32.totalorder %s12, 1
      %s113 = scalar_select %p112, %s12, 1
      %s114 = smul.addr %s113, 24
      %s115 = smul.addr %s114, 4
      %s116 = scalar_lea.vmem %s1, %s115
      %v117 = vld [vmem:[%s111] sm:$0xf]
      %v118 = vld [vmem:[%s111 + $0x4] sm:$0x3]
      %v119 = vld [vmem:[%s111 + $0x8] sm:$0xf]
      %v120 = vld [vmem:[%s111 + $0xc] sm:$0x3]
      %v121 = vld [vmem:[%s111 + $0x10] sm:$0xf]
      %v122 = vld [vmem:[%s111 + $0x14] sm:$0x3]
      %v123 = vld [vmem:[%s111 + $0x18] sm:$0xf]
      %v124 = vld [vmem:[%s111 + $0x1c] sm:$0x3]
      %v125 = vld [vmem:[%s111 + $0x20] sm:$0xf]
      %v126 = vld [vmem:[%s111 + $0x24] sm:$0x3]
      %v127 = vld [vmem:[%s111 + $0x28] sm:$0xf]
      %v128 = vld [vmem:[%s111 + $0x2c] sm:$0x3]
      %v129 = vld [vmem:[%s111 + $0x30] sm:$0xf]
      %v130 = vld [vmem:[%s111 + $0x34] sm:$0x3]
      %v131 = vld [vmem:[%s111 + $0x38] sm:$0xf]
      %v132 = vld [vmem:[%s111 + $0x3c] sm:$0x3]
      %v133 = vld [vmem:[%s111 + $0x40] sm:$0xf]
      %v134 = vld [vmem:[%s111 + $0x44] sm:$0x3]
      %v135 = vld [vmem:[%s111 + $0x48] sm:$0xf]
      %v136 = vld [vmem:[%s111 + $0x4c] sm:$0x3]
      %v137 = vld [vmem:[%s111 + $0x50] sm:$0xf]
      %v138 = vld [vmem:[%s111 + $0x54] sm:$0x3]
      %v139 = vld [vmem:[%s111 + $0x58] sm:$0xf]
      %v140 = vld [vmem:[%s111 + $0x5c] sm:$0x3]
      %v141 = vld [vmem:[%s111 + $0x60] sm:$0xf]
      %v142 = vld [vmem:[%s111 + $0x64] sm:$0x3]
      %v143 = vld [vmem:[%s111 + $0x68] sm:$0xf]
      %v144 = vld [vmem:[%s111 + $0x6c] sm:$0x3]
      %v145 = vld [vmem:[%s111 + $0x70] sm:$0xf]
      %v146 = vld [vmem:[%s111 + $0x74] sm:$0x3]
      %v147 = vld [vmem:[%s111 + $0x78] sm:$0xf]
      %v148 = vld [vmem:[%s111 + $0x7c] sm:$0x3]
      %v149 = vld [vmem:[%s111 + $0x80] sm:$0xf]
      %v150 = vld [vmem:[%s111 + $0x84] sm:$0x3]
      %v151 = vld [vmem:[%s111 + $0x88] sm:$0xf]
      %v152 = vld [vmem:[%s111 + $0x8c] sm:$0x3]
      %v153 = vld [vmem:[%s111 + $0x90] sm:$0xf]
      %v154 = vld [vmem:[%s111 + $0x94] sm:$0x3]
      %v155 = vld [vmem:[%s111 + $0x98] sm:$0xf]
      %v156 = vld [vmem:[%s111 + $0x9c] sm:$0x3]
      %v157 = vld [vmem:[%s111 + $0xa0] sm:$0xf]
      %v158 = vld [vmem:[%s111 + $0xa4] sm:$0x3]
      %v159 = vld [vmem:[%s111 + $0xa8] sm:$0xf]
      %v160 = vld [vmem:[%s111 + $0xac] sm:$0x3]
      %v161 = vld [vmem:[%s111 + $0xb0] sm:$0xf]
      %v162 = vld [vmem:[%s111 + $0xb4] sm:$0x3]
      %v163 = vld [vmem:[%s111 + $0xb8] sm:$0xf]
      %v164 = vld [vmem:[%s111 + $0xbc] sm:$0x3]
      %v165 = vmax.bf16 %v117, %v119
      %v166 = vmax.bf16 %v118, %v120
      %v167 = vmax.bf16 %v121, %v123
      %v168 = vmax.bf16 %v122, %v124
      %v169 = vmax.bf16 %v125, %v127
      %v170 = vmax.bf16 %v126, %v128
      %v171 = vmax.bf16 %v129, %v131
      %v172 = vmax.bf16 %v130, %v132
      %v173 = vmax.bf16 %v133, %v135
      %v174 = vmax.bf16 %v134, %v136
      %v175 = vmax.bf16 %v137, %v139
      %v176 = vmax.bf16 %v138, %v140
      %v177 = vmax.bf16 %v141, %v143
      %v178 = vmax.bf16 %v142, %v144
      %v179 = vmax.bf16 %v145, %v147
      %v180 = vmax.bf16 %v146, %v148
      %v181 = vmax.bf16 %v149, %v151
      %v182 = vmax.bf16 %v150, %v152
      %v183 = vmax.bf16 %v153, %v155
      %v184 = vmax.bf16 %v154, %v156
      %v185 = vmax.bf16 %v157, %v159
      %v186 = vmax.bf16 %v158, %v160
      %v187 = vmax.bf16 %v161, %v163
      %v188 = vmax.bf16 %v162, %v164
      %213 = vrot.lane.b32.xlu0 %v165, 64
      %v214 = vpop.permute.xlu0 %213
      %215 = vrot.lane.b32.xlu0 %v166, 64
      %v216 = vpop.permute.xlu0 %215
      %217 = vrot.lane.b32.xlu0 %v167, 64
      %v218 = vpop.permute.xlu0 %217
      %219 = vrot.lane.b32.xlu0 %v168, 64
      %v220 = vpop.permute.xlu0 %219
      %221 = vrot.lane.b32.xlu0 %v169, 64
      %v222 = vpop.permute.xlu0 %221
      %223 = vrot.lane.b32.xlu0 %v170, 64
      %v224 = vpop.permute.xlu0 %223
      %225 = vrot.lane.b32.xlu0 %v171, 64
      %v226 = vpop.permute.xlu0 %225
      %227 = vrot.lane.b32.xlu0 %v172, 64
      %v228 = vpop.permute.xlu0 %227
      %229 = vrot.lane.b32.xlu0 %v173, 64
      %v230 = vpop.permute.xlu0 %229
      %231 = vrot.lane.b32.xlu0 %v174, 64
      %v232 = vpop.permute.xlu0 %231
      %233 = vrot.lane.b32.xlu0 %v175, 64
      %v234 = vpop.permute.xlu0 %233
      %235 = vrot.lane.b32.xlu0 %v176, 64
      %v236 = vpop.permute.xlu0 %235
      %237 = vrot.lane.b32.xlu0 %v177, 64
      %v238 = vpop.permute.xlu0 %237
      %239 = vrot.lane.b32.xlu0 %v178, 64
      %v240 = vpop.permute.xlu0 %239
      %241 = vrot.lane.b32.xlu0 %v179, 64
      %v242 = vpop.permute.xlu0 %241
      %243 = vrot.lane.b32.xlu0 %v180, 64
      %v244 = vpop.permute.xlu0 %243
      %245 = vrot.lane.b32.xlu0 %v181, 64
      %v246 = vpop.permute.xlu0 %245
      %247 = vrot.lane.b32.xlu0 %v182, 64
      %v248 = vpop.permute.xlu0 %247
      %249 = vrot.lane.b32.xlu0 %v183, 64
      %v250 = vpop.permute.xlu0 %249
      %251 = vrot.lane.b32.xlu0 %v184, 64
      %v252 = vpop.permute.xlu0 %251
      %253 = vrot.lane.b32.xlu0 %v185, 64
      %v254 = vpop.permute.xlu0 %253
      %255 = vrot.lane.b32.xlu0 %v186, 64
      %v256 = vpop.permute.xlu0 %255
      %257 = vrot.lane.b32.xlu0 %v187, 64
      %v258 = vpop.permute.xlu0 %257
      %259 = vrot.lane.b32.xlu0 %v188, 64
      %v260 = vpop.permute.xlu0 %259
      %v285 = vmax.bf16 %v165, %v214
      %v286 = vmax.bf16 %v166, %v216
      %v287 = vmax.bf16 %v167, %v218
      %v288 = vmax.bf16 %v168, %v220
      %v289 = vmax.bf16 %v169, %v222
      %v290 = vmax.bf16 %v170, %v224
      %v291 = vmax.bf16 %v171, %v226
      %v292 = vmax.bf16 %v172, %v228
      %v293 = vmax.bf16 %v173, %v230
      %v294 = vmax.bf16 %v174, %v232
      %v295 = vmax.bf16 %v175, %v234
      %v296 = vmax.bf16 %v176, %v236
      %v297 = vmax.bf16 %v177, %v238
      %v298 = vmax.bf16 %v178, %v240
      %v299 = vmax.bf16 %v179, %v242
      %v300 = vmax.bf16 %v180, %v244
      %v301 = vmax.bf16 %v181, %v246
      %v302 = vmax.bf16 %v182, %v248
      %v303 = vmax.bf16 %v183, %v250
      %v304 = vmax.bf16 %v184, %v252
      %v305 = vmax.bf16 %v185, %v254
      %v306 = vmax.bf16 %v186, %v256
      %v307 = vmax.bf16 %v187, %v258
      %v308 = vmax.bf16 %v188, %v260
      %vm309 = vcmask 519168
      %310 = vst.msk [vmem:[%s116] sm:$0xf] %vm309, %v285
      %vm311 = vcmask 517120
      %312 = vst.msk [vmem:[%s116 + $0x4] sm:$0x3] %vm311, %v286
      %313 = vst.msk [vmem:[%s116 + $0x8] sm:$0xf] %vm309, %v287
      %314 = vst.msk [vmem:[%s116 + $0xc] sm:$0x3] %vm311, %v288
      %315 = vst.msk [vmem:[%s116 + $0x10] sm:$0xf] %vm309, %v289
      %316 = vst.msk [vmem:[%s116 + $0x14] sm:$0x3] %vm311, %v290
      %317 = vst.msk [vmem:[%s116 + $0x18] sm:$0xf] %vm309, %v291
      %318 = vst.msk [vmem:[%s116 + $0x1c] sm:$0x3] %vm311, %v292
      %319 = vst.msk [vmem:[%s116 + $0x20] sm:$0xf] %vm309, %v293
      %320 = vst.msk [vmem:[%s116 + $0x24] sm:$0x3] %vm311, %v294
      %321 = vst.msk [vmem:[%s116 + $0x28] sm:$0xf] %vm309, %v295
      %322 = vst.msk [vmem:[%s116 + $0x2c] sm:$0x3] %vm311, %v296
      %323 = vst.msk [vmem:[%s116 + $0x30] sm:$0xf] %vm309, %v297
      %324 = vst.msk [vmem:[%s116 + $0x34] sm:$0x3] %vm311, %v298
      %325 = vst.msk [vmem:[%s116 + $0x38] sm:$0xf] %vm309, %v299
      %326 = vst.msk [vmem:[%s116 + $0x3c] sm:$0x3] %vm311, %v300
      %327 = vst.msk [vmem:[%s116 + $0x40] sm:$0xf] %vm309, %v301
      %328 = vst.msk [vmem:[%s116 + $0x44] sm:$0x3] %vm311, %v302
      %329 = vst.msk [vmem:[%s116 + $0x48] sm:$0xf] %vm309, %v303
      %330 = vst.msk [vmem:[%s116 + $0x4c] sm:$0x3] %vm311, %v304
      %331 = vst.msk [vmem:[%s116 + $0x50] sm:$0xf] %vm309, %v305
      %332 = vst.msk [vmem:[%s116 + $0x54] sm:$0x3] %vm311, %v306
      %333 = vst.msk [vmem:[%s116 + $0x58] sm:$0xf] %vm309, %v307
      %334 = vst.msk [vmem:[%s116 + $0x5c] sm:$0x3] %vm311, %v308
      %p335 = scmp.lt.s32.totalorder %s12, 1
      %s336 = scalar_select %p335, %s12, 1
      %s337 = smul.addr %s336, 24
      %s338 = smul.addr %s337, 4
      %s339 = scalar_lea.vmem %s1, %s338
      // Predicated region
      $region25: #{cnn_forward.6} parent=23 // pred_check
        %p340 = pneg %p56
      $region26: #{cnn_forward.6} parent=23 // pred_check_branch
        %342 = sbr.rel (%p340) target = $region28
      $region27: #{cnn_forward.6} parent=23 // pred_region
        _
      $region28: #{cnn_forward.6} parent=23 // pred_fallthru
        _
    $region24: #{cnn_forward.6} parent=5 // pred_fallthru
      _
    %p343 = scmp.le.s32.totalorder 2, %s7
    // Predicated region
    $region29: #{cnn_forward.6} parent=5 // pred_check
      %p344 = pneg %p343
    $region30: #{cnn_forward.6} parent=5 // pred_check_branch
      %346 = sbr.rel (%p344) target = $region32
    $region31: #{cnn_forward.6} parent=5 // pred_region
      %s347 = ssub.s32 %s7, 2
      // Predicated region
      $region33: #{cnn_forward.6} parent=31 // pred_check
        %p348 = pneg %p62
      $region34: #{cnn_forward.6} parent=31 // pred_check_branch
        %350 = sbr.rel (%p348) target = $region36
      $region35: #{cnn_forward.6} parent=31 // pred_region
        %p351 = scmp.lt.s32.totalorder %s13, 1
        %s352 = scalar_select %p351, %s13, 1
        %s353 = smul.addr %s352, 24
        %s354 = smul.addr %s353, 4
        %s355 = scalar_lea.vmem %s1, %s354
      $region36: #{cnn_forward.6} parent=31 // pred_fallthru
        _
    $region32: #{cnn_forward.6} parent=5 // pred_fallthru
      _
  $region6: #{cnn_forward.6} parent=0 // loop_footer
    %s11 = sadd.s32 1, %s7
  $region7: #{cnn_forward.6} parent=0 // loop_footer_branch
    %6 = sbr.rel target = $region3
  $region8: #{cnn_forward.6} parent=0 // loop_exit
    _

// kernel: cnn_forward.7
$region0: #{cnn_forward.7}
  #allocation0 [shape = 'u32[]', space=smem, size = 0x4, offset = 0x4, fixed_abs, tag = 'smem constant byte address 0x4 - core index']
  #allocation1 [shape = 'u32[144,128]{1,0:T(1,128)}', space=vmem, size = 0x12000, scoped, tag = 'internal scratch']
  %s0 = inlined_call_operand.vmem [shape: bf16[8,9216], index: 0, kind: input, shape index: {}]
  %s1 = inlined_call_operand.vmem [shape: bf16[9216,128], index: 1, kind: input, shape index: {}]
  %s2 = inlined_call_operand.vmem [shape: f32[1,128], index: 2, kind: input, shape index: {}]
  %s3 = inlined_call_operand.vmem [shape: bf16[128,128], index: 3, kind: input, shape index: {}]
  %s4 = inlined_call_operand.vmem [shape: f32[1,128], index: 4, kind: input, shape index: {}]
  %s5 = inlined_call_operand.vmem [shape: f32[8,128], index: 5, kind: output, shape index: {}]
  %s6 = sld [smem:[#allocation0]]
  $region30: #{cnn_forward.7} parent=0
    _
  %s8 = ssub.s32 1, %s6
  %s9 = scalar_select 0, %s8, %s6
  // Predicated region
  $region2: #{cnn_forward.7} parent=0 // pred_check
    _
  $region3: #{cnn_forward.7} parent=0 // pred_check_branch
    %11 = sbr.rel (0) target = $region5
  $region4: #{cnn_forward.7} parent=0 // pred_region
    _
  $region5: #{cnn_forward.7} parent=0 // pred_fallthru
    _
  // Predicated region
  $region6: #{cnn_forward.7} parent=0 // pred_check
    _
  $region7: #{cnn_forward.7} parent=0 // pred_check_branch
    %13 = sbr.rel (0) target = $region9
  $region8: #{cnn_forward.7} parent=0 // pred_region
    _
  $region9: #{cnn_forward.7} parent=0 // pred_fallthru
    _
  // Predicated region
  $region10: #{cnn_forward.7} parent=0 // pred_check
    _
  $region11: #{cnn_forward.7} parent=0 // pred_check_branch
    %15 = sbr.rel (0) target = $region13
  $region12: #{cnn_forward.7} parent=0 // pred_region
    _
  $region13: #{cnn_forward.7} parent=0 // pred_fallthru
    _
  // Predicated region
  $region14: #{cnn_forward.7} parent=0 // pred_check
    _
  $region15: #{cnn_forward.7} parent=0 // pred_check_branch
    %17 = sbr.rel (0) target = $region17
  $region16: #{cnn_forward.7} parent=0 // pred_region
    _
  $region17: #{cnn_forward.7} parent=0 // pred_fallthru
    _
  // Predicated region
  $region18: #{cnn_forward.7} parent=0 // pred_check
    _
  $region19: #{cnn_forward.7} parent=0 // pred_check_branch
    %19 = sbr.rel (0) target = $region21
  $region20: #{cnn_forward.7} parent=0 // pred_region
    _
  $region21: #{cnn_forward.7} parent=0 // pred_fallthru
    _
  %v21 = vld [vmem:[%s0] sm:$0xff]
  %v22 = vld [vmem:[%s0 + $0x8] sm:$0xff]
  %v23 = vld [vmem:[%s0 + $0x10] sm:$0xff]
  %v24 = vld [vmem:[%s0 + $0x18] sm:$0xff]
  %v25 = vld [vmem:[%s0 + $0x20] sm:$0xff]
  %v26 = vld [vmem:[%s0 + $0x28] sm:$0xff]
  %v27 = vld [vmem:[%s0 + $0x30] sm:$0xff]
  %v28 = vld [vmem:[%s0 + $0x38] sm:$0xff]
  %v29 = vld [vmem:[%s0 + $0x40] sm:$0xff]
  %v30 = vld [vmem:[%s0 + $0x48] sm:$0xff]
  %v31 = vld [vmem:[%s0 + $0x50] sm:$0xff]
  %v32 = vld [vmem:[%s0 + $0x58] sm:$0xff]
  %v33 = vld [vmem:[%s0 + $0x60] sm:$0xff]
  %v34 = vld [vmem:[%s0 + $0x68] sm:$0xff]
  %v35 = vld [vmem:[%s0 + $0x70] sm:$0xff]
  %v36 = vld [vmem:[%s0 + $0x78] sm:$0xff]
  %v37 = vld [vmem:[%s0 + $0x80] sm:$0xff]
  %v38 = vld [vmem:[%s0 + $0x88] sm:$0xff]
  %v39 = vld [vmem:[%s0 + $0x90] sm:$0xff]
  %v40 = vld [vmem:[%s0 + $0x98] sm:$0xff]
  %v41 = vld [vmem:[%s0 + $0xa0] sm:$0xff]
  %v42 = vld [vmem:[%s0 + $0xa8] sm:$0xff]
  %v43 = vld [vmem:[%s0 + $0xb0] sm:$0xff]
  %v44 = vld [vmem:[%s0 + $0xb8] sm:$0xff]
  %v45 = vld [vmem:[%s0 + $0xc0] sm:$0xff]
  %v46 = vld [vmem:[%s0 + $0xc8] sm:$0xff]
  %v47 = vld [vmem:[%s0 + $0xd0] sm:$0xff]
  %v48 = vld [vmem:[%s0 + $0xd8] sm:$0xff]
  %v49 = vld [vmem:[%s0 + $0xe0] sm:$0xff]
  %v50 = vld [vmem:[%s0 + $0xe8] sm:$0xff]
  %v51 = vld [vmem:[%s0 + $0xf0] sm:$0xff]
  %v52 = vld [vmem:[%s0 + $0xf8] sm:$0xff]
  %v53 = vld [vmem:[%s0 + $0x100] sm:$0xff]
  %v54 = vld [vmem:[%s0 + $0x108] sm:$0xff]
  %v55 = vld [vmem:[%s0 + $0x110] sm:$0xff]
  %v56 = vld [vmem:[%s0 + $0x118] sm:$0xff]
  %v57 = vld [vmem:[%s1] sm:$0xf]
  %v58 = vld [vmem:[%s1 + $0x4] sm:$0xf]
  %v59 = vld [vmem:[%s1 + $0x8] sm:$0xf]
  %v60 = vld [vmem:[%s1 + $0xc] sm:$0xf]
  %v61 = vld [vmem:[%s1 + $0x10] sm:$0xf]
  %v62 = vld [vmem:[%s1 + $0x14] sm:$0xf]
  %v63 = vld [vmem:[%s1 + $0x18] sm:$0xf]
  %v64 = vld [vmem:[%s1 + $0x1c] sm:$0xf]
  %v65 = vld [vmem:[%s1 + $0x20] sm:$0xf]
  %v66 = vld [vmem:[%s1 + $0x24] sm:$0xf]
  %v67 = vld [vmem:[%s1 + $0x28] sm:$0xf]
  %v68 = vld [vmem:[%s1 + $0x2c] sm:$0xf]
  %v69 = vld [vmem:[%s1 + $0x30] sm:$0xf]
  %v70 = vld [vmem:[%s1 + $0x34] sm:$0xf]
  %v71 = vld [vmem:[%s1 + $0x38] sm:$0xf]
  %v72 = vld [vmem:[%s1 + $0x3c] sm:$0xf]
  %v73 = vld [vmem:[%s1 + $0x40] sm:$0xf]
  %v74 = vld [vmem:[%s1 + $0x44] sm:$0xf]
  %v75 = vld [vmem:[%s1 + $0x48] sm:$0xf]
  %v76 = vld [vmem:[%s1 + $0x4c] sm:$0xf]
  %v77 = vld [vmem:[%s1 + $0x50] sm:$0xf]
  %v78 = vld [vmem:[%s1 + $0x54] sm:$0xf]
  %v79 = vld [vmem:[%s1 + $0x58] sm:$0xf]
  %v80 = vld [vmem:[%s1 + $0x5c] sm:$0xf]
  %v81 = vld [vmem:[%s1 + $0x60] sm:$0xf]
  %v82 = vld [vmem:[%s1 + $0x64] sm:$0xf]
  %v83 = vld [vmem:[%s1 + $0x68] sm:$0xf]
  %v84 = vld [vmem:[%s1 + $0x6c] sm:$0xf]
  %v85 = vld [vmem:[%s1 + $0x70] sm:$0xf]
  %v86 = vld [vmem:[%s1 + $0x74] sm:$0xf]
  %v87 = vld [vmem:[%s1 + $0x78] sm:$0xf]
  %v88 = vld [vmem:[%s1 + $0x7c] sm:$0xf]
  %v89 = vld [vmem:[%s1 + $0x80] sm:$0xf]
  %v90 = vld [vmem:[%s1 + $0x84] sm:$0xf]
  %v91 = vld [vmem:[%s1 + $0x88] sm:$0xf]
  %v92 = vld [vmem:[%s1 + $0x8c] sm:$0xf]
  %v93 = vld [vmem:[%s1 + $0x90] sm:$0xf]
  %v94 = vld [vmem:[%s1 + $0x94] sm:$0xf]
  %v95 = vld [vmem:[%s1 + $0x98] sm:$0xf]
  %v96 = vld [vmem:[%s1 + $0x9c] sm:$0xf]
  %v97 = vld [vmem:[%s1 + $0xa0] sm:$0xf]
  %v98 = vld [vmem:[%s1 + $0xa4] sm:$0xf]
  %v99 = vld [vmem:[%s1 + $0xa8] sm:$0xf]
  %v100 = vld [vmem:[%s1 + $0xac] sm:$0xf]
  %v101 = vld [vmem:[%s1 + $0xb0] sm:$0xf]
  %v102 = vld [vmem:[%s1 + $0xb4] sm:$0xf]
  %v103 = vld [vmem:[%s1 + $0xb8] sm:$0xf]
  %v104 = vld [vmem:[%s1 + $0xbc] sm:$0xf]
  %v105 = vld [vmem:[%s1 + $0xc0] sm:$0xf]
  %v106 = vld [vmem:[%s1 + $0xc4] sm:$0xf]
  %v107 = vld [vmem:[%s1 + $0xc8] sm:$0xf]
  %v108 = vld [vmem:[%s1 + $0xcc] sm:$0xf]
  %v109 = vld [vmem:[%s1 + $0xd0] sm:$0xf]
  %v110 = vld [vmem:[%s1 + $0xd4] sm:$0xf]
  %v111 = vld [vmem:[%s1 + $0xd8] sm:$0xf]
  %v112 = vld [vmem:[%s1 + $0xdc] sm:$0xf]
  %v113 = vld [vmem:[%s1 + $0xe0] sm:$0xf]
  %v114 = vld [vmem:[%s1 + $0xe4] sm:$0xf]
  %v115 = vld [vmem:[%s1 + $0xe8] sm:$0xf]
  %v116 = vld [vmem:[%s1 + $0xec] sm:$0xf]
  %v117 = vld [vmem:[%s1 + $0xf0] sm:$0xf]
  %v118 = vld [vmem:[%s1 + $0xf4] sm:$0xf]
  %v119 = vld [vmem:[%s1 + $0xf8] sm:$0xf]
  %v120 = vld [vmem:[%s1 + $0xfc] sm:$0xf]
  %v121 = vld [vmem:[%s1 + $0x100] sm:$0xf]
  %v122 = vld [vmem:[%s1 + $0x104] sm:$0xf]
  %v123 = vld [vmem:[%s1 + $0x108] sm:$0xf]
  %v124 = vld [vmem:[%s1 + $0x10c] sm:$0xf]
  %v125 = vld [vmem:[%s1 + $0x110] sm:$0xf]
  %v126 = vld [vmem:[%s1 + $0x114] sm:$0xf]
  %v127 = vld [vmem:[%s1 + $0x118] sm:$0xf]
  %v128 = vld [vmem:[%s1 + $0x11c] sm:$0xf]
  %v129 = vld [vmem:[%s1 + $0x120] sm:$0xf]
  %v130 = vld [vmem:[%s1 + $0x124] sm:$0xf]
  %v131 = vld [vmem:[%s1 + $0x128] sm:$0xf]
  %v132 = vld [vmem:[%s1 + $0x12c] sm:$0xf]
  %v133 = vld [vmem:[%s1 + $0x130] sm:$0xf]
  %v134 = vld [vmem:[%s1 + $0x134] sm:$0xf]
  %v135 = vld [vmem:[%s1 + $0x138] sm:$0xf]
  %v136 = vld [vmem:[%s1 + $0x13c] sm:$0xf]
  %v137 = vld [vmem:[%s1 + $0x140] sm:$0xf]
  %v138 = vld [vmem:[%s1 + $0x144] sm:$0xf]
  %v139 = vld [vmem:[%s1 + $0x148] sm:$0xf]
  %v140 = vld [vmem:[%s1 + $0x14c] sm:$0xf]
  %v141 = vld [vmem:[%s1 + $0x150] sm:$0xf]
  %v142 = vld [vmem:[%s1 + $0x154] sm:$0xf]
  %v143 = vld [vmem:[%s1 + $0x158] sm:$0xf]
  %v144 = vld [vmem:[%s1 + $0x15c] sm:$0xf]
  %v145 = vld [vmem:[%s1 + $0x160] sm:$0xf]
  %v146 = vld [vmem:[%s1 + $0x164] sm:$0xf]
  %v147 = vld [vmem:[%s1 + $0x168] sm:$0xf]
  %v148 = vld [vmem:[%s1 + $0x16c] sm:$0xf]
  %v149 = vld [vmem:[%s1 + $0x170] sm:$0xf]
  %v150 = vld [vmem:[%s1 + $0x174] sm:$0xf]
  %v151 = vld [vmem:[%s1 + $0x178] sm:$0xf]
  %v152 = vld [vmem:[%s1 + $0x17c] sm:$0xf]
  %v153 = vld [vmem:[%s1 + $0x180] sm:$0xf]
  %v154 = vld [vmem:[%s1 + $0x184] sm:$0xf]
  %v155 = vld [vmem:[%s1 + $0x188] sm:$0xf]
  %v156 = vld [vmem:[%s1 + $0x18c] sm:$0xf]
  %v157 = vld [vmem:[%s1 + $0x190] sm:$0xf]
  %v158 = vld [vmem:[%s1 + $0x194] sm:$0xf]
  %v159 = vld [vmem:[%s1 + $0x198] sm:$0xf]
  %v160 = vld [vmem:[%s1 + $0x19c] sm:$0xf]
  %v161 = vld [vmem:[%s1 + $0x1a0] sm:$0xf]
  %v162 = vld [vmem:[%s1 + $0x1a4] sm:$0xf]
  %v163 = vld [vmem:[%s1 + $0x1a8] sm:$0xf]
  %v164 = vld [vmem:[%s1 + $0x1ac] sm:$0xf]
  %v165 = vld [vmem:[%s1 + $0x1b0] sm:$0xf]
  %v166 = vld [vmem:[%s1 + $0x1b4] sm:$0xf]
  %v167 = vld [vmem:[%s1 + $0x1b8] sm:$0xf]
  %v168 = vld [vmem:[%s1 + $0x1bc] sm:$0xf]
  %v169 = vld [vmem:[%s1 + $0x1c0] sm:$0xf]
  %v170 = vld [vmem:[%s1 + $0x1c4] sm:$0xf]
  %v171 = vld [vmem:[%s1 + $0x1c8] sm:$0xf]
  %v172 = vld [vmem:[%s1 + $0x1cc] sm:$0xf]
  %v173 = vld [vmem:[%s1 + $0x1d0] sm:$0xf]
  %v174 = vld [vmem:[%s1 + $0x1d4] sm:$0xf]
  %v175 = vld [vmem:[%s1 + $0x1d8] sm:$0xf]
  %v176 = vld [vmem:[%s1 + $0x1dc] sm:$0xf]
  %v177 = vld [vmem:[%s1 + $0x1e0] sm:$0xf]
  %v178 = vld [vmem:[%s1 + $0x1e4] sm:$0xf]
  %v179 = vld [vmem:[%s1 + $0x1e8] sm:$0xf]
  %v180 = vld [vmem:[%s1 + $0x1ec] sm:$0xf]
  %v181 = vld [vmem:[%s1 + $0x1f0] sm:$0xf]
  %v182 = vld [vmem:[%s1 + $0x1f4] sm:$0xf]
  %v183 = vld [vmem:[%s1 + $0x1f8] sm:$0xf]
  %v184 = vld [vmem:[%s1 + $0x1fc] sm:$0xf]
  %v185 = vld [vmem:[%s1 + $0x200] sm:$0xf]
  %v186 = vld [vmem:[%s1 + $0x204] sm:$0xf]
  %v187 = vld [vmem:[%s1 + $0x208] sm:$0xf]
  %v188 = vld [vmem:[%s1 + $0x20c] sm:$0xf]
  %v189 = vld [vmem:[%s1 + $0x210] sm:$0xf]
  %v190 = vld [vmem:[%s1 + $0x214] sm:$0xf]
  %v191 = vld [vmem:[%s1 + $0x218] sm:$0xf]
  %v192 = vld [vmem:[%s1 + $0x21c] sm:$0xf]
  %v193 = vld [vmem:[%s1 + $0x220] sm:$0xf]
  %v194 = vld [vmem:[%s1 + $0x224] sm:$0xf]
  %v195 = vld [vmem:[%s1 + $0x228] sm:$0xf]
  %v196 = vld [vmem:[%s1 + $0x22c] sm:$0xf]
  %v197 = vld [vmem:[%s1 + $0x230] sm:$0xf]
  %v198 = vld [vmem:[%s1 + $0x234] sm:$0xf]
  %v199 = vld [vmem:[%s1 + $0x238] sm:$0xf]
  %v200 = vld [vmem:[%s1 + $0x23c] sm:$0xf]
  %v201 = vld [vmem:[%s1 + $0x240] sm:$0xf]
  %v202 = vld [vmem:[%s1 + $0x244] sm:$0xf]
  %v203 = vld [vmem:[%s1 + $0x248] sm:$0xf]
  %v204 = vld [vmem:[%s1 + $0x24c] sm:$0xf]
  %v205 = vld [vmem:[%s1 + $0x250] sm:$0xf]
  %v206 = vld [vmem:[%s1 + $0x254] sm:$0xf]
  %v207 = vld [vmem:[%s1 + $0x258] sm:$0xf]
  %v208 = vld [vmem:[%s1 + $0x25c] sm:$0xf]
  %v209 = vld [vmem:[%s1 + $0x260] sm:$0xf]
  %v210 = vld [vmem:[%s1 + $0x264] sm:$0xf]
  %v211 = vld [vmem:[%s1 + $0x268] sm:$0xf]
  %v212 = vld [vmem:[%s1 + $0x26c] sm:$0xf]
  %v213 = vld [vmem:[%s1 + $0x270] sm:$0xf]
  %v214 = vld [vmem:[%s1 + $0x274] sm:$0xf]
  %v215 = vld [vmem:[%s1 + $0x278] sm:$0xf]
  %v216 = vld [vmem:[%s1 + $0x27c] sm:$0xf]
  %v217 = vld [vmem:[%s1 + $0x280] sm:$0xf]
  %v218 = vld [vmem:[%s1 + $0x284] sm:$0xf]
  %v219 = vld [vmem:[%s1 + $0x288] sm:$0xf]
  %v220 = vld [vmem:[%s1 + $0x28c] sm:$0xf]
  %v221 = vld [vmem:[%s1 + $0x290] sm:$0xf]
  %v222 = vld [vmem:[%s1 + $0x294] sm:$0xf]
  %v223 = vld [vmem:[%s1 + $0x298] sm:$0xf]
  %v224 = vld [vmem:[%s1 + $0x29c] sm:$0xf]
  %v225 = vld [vmem:[%s1 + $0x2a0] sm:$0xf]
  %v226 = vld [vmem:[%s1 + $0x2a4] sm:$0xf]
  %v227 = vld [vmem:[%s1 + $0x2a8] sm:$0xf]
  %v228 = vld [vmem:[%s1 + $0x2ac] sm:$0xf]
  %v229 = vld [vmem:[%s1 + $0x2b0] sm:$0xf]
  %v230 = vld [vmem:[%s1 + $0x2b4] sm:$0xf]
  %v231 = vld [vmem:[%s1 + $0x2b8] sm:$0xf]
  %v232 = vld [vmem:[%s1 + $0x2bc] sm:$0xf]
  %v233 = vld [vmem:[%s1 + $0x2c0] sm:$0xf]
  %v234 = vld [vmem:[%s1 + $0x2c4] sm:$0xf]
  %v235 = vld [vmem:[%s1 + $0x2c8] sm:$0xf]
  %v236 = vld [vmem:[%s1 + $0x2cc] sm:$0xf]
  %v237 = vld [vmem:[%s1 + $0x2d0] sm:$0xf]
  %v238 = vld [vmem:[%s1 + $0x2d4] sm:$0xf]
  %v239 = vld [vmem:[%s1 + $0x2d8] sm:$0xf]
  %v240 = vld [vmem:[%s1 + $0x2dc] sm:$0xf]
  %v241 = vld [vmem:[%s1 + $0x2e0] sm:$0xf]
  %v242 = vld [vmem:[%s1 + $0x2e4] sm:$0xf]
  %v243 = vld [vmem:[%s1 + $0x2e8] sm:$0xf]
  %v244 = vld [vmem:[%s1 + $0x2ec] sm:$0xf]
  %v245 = vld [vmem:[%s1 + $0x2f0] sm:$0xf]
  %v246 = vld [vmem:[%s1 + $0x2f4] sm:$0xf]
  %v247 = vld [vmem:[%s1 + $0x2f8] sm:$0xf]
  %v248 = vld [vmem:[%s1 + $0x2fc] sm:$0xf]
  %v249 = vld [vmem:[%s1 + $0x300] sm:$0xf]
  %v250 = vld [vmem:[%s1 + $0x304] sm:$0xf]
  %v251 = vld [vmem:[%s1 + $0x308] sm:$0xf]
  %v252 = vld [vmem:[%s1 + $0x30c] sm:$0xf]
  %v253 = vld [vmem:[%s1 + $0x310] sm:$0xf]
  %v254 = vld [vmem:[%s1 + $0x314] sm:$0xf]
  %v255 = vld [vmem:[%s1 + $0x318] sm:$0xf]
  %v256 = vld [vmem:[%s1 + $0x31c] sm:$0xf]
  %v257 = vld [vmem:[%s1 + $0x320] sm:$0xf]
  %v258 = vld [vmem:[%s1 + $0x324] sm:$0xf]
  %v259 = vld [vmem:[%s1 + $0x328] sm:$0xf]
  %v260 = vld [vmem:[%s1 + $0x32c] sm:$0xf]
  %v261 = vld [vmem:[%s1 + $0x330] sm:$0xf]
  %v262 = vld [vmem:[%s1 + $0x334] sm:$0xf]
  %v263 = vld [vmem:[%s1 + $0x338] sm:$0xf]
  %v264 = vld [vmem:[%s1 + $0x33c] sm:$0xf]
  %v265 = vld [vmem:[%s1 + $0x340] sm:$0xf]
  %v266 = vld [vmem:[%s1 + $0x344] sm:$0xf]
  %v267 = vld [vmem:[%s1 + $0x348] sm:$0xf]
  %v268 = vld [vmem:[%s1 + $0x34c] sm:$0xf]
  %v269 = vld [vmem:[%s1 + $0x350] sm:$0xf]
  %v270 = vld [vmem:[%s1 + $0x354] sm:$0xf]
  %v271 = vld [vmem:[%s1 + $0x358] sm:$0xf]
  %v272 = vld [vmem:[%s1 + $0x35c] sm:$0xf]
  %v273 = vld [vmem:[%s1 + $0x360] sm:$0xf]
  %v274 = vld [vmem:[%s1 + $0x364] sm:$0xf]
  %v275 = vld [vmem:[%s1 + $0x368] sm:$0xf]
  %v276 = vld [vmem:[%s1 + $0x36c] sm:$0xf]
  %v277 = vld [vmem:[%s1 + $0x370] sm:$0xf]
  %v278 = vld [vmem:[%s1 + $0x374] sm:$0xf]
  %v279 = vld [vmem:[%s1 + $0x378] sm:$0xf]
  %v280 = vld [vmem:[%s1 + $0x37c] sm:$0xf]
  %v281 = vld [vmem:[%s1 + $0x380] sm:$0xf]
  %v282 = vld [vmem:[%s1 + $0x384] sm:$0xf]
  %v283 = vld [vmem:[%s1 + $0x388] sm:$0xf]
  %v284 = vld [vmem:[%s1 + $0x38c] sm:$0xf]
  %v285 = vld [vmem:[%s1 + $0x390] sm:$0xf]
  %v286 = vld [vmem:[%s1 + $0x394] sm:$0xf]
  %v287 = vld [vmem:[%s1 + $0x398] sm:$0xf]
  %v288 = vld [vmem:[%s1 + $0x39c] sm:$0xf]
  %v289 = vld [vmem:[%s1 + $0x3a0] sm:$0xf]
  %v290 = vld [vmem:[%s1 + $0x3a4] sm:$0xf]
  %v291 = vld [vmem:[%s1 + $0x3a8] sm:$0xf]
  %v292 = vld [vmem:[%s1 + $0x3ac] sm:$0xf]
  %v293 = vld [vmem:[%s1 + $0x3b0] sm:$0xf]
  %v294 = vld [vmem:[%s1 + $0x3b4] sm:$0xf]
  %v295 = vld [vmem:[%s1 + $0x3b8] sm:$0xf]
  %v296 = vld [vmem:[%s1 + $0x3bc] sm:$0xf]
  %v297 = vld [vmem:[%s1 + $0x3c0] sm:$0xf]
  %v298 = vld [vmem:[%s1 + $0x3c4] sm:$0xf]
  %v299 = vld [vmem:[%s1 + $0x3c8] sm:$0xf]
  %v300 = vld [vmem:[%s1 + $0x3cc] sm:$0xf]
  %v301 = vld [vmem:[%s1 + $0x3d0] sm:$0xf]
  %v302 = vld [vmem:[%s1 + $0x3d4] sm:$0xf]
  %v303 = vld [vmem:[%s1 + $0x3d8] sm:$0xf]
  %v304 = vld [vmem:[%s1 + $0x3dc] sm:$0xf]
  %v305 = vld [vmem:[%s1 + $0x3e0] sm:$0xf]
  %v306 = vld [vmem:[%s1 + $0x3e4] sm:$0xf]
  %v307 = vld [vmem:[%s1 + $0x3e8] sm:$0xf]
  %v308 = vld [vmem:[%s1 + $0x3ec] sm:$0xf]
  %v309 = vld [vmem:[%s1 + $0x3f0] sm:$0xf]
  %v310 = vld [vmem:[%s1 + $0x3f4] sm:$0xf]
  %v311 = vld [vmem:[%s1 + $0x3f8] sm:$0xf]
  %v312 = vld [vmem:[%s1 + $0x3fc] sm:$0xf]
  %v313 = vld [vmem:[%s1 + $0x400] sm:$0xf]
  %v314 = vld [vmem:[%s1 + $0x404] sm:$0xf]
  %v315 = vld [vmem:[%s1 + $0x408] sm:$0xf]
  %v316 = vld [vmem:[%s1 + $0x40c] sm:$0xf]
  %v317 = vld [vmem:[%s1 + $0x410] sm:$0xf]
  %v318 = vld [vmem:[%s1 + $0x414] sm:$0xf]
  %v319 = vld [vmem:[%s1 + $0x418] sm:$0xf]
  %v320 = vld [vmem:[%s1 + $0x41c] sm:$0xf]
  %v321 = vld [vmem:[%s1 + $0x420] sm:$0xf]
  %v322 = vld [vmem:[%s1 + $0x424] sm:$0xf]
  %v323 = vld [vmem:[%s1 + $0x428] sm:$0xf]
  %v324 = vld [vmem:[%s1 + $0x42c] sm:$0xf]
  %v325 = vld [vmem:[%s1 + $0x430] sm:$0xf]
  %v326 = vld [vmem:[%s1 + $0x434] sm:$0xf]
  %v327 = vld [vmem:[%s1 + $0x438] sm:$0xf]
  %v328 = vld [vmem:[%s1 + $0x43c] sm:$0xf]
  %v329 = vld [vmem:[%s1 + $0x440] sm:$0xf]
  %v330 = vld [vmem:[%s1 + $0x444] sm:$0xf]
  %v331 = vld [vmem:[%s1 + $0x448] sm:$0xf]
  %v332 = vld [vmem:[%s1 + $0x44c] sm:$0xf]
  %v333 = vld [vmem:[%s1 + $0x450] sm:$0xf]
  %v334 = vld [vmem:[%s1 + $0x454] sm:$0xf]
  %v335 = vld [vmem:[%s1 + $0x458] sm:$0xf]
  %v336 = vld [vmem:[%s1 + $0x45c] sm:$0xf]
  %v337 = vld [vmem:[%s1 + $0x460] sm:$0xf]
  %v338 = vld [vmem:[%s1 + $0x464] sm:$0xf]
  %v339 = vld [vmem:[%s1 + $0x468] sm:$0xf]
  %v340 = vld [vmem:[%s1 + $0x46c] sm:$0xf]
  %v341 = vld [vmem:[%s1 + $0x470] sm:$0xf]
  %v342 = vld [vmem:[%s1 + $0x474] sm:$0xf]
  %v343 = vld [vmem:[%s1 + $0x478] sm:$0xf]
  %v344 = vld [vmem:[%s1 + $0x47c] sm:$0xf]
  %v345 = vld [vmem:[%s1 + $0x480] sm:$0xf]
  %v346 = vld [vmem:[%s1 + $0x484] sm:$0xf]
  %v347 = vld [vmem:[%s1 + $0x488] sm:$0xf]
  %v348 = vld [vmem:[%s1 + $0x48c] sm:$0xf]
  %v349 = vld [vmem:[%s1 + $0x490] sm:$0xf]
  %v350 = vld [vmem:[%s1 + $0x494] sm:$0xf]
  %v351 = vld [vmem:[%s1 + $0x498] sm:$0xf]
  %v352 = vld [vmem:[%s1 + $0x49c] sm:$0xf]
  %v353 = vld [vmem:[%s1 + $0x4a0] sm:$0xf]
  %v354 = vld [vmem:[%s1 + $0x4a4] sm:$0xf]
  %v355 = vld [vmem:[%s1 + $0x4a8] sm:$0xf]
  %v356 = vld [vmem:[%s1 + $0x4ac] sm:$0xf]
  %v357 = vld [vmem:[%s1 + $0x4b0] sm:$0xf]
  %v358 = vld [vmem:[%s1 + $0x4b4] sm:$0xf]
  %v359 = vld [vmem:[%s1 + $0x4b8] sm:$0xf]
  %v360 = vld [vmem:[%s1 + $0x4bc] sm:$0xf]
  %v361 = vld [vmem:[%s1 + $0x4c0] sm:$0xf]
  %v362 = vld [vmem:[%s1 + $0x4c4] sm:$0xf]
  %v363 = vld [vmem:[%s1 + $0x4c8] sm:$0xf]
  %v364 = vld [vmem:[%s1 + $0x4cc] sm:$0xf]
  %v365 = vld [vmem:[%s1 + $0x4d0] sm:$0xf]
  %v366 = vld [vmem:[%s1 + $0x4d4] sm:$0xf]
  %v367 = vld [vmem:[%s1 + $0x4d8] sm:$0xf]
  %v368 = vld [vmem:[%s1 + $0x4dc] sm:$0xf]
  %v369 = vld [vmem:[%s1 + $0x4e0] sm:$0xf]
  %v370 = vld [vmem:[%s1 + $0x4e4] sm:$0xf]
  %v371 = vld [vmem:[%s1 + $0x4e8] sm:$0xf]
  %v372 = vld [vmem:[%s1 + $0x4ec] sm:$0xf]
  %v373 = vld [vmem:[%s1 + $0x4f0] sm:$0xf]
  %v374 = vld [vmem:[%s1 + $0x4f4] sm:$0xf]
  %v375 = vld [vmem:[%s1 + $0x4f8] sm:$0xf]
  %v376 = vld [vmem:[%s1 + $0x4fc] sm:$0xf]
  %v377 = vld [vmem:[%s1 + $0x500] sm:$0xf]
  %v378 = vld [vmem:[%s1 + $0x504] sm:$0xf]
  %v379 = vld [vmem:[%s1 + $0x508] sm:$0xf]
  %v380 = vld [vmem:[%s1 + $0x50c] sm:$0xf]
  %v381 = vld [vmem:[%s1 + $0x510] sm:$0xf]
  %v382 = vld [vmem:[%s1 + $0x514] sm:$0xf]
  %v383 = vld [vmem:[%s1 + $0x518] sm:$0xf]
  %v384 = vld [vmem:[%s1 + $0x51c] sm:$0xf]
  %v385 = vld [vmem:[%s1 + $0x520] sm:$0xf]
  %v386 = vld [vmem:[%s1 + $0x524] sm:$0xf]
  %v387 = vld [vmem:[%s1 + $0x528] sm:$0xf]
  %v388 = vld [vmem:[%s1 + $0x52c] sm:$0xf]
  %v389 = vld [vmem:[%s1 + $0x530] sm:$0xf]
  %v390 = vld [vmem:[%s1 + $0x534] sm:$0xf]
  %v391 = vld [vmem:[%s1 + $0x538] sm:$0xf]
  %v392 = vld [vmem:[%s1 + $0x53c] sm:$0xf]
  %v393 = vld [vmem:[%s1 + $0x540] sm:$0xf]
  %v394 = vld [vmem:[%s1 + $0x544] sm:$0xf]
  %v395 = vld [vmem:[%s1 + $0x548] sm:$0xf]
  %v396 = vld [vmem:[%s1 + $0x54c] sm:$0xf]
  %v397 = vld [vmem:[%s1 + $0x550] sm:$0xf]
  %v398 = vld [vmem:[%s1 + $0x554] sm:$0xf]
  %v399 = vld [vmem:[%s1 + $0x558] sm:$0xf]
  %v400 = vld [vmem:[%s1 + $0x55c] sm:$0xf]
  %v401 = vld [vmem:[%s1 + $0x560] sm:$0xf]
  %v402 = vld [vmem:[%s1 + $0x564] sm:$0xf]
  %v403 = vld [vmem:[%s1 + $0x568] sm:$0xf]
  %v404 = vld [vmem:[%s1 + $0x56c] sm:$0xf]
  %v405 = vld [vmem:[%s1 + $0x570] sm:$0xf]
  %v406 = vld [vmem:[%s1 + $0x574] sm:$0xf]
  %v407 = vld [vmem:[%s1 + $0x578] sm:$0xf]
  %v408 = vld [vmem:[%s1 + $0x57c] sm:$0xf]
  %v409 = vld [vmem:[%s1 + $0x580] sm:$0xf]
  %v410 = vld [vmem:[%s1 + $0x584] sm:$0xf]
  %v411 = vld [vmem:[%s1 + $0x588] sm:$0xf]
  %v412 = vld [vmem:[%s1 + $0x58c] sm:$0xf]
  %v413 = vld [vmem:[%s1 + $0x590] sm:$0xf]
  %v414 = vld [vmem:[%s1 + $0x594] sm:$0xf]
  %v415 = vld [vmem:[%s1 + $0x598] sm:$0xf]
  %v416 = vld [vmem:[%s1 + $0x59c] sm:$0xf]
  %v417 = vld [vmem:[%s1 + $0x5a0] sm:$0xf]
  %v418 = vld [vmem:[%s1 + $0x5a4] sm:$0xf]
  %v419 = vld [vmem:[%s1 + $0x5a8] sm:$0xf]
  %v420 = vld [vmem:[%s1 + $0x5ac] sm:$0xf]
  %v421 = vld [vmem:[%s1 + $0x5b0] sm:$0xf]
  %v422 = vld [vmem:[%s1 + $0x5b4] sm:$0xf]
  %v423 = vld [vmem:[%s1 + $0x5b8] sm:$0xf]
  %v424 = vld [vmem:[%s1 + $0x5bc] sm:$0xf]
  %v425 = vld [vmem:[%s1 + $0x5c0] sm:$0xf]
  %v426 = vld [vmem:[%s1 + $0x5c4] sm:$0xf]
  %v427 = vld [vmem:[%s1 + $0x5c8] sm:$0xf]
  %v428 = vld [vmem:[%s1 + $0x5cc] sm:$0xf]
  %v429 = vld [vmem:[%s1 + $0x5d0] sm:$0xf]
  %v430 = vld [vmem:[%s1 + $0x5d4] sm:$0xf]
  %v431 = vld [vmem:[%s1 + $0x5d8] sm:$0xf]
  %v432 = vld [vmem:[%s1 + $0x5dc] sm:$0xf]
  %v433 = vld [vmem:[%s1 + $0x5e0] sm:$0xf]
  %v434 = vld [vmem:[%s1 + $0x5e4] sm:$0xf]
  %v435 = vld [vmem:[%s1 + $0x5e8] sm:$0xf]
  %v436 = vld [vmem:[%s1 + $0x5ec] sm:$0xf]
  %v437 = vld [vmem:[%s1 + $0x5f0] sm:$0xf]
  %v438 = vld [vmem:[%s1 + $0x5f4] sm:$0xf]
  %v439 = vld [vmem:[%s1 + $0x5f8] sm:$0xf]
  %v440 = vld [vmem:[%s1 + $0x5fc] sm:$0xf]
  %v441 = vld [vmem:[%s1 + $0x600] sm:$0xf]
  %v442 = vld [vmem:[%s1 + $0x604] sm:$0xf]
  %v443 = vld [vmem:[%s1 + $0x608] sm:$0xf]
  %v444 = vld [vmem:[%s1 + $0x60c] sm:$0xf]
  %v445 = vld [vmem:[%s1 + $0x610] sm:$0xf]
  %v446 = vld [vmem:[%s1 + $0x614] sm:$0xf]
  %v447 = vld [vmem:[%s1 + $0x618] sm:$0xf]
  %v448 = vld [vmem:[%s1 + $0x61c] sm:$0xf]
  %v449 = vld [vmem:[%s1 + $0x620] sm:$0xf]
  %v450 = vld [vmem:[%s1 + $0x624] sm:$0xf]
  %v451 = vld [vmem:[%s1 + $0x628] sm:$0xf]
  %v452 = vld [vmem:[%s1 + $0x62c] sm:$0xf]
  %v453 = vld [vmem:[%s1 + $0x630] sm:$0xf]
  %v454 = vld [vmem:[%s1 + $0x634] sm:$0xf]
  %v455 = vld [vmem:[%s1 + $0x638] sm:$0xf]
  %v456 = vld [vmem:[%s1 + $0x63c] sm:$0xf]
  %v457 = vld [vmem:[%s1 + $0x640] sm:$0xf]
  %v458 = vld [vmem:[%s1 + $0x644] sm:$0xf]
  %v459 = vld [vmem:[%s1 + $0x648] sm:$0xf]
  %v460 = vld [vmem:[%s1 + $0x64c] sm:$0xf]
  %v461 = vld [vmem:[%s1 + $0x650] sm:$0xf]
  %v462 = vld [vmem:[%s1 + $0x654] sm:$0xf]
  %v463 = vld [vmem:[%s1 + $0x658] sm:$0xf]
  %v464 = vld [vmem:[%s1 + $0x65c] sm:$0xf]
  %v465 = vld [vmem:[%s1 + $0x660] sm:$0xf]
  %v466 = vld [vmem:[%s1 + $0x664] sm:$0xf]
  %v467 = vld [vmem:[%s1 + $0x668] sm:$0xf]
  %v468 = vld [vmem:[%s1 + $0x66c] sm:$0xf]
  %v469 = vld [vmem:[%s1 + $0x670] sm:$0xf]
  %v470 = vld [vmem:[%s1 + $0x674] sm:$0xf]
  %v471 = vld [vmem:[%s1 + $0x678] sm:$0xf]
  %v472 = vld [vmem:[%s1 + $0x67c] sm:$0xf]
  %v473 = vld [vmem:[%s1 + $0x680] sm:$0xf]
  %v474 = vld [vmem:[%s1 + $0x684] sm:$0xf]
  %v475 = vld [vmem:[%s1 + $0x688] sm:$0xf]
  %v476 = vld [vmem:[%s1 + $0x68c] sm:$0xf]
  %v477 = vld [vmem:[%s1 + $0x690] sm:$0xf]
  %v478 = vld [vmem:[%s1 + $0x694] sm:$0xf]
  %v479 = vld [vmem:[%s1 + $0x698] sm:$0xf]
  %v480 = vld [vmem:[%s1 + $0x69c] sm:$0xf]
  %v481 = vld [vmem:[%s1 + $0x6a0] sm:$0xf]
  %v482 = vld [vmem:[%s1 + $0x6a4] sm:$0xf]
  %v483 = vld [vmem:[%s1 + $0x6a8] sm:$0xf]
  %v484 = vld [vmem:[%s1 + $0x6ac] sm:$0xf]
  %v485 = vld [vmem:[%s1 + $0x6b0] sm:$0xf]
  %v486 = vld [vmem:[%s1 + $0x6b4] sm:$0xf]
  %v487 = vld [vmem:[%s1 + $0x6b8] sm:$0xf]
  %v488 = vld [vmem:[%s1 + $0x6bc] sm:$0xf]
  %v489 = vld [vmem:[%s1 + $0x6c0] sm:$0xf]
  %v490 = vld [vmem:[%s1 + $0x6c4] sm:$0xf]
  %v491 = vld [vmem:[%s1 + $0x6c8] sm:$0xf]
  %v492 = vld [vmem:[%s1 + $0x6cc] sm:$0xf]
  %v493 = vld [vmem:[%s1 + $0x6d0] sm:$0xf]
  %v494 = vld [vmem:[%s1 + $0x6d4] sm:$0xf]
  %v495 = vld [vmem:[%s1 + $0x6d8] sm:$0xf]
  %v496 = vld [vmem:[%s1 + $0x6dc] sm:$0xf]
  %v497 = vld [vmem:[%s1 + $0x6e0] sm:$0xf]
  %v498 = vld [vmem:[%s1 + $0x6e4] sm:$0xf]
  %v499 = vld [vmem:[%s1 + $0x6e8] sm:$0xf]
  %v500 = vld [vmem:[%s1 + $0x6ec] sm:$0xf]
  %v501 = vld [vmem:[%s1 + $0x6f0] sm:$0xf]
  %v502 = vld [vmem:[%s1 + $0x6f4] sm:$0xf]
  %v503 = vld [vmem:[%s1 + $0x6f8] sm:$0xf]
  %v504 = vld [vmem:[%s1 + $0x6fc] sm:$0xf]
  %v505 = vld [vmem:[%s1 + $0x700] sm:$0xf]
  %v506 = vld [vmem:[%s1 + $0x704] sm:$0xf]
  %v507 = vld [vmem:[%s1 + $0x708] sm:$0xf]
  %v508 = vld [vmem:[%s1 + $0x70c] sm:$0xf]
  %v509 = vld [vmem:[%s1 + $0x710] sm:$0xf]
  %v510 = vld [vmem:[%s1 + $0x714] sm:$0xf]
  %v511 = vld [vmem:[%s1 + $0x718] sm:$0xf]
  %v512 = vld [vmem:[%s1 + $0x71c] sm:$0xf]
  %v513 = vld [vmem:[%s1 + $0x720] sm:$0xf]
  %v514 = vld [vmem:[%s1 + $0x724] sm:$0xf]
  %v515 = vld [vmem:[%s1 + $0x728] sm:$0xf]
  %v516 = vld [vmem:[%s1 + $0x72c] sm:$0xf]
  %v517 = vld [vmem:[%s1 + $0x730] sm:$0xf]
  %v518 = vld [vmem:[%s1 + $0x734] sm:$0xf]
  %v519 = vld [vmem:[%s1 + $0x738] sm:$0xf]
  %v520 = vld [vmem:[%s1 + $0x73c] sm:$0xf]
  %v521 = vld [vmem:[%s1 + $0x740] sm:$0xf]
  %v522 = vld [vmem:[%s1 + $0x744] sm:$0xf]
  %v523 = vld [vmem:[%s1 + $0x748] sm:$0xf]
  %v524 = vld [vmem:[%s1 + $0x74c] sm:$0xf]
  %v525 = vld [vmem:[%s1 + $0x750] sm:$0xf]
  %v526 = vld [vmem:[%s1 + $0x754] sm:$0xf]
  %v527 = vld [vmem:[%s1 + $0x758] sm:$0xf]
  %v528 = vld [vmem:[%s1 + $0x75c] sm:$0xf]
  %v529 = vld [vmem:[%s1 + $0x760] sm:$0xf]
  %v530 = vld [vmem:[%s1 + $0x764] sm:$0xf]
  %v531 = vld [vmem:[%s1 + $0x768] sm:$0xf]
  %v532 = vld [vmem:[%s1 + $0x76c] sm:$0xf]
  %v533 = vld [vmem:[%s1 + $0x770] sm:$0xf]
  %v534 = vld [vmem:[%s1 + $0x774] sm:$0xf]
  %v535 = vld [vmem:[%s1 + $0x778] sm:$0xf]
  %v536 = vld [vmem:[%s1 + $0x77c] sm:$0xf]
  %v537 = vld [vmem:[%s1 + $0x780] sm:$0xf]
  %v538 = vld [vmem:[%s1 + $0x784] sm:$0xf]
  %v539 = vld [vmem:[%s1 + $0x788] sm:$0xf]
  %v540 = vld [vmem:[%s1 + $0x78c] sm:$0xf]
  %v541 = vld [vmem:[%s1 + $0x790] sm:$0xf]
  %v542 = vld [vmem:[%s1 + $0x794] sm:$0xf]
  %v543 = vld [vmem:[%s1 + $0x798] sm:$0xf]
  %v544 = vld [vmem:[%s1 + $0x79c] sm:$0xf]
  %v545 = vld [vmem:[%s1 + $0x7a0] sm:$0xf]
  %v546 = vld [vmem:[%s1 + $0x7a4] sm:$0xf]
  %v547 = vld [vmem:[%s1 + $0x7a8] sm:$0xf]
  %v548 = vld [vmem:[%s1 + $0x7ac] sm:$0xf]
  %v549 = vld [vmem:[%s1 + $0x7b0] sm:$0xf]
  %v550 = vld [vmem:[%s1 + $0x7b4] sm:$0xf]
  %v551 = vld [vmem:[%s1 + $0x7b8] sm:$0xf]
  %v552 = vld [vmem:[%s1 + $0x7bc] sm:$0xf]
  %v553 = vld [vmem:[%s1 + $0x7c0] sm:$0xf]
  %v554 = vld [vmem:[%s1 + $0x7c4] sm:$0xf]
  %v555 = vld [vmem:[%s1 + $0x7c8] sm:$0xf]
  %v556 = vld [vmem:[%s1 + $0x7cc] sm:$0xf]
  %v557 = vld [vmem:[%s1 + $0x7d0] sm:$0xf]
  %v558 = vld [vmem:[%s1 + $0x7d4] sm:$0xf]
  %v559 = vld [vmem:[%s1 + $0x7d8] sm:$0xf]
  %v560 = vld [vmem:[%s1 + $0x7dc] sm:$0xf]
  %v561 = vld [vmem:[%s1 + $0x7e0] sm:$0xf]
  %v562 = vld [vmem:[%s1 + $0x7e4] sm:$0xf]
  %v563 = vld [vmem:[%s1 + $0x7e8] sm:$0xf]
  %v564 = vld [vmem:[%s1 + $0x7ec] sm:$0xf]
  %v565 = vld [vmem:[%s1 + $0x7f0] sm:$0xf]
  %v566 = vld [vmem:[%s1 + $0x7f4] sm:$0xf]
  %v567 = vld [vmem:[%s1 + $0x7f8] sm:$0xf]
  %v568 = vld [vmem:[%s1 + $0x7fc] sm:$0xf]
  %v569 = vld [vmem:[%s1 + $0x800] sm:$0xf]
  %v570 = vld [vmem:[%s1 + $0x804] sm:$0xf]
  %v571 = vld [vmem:[%s1 + $0x808] sm:$0xf]
  %v572 = vld [vmem:[%s1 + $0x80c] sm:$0xf]
  %v573 = vld [vmem:[%s1 + $0x810] sm:$0xf]
  %v574 = vld [vmem:[%s1 + $0x814] sm:$0xf]
  %v575 = vld [vmem:[%s1 + $0x818] sm:$0xf]
  %v576 = vld [vmem:[%s1 + $0x81c] sm:$0xf]
  %v577 = vld [vmem:[%s1 + $0x820] sm:$0xf]
  %v578 = vld [vmem:[%s1 + $0x824] sm:$0xf]
  %v579 = vld [vmem:[%s1 + $0x828] sm:$0xf]
  %v580 = vld [vmem:[%s1 + $0x82c] sm:$0xf]
  %v581 = vld [vmem:[%s1 + $0x830] sm:$0xf]
  %v582 = vld [vmem:[%s1 + $0x834] sm:$0xf]
  %v583 = vld [vmem:[%s1 + $0x838] sm:$0xf]
  %v584 = vld [vmem:[%s1 + $0x83c] sm:$0xf]
  %v585 = vld [vmem:[%s1 + $0x840] sm:$0xf]
  %v586 = vld [vmem:[%s1 + $0x844] sm:$0xf]
  %v587 = vld [vmem:[%s1 + $0x848] sm:$0xf]
  %v588 = vld [vmem:[%s1 + $0x84c] sm:$0xf]
  %v589 = vld [vmem:[%s1 + $0x850] sm:$0xf]
  %v590 = vld [vmem:[%s1 + $0x854] sm:$0xf]
  %v591 = vld [vmem:[%s1 + $0x858] sm:$0xf]
  %v592 = vld [vmem:[%s1 + $0x85c] sm:$0xf]
  %v593 = vld [vmem:[%s1 + $0x860] sm:$0xf]
  %v594 = vld [vmem:[%s1 + $0x864] sm:$0xf]
  %v595 = vld [vmem:[%s1 + $0x868] sm:$0xf]
  %v596 = vld [vmem:[%s1 + $0x86c] sm:$0xf]
  %v597 = vld [vmem:[%s1 + $0x870] sm:$0xf]
  %v598 = vld [vmem:[%s1 + $0x874] sm:$0xf]
  %v599 = vld [vmem:[%s1 + $0x878] sm:$0xf]
  %v600 = vld [vmem:[%s1 + $0x87c] sm:$0xf]
  %v601 = vld [vmem:[%s1 + $0x880] sm:$0xf]
  %v602 = vld [vmem:[%s1 + $0x884] sm:$0xf]
  %v603 = vld [vmem:[%s1 + $0x888] sm:$0xf]
  %v604 = vld [vmem:[%s1 + $0x88c] sm:$0xf]
  %v605 = vld [vmem:[%s1 + $0x890] sm:$0xf]
  %v606 = vld [vmem:[%s1 + $0x894] sm:$0xf]
  %v607 = vld [vmem:[%s1 + $0x898] sm:$0xf]
  %v608 = vld [vmem:[%s1 + $0x89c] sm:$0xf]
  %v609 = vld [vmem:[%s1 + $0x8a0] sm:$0xf]
  %v610 = vld [vmem:[%s1 + $0x8a4] sm:$0xf]
  %v611 = vld [vmem:[%s1 + $0x8a8] sm:$0xf]
  %v612 = vld [vmem:[%s1 + $0x8ac] sm:$0xf]
  %v613 = vld [vmem:[%s1 + $0x8b0] sm:$0xf]
  %v614 = vld [vmem:[%s1 + $0x8b4] sm:$0xf]
  %v615 = vld [vmem:[%s1 + $0x8b8] sm:$0xf]
  %v616 = vld [vmem:[%s1 + $0x8bc] sm:$0xf]
  %v617 = vld [vmem:[%s1 + $0x8c0] sm:$0xf]
  %v618 = vld [vmem:[%s1 + $0x8c4] sm:$0xf]
  %v619 = vld [vmem:[%s1 + $0x8c8] sm:$0xf]
  %v620 = vld [vmem:[%s1 + $0x8cc] sm:$0xf]
  %v621 = vld [vmem:[%s1 + $0x8d0] sm:$0xf]
  %v622 = vld [vmem:[%s1 + $0x8d4] sm:$0xf]
  %v623 = vld [vmem:[%s1 + $0x8d8] sm:$0xf]
  %v624 = vld [vmem:[%s1 + $0x8dc] sm:$0xf]
  %v625 = vld [vmem:[%s1 + $0x8e0] sm:$0xf]
  %v626 = vld [vmem:[%s1 + $0x8e4] sm:$0xf]
  %v627 = vld [vmem:[%s1 + $0x8e8] sm:$0xf]
  %v628 = vld [vmem:[%s1 + $0x8ec] sm:$0xf]
  %v629 = vld [vmem:[%s1 + $0x8f0] sm:$0xf]
  %v630 = vld [vmem:[%s1 + $0x8f4] sm:$0xf]
  %v631 = vld [vmem:[%s1 + $0x8f8] sm:$0xf]
  %v632 = vld [vmem:[%s1 + $0x8fc] sm:$0xf]
  %v633 = vld [vmem:[%s1 + $0x900] sm:$0xf]
  %v634 = vld [vmem:[%s1 + $0x904] sm:$0xf]
  %v635 = vld [vmem:[%s1 + $0x908] sm:$0xf]
  %v636 = vld [vmem:[%s1 + $0x90c] sm:$0xf]
  %v637 = vld [vmem:[%s1 + $0x910] sm:$0xf]
  %v638 = vld [vmem:[%s1 + $0x914] sm:$0xf]
  %v639 = vld [vmem:[%s1 + $0x918] sm:$0xf]
  %v640 = vld [vmem:[%s1 + $0x91c] sm:$0xf]
  %v641 = vld [vmem:[%s1 + $0x920] sm:$0xf]
  %v642 = vld [vmem:[%s1 + $0x924] sm:$0xf]
  %v643 = vld [vmem:[%s1 + $0x928] sm:$0xf]
  %v644 = vld [vmem:[%s1 + $0x92c] sm:$0xf]
  %v645 = vld [vmem:[%s1 + $0x930] sm:$0xf]
  %v646 = vld [vmem:[%s1 + $0x934] sm:$0xf]
  %v647 = vld [vmem:[%s1 + $0x938] sm:$0xf]
  %v648 = vld [vmem:[%s1 + $0x93c] sm:$0xf]
  %v649 = vld [vmem:[%s1 + $0x940] sm:$0xf]
  %v650 = vld [vmem:[%s1 + $0x944] sm:$0xf]
  %v651 = vld [vmem:[%s1 + $0x948] sm:$0xf]
  %v652 = vld [vmem:[%s1 + $0x94c] sm:$0xf]
  %v653 = vld [vmem:[%s1 + $0x950] sm:$0xf]
  %v654 = vld [vmem:[%s1 + $0x954] sm:$0xf]
  %v655 = vld [vmem:[%s1 + $0x958] sm:$0xf]
  %v656 = vld [vmem:[%s1 + $0x95c] sm:$0xf]
  %v657 = vld [vmem:[%s1 + $0x960] sm:$0xf]
  %v658 = vld [vmem:[%s1 + $0x964] sm:$0xf]
  %v659 = vld [vmem:[%s1 + $0x968] sm:$0xf]
  %v660 = vld [vmem:[%s1 + $0x96c] sm:$0xf]
  %v661 = vld [vmem:[%s1 + $0x970] sm:$0xf]
  %v662 = vld [vmem:[%s1 + $0x974] sm:$0xf]
  %v663 = vld [vmem:[%s1 + $0x978] sm:$0xf]
  %v664 = vld [vmem:[%s1 + $0x97c] sm:$0xf]
  %v665 = vld [vmem:[%s1 + $0x980] sm:$0xf]
  %v666 = vld [vmem:[%s1 + $0x984] sm:$0xf]
  %v667 = vld [vmem:[%s1 + $0x988] sm:$0xf]
  %v668 = vld [vmem:[%s1 + $0x98c] sm:$0xf]
  %v669 = vld [vmem:[%s1 + $0x990] sm:$0xf]
  %v670 = vld [vmem:[%s1 + $0x994] sm:$0xf]
  %v671 = vld [vmem:[%s1 + $0x998] sm:$0xf]
  %v672 = vld [vmem:[%s1 + $0x99c] sm:$0xf]
  %v673 = vld [vmem:[%s1 + $0x9a0] sm:$0xf]
  %v674 = vld [vmem:[%s1 + $0x9a4] sm:$0xf]
  %v675 = vld [vmem:[%s1 + $0x9a8] sm:$0xf]
  %v676 = vld [vmem:[%s1 + $0x9ac] sm:$0xf]
  %v677 = vld [vmem:[%s1 + $0x9b0] sm:$0xf]
  %v678 = vld [vmem:[%s1 + $0x9b4] sm:$0xf]
  %v679 = vld [vmem:[%s1 + $0x9b8] sm:$0xf]
  %v680 = vld [vmem:[%s1 + $0x9bc] sm:$0xf]
  %v681 = vld [vmem:[%s1 + $0x9c0] sm:$0xf]
  %v682 = vld [vmem:[%s1 + $0x9c4] sm:$0xf]
  %v683 = vld [vmem:[%s1 + $0x9c8] sm:$0xf]
  %v684 = vld [vmem:[%s1 + $0x9cc] sm:$0xf]
  %v685 = vld [vmem:[%s1 + $0x9d0] sm:$0xf]
  %v686 = vld [vmem:[%s1 + $0x9d4] sm:$0xf]
  %v687 = vld [vmem:[%s1 + $0x9d8] sm:$0xf]
  %v688 = vld [vmem:[%s1 + $0x9dc] sm:$0xf]
  %v689 = vld [vmem:[%s1 + $0x9e0] sm:$0xf]
  %v690 = vld [vmem:[%s1 + $0x9e4] sm:$0xf]
  %v691 = vld [vmem:[%s1 + $0x9e8] sm:$0xf]
  %v692 = vld [vmem:[%s1 + $0x9ec] sm:$0xf]
  %v693 = vld [vmem:[%s1 + $0x9f0] sm:$0xf]
  %v694 = vld [vmem:[%s1 + $0x9f4] sm:$0xf]
  %v695 = vld [vmem:[%s1 + $0x9f8] sm:$0xf]
  %v696 = vld [vmem:[%s1 + $0x9fc] sm:$0xf]
  %v697 = vld [vmem:[%s1 + $0xa00] sm:$0xf]
  %v698 = vld [vmem:[%s1 + $0xa04] sm:$0xf]
  %v699 = vld [vmem:[%s1 + $0xa08] sm:$0xf]
  %v700 = vld [vmem:[%s1 + $0xa0c] sm:$0xf]
  %v701 = vld [vmem:[%s1 + $0xa10] sm:$0xf]
  %v702 = vld [vmem:[%s1 + $0xa14] sm:$0xf]
  %v703 = vld [vmem:[%s1 + $0xa18] sm:$0xf]
  %v704 = vld [vmem:[%s1 + $0xa1c] sm:$0xf]
  %v705 = vld [vmem:[%s1 + $0xa20] sm:$0xf]
  %v706 = vld [vmem:[%s1 + $0xa24] sm:$0xf]
  %v707 = vld [vmem:[%s1 + $0xa28] sm:$0xf]
  %v708 = vld [vmem:[%s1 + $0xa2c] sm:$0xf]
  %v709 = vld [vmem:[%s1 + $0xa30] sm:$0xf]
  %v710 = vld [vmem:[%s1 + $0xa34] sm:$0xf]
  %v711 = vld [vmem:[%s1 + $0xa38] sm:$0xf]
  %v712 = vld [vmem:[%s1 + $0xa3c] sm:$0xf]
  %v713 = vld [vmem:[%s1 + $0xa40] sm:$0xf]
  %v714 = vld [vmem:[%s1 + $0xa44] sm:$0xf]
  %v715 = vld [vmem:[%s1 + $0xa48] sm:$0xf]
  %v716 = vld [vmem:[%s1 + $0xa4c] sm:$0xf]
  %v717 = vld [vmem:[%s1 + $0xa50] sm:$0xf]
  %v718 = vld [vmem:[%s1 + $0xa54] sm:$0xf]
  %v719 = vld [vmem:[%s1 + $0xa58] sm:$0xf]
  %v720 = vld [vmem:[%s1 + $0xa5c] sm:$0xf]
  %v721 = vld [vmem:[%s1 + $0xa60] sm:$0xf]
  %v722 = vld [vmem:[%s1 + $0xa64] sm:$0xf]
  %v723 = vld [vmem:[%s1 + $0xa68] sm:$0xf]
  %v724 = vld [vmem:[%s1 + $0xa6c] sm:$0xf]
  %v725 = vld [vmem:[%s1 + $0xa70] sm:$0xf]
  %v726 = vld [vmem:[%s1 + $0xa74] sm:$0xf]
  %v727 = vld [vmem:[%s1 + $0xa78] sm:$0xf]
  %v728 = vld [vmem:[%s1 + $0xa7c] sm:$0xf]
  %v729 = vld [vmem:[%s1 + $0xa80] sm:$0xf]
  %v730 = vld [vmem:[%s1 + $0xa84] sm:$0xf]
  %v731 = vld [vmem:[%s1 + $0xa88] sm:$0xf]
  %v732 = vld [vmem:[%s1 + $0xa8c] sm:$0xf]
  %v733 = vld [vmem:[%s1 + $0xa90] sm:$0xf]
  %v734 = vld [vmem:[%s1 + $0xa94] sm:$0xf]
  %v735 = vld [vmem:[%s1 + $0xa98] sm:$0xf]
  %v736 = vld [vmem:[%s1 + $0xa9c] sm:$0xf]
  %v737 = vld [vmem:[%s1 + $0xaa0] sm:$0xf]
  %v738 = vld [vmem:[%s1 + $0xaa4] sm:$0xf]
  %v739 = vld [vmem:[%s1 + $0xaa8] sm:$0xf]
  %v740 = vld [vmem:[%s1 + $0xaac] sm:$0xf]
  %v741 = vld [vmem:[%s1 + $0xab0] sm:$0xf]
  %v742 = vld [vmem:[%s1 + $0xab4] sm:$0xf]
  %v743 = vld [vmem:[%s1 + $0xab8] sm:$0xf]
  %v744 = vld [vmem:[%s1 + $0xabc] sm:$0xf]
  %v745 = vld [vmem:[%s1 + $0xac0] sm:$0xf]
  %v746 = vld [vmem:[%s1 + $0xac4] sm:$0xf]
  %v747 = vld [vmem:[%s1 + $0xac8] sm:$0xf]
  %v748 = vld [vmem:[%s1 + $0xacc] sm:$0xf]
  %v749 = vld [vmem:[%s1 + $0xad0] sm:$0xf]
  %v750 = vld [vmem:[%s1 + $0xad4] sm:$0xf]
  %v751 = vld [vmem:[%s1 + $0xad8] sm:$0xf]
  %v752 = vld [vmem:[%s1 + $0xadc] sm:$0xf]
  %v753 = vld [vmem:[%s1 + $0xae0] sm:$0xf]
  %v754 = vld [vmem:[%s1 + $0xae4] sm:$0xf]
  %v755 = vld [vmem:[%s1 + $0xae8] sm:$0xf]
  %v756 = vld [vmem:[%s1 + $0xaec] sm:$0xf]
  %v757 = vld [vmem:[%s1 + $0xaf0] sm:$0xf]
  %v758 = vld [vmem:[%s1 + $0xaf4] sm:$0xf]
  %v759 = vld [vmem:[%s1 + $0xaf8] sm:$0xf]
  %v760 = vld [vmem:[%s1 + $0xafc] sm:$0xf]
  %v761 = vld [vmem:[%s1 + $0xb00] sm:$0xf]
  %v762 = vld [vmem:[%s1 + $0xb04] sm:$0xf]
  %v763 = vld [vmem:[%s1 + $0xb08] sm:$0xf]
  %v764 = vld [vmem:[%s1 + $0xb0c] sm:$0xf]
  %v765 = vld [vmem:[%s1 + $0xb10] sm:$0xf]
  %v766 = vld [vmem:[%s1 + $0xb14] sm:$0xf]
  %v767 = vld [vmem:[%s1 + $0xb18] sm:$0xf]
  %v768 = vld [vmem:[%s1 + $0xb1c] sm:$0xf]
  %v769 = vld [vmem:[%s1 + $0xb20] sm:$0xf]
  %v770 = vld [vmem:[%s1 + $0xb24] sm:$0xf]
  %v771 = vld [vmem:[%s1 + $0xb28] sm:$0xf]
  %v772 = vld [vmem:[%s1 + $0xb2c] sm:$0xf]
  %v773 = vld [vmem:[%s1 + $0xb30] sm:$0xf]
  %v774 = vld [vmem:[%s1 + $0xb34] sm:$0xf]
  %v775 = vld [vmem:[%s1 + $0xb38] sm:$0xf]
  %v776 = vld [vmem:[%s1 + $0xb3c] sm:$0xf]
  %v777 = vld [vmem:[%s1 + $0xb40] sm:$0xf]
  %v778 = vld [vmem:[%s1 + $0xb44] sm:$0xf]
  %v779 = vld [vmem:[%s1 + $0xb48] sm:$0xf]
  %v780 = vld [vmem:[%s1 + $0xb4c] sm:$0xf]
  %v781 = vld [vmem:[%s1 + $0xb50] sm:$0xf]
  %v782 = vld [vmem:[%s1 + $0xb54] sm:$0xf]
  %v783 = vld [vmem:[%s1 + $0xb58] sm:$0xf]
  %v784 = vld [vmem:[%s1 + $0xb5c] sm:$0xf]
  %v785 = vld [vmem:[%s1 + $0xb60] sm:$0xf]
  %v786 = vld [vmem:[%s1 + $0xb64] sm:$0xf]
  %v787 = vld [vmem:[%s1 + $0xb68] sm:$0xf]
  %v788 = vld [vmem:[%s1 + $0xb6c] sm:$0xf]
  %v789 = vld [vmem:[%s1 + $0xb70] sm:$0xf]
  %v790 = vld [vmem:[%s1 + $0xb74] sm:$0xf]
  %v791 = vld [vmem:[%s1 + $0xb78] sm:$0xf]
  %v792 = vld [vmem:[%s1 + $0xb7c] sm:$0xf]
  %v793 = vld [vmem:[%s1 + $0xb80] sm:$0xf]
  %v794 = vld [vmem:[%s1 + $0xb84] sm:$0xf]
  %v795 = vld [vmem:[%s1 + $0xb88] sm:$0xf]
  %v796 = vld [vmem:[%s1 + $0xb8c] sm:$0xf]
  %v797 = vld [vmem:[%s1 + $0xb90] sm:$0xf]
  %v798 = vld [vmem:[%s1 + $0xb94] sm:$0xf]
  %v799 = vld [vmem:[%s1 + $0xb98] sm:$0xf]
  %v800 = vld [vmem:[%s1 + $0xb9c] sm:$0xf]
  %v801 = vld [vmem:[%s1 + $0xba0] sm:$0xf]
  %v802 = vld [vmem:[%s1 + $0xba4] sm:$0xf]
  %v803 = vld [vmem:[%s1 + $0xba8] sm:$0xf]
  %v804 = vld [vmem:[%s1 + $0xbac] sm:$0xf]
  %v805 = vld [vmem:[%s1 + $0xbb0] sm:$0xf]
  %v806 = vld [vmem:[%s1 + $0xbb4] sm:$0xf]
  %v807 = vld [vmem:[%s1 + $0xbb8] sm:$0xf]
  %v808 = vld [vmem:[%s1 + $0xbbc] sm:$0xf]
  %v809 = vld [vmem:[%s1 + $0xbc0] sm:$0xf]
  %v810 = vld [vmem:[%s1 + $0xbc4] sm:$0xf]
  %v811 = vld [vmem:[%s1 + $0xbc8] sm:$0xf]
  %v812 = vld [vmem:[%s1 + $0xbcc] sm:$0xf]
  %v813 = vld [vmem:[%s1 + $0xbd0] sm:$0xf]
  %v814 = vld [vmem:[%s1 + $0xbd4] sm:$0xf]
  %v815 = vld [vmem:[%s1 + $0xbd8] sm:$0xf]
  %v816 = vld [vmem:[%s1 + $0xbdc] sm:$0xf]
  %v817 = vld [vmem:[%s1 + $0xbe0] sm:$0xf]
  %v818 = vld [vmem:[%s1 + $0xbe4] sm:$0xf]
  %v819 = vld [vmem:[%s1 + $0xbe8] sm:$0xf]
  %v820 = vld [vmem:[%s1 + $0xbec] sm:$0xf]
  %v821 = vld [vmem:[%s1 + $0xbf0] sm:$0xf]
  %v822 = vld [vmem:[%s1 + $0xbf4] sm:$0xf]
  %v823 = vld [vmem:[%s1 + $0xbf8] sm:$0xf]
  %v824 = vld [vmem:[%s1 + $0xbfc] sm:$0xf]
  %v825 = vld [vmem:[%s1 + $0xc00] sm:$0xf]
  %v826 = vld [vmem:[%s1 + $0xc04] sm:$0xf]
  %v827 = vld [vmem:[%s1 + $0xc08] sm:$0xf]
  %v828 = vld [vmem:[%s1 + $0xc0c] sm:$0xf]
  %v829 = vld [vmem:[%s1 + $0xc10] sm:$0xf]
  %v830 = vld [vmem:[%s1 + $0xc14] sm:$0xf]
  %v831 = vld [vmem:[%s1 + $0xc18] sm:$0xf]
  %v832 = vld [vmem:[%s1 + $0xc1c] sm:$0xf]
  %v833 = vld [vmem:[%s1 + $0xc20] sm:$0xf]
  %v834 = vld [vmem:[%s1 + $0xc24] sm:$0xf]
  %v835 = vld [vmem:[%s1 + $0xc28] sm:$0xf]
  %v836 = vld [vmem:[%s1 + $0xc2c] sm:$0xf]
  %v837 = vld [vmem:[%s1 + $0xc30] sm:$0xf]
  %v838 = vld [vmem:[%s1 + $0xc34] sm:$0xf]
  %v839 = vld [vmem:[%s1 + $0xc38] sm:$0xf]
  %v840 = vld [vmem:[%s1 + $0xc3c] sm:$0xf]
  %v841 = vld [vmem:[%s1 + $0xc40] sm:$0xf]
  %v842 = vld [vmem:[%s1 + $0xc44] sm:$0xf]
  %v843 = vld [vmem:[%s1 + $0xc48] sm:$0xf]
  %v844 = vld [vmem:[%s1 + $0xc4c] sm:$0xf]
  %v845 = vld [vmem:[%s1 + $0xc50] sm:$0xf]
  %v846 = vld [vmem:[%s1 + $0xc54] sm:$0xf]
  %v847 = vld [vmem:[%s1 + $0xc58] sm:$0xf]
  %v848 = vld [vmem:[%s1 + $0xc5c] sm:$0xf]
  %v849 = vld [vmem:[%s1 + $0xc60] sm:$0xf]
  %v850 = vld [vmem:[%s1 + $0xc64] sm:$0xf]
  %v851 = vld [vmem:[%s1 + $0xc68] sm:$0xf]
  %v852 = vld [vmem:[%s1 + $0xc6c] sm:$0xf]
  %v853 = vld [vmem:[%s1 + $0xc70] sm:$0xf]
  %v854 = vld [vmem:[%s1 + $0xc74] sm:$0xf]
  %v855 = vld [vmem:[%s1 + $0xc78] sm:$0xf]
  %v856 = vld [vmem:[%s1 + $0xc7c] sm:$0xf]
  %v857 = vld [vmem:[%s1 + $0xc80] sm:$0xf]
  %v858 = vld [vmem:[%s1 + $0xc84] sm:$0xf]
  %v859 = vld [vmem:[%s1 + $0xc88] sm:$0xf]
  %v860 = vld [vmem:[%s1 + $0xc8c] sm:$0xf]
  %v861 = vld [vmem:[%s1 + $0xc90] sm:$0xf]
  %v862 = vld [vmem:[%s1 + $0xc94] sm:$0xf]
  %v863 = vld [vmem:[%s1 + $0xc98] sm:$0xf]
  %v864 = vld [vmem:[%s1 + $0xc9c] sm:$0xf]
  %v865 = vld [vmem:[%s1 + $0xca0] sm:$0xf]
  %v866 = vld [vmem:[%s1 + $0xca4] sm:$0xf]
  %v867 = vld [vmem:[%s1 + $0xca8] sm:$0xf]
  %v868 = vld [vmem:[%s1 + $0xcac] sm:$0xf]
  %v869 = vld [vmem:[%s1 + $0xcb0] sm:$0xf]
  %v870 = vld [vmem:[%s1 + $0xcb4] sm:$0xf]
  %v871 = vld [vmem:[%s1 + $0xcb8] sm:$0xf]
  %v872 = vld [vmem:[%s1 + $0xcbc] sm:$0xf]
  %v873 = vld [vmem:[%s1 + $0xcc0] sm:$0xf]
  %v874 = vld [vmem:[%s1 + $0xcc4] sm:$0xf]
  %v875 = vld [vmem:[%s1 + $0xcc8] sm:$0xf]
  %v876 = vld [vmem:[%s1 + $0xccc] sm:$0xf]
  %v877 = vld [vmem:[%s1 + $0xcd0] sm:$0xf]
  %v878 = vld [vmem:[%s1 + $0xcd4] sm:$0xf]
  %v879 = vld [vmem:[%s1 + $0xcd8] sm:$0xf]
  %v880 = vld [vmem:[%s1 + $0xcdc] sm:$0xf]
  %v881 = vld [vmem:[%s1 + $0xce0] sm:$0xf]
  %v882 = vld [vmem:[%s1 + $0xce4] sm:$0xf]
  %v883 = vld [vmem:[%s1 + $0xce8] sm:$0xf]
  %v884 = vld [vmem:[%s1 + $0xcec] sm:$0xf]
  %v885 = vld [vmem:[%s1 + $0xcf0] sm:$0xf]
  %v886 = vld [vmem:[%s1 + $0xcf4] sm:$0xf]
  %v887 = vld [vmem:[%s1 + $0xcf8] sm:$0xf]
  %v888 = vld [vmem:[%s1 + $0xcfc] sm:$0xf]
  %v889 = vld [vmem:[%s1 + $0xd00] sm:$0xf]
  %v890 = vld [vmem:[%s1 + $0xd04] sm:$0xf]
  %v891 = vld [vmem:[%s1 + $0xd08] sm:$0xf]
  %v892 = vld [vmem:[%s1 + $0xd0c] sm:$0xf]
  %v893 = vld [vmem:[%s1 + $0xd10] sm:$0xf]
  %v894 = vld [vmem:[%s1 + $0xd14] sm:$0xf]
  %v895 = vld [vmem:[%s1 + $0xd18] sm:$0xf]
  %v896 = vld [vmem:[%s1 + $0xd1c] sm:$0xf]
  %v897 = vld [vmem:[%s1 + $0xd20] sm:$0xf]
  %v898 = vld [vmem:[%s1 + $0xd24] sm:$0xf]
  %v899 = vld [vmem:[%s1 + $0xd28] sm:$0xf]
  %v900 = vld [vmem:[%s1 + $0xd2c] sm:$0xf]
  %v901 = vld [vmem:[%s1 + $0xd30] sm:$0xf]
  %v902 = vld [vmem:[%s1 + $0xd34] sm:$0xf]
  %v903 = vld [vmem:[%s1 + $0xd38] sm:$0xf]
  %v904 = vld [vmem:[%s1 + $0xd3c] sm:$0xf]
  %v905 = vld [vmem:[%s1 + $0xd40] sm:$0xf]
  %v906 = vld [vmem:[%s1 + $0xd44] sm:$0xf]
  %v907 = vld [vmem:[%s1 + $0xd48] sm:$0xf]
  %v908 = vld [vmem:[%s1 + $0xd4c] sm:$0xf]
  %v909 = vld [vmem:[%s1 + $0xd50] sm:$0xf]
  %v910 = vld [vmem:[%s1 + $0xd54] sm:$0xf]
  %v911 = vld [vmem:[%s1 + $0xd58] sm:$0xf]
  %v912 = vld [vmem:[%s1 + $0xd5c] sm:$0xf]
  %v913 = vld [vmem:[%s1 + $0xd60] sm:$0xf]
  %v914 = vld [vmem:[%s1 + $0xd64] sm:$0xf]
  %v915 = vld [vmem:[%s1 + $0xd68] sm:$0xf]
  %v916 = vld [vmem:[%s1 + $0xd6c] sm:$0xf]
  %v917 = vld [vmem:[%s1 + $0xd70] sm:$0xf]
  %v918 = vld [vmem:[%s1 + $0xd74] sm:$0xf]
  %v919 = vld [vmem:[%s1 + $0xd78] sm:$0xf]
  %v920 = vld [vmem:[%s1 + $0xd7c] sm:$0xf]
  %v921 = vld [vmem:[%s1 + $0xd80] sm:$0xf]
  %v922 = vld [vmem:[%s1 + $0xd84] sm:$0xf]
  %v923 = vld [vmem:[%s1 + $0xd88] sm:$0xf]
  %v924 = vld [vmem:[%s1 + $0xd8c] sm:$0xf]
  %v925 = vld [vmem:[%s1 + $0xd90] sm:$0xf]
  %v926 = vld [vmem:[%s1 + $0xd94] sm:$0xf]
  %v927 = vld [vmem:[%s1 + $0xd98] sm:$0xf]
  %v928 = vld [vmem:[%s1 + $0xd9c] sm:$0xf]
  %v929 = vld [vmem:[%s1 + $0xda0] sm:$0xf]
  %v930 = vld [vmem:[%s1 + $0xda4] sm:$0xf]
  %v931 = vld [vmem:[%s1 + $0xda8] sm:$0xf]
  %v932 = vld [vmem:[%s1 + $0xdac] sm:$0xf]
  %v933 = vld [vmem:[%s1 + $0xdb0] sm:$0xf]
  %v934 = vld [vmem:[%s1 + $0xdb4] sm:$0xf]
  %v935 = vld [vmem:[%s1 + $0xdb8] sm:$0xf]
  %v936 = vld [vmem:[%s1 + $0xdbc] sm:$0xf]
  %v937 = vld [vmem:[%s1 + $0xdc0] sm:$0xf]
  %v938 = vld [vmem:[%s1 + $0xdc4] sm:$0xf]
  %v939 = vld [vmem:[%s1 + $0xdc8] sm:$0xf]
  %v940 = vld [vmem:[%s1 + $0xdcc] sm:$0xf]
  %v941 = vld [vmem:[%s1 + $0xdd0] sm:$0xf]
  %v942 = vld [vmem:[%s1 + $0xdd4] sm:$0xf]
  %v943 = vld [vmem:[%s1 + $0xdd8] sm:$0xf]
  %v944 = vld [vmem:[%s1 + $0xddc] sm:$0xf]
  %v945 = vld [vmem:[%s1 + $0xde0] sm:$0xf]
  %v946 = vld [vmem:[%s1 + $0xde4] sm:$0xf]
  %v947 = vld [vmem:[%s1 + $0xde8] sm:$0xf]
  %v948 = vld [vmem:[%s1 + $0xdec] sm:$0xf]
  %v949 = vld [vmem:[%s1 + $0xdf0] sm:$0xf]
  %v950 = vld [vmem:[%s1 + $0xdf4] sm:$0xf]
  %v951 = vld [vmem:[%s1 + $0xdf8] sm:$0xf]
  %v952 = vld [vmem:[%s1 + $0xdfc] sm:$0xf]
  %v953 = vld [vmem:[%s1 + $0xe00] sm:$0xf]
  %v954 = vld [vmem:[%s1 + $0xe04] sm:$0xf]
  %v955 = vld [vmem:[%s1 + $0xe08] sm:$0xf]
  %v956 = vld [vmem:[%s1 + $0xe0c] sm:$0xf]
  %v957 = vld [vmem:[%s1 + $0xe10] sm:$0xf]
  %v958 = vld [vmem:[%s1 + $0xe14] sm:$0xf]
  %v959 = vld [vmem:[%s1 + $0xe18] sm:$0xf]
  %v960 = vld [vmem:[%s1 + $0xe1c] sm:$0xf]
  %v961 = vld [vmem:[%s1 + $0xe20] sm:$0xf]
  %v962 = vld [vmem:[%s1 + $0xe24] sm:$0xf]
  %v963 = vld [vmem:[%s1 + $0xe28] sm:$0xf]
  %v964 = vld [vmem:[%s1 + $0xe2c] sm:$0xf]
  %v965 = vld [vmem:[%s1 + $0xe30] sm:$0xf]
  %v966 = vld [vmem:[%s1 + $0xe34] sm:$0xf]
  %v967 = vld [vmem:[%s1 + $0xe38] sm:$0xf]
  %v968 = vld [vmem:[%s1 + $0xe3c] sm:$0xf]
  %v969 = vld [vmem:[%s1 + $0xe40] sm:$0xf]
  %v970 = vld [vmem:[%s1 + $0xe44] sm:$0xf]
  %v971 = vld [vmem:[%s1 + $0xe48] sm:$0xf]
  %v972 = vld [vmem:[%s1 + $0xe4c] sm:$0xf]
  %v973 = vld [vmem:[%s1 + $0xe50] sm:$0xf]
  %v974 = vld [vmem:[%s1 + $0xe54] sm:$0xf]
  %v975 = vld [vmem:[%s1 + $0xe58] sm:$0xf]
  %v976 = vld [vmem:[%s1 + $0xe5c] sm:$0xf]
  %v977 = vld [vmem:[%s1 + $0xe60] sm:$0xf]
  %v978 = vld [vmem:[%s1 + $0xe64] sm:$0xf]
  %v979 = vld [vmem:[%s1 + $0xe68] sm:$0xf]
  %v980 = vld [vmem:[%s1 + $0xe6c] sm:$0xf]
  %v981 = vld [vmem:[%s1 + $0xe70] sm:$0xf]
  %v982 = vld [vmem:[%s1 + $0xe74] sm:$0xf]
  %v983 = vld [vmem:[%s1 + $0xe78] sm:$0xf]
  %v984 = vld [vmem:[%s1 + $0xe7c] sm:$0xf]
  %v985 = vld [vmem:[%s1 + $0xe80] sm:$0xf]
  %v986 = vld [vmem:[%s1 + $0xe84] sm:$0xf]
  %v987 = vld [vmem:[%s1 + $0xe88] sm:$0xf]
  %v988 = vld [vmem:[%s1 + $0xe8c] sm:$0xf]
  %v989 = vld [vmem:[%s1 + $0xe90] sm:$0xf]
  %v990 = vld [vmem:[%s1 + $0xe94] sm:$0xf]
  %v991 = vld [vmem:[%s1 + $0xe98] sm:$0xf]
  %v992 = vld [vmem:[%s1 + $0xe9c] sm:$0xf]
  %v993 = vld [vmem:[%s1 + $0xea0] sm:$0xf]
  %v994 = vld [vmem:[%s1 + $0xea4] sm:$0xf]
  %v995 = vld [vmem:[%s1 + $0xea8] sm:$0xf]
  %v996 = vld [vmem:[%s1 + $0xeac] sm:$0xf]
  %v997 = vld [vmem:[%s1 + $0xeb0] sm:$0xf]
  %v998 = vld [vmem:[%s1 + $0xeb4] sm:$0xf]
  %v999 = vld [vmem:[%s1 + $0xeb8] sm:$0xf]
  %v1000 = vld [vmem:[%s1 + $0xebc] sm:$0xf]
  %v1001 = vld [vmem:[%s1 + $0xec0] sm:$0xf]
  %v1002 = vld [vmem:[%s1 + $0xec4] sm:$0xf]
  %v1003 = vld [vmem:[%s1 + $0xec8] sm:$0xf]
  %v1004 = vld [vmem:[%s1 + $0xecc] sm:$0xf]
  %v1005 = vld [vmem:[%s1 + $0xed0] sm:$0xf]
  %v1006 = vld [vmem:[%s1 + $0xed4] sm:$0xf]
  %v1007 = vld [vmem:[%s1 + $0xed8] sm:$0xf]
  %v1008 = vld [vmem:[%s1 + $0xedc] sm:$0xf]
  %v1009 = vld [vmem:[%s1 + $0xee0] sm:$0xf]
  %v1010 = vld [vmem:[%s1 + $0xee4] sm:$0xf]
  %v1011 = vld [vmem:[%s1 + $0xee8] sm:$0xf]
  %v1012 = vld [vmem:[%s1 + $0xeec] sm:$0xf]
  %v1013 = vld [vmem:[%s1 + $0xef0] sm:$0xf]
  %v1014 = vld [vmem:[%s1 + $0xef4] sm:$0xf]
  %v1015 = vld [vmem:[%s1 + $0xef8] sm:$0xf]
  %v1016 = vld [vmem:[%s1 + $0xefc] sm:$0xf]
  %v1017 = vld [vmem:[%s1 + $0xf00] sm:$0xf]
  %v1018 = vld [vmem:[%s1 + $0xf04] sm:$0xf]
  %v1019 = vld [vmem:[%s1 + $0xf08] sm:$0xf]
  %v1020 = vld [vmem:[%s1 + $0xf0c] sm:$0xf]
  %v1021 = vld [vmem:[%s1 + $0xf10] sm:$0xf]
  %v1022 = vld [vmem:[%s1 + $0xf14] sm:$0xf]
  %v1023 = vld [vmem:[%s1 + $0xf18] sm:$0xf]
  %v1024 = vld [vmem:[%s1 + $0xf1c] sm:$0xf]
  %v1025 = vld [vmem:[%s1 + $0xf20] sm:$0xf]
  %v1026 = vld [vmem:[%s1 + $0xf24] sm:$0xf]
  %v1027 = vld [vmem:[%s1 + $0xf28] sm:$0xf]
  %v1028 = vld [vmem:[%s1 + $0xf2c] sm:$0xf]
  %v1029 = vld [vmem:[%s1 + $0xf30] sm:$0xf]
  %v1030 = vld [vmem:[%s1 + $0xf34] sm:$0xf]
  %v1031 = vld [vmem:[%s1 + $0xf38] sm:$0xf]
  %v1032 = vld [vmem:[%s1 + $0xf3c] sm:$0xf]
  %v1033 = vld [vmem:[%s1 + $0xf40] sm:$0xf]
  %v1034 = vld [vmem:[%s1 + $0xf44] sm:$0xf]
  %v1035 = vld [vmem:[%s1 + $0xf48] sm:$0xf]
  %v1036 = vld [vmem:[%s1 + $0xf4c] sm:$0xf]
  %v1037 = vld [vmem:[%s1 + $0xf50] sm:$0xf]
  %v1038 = vld [vmem:[%s1 + $0xf54] sm:$0xf]
  %v1039 = vld [vmem:[%s1 + $0xf58] sm:$0xf]
  %v1040 = vld [vmem:[%s1 + $0xf5c] sm:$0xf]
  %v1041 = vld [vmem:[%s1 + $0xf60] sm:$0xf]
  %v1042 = vld [vmem:[%s1 + $0xf64] sm:$0xf]
  %v1043 = vld [vmem:[%s1 + $0xf68] sm:$0xf]
  %v1044 = vld [vmem:[%s1 + $0xf6c] sm:$0xf]
  %v1045 = vld [vmem:[%s1 + $0xf70] sm:$0xf]
  %v1046 = vld [vmem:[%s1 + $0xf74] sm:$0xf]
  %v1047 = vld [vmem:[%s1 + $0xf78] sm:$0xf]
  %v1048 = vld [vmem:[%s1 + $0xf7c] sm:$0xf]
  %v1049 = vld [vmem:[%s1 + $0xf80] sm:$0xf]
  %v1050 = vld [vmem:[%s1 + $0xf84] sm:$0xf]
  %v1051 = vld [vmem:[%s1 + $0xf88] sm:$0xf]
  %v1052 = vld [vmem:[%s1 + $0xf8c] sm:$0xf]
  %v1053 = vld [vmem:[%s1 + $0xf90] sm:$0xf]
  %v1054 = vld [vmem:[%s1 + $0xf94] sm:$0xf]
  %v1055 = vld [vmem:[%s1 + $0xf98] sm:$0xf]
  %v1056 = vld [vmem:[%s1 + $0xf9c] sm:$0xf]
  %v1057 = vld [vmem:[%s1 + $0xfa0] sm:$0xf]
  %v1058 = vld [vmem:[%s1 + $0xfa4] sm:$0xf]
  %v1059 = vld [vmem:[%s1 + $0xfa8] sm:$0xf]
  %v1060 = vld [vmem:[%s1 + $0xfac] sm:$0xf]
  %v1061 = vld [vmem:[%s1 + $0xfb0] sm:$0xf]
  %v1062 = vld [vmem:[%s1 + $0xfb4] sm:$0xf]
  %v1063 = vld [vmem:[%s1 + $0xfb8] sm:$0xf]
  %v1064 = vld [vmem:[%s1 + $0xfbc] sm:$0xf]
  %v1065 = vld [vmem:[%s1 + $0xfc0] sm:$0xf]
  %v1066 = vld [vmem:[%s1 + $0xfc4] sm:$0xf]
  %v1067 = vld [vmem:[%s1 + $0xfc8] sm:$0xf]
  %v1068 = vld [vmem:[%s1 + $0xfcc] sm:$0xf]
  %v1069 = vld [vmem:[%s1 + $0xfd0] sm:$0xf]
  %v1070 = vld [vmem:[%s1 + $0xfd4] sm:$0xf]
  %v1071 = vld [vmem:[%s1 + $0xfd8] sm:$0xf]
  %v1072 = vld [vmem:[%s1 + $0xfdc] sm:$0xf]
  %v1073 = vld [vmem:[%s1 + $0xfe0] sm:$0xf]
  %v1074 = vld [vmem:[%s1 + $0xfe4] sm:$0xf]
  %v1075 = vld [vmem:[%s1 + $0xfe8] sm:$0xf]
  %v1076 = vld [vmem:[%s1 + $0xfec] sm:$0xf]
  %v1077 = vld [vmem:[%s1 + $0xff0] sm:$0xf]
  %v1078 = vld [vmem:[%s1 + $0xff4] sm:$0xf]
  %v1079 = vld [vmem:[%s1 + $0xff8] sm:$0xf]
  %v1080 = vld [vmem:[%s1 + $0xffc] sm:$0xf]
  %v1081 = vld [vmem:[%s1 + $0x1000] sm:$0xf]
  %v1082 = vld [vmem:[%s1 + $0x1004] sm:$0xf]
  %v1083 = vld [vmem:[%s1 + $0x1008] sm:$0xf]
  %v1084 = vld [vmem:[%s1 + $0x100c] sm:$0xf]
  %v1085 = vld [vmem:[%s1 + $0x1010] sm:$0xf]
  %v1086 = vld [vmem:[%s1 + $0x1014] sm:$0xf]
  %v1087 = vld [vmem:[%s1 + $0x1018] sm:$0xf]
  %v1088 = vld [vmem:[%s1 + $0x101c] sm:$0xf]
  %v1089 = vld [vmem:[%s1 + $0x1020] sm:$0xf]
  %v1090 = vld [vmem:[%s1 + $0x1024] sm:$0xf]
  %v1091 = vld [vmem:[%s1 + $0x1028] sm:$0xf]
  %v1092 = vld [vmem:[%s1 + $0x102c] sm:$0xf]
  %v1093 = vld [vmem:[%s1 + $0x1030] sm:$0xf]
  %v1094 = vld [vmem:[%s1 + $0x1034] sm:$0xf]
  %v1095 = vld [vmem:[%s1 + $0x1038] sm:$0xf]
  %v1096 = vld [vmem:[%s1 + $0x103c] sm:$0xf]
  %v1097 = vld [vmem:[%s1 + $0x1040] sm:$0xf]
  %v1098 = vld [vmem:[%s1 + $0x1044] sm:$0xf]
  %v1099 = vld [vmem:[%s1 + $0x1048] sm:$0xf]
  %v1100 = vld [vmem:[%s1 + $0x104c] sm:$0xf]
  %v1101 = vld [vmem:[%s1 + $0x1050] sm:$0xf]
  %v1102 = vld [vmem:[%s1 + $0x1054] sm:$0xf]
  %v1103 = vld [vmem:[%s1 + $0x1058] sm:$0xf]
  %v1104 = vld [vmem:[%s1 + $0x105c] sm:$0xf]
  %v1105 = vld [vmem:[%s1 + $0x1060] sm:$0xf]
  %v1106 = vld [vmem:[%s1 + $0x1064] sm:$0xf]
  %v1107 = vld [vmem:[%s1 + $0x1068] sm:$0xf]
  %v1108 = vld [vmem:[%s1 + $0x106c] sm:$0xf]
  %v1109 = vld [vmem:[%s1 + $0x1070] sm:$0xf]
  %v1110 = vld [vmem:[%s1 + $0x1074] sm:$0xf]
  %v1111 = vld [vmem:[%s1 + $0x1078] sm:$0xf]
  %v1112 = vld [vmem:[%s1 + $0x107c] sm:$0xf]
  %v1113 = vld [vmem:[%s1 + $0x1080] sm:$0xf]
  %v1114 = vld [vmem:[%s1 + $0x1084] sm:$0xf]
  %v1115 = vld [vmem:[%s1 + $0x1088] sm:$0xf]
  %v1116 = vld [vmem:[%s1 + $0x108c] sm:$0xf]
  %v1117 = vld [vmem:[%s1 + $0x1090] sm:$0xf]
  %v1118 = vld [vmem:[%s1 + $0x1094] sm:$0xf]
  %v1119 = vld [vmem:[%s1 + $0x1098] sm:$0xf]
  %v1120 = vld [vmem:[%s1 + $0x109c] sm:$0xf]
  %v1121 = vld [vmem:[%s1 + $0x10a0] sm:$0xf]
  %v1122 = vld [vmem:[%s1 + $0x10a4] sm:$0xf]
  %v1123 = vld [vmem:[%s1 + $0x10a8] sm:$0xf]
  %v1124 = vld [vmem:[%s1 + $0x10ac] sm:$0xf]
  %v1125 = vld [vmem:[%s1 + $0x10b0] sm:$0xf]
  %v1126 = vld [vmem:[%s1 + $0x10b4] sm:$0xf]
  %v1127 = vld [vmem:[%s1 + $0x10b8] sm:$0xf]
  %v1128 = vld [vmem:[%s1 + $0x10bc] sm:$0xf]
  %v1129 = vld [vmem:[%s1 + $0x10c0] sm:$0xf]
  %v1130 = vld [vmem:[%s1 + $0x10c4] sm:$0xf]
  %v1131 = vld [vmem:[%s1 + $0x10c8] sm:$0xf]
  %v1132 = vld [vmem:[%s1 + $0x10cc] sm:$0xf]
  %v1133 = vld [vmem:[%s1 + $0x10d0] sm:$0xf]
  %v1134 = vld [vmem:[%s1 + $0x10d4] sm:$0xf]
  %v1135 = vld [vmem:[%s1 + $0x10d8] sm:$0xf]
  %v1136 = vld [vmem:[%s1 + $0x10dc] sm:$0xf]
  %v1137 = vld [vmem:[%s1 + $0x10e0] sm:$0xf]
  %v1138 = vld [vmem:[%s1 + $0x10e4] sm:$0xf]
  %v1139 = vld [vmem:[%s1 + $0x10e8] sm:$0xf]
  %v1140 = vld [vmem:[%s1 + $0x10ec] sm:$0xf]
  %v1141 = vld [vmem:[%s1 + $0x10f0] sm:$0xf]
  %v1142 = vld [vmem:[%s1 + $0x10f4] sm:$0xf]
  %v1143 = vld [vmem:[%s1 + $0x10f8] sm:$0xf]
  %v1144 = vld [vmem:[%s1 + $0x10fc] sm:$0xf]
  %v1145 = vld [vmem:[%s1 + $0x1100] sm:$0xf]
  %v1146 = vld [vmem:[%s1 + $0x1104] sm:$0xf]
  %v1147 = vld [vmem:[%s1 + $0x1108] sm:$0xf]
  %v1148 = vld [vmem:[%s1 + $0x110c] sm:$0xf]
  %v1149 = vld [vmem:[%s1 + $0x1110] sm:$0xf]
  %v1150 = vld [vmem:[%s1 + $0x1114] sm:$0xf]
  %v1151 = vld [vmem:[%s1 + $0x1118] sm:$0xf]
  %v1152 = vld [vmem:[%s1 + $0x111c] sm:$0xf]
  %v1153 = vld [vmem:[%s1 + $0x1120] sm:$0xf]
  %v1154 = vld [vmem:[%s1 + $0x1124] sm:$0xf]
  %v1155 = vld [vmem:[%s1 + $0x1128] sm:$0xf]
  %v1156 = vld [vmem:[%s1 + $0x112c] sm:$0xf]
  %v1157 = vld [vmem:[%s1 + $0x1130] sm:$0xf]
  %v1158 = vld [vmem:[%s1 + $0x1134] sm:$0xf]
  %v1159 = vld [vmem:[%s1 + $0x1138] sm:$0xf]
  %v1160 = vld [vmem:[%s1 + $0x113c] sm:$0xf]
  %v1161 = vld [vmem:[%s1 + $0x1140] sm:$0xf]
  %v1162 = vld [vmem:[%s1 + $0x1144] sm:$0xf]
  %v1163 = vld [vmem:[%s1 + $0x1148] sm:$0xf]
  %v1164 = vld [vmem:[%s1 + $0x114c] sm:$0xf]
  %v1165 = vld [vmem:[%s1 + $0x1150] sm:$0xf]
  %v1166 = vld [vmem:[%s1 + $0x1154] sm:$0xf]
  %v1167 = vld [vmem:[%s1 + $0x1158] sm:$0xf]
  %v1168 = vld [vmem:[%s1 + $0x115c] sm:$0xf]
  %v1169 = vld [vmem:[%s1 + $0x1160] sm:$0xf]
  %v1170 = vld [vmem:[%s1 + $0x1164] sm:$0xf]
  %v1171 = vld [vmem:[%s1 + $0x1168] sm:$0xf]
  %v1172 = vld [vmem:[%s1 + $0x116c] sm:$0xf]
  %v1173 = vld [vmem:[%s1 + $0x1170] sm:$0xf]
  %v1174 = vld [vmem:[%s1 + $0x1174] sm:$0xf]
  %v1175 = vld [vmem:[%s1 + $0x1178] sm:$0xf]
  %v1176 = vld [vmem:[%s1 + $0x117c] sm:$0xf]
  %v1177 = vld [vmem:[%s1 + $0x1180] sm:$0xf]
  %v1178 = vld [vmem:[%s1 + $0x1184] sm:$0xf]
  %v1179 = vld [vmem:[%s1 + $0x1188] sm:$0xf]
  %v1180 = vld [vmem:[%s1 + $0x118c] sm:$0xf]
  %v1181 = vld [vmem:[%s1 + $0x1190] sm:$0xf]
  %v1182 = vld [vmem:[%s1 + $0x1194] sm:$0xf]
  %v1183 = vld [vmem:[%s1 + $0x1198] sm:$0xf]
  %v1184 = vld [vmem:[%s1 + $0x119c] sm:$0xf]
  %v1185 = vld [vmem:[%s1 + $0x11a0] sm:$0xf]
  %v1186 = vld [vmem:[%s1 + $0x11a4] sm:$0xf]
  %v1187 = vld [vmem:[%s1 + $0x11a8] sm:$0xf]
  %v1188 = vld [vmem:[%s1 + $0x11ac] sm:$0xf]
  %v1189 = vld [vmem:[%s1 + $0x11b0] sm:$0xf]
  %v1190 = vld [vmem:[%s1 + $0x11b4] sm:$0xf]
  %v1191 = vld [vmem:[%s1 + $0x11b8] sm:$0xf]
  %v1192 = vld [vmem:[%s1 + $0x11bc] sm:$0xf]
  %v1193 = vld [vmem:[%s1 + $0x11c0] sm:$0xf]
  %v1194 = vld [vmem:[%s1 + $0x11c4] sm:$0xf]
  %v1195 = vld [vmem:[%s1 + $0x11c8] sm:$0xf]
  %v1196 = vld [vmem:[%s1 + $0x11cc] sm:$0xf]
  %v1197 = vld [vmem:[%s1 + $0x11d0] sm:$0xf]
  %v1198 = vld [vmem:[%s1 + $0x11d4] sm:$0xf]
  %v1199 = vld [vmem:[%s1 + $0x11d8] sm:$0xf]
  %v1200 = vld [vmem:[%s1 + $0x11dc] sm:$0xf]
  %v1201 = vld [vmem:[%s1 + $0x11e0] sm:$0xf]
  %v1202 = vld [vmem:[%s1 + $0x11e4] sm:$0xf]
  %v1203 = vld [vmem:[%s1 + $0x11e8] sm:$0xf]
  %v1204 = vld [vmem:[%s1 + $0x11ec] sm:$0xf]
  %v1205 = vld [vmem:[%s1 + $0x11f0] sm:$0xf]
  %v1206 = vld [vmem:[%s1 + $0x11f4] sm:$0xf]
  %v1207 = vld [vmem:[%s1 + $0x11f8] sm:$0xf]
  %v1208 = vld [vmem:[%s1 + $0x11fc] sm:$0xf]
  %v1209 = vld [vmem:[%s2] sm:$0x1]
  %v1211 = vlaneseq
  %v1212 = vshrl.u32 %v1211, 7
  %v1213 = vsub.s32 0, %v1212
  %v1214 = vrot.slane %v1209, %v1213
  %v1252 = vunpack.c.l.b16 %v21
  %v1253 = vunpack.c.h.b16 %v21
  %v1254 = vunpack.c.l.b16 %v22
  %v1255 = vunpack.c.h.b16 %v22
  %v1256 = vunpack.c.l.b16 %v23
  %v1257 = vunpack.c.h.b16 %v23
  %v1258 = vunpack.c.l.b16 %v24
  %v1259 = vunpack.c.h.b16 %v24
  %v1260 = vunpack.c.l.b16 %v25
  %v1261 = vunpack.c.h.b16 %v25
  %v1262 = vunpack.c.l.b16 %v26
  %v1263 = vunpack.c.h.b16 %v26
  %v1264 = vunpack.c.l.b16 %v27
  %v1265 = vunpack.c.h.b16 %v27
  %v1266 = vunpack.c.l.b16 %v28
  %v1267 = vunpack.c.h.b16 %v28
  %v1268 = vunpack.c.l.b16 %v29
  %v1269 = vunpack.c.h.b16 %v29
  %v1270 = vunpack.c.l.b16 %v30
  %v1271 = vunpack.c.h.b16 %v30
  %v1272 = vunpack.c.l.b16 %v31
  %v1273 = vunpack.c.h.b16 %v31
  %v1274 = vunpack.c.l.b16 %v32
  %v1275 = vunpack.c.h.b16 %v32
  %v1276 = vunpack.c.l.b16 %v33
  %v1277 = vunpack.c.h.b16 %v33
  %v1278 = vunpack.c.l.b16 %v34
  %v1279 = vunpack.c.h.b16 %v34
  %v1280 = vunpack.c.l.b16 %v35
  %v1281 = vunpack.c.h.b16 %v35
  %v1282 = vunpack.c.l.b16 %v36
  %v1283 = vunpack.c.h.b16 %v36
  %v1284 = vunpack.c.l.b16 %v37
  %v1285 = vunpack.c.h.b16 %v37
  %v1286 = vunpack.c.l.b16 %v38
  %v1287 = vunpack.c.h.b16 %v38
  %v1288 = vunpack.c.l.b16 %v39
  %v1289 = vunpack.c.h.b16 %v39
  %v1290 = vunpack.c.l.b16 %v40
  %v1291 = vunpack.c.h.b16 %v40
  %v1292 = vunpack.c.l.b16 %v41
  %v1293 = vunpack.c.h.b16 %v41
  %v1294 = vunpack.c.l.b16 %v42
  %v1295 = vunpack.c.h.b16 %v42
  %v1296 = vunpack.c.l.b16 %v43
  %v1297 = vunpack.c.h.b16 %v43
  %v1298 = vunpack.c.l.b16 %v44
  %v1299 = vunpack.c.h.b16 %v44
  %v1300 = vunpack.c.l.b16 %v45
  %v1301 = vunpack.c.h.b16 %v45
  %v1302 = vunpack.c.l.b16 %v46
  %v1303 = vunpack.c.h.b16 %v46
  %v1304 = vunpack.c.l.b16 %v47
  %v1305 = vunpack.c.h.b16 %v47
  %v1306 = vunpack.c.l.b16 %v48
  %v1307 = vunpack.c.h.b16 %v48
  %v1308 = vunpack.c.l.b16 %v49
  %v1309 = vunpack.c.h.b16 %v49
  %v1310 = vunpack.c.l.b16 %v50
  %v1311 = vunpack.c.h.b16 %v50
  %v1312 = vunpack.c.l.b16 %v51
  %v1313 = vunpack.c.h.b16 %v51
  %v1314 = vunpack.c.l.b16 %v52
  %v1315 = vunpack.c.h.b16 %v52
  %v1316 = vunpack.c.l.b16 %v53
  %v1317 = vunpack.c.h.b16 %v53
  %v1318 = vunpack.c.l.b16 %v54
  %v1319 = vunpack.c.h.b16 %v54
  %v1320 = vunpack.c.l.b16 %v55
  %v1321 = vunpack.c.h.b16 %v55
  %v1322 = vunpack.c.l.b16 %v56
  %v1323 = vunpack.c.h.b16 %v56
  %v1324 = vpack.c.b16 %v1252, %v1252
  %v1325 = vpack.c.b16 %v1253, %v1253
  %v1326 = vpack.c.b16 %v1254, %v1254
  %v1327 = vpack.c.b16 %v1255, %v1255
  %v1328 = vpack.c.b16 %v1256, %v1256
  %v1329 = vpack.c.b16 %v1257, %v1257
  %v1330 = vpack.c.b16 %v1258, %v1258
  %v1331 = vpack.c.b16 %v1259, %v1259
  %v1332 = vpack.c.b16 %v1260, %v1260
  %v1333 = vpack.c.b16 %v1261, %v1261
  %v1334 = vpack.c.b16 %v1262, %v1262
  %v1335 = vpack.c.b16 %v1263, %v1263
  %v1336 = vpack.c.b16 %v1264, %v1264
  %v1337 = vpack.c.b16 %v1265, %v1265
  %v1338 = vpack.c.b16 %v1266, %v1266
  %v1339 = vpack.c.b16 %v1267, %v1267
  %v1340 = vpack.c.b16 %v1268, %v1268
  %v1341 = vpack.c.b16 %v1269, %v1269
  %v1342 = vpack.c.b16 %v1270, %v1270
  %v1343 = vpack.c.b16 %v1271, %v1271
  %v1344 = vpack.c.b16 %v1272, %v1272
  %v1345 = vpack.c.b16 %v1273, %v1273
  %v1346 = vpack.c.b16 %v1274, %v1274
  %v1347 = vpack.c.b16 %v1275, %v1275
  %v1348 = vpack.c.b16 %v1276, %v1276
  %v1349 = vpack.c.b16 %v1277, %v1277
  %v1350 = vpack.c.b16 %v1278, %v1278
  %v1351 = vpack.c.b16 %v1279, %v1279
  %v1352 = vpack.c.b16 %v1280, %v1280
  %v1353 = vpack.c.b16 %v1281, %v1281
  %v1354 = vpack.c.b16 %v1282, %v1282
  %v1355 = vpack.c.b16 %v1283, %v1283
  %v1356 = vpack.c.b16 %v1284, %v1284
  %v1357 = vpack.c.b16 %v1285, %v1285
  %v1358 = vpack.c.b16 %v1286, %v1286
  %v1359 = vpack.c.b16 %v1287, %v1287
  %v1360 = vpack.c.b16 %v1288, %v1288
  %v1361 = vpack.c.b16 %v1289, %v1289
  %v1362 = vpack.c.b16 %v1290, %v1290
  %v1363 = vpack.c.b16 %v1291, %v1291
  %v1364 = vpack.c.b16 %v1292, %v1292
  %v1365 = vpack.c.b16 %v1293, %v1293
  %v1366 = vpack.c.b16 %v1294, %v1294
  %v1367 = vpack.c.b16 %v1295, %v1295
  %v1368 = vpack.c.b16 %v1296, %v1296
  %v1369 = vpack.c.b16 %v1297, %v1297
  %v1370 = vpack.c.b16 %v1298, %v1298
  %v1371 = vpack.c.b16 %v1299, %v1299
  %v1372 = vpack.c.b16 %v1300, %v1300
  %v1373 = vpack.c.b16 %v1301, %v1301
  %v1374 = vpack.c.b16 %v1302, %v1302
  %v1375 = vpack.c.b16 %v1303, %v1303
  %v1376 = vpack.c.b16 %v1304, %v1304
  %v1377 = vpack.c.b16 %v1305, %v1305
  %v1378 = vpack.c.b16 %v1306, %v1306
  %v1379 = vpack.c.b16 %v1307, %v1307
  %v1380 = vpack.c.b16 %v1308, %v1308
  %v1381 = vpack.c.b16 %v1309, %v1309
  %v1382 = vpack.c.b16 %v1310, %v1310
  %v1383 = vpack.c.b16 %v1311, %v1311
  %v1384 = vpack.c.b16 %v1312, %v1312
  %v1385 = vpack.c.b16 %v1313, %v1313
  %v1386 = vpack.c.b16 %v1314, %v1314
  %v1387 = vpack.c.b16 %v1315, %v1315
  %v1388 = vpack.c.b16 %v1316, %v1316
  %v1389 = vpack.c.b16 %v1317, %v1317
  %v1390 = vpack.c.b16 %v1318, %v1318
  %v1391 = vpack.c.b16 %v1319, %v1319
  %v1392 = vpack.c.b16 %v1320, %v1320
  %v1393 = vpack.c.b16 %v1321, %v1321
  %v1394 = vpack.c.b16 %v1322, %v1322
  %v1395 = vpack.c.b16 %v1323, %v1323
  %v2620 = vunpack.c.l.b16 %v57
  %v2621 = vunpack.c.l.b16 %v58
  %v2622 = vunpack.c.l.b16 %v59
  %v2623 = vunpack.c.l.b16 %v60
  %v2624 = vunpack.c.l.b16 %v61
  %v2625 = vunpack.c.l.b16 %v62
  %v2626 = vunpack.c.l.b16 %v63
  %v2627 = vunpack.c.l.b16 %v64
  %v2628 = vunpack.c.l.b16 %v65
  %v2629 = vunpack.c.l.b16 %v66
  %v2630 = vunpack.c.l.b16 %v67
  %v2631 = vunpack.c.l.b16 %v68
  %v2632 = vunpack.c.l.b16 %v69
  %v2633 = vunpack.c.l.b16 %v70
  %v2634 = vunpack.c.l.b16 %v71
  %v2635 = vunpack.c.l.b16 %v72
  %v2636 = vunpack.c.l.b16 %v73
  %v2637 = vunpack.c.l.b16 %v74
  %v2638 = vunpack.c.l.b16 %v75
  %v2639 = vunpack.c.l.b16 %v76
  %v2640 = vunpack.c.l.b16 %v77
  %v2641 = vunpack.c.l.b16 %v78
  %v2642 = vunpack.c.l.b16 %v79
  %v2643 = vunpack.c.l.b16 %v80
  %v2644 = vunpack.c.l.b16 %v81
  %v2645 = vunpack.c.l.b16 %v82
  %v2646 = vunpack.c.l.b16 %v83
  %v2647 = vunpack.c.l.b16 %v84
  %v2648 = vunpack.c.l.b16 %v85
  %v2649 = vunpack.c.l.b16 %v86
  %v2650 = vunpack.c.l.b16 %v87
  %v2651 = vunpack.c.l.b16 %v88
  %v2652 = vunpack.c.l.b16 %v89
  %v2653 = vunpack.c.l.b16 %v90
  %v2654 = vunpack.c.l.b16 %v91
  %v2655 = vunpack.c.l.b16 %v92
  %v2656 = vunpack.c.l.b16 %v93
  %v2657 = vunpack.c.l.b16 %v94
  %v2658 = vunpack.c.l.b16 %v95
  %v2659 = vunpack.c.l.b16 %v96
  %v2660 = vunpack.c.l.b16 %v97
  %v2661 = vunpack.c.l.b16 %v98
  %v2662 = vunpack.c.l.b16 %v99
  %v2663 = vunpack.c.l.b16 %v100
  %v2664 = vunpack.c.l.b16 %v101
  %v2665 = vunpack.c.l.b16 %v102
  %v2666 = vunpack.c.l.b16 %v103
  %v2667 = vunpack.c.l.b16 %v104
  %v2668 = vunpack.c.l.b16 %v105
  %v2669 = vunpack.c.l.b16 %v106
  %v2670 = vunpack.c.l.b16 %v107
  %v2671 = vunpack.c.l.b16 %v108
  %v2672 = vunpack.c.l.b16 %v109
  %v2673 = vunpack.c.l.b16 %v110
  %v2674 = vunpack.c.l.b16 %v111
  %v2675 = vunpack.c.l.b16 %v112
  %v2676 = vunpack.c.l.b16 %v113
  %v2677 = vunpack.c.l.b16 %v114
  %v2678 = vunpack.c.l.b16 %v115
  %v2679 = vunpack.c.l.b16 %v116
  %v2680 = vunpack.c.l.b16 %v117
  %v2681 = vunpack.c.l.b16 %v118
  %v2682 = vunpack.c.l.b16 %v119
  %v2683 = vunpack.c.l.b16 %v120
  %v2684 = vunpack.c.l.b16 %v121
  %v2685 = vunpack.c.l.b16 %v122
  %v2686 = vunpack.c.l.b16 %v123
  %v2687 = vunpack.c.l.b16 %v124
  %v2688 = vunpack.c.l.b16 %v125
  %v2689 = vunpack.c.l.b16 %v126
  %v2690 = vunpack.c.l.b16 %v127
  %v2691 = vunpack.c.l.b16 %v128
  %v2692 = vunpack.c.l.b16 %v129
  %v2693 = vunpack.c.l.b16 %v130
  %v2694 = vunpack.c.l.b16 %v131
  %v2695 = vunpack.c.l.b16 %v132
  %v2696 = vunpack.c.l.b16 %v133
  %v2697 = vunpack.c.l.b16 %v134
  %v2698 = vunpack.c.l.b16 %v135
  %v2699 = vunpack.c.l.b16 %v136
  %v2700 = vunpack.c.l.b16 %v137
  %v2701 = vunpack.c.l.b16 %v138
  %v2702 = vunpack.c.l.b16 %v139
  %v2703 = vunpack.c.l.b16 %v140
  %v2704 = vunpack.c.l.b16 %v141
  %v2705 = vunpack.c.l.b16 %v142
  %v2706 = vunpack.c.l.b16 %v143
  %v2707 = vunpack.c.l.b16 %v144
  %v2708 = vunpack.c.l.b16 %v145
  %v2709 = vunpack.c.l.b16 %v146
  %v2710 = vunpack.c.l.b16 %v147
  %v2711 = vunpack.c.l.b16 %v148
  %v2712 = vunpack.c.l.b16 %v149
  %v2713 = vunpack.c.l.b16 %v150
  %v2714 = vunpack.c.l.b16 %v151
  %v2715 = vunpack.c.l.b16 %v152
  %v2716 = vunpack.c.l.b16 %v153
  %v2717 = vunpack.c.l.b16 %v154
  %v2718 = vunpack.c.l.b16 %v155
  %v2719 = vunpack.c.l.b16 %v156
  %v2720 = vunpack.c.l.b16 %v157
  %v2721 = vunpack.c.l.b16 %v158
  %v2722 = vunpack.c.l.b16 %v159
  %v2723 = vunpack.c.l.b16 %v160
  %v2724 = vunpack.c.l.b16 %v161
  %v2725 = vunpack.c.l.b16 %v162
  %v2726 = vunpack.c.l.b16 %v163
  %v2727 = vunpack.c.l.b16 %v164
  %v2728 = vunpack.c.l.b16 %v165
  %v2729 = vunpack.c.l.b16 %v166
  %v2730 = vunpack.c.l.b16 %v167
  %v2731 = vunpack.c.l.b16 %v168
  %v2732 = vunpack.c.l.b16 %v169
  %v2733 = vunpack.c.l.b16 %v170
  %v2734 = vunpack.c.l.b16 %v171
  %v2735 = vunpack.c.l.b16 %v172
  %v2736 = vunpack.c.l.b16 %v173
  %v2737 = vunpack.c.l.b16 %v174
  %v2738 = vunpack.c.l.b16 %v175
  %v2739 = vunpack.c.l.b16 %v176
  %v2740 = vunpack.c.l.b16 %v177
  %v2741 = vunpack.c.l.b16 %v178
  %v2742 = vunpack.c.l.b16 %v179
  %v2743 = vunpack.c.l.b16 %v180
  %v2744 = vunpack.c.l.b16 %v181
  %v2745 = vunpack.c.l.b16 %v182
  %v2746 = vunpack.c.l.b16 %v183
  %v2747 = vunpack.c.l.b16 %v184
  %v2748 = vunpack.c.l.b16 %v185
  %v2749 = vunpack.c.l.b16 %v186
  %v2750 = vunpack.c.l.b16 %v187
  %v2751 = vunpack.c.l.b16 %v188
  %v2752 = vunpack.c.l.b16 %v189
  %v2753 = vunpack.c.l.b16 %v190
  %v2754 = vunpack.c.l.b16 %v191
  %v2755 = vunpack.c.l.b16 %v192
  %v2756 = vunpack.c.l.b16 %v193
  %v2757 = vunpack.c.l.b16 %v194
  %v2758 = vunpack.c.l.b16 %v195
  %v2759 = vunpack.c.l.b16 %v196
  %v2760 = vunpack.c.l.b16 %v197
  %v2761 = vunpack.c.l.b16 %v198
  %v2762 = vunpack.c.l.b16 %v199
  %v2763 = vunpack.c.l.b16 %v200
  %v2764 = vunpack.c.l.b16 %v201
  %v2765 = vunpack.c.l.b16 %v202
  %v2766 = vunpack.c.l.b16 %v203
  %v2767 = vunpack.c.l.b16 %v204
  %v2768 = vunpack.c.l.b16 %v205
  %v2769 = vunpack.c.l.b16 %v206
  %v2770 = vunpack.c.l.b16 %v207
  %v2771 = vunpack.c.l.b16 %v208
  %v2772 = vunpack.c.l.b16 %v209
  %v2773 = vunpack.c.l.b16 %v210
  %v2774 = vunpack.c.l.b16 %v211
  %v2775 = vunpack.c.l.b16 %v212
  %v2776 = vunpack.c.l.b16 %v213
  %v2777 = vunpack.c.l.b16 %v214
  %v2778 = vunpack.c.l.b16 %v215
  %v2779 = vunpack.c.l.b16 %v216
  %v2780 = vunpack.c.l.b16 %v217
  %v2781 = vunpack.c.l.b16 %v218
  %v2782 = vunpack.c.l.b16 %v219
  %v2783 = vunpack.c.l.b16 %v220
  %v2784 = vunpack.c.l.b16 %v221
  %v2785 = vunpack.c.l.b16 %v222
  %v2786 = vunpack.c.l.b16 %v223
  %v2787 = vunpack.c.l.b16 %v224
  %v2788 = vunpack.c.l.b16 %v225
  %v2789 = vunpack.c.l.b16 %v226
  %v2790 = vunpack.c.l.b16 %v227
  %v2791 = vunpack.c.l.b16 %v228
  %v2792 = vunpack.c.l.b16 %v229
  %v2793 = vunpack.c.l.b16 %v230
  %v2794 = vunpack.c.l.b16 %v231
  %v2795 = vunpack.c.l.b16 %v232
  %v2796 = vunpack.c.l.b16 %v233
  %v2797 = vunpack.c.l.b16 %v234
  %v2798 = vunpack.c.l.b16 %v235
  %v2799 = vunpack.c.l.b16 %v236
  %v2800 = vunpack.c.l.b16 %v237
  %v2801 = vunpack.c.l.b16 %v238
  %v2802 = vunpack.c.l.b16 %v239
  %v2803 = vunpack.c.l.b16 %v240
  %v2804 = vunpack.c.l.b16 %v241
  %v2805 = vunpack.c.l.b16 %v242
  %v2806 = vunpack.c.l.b16 %v243
  %v2807 = vunpack.c.l.b16 %v244
  %v2808 = vunpack.c.l.b16 %v245
  %v2809 = vunpack.c.l.b16 %v246
  %v2810 = vunpack.c.l.b16 %v247
  %v2811 = vunpack.c.l.b16 %v248
  %v2812 = vunpack.c.l.b16 %v249
  %v2813 = vunpack.c.l.b16 %v250
  %v2814 = vunpack.c.l.b16 %v251
  %v2815 = vunpack.c.l.b16 %v252
  %v2816 = vunpack.c.l.b16 %v253
  %v2817 = vunpack.c.l.b16 %v254
  %v2818 = vunpack.c.l.b16 %v255
  %v2819 = vunpack.c.l.b16 %v256
  %v2820 = vunpack.c.l.b16 %v257
  %v2821 = vunpack.c.l.b16 %v258
  %v2822 = vunpack.c.l.b16 %v259
  %v2823 = vunpack.c.l.b16 %v260
  %v2824 = vunpack.c.l.b16 %v261
  %v2825 = vunpack.c.l.b16 %v262
  %v2826 = vunpack.c.l.b16 %v263
  %v2827 = vunpack.c.l.b16 %v264
  %v2828 = vunpack.c.l.b16 %v265
  %v2829 = vunpack.c.l.b16 %v266
  %v2830 = vunpack.c.l.b16 %v267
  %v2831 = vunpack.c.l.b16 %v268
  %v2832 = vunpack.c.l.b16 %v269
  %v2833 = vunpack.c.l.b16 %v270
  %v2834 = vunpack.c.l.b16 %v271
  %v2835 = vunpack.c.l.b16 %v272
  %v2836 = vunpack.c.l.b16 %v273
  %v2837 = vunpack.c.l.b16 %v274
  %v2838 = vunpack.c.l.b16 %v275
  %v2839 = vunpack.c.l.b16 %v276
  %v2840 = vunpack.c.l.b16 %v277
  %v2841 = vunpack.c.l.b16 %v278
  %v2842 = vunpack.c.l.b16 %v279
  %v2843 = vunpack.c.l.b16 %v280
  %v2844 = vunpack.c.l.b16 %v281
  %v2845 = vunpack.c.l.b16 %v282
  %v2846 = vunpack.c.l.b16 %v283
  %v2847 = vunpack.c.l.b16 %v284
  %v2848 = vunpack.c.l.b16 %v285
  %v2849 = vunpack.c.l.b16 %v286
  %v2850 = vunpack.c.l.b16 %v287
  %v2851 = vunpack.c.l.b16 %v288
  %v2852 = vunpack.c.l.b16 %v289
  %v2853 = vunpack.c.l.b16 %v290
  %v2854 = vunpack.c.l.b16 %v291
  %v2855 = vunpack.c.l.b16 %v292
  %v2856 = vunpack.c.l.b16 %v293
  %v2857 = vunpack.c.l.b16 %v294
  %v2858 = vunpack.c.l.b16 %v295
  %v2859 = vunpack.c.l.b16 %v296
  %v2860 = vunpack.c.l.b16 %v297
  %v2861 = vunpack.c.l.b16 %v298
  %v2862 = vunpack.c.l.b16 %v299
  %v2863 = vunpack.c.l.b16 %v300
  %v2864 = vunpack.c.l.b16 %v301
  %v2865 = vunpack.c.l.b16 %v302
  %v2866 = vunpack.c.l.b16 %v303
  %v2867 = vunpack.c.l.b16 %v304
  %v2868 = vunpack.c.l.b16 %v305
  %v2869 = vunpack.c.l.b16 %v306
  %v2870 = vunpack.c.l.b16 %v307
  %v2871 = vunpack.c.l.b16 %v308
  %v2872 = vunpack.c.l.b16 %v309
  %v2873 = vunpack.c.l.b16 %v310
  %v2874 = vunpack.c.l.b16 %v311
  %v2875 = vunpack.c.l.b16 %v312
  %v2876 = vunpack.c.l.b16 %v313
  %v2877 = vunpack.c.l.b16 %v314
  %v2878 = vunpack.c.l.b16 %v315
  %v2879 = vunpack.c.l.b16 %v316
  %v2880 = vunpack.c.l.b16 %v317
  %v2881 = vunpack.c.l.b16 %v318
  %v2882 = vunpack.c.l.b16 %v319
  %v2883 = vunpack.c.l.b16 %v320
  %v2884 = vunpack.c.l.b16 %v321
  %v2885 = vunpack.c.l.b16 %v322
  %v2886 = vunpack.c.l.b16 %v323
  %v2887 = vunpack.c.l.b16 %v324
  %v2888 = vunpack.c.l.b16 %v325
  %v2889 = vunpack.c.l.b16 %v326
  %v2890 = vunpack.c.l.b16 %v327
  %v2891 = vunpack.c.l.b16 %v328
  %v2892 = vunpack.c.l.b16 %v329
  %v2893 = vunpack.c.l.b16 %v330
  %v2894 = vunpack.c.l.b16 %v331
  %v2895 = vunpack.c.l.b16 %v332
  %v2896 = vunpack.c.l.b16 %v333
  %v2897 = vunpack.c.l.b16 %v334
  %v2898 = vunpack.c.l.b16 %v335
  %v2899 = vunpack.c.l.b16 %v336
  %v2900 = vunpack.c.l.b16 %v337
  %v2901 = vunpack.c.l.b16 %v338
  %v2902 = vunpack.c.l.b16 %v339
  %v2903 = vunpack.c.l.b16 %v340
  %v2904 = vunpack.c.l.b16 %v341
  %v2905 = vunpack.c.l.b16 %v342
  %v2906 = vunpack.c.l.b16 %v343
  %v2907 = vunpack.c.l.b16 %v344
  %v2908 = vunpack.c.l.b16 %v345
  %v2909 = vunpack.c.l.b16 %v346
  %v2910 = vunpack.c.l.b16 %v347
  %v2911 = vunpack.c.l.b16 %v348
  %v2912 = vunpack.c.l.b16 %v349
  %v2913 = vunpack.c.l.b16 %v350
  %v2914 = vunpack.c.l.b16 %v351
  %v2915 = vunpack.c.l.b16 %v352
  %v2916 = vunpack.c.l.b16 %v353
  %v2917 = vunpack.c.l.b16 %v354
  %v2918 = vunpack.c.l.b16 %v355
  %v2919 = vunpack.c.l.b16 %v356
  %v2920 = vunpack.c.l.b16 %v357
  %v2921 = vunpack.c.l.b16 %v358
  %v2922 = vunpack.c.l.b16 %v359
  %v2923 = vunpack.c.l.b16 %v360
  %v2924 = vunpack.c.l.b16 %v361
  %v2925 = vunpack.c.l.b16 %v362
  %v2926 = vunpack.c.l.b16 %v363
  %v2927 = vunpack.c.l.b16 %v364
  %v2928 = vunpack.c.l.b16 %v365
  %v2929 = vunpack.c.l.b16 %v366
  %v2930 = vunpack.c.l.b16 %v367
  %v2931 = vunpack.c.l.b16 %v368
  %v2932 = vunpack.c.l.b16 %v369
  %v2933 = vunpack.c.l.b16 %v370
  %v2934 = vunpack.c.l.b16 %v371
  %v2935 = vunpack.c.l.b16 %v372
  %v2936 = vunpack.c.l.b16 %v373
  %v2937 = vunpack.c.l.b16 %v374
  %v2938 = vunpack.c.l.b16 %v375
  %v2939 = vunpack.c.l.b16 %v376
  %v2940 = vunpack.c.l.b16 %v377
  %v2941 = vunpack.c.l.b16 %v378
  %v2942 = vunpack.c.l.b16 %v379
  %v2943 = vunpack.c.l.b16 %v380
  %v2944 = vunpack.c.l.b16 %v381
  %v2945 = vunpack.c.l.b16 %v382
  %v2946 = vunpack.c.l.b16 %v383
  %v2947 = vunpack.c.l.b16 %v384
  %v2948 = vunpack.c.l.b16 %v385
  %v2949 = vunpack.c.l.b16 %v386
  %v2950 = vunpack.c.l.b16 %v387
  %v2951 = vunpack.c.l.b16 %v388
  %v2952 = vunpack.c.l.b16 %v389
  %v2953 = vunpack.c.l.b16 %v390
  %v2954 = vunpack.c.l.b16 %v391
  %v2955 = vunpack.c.l.b16 %v392
  %v2956 = vunpack.c.l.b16 %v393
  %v2957 = vunpack.c.l.b16 %v394
  %v2958 = vunpack.c.l.b16 %v395
  %v2959 = vunpack.c.l.b16 %v396
  %v2960 = vunpack.c.l.b16 %v397
  %v2961 = vunpack.c.l.b16 %v398
  %v2962 = vunpack.c.l.b16 %v399
  %v2963 = vunpack.c.l.b16 %v400
  %v2964 = vunpack.c.l.b16 %v401
  %v2965 = vunpack.c.l.b16 %v402
  %v2966 = vunpack.c.l.b16 %v403
  %v2967 = vunpack.c.l.b16 %v404
  %v2968 = vunpack.c.l.b16 %v405
  %v2969 = vunpack.c.l.b16 %v406
  %v2970 = vunpack.c.l.b16 %v407
  %v2971 = vunpack.c.l.b16 %v408
  %v2972 = vunpack.c.l.b16 %v409
  %v2973 = vunpack.c.l.b16 %v410
  %v2974 = vunpack.c.l.b16 %v411
  %v2975 = vunpack.c.l.b16 %v412
  %v2976 = vunpack.c.l.b16 %v413
  %v2977 = vunpack.c.l.b16 %v414
  %v2978 = vunpack.c.l.b16 %v415
  %v2979 = vunpack.c.l.b16 %v416
  %v2980 = vunpack.c.l.b16 %v417
  %v2981 = vunpack.c.l.b16 %v418
  %v2982 = vunpack.c.l.b16 %v419
  %v2983 = vunpack.c.l.b16 %v420
  %v2984 = vunpack.c.l.b16 %v421
  %v2985 = vunpack.c.l.b16 %v422
  %v2986 = vunpack.c.l.b16 %v423
  %v2987 = vunpack.c.l.b16 %v424
  %v2988 = vunpack.c.l.b16 %v425
  %v2989 = vunpack.c.l.b16 %v426
  %v2990 = vunpack.c.l.b16 %v427
  %v2991 = vunpack.c.l.b16 %v428
  %v2992 = vunpack.c.l.b16 %v429
  %v2993 = vunpack.c.l.b16 %v430
  %v2994 = vunpack.c.l.b16 %v431
  %v2995 = vunpack.c.l.b16 %v432
  %v2996 = vunpack.c.l.b16 %v433
  %v2997 = vunpack.c.l.b16 %v434
  %v2998 = vunpack.c.l.b16 %v435
  %v2999 = vunpack.c.l.b16 %v436
  %v3000 = vunpack.c.l.b16 %v437
  %v3001 = vunpack.c.l.b16 %v438
  %v3002 = vunpack.c.l.b16 %v439
  %v3003 = vunpack.c.l.b16 %v440
  %v3004 = vunpack.c.l.b16 %v441
  %v3005 = vunpack.c.l.b16 %v442
  %v3006 = vunpack.c.l.b16 %v443
  %v3007 = vunpack.c.l.b16 %v444
  %v3008 = vunpack.c.l.b16 %v445
  %v3009 = vunpack.c.l.b16 %v446
  %v3010 = vunpack.c.l.b16 %v447
  %v3011 = vunpack.c.l.b16 %v448
  %v3012 = vunpack.c.l.b16 %v449
  %v3013 = vunpack.c.l.b16 %v450
  %v3014 = vunpack.c.l.b16 %v451
  %v3015 = vunpack.c.l.b16 %v452
  %v3016 = vunpack.c.l.b16 %v453
  %v3017 = vunpack.c.l.b16 %v454
  %v3018 = vunpack.c.l.b16 %v455
  %v3019 = vunpack.c.l.b16 %v456
  %v3020 = vunpack.c.l.b16 %v457
  %v3021 = vunpack.c.l.b16 %v458
  %v3022 = vunpack.c.l.b16 %v459
  %v3023 = vunpack.c.l.b16 %v460
  %v3024 = vunpack.c.l.b16 %v461
  %v3025 = vunpack.c.l.b16 %v462
  %v3026 = vunpack.c.l.b16 %v463
  %v3027 = vunpack.c.l.b16 %v464
  %v3028 = vunpack.c.l.b16 %v465
  %v3029 = vunpack.c.l.b16 %v466
  %v3030 = vunpack.c.l.b16 %v467
  %v3031 = vunpack.c.l.b16 %v468
  %v3032 = vunpack.c.l.b16 %v469
  %v3033 = vunpack.c.l.b16 %v470
  %v3034 = vunpack.c.l.b16 %v471
  %v3035 = vunpack.c.l.b16 %v472
  %v3036 = vunpack.c.l.b16 %v473
  %v3037 = vunpack.c.l.b16 %v474
  %v3038 = vunpack.c.l.b16 %v475
  %v3039 = vunpack.c.l.b16 %v476
  %v3040 = vunpack.c.l.b16 %v477
  %v3041 = vunpack.c.l.b16 %v478
  %v3042 = vunpack.c.l.b16 %v479
  %v3043 = vunpack.c.l.b16 %v480
  %v3044 = vunpack.c.l.b16 %v481
  %v3045 = vunpack.c.l.b16 %v482
  %v3046 = vunpack.c.l.b16 %v483
  %v3047 = vunpack.c.l.b16 %v484
  %v3048 = vunpack.c.l.b16 %v485
  %v3049 = vunpack.c.l.b16 %v486
  %v3050 = vunpack.c.l.b16 %v487
  %v3051 = vunpack.c.l.b16 %v488
  %v3052 = vunpack.c.l.b16 %v489
  %v3053 = vunpack.c.l.b16 %v490
  %v3054 = vunpack.c.l.b16 %v491
  %v3055 = vunpack.c.l.b16 %v492
  %v3056 = vunpack.c.l.b16 %v493
  %v3057 = vunpack.c.l.b16 %v494
  %v3058 = vunpack.c.l.b16 %v495
  %v3059 = vunpack.c.l.b16 %v496
  %v3060 = vunpack.c.l.b16 %v497
  %v3061 = vunpack.c.l.b16 %v498
  %v3062 = vunpack.c.l.b16 %v499
  %v3063 = vunpack.c.l.b16 %v500
  %v3064 = vunpack.c.l.b16 %v501
  %v3065 = vunpack.c.l.b16 %v502
  %v3066 = vunpack.c.l.b16 %v503
  %v3067 = vunpack.c.l.b16 %v504
  %v3068 = vunpack.c.l.b16 %v505
  %v3069 = vunpack.c.l.b16 %v506
  %v3070 = vunpack.c.l.b16 %v507
  %v3071 = vunpack.c.l.b16 %v508
  %v3072 = vunpack.c.l.b16 %v509
  %v3073 = vunpack.c.l.b16 %v510
  %v3074 = vunpack.c.l.b16 %v511
  %v3075 = vunpack.c.l.b16 %v512
  %v3076 = vunpack.c.l.b16 %v513
  %v3077 = vunpack.c.l.b16 %v514
  %v3078 = vunpack.c.l.b16 %v515
  %v3079 = vunpack.c.l.b16 %v516
  %v3080 = vunpack.c.l.b16 %v517
  %v3081 = vunpack.c.l.b16 %v518
  %v3082 = vunpack.c.l.b16 %v519
  %v3083 = vunpack.c.l.b16 %v520
  %v3084 = vunpack.c.l.b16 %v521
  %v3085 = vunpack.c.l.b16 %v522
  %v3086 = vunpack.c.l.b16 %v523
  %v3087 = vunpack.c.l.b16 %v524
  %v3088 = vunpack.c.l.b16 %v525
  %v3089 = vunpack.c.l.b16 %v526
  %v3090 = vunpack.c.l.b16 %v527
  %v3091 = vunpack.c.l.b16 %v528
  %v3092 = vunpack.c.l.b16 %v529
  %v3093 = vunpack.c.l.b16 %v530
  %v3094 = vunpack.c.l.b16 %v531
  %v3095 = vunpack.c.l.b16 %v532
  %v3096 = vunpack.c.l.b16 %v533
  %v3097 = vunpack.c.l.b16 %v534
  %v3098 = vunpack.c.l.b16 %v535
  %v3099 = vunpack.c.l.b16 %v536
  %v3100 = vunpack.c.l.b16 %v537
  %v3101 = vunpack.c.l.b16 %v538
  %v3102 = vunpack.c.l.b16 %v539
  %v3103 = vunpack.c.l.b16 %v540
  %v3104 = vunpack.c.l.b16 %v541
  %v3105 = vunpack.c.l.b16 %v542
  %v3106 = vunpack.c.l.b16 %v543
  %v3107 = vunpack.c.l.b16 %v544
  %v3108 = vunpack.c.l.b16 %v545
  %v3109 = vunpack.c.l.b16 %v546
  %v3110 = vunpack.c.l.b16 %v547
  %v3111 = vunpack.c.l.b16 %v548
  %v3112 = vunpack.c.l.b16 %v549
  %v3113 = vunpack.c.l.b16 %v550
  %v3114 = vunpack.c.l.b16 %v551
  %v3115 = vunpack.c.l.b16 %v552
  %v3116 = vunpack.c.l.b16 %v553
  %v3117 = vunpack.c.l.b16 %v554
  %v3118 = vunpack.c.l.b16 %v555
  %v3119 = vunpack.c.l.b16 %v556
  %v3120 = vunpack.c.l.b16 %v557
  %v3121 = vunpack.c.l.b16 %v558
  %v3122 = vunpack.c.l.b16 %v559
  %v3123 = vunpack.c.l.b16 %v560
  %v3124 = vunpack.c.l.b16 %v561
  %v3125 = vunpack.c.l.b16 %v562
  %v3126 = vunpack.c.l.b16 %v563
  %v3127 = vunpack.c.l.b16 %v564
  %v3128 = vunpack.c.l.b16 %v565
  %v3129 = vunpack.c.l.b16 %v566
  %v3130 = vunpack.c.l.b16 %v567
  %v3131 = vunpack.c.l.b16 %v568
  %v3132 = vunpack.c.l.b16 %v569
  %v3133 = vunpack.c.l.b16 %v570
  %v3134 = vunpack.c.l.b16 %v571
  %v3135 = vunpack.c.l.b16 %v572
  %v3136 = vunpack.c.l.b16 %v573
  %v3137 = vunpack.c.l.b16 %v574
  %v3138 = vunpack.c.l.b16 %v575
  %v3139 = vunpack.c.l.b16 %v576
  %v3140 = vunpack.c.l.b16 %v577
  %v3141 = vunpack.c.l.b16 %v578
  %v3142 = vunpack.c.l.b16 %v579
  %v3143 = vunpack.c.l.b16 %v580
  %v3144 = vunpack.c.l.b16 %v581
  %v3145 = vunpack.c.l.b16 %v582
  %v3146 = vunpack.c.l.b16 %v583
  %v3147 = vunpack.c.l.b16 %v584
  %v3148 = vunpack.c.l.b16 %v585
  %v3149 = vunpack.c.l.b16 %v586
  %v3150 = vunpack.c.l.b16 %v587
  %v3151 = vunpack.c.l.b16 %v588
  %v3152 = vunpack.c.l.b16 %v589
  %v3153 = vunpack.c.l.b16 %v590
  %v3154 = vunpack.c.l.b16 %v591
  %v3155 = vunpack.c.l.b16 %v592
  %v3156 = vunpack.c.l.b16 %v593
  %v3157 = vunpack.c.l.b16 %v594
  %v3158 = vunpack.c.l.b16 %v595
  %v3159 = vunpack.c.l.b16 %v596
  %v3160 = vunpack.c.l.b16 %v597
  %v3161 = vunpack.c.l.b16 %v598
  %v3162 = vunpack.c.l.b16 %v599
  %v3163 = vunpack.c.l.b16 %v600
  %v3164 = vunpack.c.l.b16 %v601
  %v3165 = vunpack.c.l.b16 %v602
  %v3166 = vunpack.c.l.b16 %v603
  %v3167 = vunpack.c.l.b16 %v604
  %v3168 = vunpack.c.l.b16 %v605
  %v3169 = vunpack.c.l.b16 %v606
  %v3170 = vunpack.c.l.b16 %v607
  %v3171 = vunpack.c.l.b16 %v608
  %v3172 = vunpack.c.l.b16 %v609
  %v3173 = vunpack.c.l.b16 %v610
  %v3174 = vunpack.c.l.b16 %v611
  %v3175 = vunpack.c.l.b16 %v612
  %v3176 = vunpack.c.l.b16 %v613
  %v3177 = vunpack.c.l.b16 %v614
  %v3178 = vunpack.c.l.b16 %v615
  %v3179 = vunpack.c.l.b16 %v616
  %v3180 = vunpack.c.l.b16 %v617
  %v3181 = vunpack.c.l.b16 %v618
  %v3182 = vunpack.c.l.b16 %v619
  %v3183 = vunpack.c.l.b16 %v620
  %v3184 = vunpack.c.l.b16 %v621
  %v3185 = vunpack.c.l.b16 %v622
  %v3186 = vunpack.c.l.b16 %v623
  %v3187 = vunpack.c.l.b16 %v624
  %v3188 = vunpack.c.l.b16 %v625
  %v3189 = vunpack.c.l.b16 %v626
  %v3190 = vunpack.c.l.b16 %v627
  %v3191 = vunpack.c.l.b16 %v628
  %v3192 = vunpack.c.l.b16 %v629
  %v3193 = vunpack.c.l.b16 %v630
  %v3194 = vunpack.c.l.b16 %v631
  %v3195 = vunpack.c.l.b16 %v632
  %v3196 = vunpack.c.l.b16 %v633
  %v3197 = vunpack.c.l.b16 %v634
  %v3198 = vunpack.c.l.b16 %v635
  %v3199 = vunpack.c.l.b16 %v636
  %v3200 = vunpack.c.l.b16 %v637
  %v3201 = vunpack.c.l.b16 %v638
  %v3202 = vunpack.c.l.b16 %v639
  %v3203 = vunpack.c.l.b16 %v640
  %v3204 = vunpack.c.l.b16 %v641
  %v3205 = vunpack.c.l.b16 %v642
  %v3206 = vunpack.c.l.b16 %v643
  %v3207 = vunpack.c.l.b16 %v644
  %v3208 = vunpack.c.l.b16 %v645
  %v3209 = vunpack.c.l.b16 %v646
  %v3210 = vunpack.c.l.b16 %v647
  %v3211 = vunpack.c.l.b16 %v648
  %v3212 = vunpack.c.l.b16 %v649
  %v3213 = vunpack.c.l.b16 %v650
  %v3214 = vunpack.c.l.b16 %v651
  %v3215 = vunpack.c.l.b16 %v652
  %v3216 = vunpack.c.l.b16 %v653
  %v3217 = vunpack.c.l.b16 %v654
  %v3218 = vunpack.c.l.b16 %v655
  %v3219 = vunpack.c.l.b16 %v656
  %v3220 = vunpack.c.l.b16 %v657
  %v3221 = vunpack.c.l.b16 %v658
  %v3222 = vunpack.c.l.b16 %v659
  %v3223 = vunpack.c.l.b16 %v660
  %v3224 = vunpack.c.l.b16 %v661
  %v3225 = vunpack.c.l.b16 %v662
  %v3226 = vunpack.c.l.b16 %v663
  %v3227 = vunpack.c.l.b16 %v664
  %v3228 = vunpack.c.l.b16 %v665
  %v3229 = vunpack.c.l.b16 %v666
  %v3230 = vunpack.c.l.b16 %v667
  %v3231 = vunpack.c.l.b16 %v668
  %v3232 = vunpack.c.l.b16 %v669
  %v3233 = vunpack.c.l.b16 %v670
  %v3234 = vunpack.c.l.b16 %v671
  %v3235 = vunpack.c.l.b16 %v672
  %v3236 = vunpack.c.l.b16 %v673
  %v3237 = vunpack.c.l.b16 %v674
  %v3238 = vunpack.c.l.b16 %v675
  %v3239 = vunpack.c.l.b16 %v676
  %v3240 = vunpack.c.l.b16 %v677
  %v3241 = vunpack.c.l.b16 %v678
  %v3242 = vunpack.c.l.b16 %v679
  %v3243 = vunpack.c.l.b16 %v680
  %v3244 = vunpack.c.l.b16 %v681
  %v3245 = vunpack.c.l.b16 %v682
  %v3246 = vunpack.c.l.b16 %v683
  %v3247 = vunpack.c.l.b16 %v684
  %v3248 = vunpack.c.l.b16 %v685
  %v3249 = vunpack.c.l.b16 %v686
  %v3250 = vunpack.c.l.b16 %v687
  %v3251 = vunpack.c.l.b16 %v688
  %v3252 = vunpack.c.l.b16 %v689
  %v3253 = vunpack.c.l.b16 %v690
  %v3254 = vunpack.c.l.b16 %v691
  %v3255 = vunpack.c.l.b16 %v692
  %v3256 = vunpack.c.l.b16 %v693
  %v3257 = vunpack.c.l.b16 %v694
  %v3258 = vunpack.c.l.b16 %v695
  %v3259 = vunpack.c.l.b16 %v696
  %v3260 = vunpack.c.l.b16 %v697
  %v3261 = vunpack.c.l.b16 %v698
  %v3262 = vunpack.c.l.b16 %v699
  %v3263 = vunpack.c.l.b16 %v700
  %v3264 = vunpack.c.l.b16 %v701
  %v3265 = vunpack.c.l.b16 %v702
  %v3266 = vunpack.c.l.b16 %v703
  %v3267 = vunpack.c.l.b16 %v704
  %v3268 = vunpack.c.l.b16 %v705
  %v3269 = vunpack.c.l.b16 %v706
  %v3270 = vunpack.c.l.b16 %v707
  %v3271 = vunpack.c.l.b16 %v708
  %v3272 = vunpack.c.l.b16 %v709
  %v3273 = vunpack.c.l.b16 %v710
  %v3274 = vunpack.c.l.b16 %v711
  %v3275 = vunpack.c.l.b16 %v712
  %v3276 = vunpack.c.l.b16 %v713
  %v3277 = vunpack.c.l.b16 %v714
  %v3278 = vunpack.c.l.b16 %v715
  %v3279 = vunpack.c.l.b16 %v716
  %v3280 = vunpack.c.l.b16 %v717
  %v3281 = vunpack.c.l.b16 %v718
  %v3282 = vunpack.c.l.b16 %v719
  %v3283 = vunpack.c.l.b16 %v720
  %v3284 = vunpack.c.l.b16 %v721
  %v3285 = vunpack.c.l.b16 %v722
  %v3286 = vunpack.c.l.b16 %v723
  %v3287 = vunpack.c.l.b16 %v724
  %v3288 = vunpack.c.l.b16 %v725
  %v3289 = vunpack.c.l.b16 %v726
  %v3290 = vunpack.c.l.b16 %v727
  %v3291 = vunpack.c.l.b16 %v728
  %v3292 = vunpack.c.l.b16 %v729
  %v3293 = vunpack.c.l.b16 %v730
  %v3294 = vunpack.c.l.b16 %v731
  %v3295 = vunpack.c.l.b16 %v732
  %v3296 = vunpack.c.l.b16 %v733
  %v3297 = vunpack.c.l.b16 %v734
  %v3298 = vunpack.c.l.b16 %v735
  %v3299 = vunpack.c.l.b16 %v736
  %v3300 = vunpack.c.l.b16 %v737
  %v3301 = vunpack.c.l.b16 %v738
  %v3302 = vunpack.c.l.b16 %v739
  %v3303 = vunpack.c.l.b16 %v740
  %v3304 = vunpack.c.l.b16 %v741
  %v3305 = vunpack.c.l.b16 %v742
  %v3306 = vunpack.c.l.b16 %v743
  %v3307 = vunpack.c.l.b16 %v744
  %v3308 = vunpack.c.l.b16 %v745
  %v3309 = vunpack.c.l.b16 %v746
  %v3310 = vunpack.c.l.b16 %v747
  %v3311 = vunpack.c.l.b16 %v748
  %v3312 = vunpack.c.l.b16 %v749
  %v3313 = vunpack.c.l.b16 %v750
  %v3314 = vunpack.c.l.b16 %v751
  %v3315 = vunpack.c.l.b16 %v752
  %v3316 = vunpack.c.l.b16 %v753
  %v3317 = vunpack.c.l.b16 %v754
  %v3318 = vunpack.c.l.b16 %v755
  %v3319 = vunpack.c.l.b16 %v756
  %v3320 = vunpack.c.l.b16 %v757
  %v3321 = vunpack.c.l.b16 %v758
  %v3322 = vunpack.c.l.b16 %v759
  %v3323 = vunpack.c.l.b16 %v760
  %v3324 = vunpack.c.l.b16 %v761
  %v3325 = vunpack.c.l.b16 %v762
  %v3326 = vunpack.c.l.b16 %v763
  %v3327 = vunpack.c.l.b16 %v764
  %v3328 = vunpack.c.l.b16 %v765
  %v3329 = vunpack.c.l.b16 %v766
  %v3330 = vunpack.c.l.b16 %v767
  %v3331 = vunpack.c.l.b16 %v768
  %v3332 = vunpack.c.l.b16 %v769
  %v3333 = vunpack.c.l.b16 %v770
  %v3334 = vunpack.c.l.b16 %v771
  %v3335 = vunpack.c.l.b16 %v772
  %v3336 = vunpack.c.l.b16 %v773
  %v3337 = vunpack.c.l.b16 %v774
  %v3338 = vunpack.c.l.b16 %v775
  %v3339 = vunpack.c.l.b16 %v776
  %v3340 = vunpack.c.l.b16 %v777
  %v3341 = vunpack.c.l.b16 %v778
  %v3342 = vunpack.c.l.b16 %v779
  %v3343 = vunpack.c.l.b16 %v780
  %v3344 = vunpack.c.l.b16 %v781
  %v3345 = vunpack.c.l.b16 %v782
  %v3346 = vunpack.c.l.b16 %v783
  %v3347 = vunpack.c.l.b16 %v784
  %v3348 = vunpack.c.l.b16 %v785
  %v3349 = vunpack.c.l.b16 %v786
  %v3350 = vunpack.c.l.b16 %v787
  %v3351 = vunpack.c.l.b16 %v788
  %v3352 = vunpack.c.l.b16 %v789
  %v3353 = vunpack.c.l.b16 %v790
  %v3354 = vunpack.c.l.b16 %v791
  %v3355 = vunpack.c.l.b16 %v792
  %v3356 = vunpack.c.l.b16 %v793
  %v3357 = vunpack.c.l.b16 %v794
  %v3358 = vunpack.c.l.b16 %v795
  %v3359 = vunpack.c.l.b16 %v796
  %v3360 = vunpack.c.l.b16 %v797
  %v3361 = vunpack.c.l.b16 %v798
  %v3362 = vunpack.c.l.b16 %v799
  %v3363 = vunpack.c.l.b16 %v800
  %v3364 = vunpack.c.l.b16 %v801
  %v3365 = vunpack.c.l.b16 %v802
  %v3366 = vunpack.c.l.b16 %v803
  %v3367 = vunpack.c.l.b16 %v804
  %v3368 = vunpack.c.l.b16 %v805
  %v3369 = vunpack.c.l.b16 %v806
  %v3370 = vunpack.c.l.b16 %v807
  %v3371 = vunpack.c.l.b16 %v808
  %v3372 = vunpack.c.l.b16 %v809
  %v3373 = vunpack.c.l.b16 %v810
  %v3374 = vunpack.c.l.b16 %v811
  %v3375 = vunpack.c.l.b16 %v812
  %v3376 = vunpack.c.l.b16 %v813
  %v3377 = vunpack.c.l.b16 %v814
  %v3378 = vunpack.c.l.b16 %v815
  %v3379 = vunpack.c.l.b16 %v816
  %v3380 = vunpack.c.l.b16 %v817
  %v3381 = vunpack.c.l.b16 %v818
  %v3382 = vunpack.c.l.b16 %v819
  %v3383 = vunpack.c.l.b16 %v820
  %v3384 = vunpack.c.l.b16 %v821
  %v3385 = vunpack.c.l.b16 %v822
  %v3386 = vunpack.c.l.b16 %v823
  %v3387 = vunpack.c.l.b16 %v824
  %v3388 = vunpack.c.l.b16 %v825
  %v3389 = vunpack.c.l.b16 %v826
  %v3390 = vunpack.c.l.b16 %v827
  %v3391 = vunpack.c.l.b16 %v828
  %v3392 = vunpack.c.l.b16 %v829
  %v3393 = vunpack.c.l.b16 %v830
  %v3394 = vunpack.c.l.b16 %v831
  %v3395 = vunpack.c.l.b16 %v832
  %v3396 = vunpack.c.l.b16 %v833
  %v3397 = vunpack.c.l.b16 %v834
  %v3398 = vunpack.c.l.b16 %v835
  %v3399 = vunpack.c.l.b16 %v836
  %v3400 = vunpack.c.l.b16 %v837
  %v3401 = vunpack.c.l.b16 %v838
  %v3402 = vunpack.c.l.b16 %v839
  %v3403 = vunpack.c.l.b16 %v840
  %v3404 = vunpack.c.l.b16 %v841
  %v3405 = vunpack.c.l.b16 %v842
  %v3406 = vunpack.c.l.b16 %v843
  %v3407 = vunpack.c.l.b16 %v844
  %v3408 = vunpack.c.l.b16 %v845
  %v3409 = vunpack.c.l.b16 %v846
  %v3410 = vunpack.c.l.b16 %v847
  %v3411 = vunpack.c.l.b16 %v848
  %v3412 = vunpack.c.l.b16 %v849
  %v3413 = vunpack.c.l.b16 %v850
  %v3414 = vunpack.c.l.b16 %v851
  %v3415 = vunpack.c.l.b16 %v852
  %v3416 = vunpack.c.l.b16 %v853
  %v3417 = vunpack.c.l.b16 %v854
  %v3418 = vunpack.c.l.b16 %v855
  %v3419 = vunpack.c.l.b16 %v856
  %v3420 = vunpack.c.l.b16 %v857
  %v3421 = vunpack.c.l.b16 %v858
  %v3422 = vunpack.c.l.b16 %v859
  %v3423 = vunpack.c.l.b16 %v860
  %v3424 = vunpack.c.l.b16 %v861
  %v3425 = vunpack.c.l.b16 %v862
  %v3426 = vunpack.c.l.b16 %v863
  %v3427 = vunpack.c.l.b16 %v864
  %v3428 = vunpack.c.l.b16 %v865
  %v3429 = vunpack.c.l.b16 %v866
  %v3430 = vunpack.c.l.b16 %v867
  %v3431 = vunpack.c.l.b16 %v868
  %v3432 = vunpack.c.l.b16 %v869
  %v3433 = vunpack.c.l.b16 %v870
  %v3434 = vunpack.c.l.b16 %v871
  %v3435 = vunpack.c.l.b16 %v872
  %v3436 = vunpack.c.l.b16 %v873
  %v3437 = vunpack.c.l.b16 %v874
  %v3438 = vunpack.c.l.b16 %v875
  %v3439 = vunpack.c.l.b16 %v876
  %v3440 = vunpack.c.l.b16 %v877
  %v3441 = vunpack.c.l.b16 %v878
  %v3442 = vunpack.c.l.b16 %v879
  %v3443 = vunpack.c.l.b16 %v880
  %v3444 = vunpack.c.l.b16 %v881
  %v3445 = vunpack.c.l.b16 %v882
  %v3446 = vunpack.c.l.b16 %v883
  %v3447 = vunpack.c.l.b16 %v884
  %v3448 = vunpack.c.l.b16 %v885
  %v3449 = vunpack.c.l.b16 %v886
  %v3450 = vunpack.c.l.b16 %v887
  %v3451 = vunpack.c.l.b16 %v888
  %v3452 = vunpack.c.l.b16 %v889
  %v3453 = vunpack.c.l.b16 %v890
  %v3454 = vunpack.c.l.b16 %v891
  %v3455 = vunpack.c.l.b16 %v892
  %v3456 = vunpack.c.l.b16 %v893
  %v3457 = vunpack.c.l.b16 %v894
  %v3458 = vunpack.c.l.b16 %v895
  %v3459 = vunpack.c.l.b16 %v896
  %v3460 = vunpack.c.l.b16 %v897
  %v3461 = vunpack.c.l.b16 %v898
  %v3462 = vunpack.c.l.b16 %v899
  %v3463 = vunpack.c.l.b16 %v900
  %v3464 = vunpack.c.l.b16 %v901
  %v3465 = vunpack.c.l.b16 %v902
  %v3466 = vunpack.c.l.b16 %v903
  %v3467 = vunpack.c.l.b16 %v904
  %v3468 = vunpack.c.l.b16 %v905
  %v3469 = vunpack.c.l.b16 %v906
  %v3470 = vunpack.c.l.b16 %v907
  %v3471 = vunpack.c.l.b16 %v908
  %v3472 = vunpack.c.l.b16 %v909
  %v3473 = vunpack.c.l.b16 %v910
  %v3474 = vunpack.c.l.b16 %v911
  %v3475 = vunpack.c.l.b16 %v912
  %v3476 = vunpack.c.l.b16 %v913
  %v3477 = vunpack.c.l.b16 %v914
  %v3478 = vunpack.c.l.b16 %v915
  %v3479 = vunpack.c.l.b16 %v916
  %v3480 = vunpack.c.l.b16 %v917
  %v3481 = vunpack.c.l.b16 %v918
  %v3482 = vunpack.c.l.b16 %v919
  %v3483 = vunpack.c.l.b16 %v920
  %v3484 = vunpack.c.l.b16 %v921
  %v3485 = vunpack.c.l.b16 %v922
  %v3486 = vunpack.c.l.b16 %v923
  %v3487 = vunpack.c.l.b16 %v924
  %v3488 = vunpack.c.l.b16 %v925
  %v3489 = vunpack.c.l.b16 %v926
  %v3490 = vunpack.c.l.b16 %v927
  %v3491 = vunpack.c.l.b16 %v928
  %v3492 = vunpack.c.l.b16 %v929
  %v3493 = vunpack.c.l.b16 %v930
  %v3494 = vunpack.c.l.b16 %v931
  %v3495 = vunpack.c.l.b16 %v932
  %v3496 = vunpack.c.l.b16 %v933
  %v3497 = vunpack.c.l.b16 %v934
  %v3498 = vunpack.c.l.b16 %v935
  %v3499 = vunpack.c.l.b16 %v936
  %v3500 = vunpack.c.l.b16 %v937
  %v3501 = vunpack.c.l.b16 %v938
  %v3502 = vunpack.c.l.b16 %v939
  %v3503 = vunpack.c.l.b16 %v940
  %v3504 = vunpack.c.l.b16 %v941
  %v3505 = vunpack.c.l.b16 %v942
  %v3506 = vunpack.c.l.b16 %v943
  %v3507 = vunpack.c.l.b16 %v944
  %v3508 = vunpack.c.l.b16 %v945
  %v3509 = vunpack.c.l.b16 %v946
  %v3510 = vunpack.c.l.b16 %v947
  %v3511 = vunpack.c.l.b16 %v948
  %v3512 = vunpack.c.l.b16 %v949
  %v3513 = vunpack.c.l.b16 %v950
  %v3514 = vunpack.c.l.b16 %v951
  %v3515 = vunpack.c.l.b16 %v952
  %v3516 = vunpack.c.l.b16 %v953
  %v3517 = vunpack.c.l.b16 %v954
  %v3518 = vunpack.c.l.b16 %v955
  %v3519 = vunpack.c.l.b16 %v956
  %v3520 = vunpack.c.l.b16 %v957
  %v3521 = vunpack.c.l.b16 %v958
  %v3522 = vunpack.c.l.b16 %v959
  %v3523 = vunpack.c.l.b16 %v960
  %v3524 = vunpack.c.l.b16 %v961
  %v3525 = vunpack.c.l.b16 %v962
  %v3526 = vunpack.c.l.b16 %v963
  %v3527 = vunpack.c.l.b16 %v964
  %v3528 = vunpack.c.l.b16 %v965
  %v3529 = vunpack.c.l.b16 %v966
  %v3530 = vunpack.c.l.b16 %v967
  %v3531 = vunpack.c.l.b16 %v968
  %v3532 = vunpack.c.l.b16 %v969
  %v3533 = vunpack.c.l.b16 %v970
  %v3534 = vunpack.c.l.b16 %v971
  %v3535 = vunpack.c.l.b16 %v972
  %v3536 = vunpack.c.l.b16 %v973
  %v3537 = vunpack.c.l.b16 %v974
  %v3538 = vunpack.c.l.b16 %v975
  %v3539 = vunpack.c.l.b16 %v976
  %v3540 = vunpack.c.l.b16 %v977
  %v3541 = vunpack.c.l.b16 %v978
  %v3542 = vunpack.c.l.b16 %v979
  %v3543 = vunpack.c.l.b16 %v980
  %v3544 = vunpack.c.l.b16 %v981
  %v3545 = vunpack.c.l.b16 %v982
  %v3546 = vunpack.c.l.b16 %v983
  %v3547 = vunpack.c.l.b16 %v984
  %v3548 = vunpack.c.l.b16 %v985
  %v3549 = vunpack.c.l.b16 %v986
  %v3550 = vunpack.c.l.b16 %v987
  %v3551 = vunpack.c.l.b16 %v988
  %v3552 = vunpack.c.l.b16 %v989
  %v3553 = vunpack.c.l.b16 %v990
  %v3554 = vunpack.c.l.b16 %v991
  %v3555 = vunpack.c.l.b16 %v992
  %v3556 = vunpack.c.l.b16 %v993
  %v3557 = vunpack.c.l.b16 %v994
  %v3558 = vunpack.c.l.b16 %v995
  %v3559 = vunpack.c.l.b16 %v996
  %v3560 = vunpack.c.l.b16 %v997
  %v3561 = vunpack.c.l.b16 %v998
  %v3562 = vunpack.c.l.b16 %v999
  %v3563 = vunpack.c.l.b16 %v1000
  %v3564 = vunpack.c.l.b16 %v1001
  %v3565 = vunpack.c.l.b16 %v1002
  %v3566 = vunpack.c.l.b16 %v1003
  %v3567 = vunpack.c.l.b16 %v1004
  %v3568 = vunpack.c.l.b16 %v1005
  %v3569 = vunpack.c.l.b16 %v1006
  %v3570 = vunpack.c.l.b16 %v1007
  %v3571 = vunpack.c.l.b16 %v1008
  %v3572 = vunpack.c.l.b16 %v1009
  %v3573 = vunpack.c.l.b16 %v1010
  %v3574 = vunpack.c.l.b16 %v1011
  %v3575 = vunpack.c.l.b16 %v1012
  %v3576 = vunpack.c.l.b16 %v1013
  %v3577 = vunpack.c.l.b16 %v1014
  %v3578 = vunpack.c.l.b16 %v1015
  %v3579 = vunpack.c.l.b16 %v1016
  %v3580 = vunpack.c.l.b16 %v1017
  %v3581 = vunpack.c.l.b16 %v1018
  %v3582 = vunpack.c.l.b16 %v1019
  %v3583 = vunpack.c.l.b16 %v1020
  %v3584 = vunpack.c.l.b16 %v1021
  %v3585 = vunpack.c.l.b16 %v1022
  %v3586 = vunpack.c.l.b16 %v1023
  %v3587 = vunpack.c.l.b16 %v1024
  %v3588 = vunpack.c.l.b16 %v1025
  %v3589 = vunpack.c.l.b16 %v1026
  %v3590 = vunpack.c.l.b16 %v1027
  %v3591 = vunpack.c.l.b16 %v1028
  %v3592 = vunpack.c.l.b16 %v1029
  %v3593 = vunpack.c.l.b16 %v1030
  %v3594 = vunpack.c.l.b16 %v1031
  %v3595 = vunpack.c.l.b16 %v1032
  %v3596 = vunpack.c.l.b16 %v1033
  %v3597 = vunpack.c.l.b16 %v1034
  %v3598 = vunpack.c.l.b16 %v1035
  %v3599 = vunpack.c.l.b16 %v1036
  %v3600 = vunpack.c.l.b16 %v1037
  %v3601 = vunpack.c.l.b16 %v1038
  %v3602 = vunpack.c.l.b16 %v1039
  %v3603 = vunpack.c.l.b16 %v1040
  %v3604 = vunpack.c.l.b16 %v1041
  %v3605 = vunpack.c.l.b16 %v1042
  %v3606 = vunpack.c.l.b16 %v1043
  %v3607 = vunpack.c.l.b16 %v1044
  %v3608 = vunpack.c.l.b16 %v1045
  %v3609 = vunpack.c.l.b16 %v1046
  %v3610 = vunpack.c.l.b16 %v1047
  %v3611 = vunpack.c.l.b16 %v1048
  %v3612 = vunpack.c.l.b16 %v1049
  %v3613 = vunpack.c.l.b16 %v1050
  %v3614 = vunpack.c.l.b16 %v1051
  %v3615 = vunpack.c.l.b16 %v1052
  %v3616 = vunpack.c.l.b16 %v1053
  %v3617 = vunpack.c.l.b16 %v1054
  %v3618 = vunpack.c.l.b16 %v1055
  %v3619 = vunpack.c.l.b16 %v1056
  %v3620 = vunpack.c.l.b16 %v1057
  %v3621 = vunpack.c.l.b16 %v1058
  %v3622 = vunpack.c.l.b16 %v1059
  %v3623 = vunpack.c.l.b16 %v1060
  %v3624 = vunpack.c.l.b16 %v1061
  %v3625 = vunpack.c.l.b16 %v1062
  %v3626 = vunpack.c.l.b16 %v1063
  %v3627 = vunpack.c.l.b16 %v1064
  %v3628 = vunpack.c.l.b16 %v1065
  %v3629 = vunpack.c.l.b16 %v1066
  %v3630 = vunpack.c.l.b16 %v1067
  %v3631 = vunpack.c.l.b16 %v1068
  %v3632 = vunpack.c.l.b16 %v1069
  %v3633 = vunpack.c.l.b16 %v1070
  %v3634 = vunpack.c.l.b16 %v1071
  %v3635 = vunpack.c.l.b16 %v1072
  %v3636 = vunpack.c.l.b16 %v1073
  %v3637 = vunpack.c.l.b16 %v1074
  %v3638 = vunpack.c.l.b16 %v1075
  %v3639 = vunpack.c.l.b16 %v1076
  %v3640 = vunpack.c.l.b16 %v1077
  %v3641 = vunpack.c.l.b16 %v1078
  %v3642 = vunpack.c.l.b16 %v1079
  %v3643 = vunpack.c.l.b16 %v1080
  %v3644 = vunpack.c.l.b16 %v1081
  %v3645 = vunpack.c.l.b16 %v1082
  %v3646 = vunpack.c.l.b16 %v1083
  %v3647 = vunpack.c.l.b16 %v1084
  %v3648 = vunpack.c.l.b16 %v1085
  %v3649 = vunpack.c.l.b16 %v1086
  %v3650 = vunpack.c.l.b16 %v1087
  %v3651 = vunpack.c.l.b16 %v1088
  %v3652 = vunpack.c.l.b16 %v1089
  %v3653 = vunpack.c.l.b16 %v1090
  %v3654 = vunpack.c.l.b16 %v1091
  %v3655 = vunpack.c.l.b16 %v1092
  %v3656 = vunpack.c.l.b16 %v1093
  %v3657 = vunpack.c.l.b16 %v1094
  %v3658 = vunpack.c.l.b16 %v1095
  %v3659 = vunpack.c.l.b16 %v1096
  %v3660 = vunpack.c.l.b16 %v1097
  %v3661 = vunpack.c.l.b16 %v1098
  %v3662 = vunpack.c.l.b16 %v1099
  %v3663 = vunpack.c.l.b16 %v1100
  %v3664 = vunpack.c.l.b16 %v1101
  %v3665 = vunpack.c.l.b16 %v1102
  %v3666 = vunpack.c.l.b16 %v1103
  %v3667 = vunpack.c.l.b16 %v1104
  %v3668 = vunpack.c.l.b16 %v1105
  %v3669 = vunpack.c.l.b16 %v1106
  %v3670 = vunpack.c.l.b16 %v1107
  %v3671 = vunpack.c.l.b16 %v1108
  %v3672 = vunpack.c.l.b16 %v1109
  %v3673 = vunpack.c.l.b16 %v1110
  %v3674 = vunpack.c.l.b16 %v1111
  %v3675 = vunpack.c.l.b16 %v1112
  %v3676 = vunpack.c.l.b16 %v1113
  %v3677 = vunpack.c.l.b16 %v1114
  %v3678 = vunpack.c.l.b16 %v1115
  %v3679 = vunpack.c.l.b16 %v1116
  %v3680 = vunpack.c.l.b16 %v1117
  %v3681 = vunpack.c.l.b16 %v1118
  %v3682 = vunpack.c.l.b16 %v1119
  %v3683 = vunpack.c.l.b16 %v1120
  %v3684 = vunpack.c.l.b16 %v1121
  %v3685 = vunpack.c.l.b16 %v1122
  %v3686 = vunpack.c.l.b16 %v1123
  %v3687 = vunpack.c.l.b16 %v1124
  %v3688 = vunpack.c.l.b16 %v1125
  %v3689 = vunpack.c.l.b16 %v1126
  %v3690 = vunpack.c.l.b16 %v1127
  %v3691 = vunpack.c.l.b16 %v1128
  %v3692 = vunpack.c.l.b16 %v1129
  %v3693 = vunpack.c.l.b16 %v1130
  %v3694 = vunpack.c.l.b16 %v1131
  %v3695 = vunpack.c.l.b16 %v1132
  %v3696 = vunpack.c.l.b16 %v1133
  %v3697 = vunpack.c.l.b16 %v1134
  %v3698 = vunpack.c.l.b16 %v1135
  %v3699 = vunpack.c.l.b16 %v1136
  %v3700 = vunpack.c.l.b16 %v1137
  %v3701 = vunpack.c.l.b16 %v1138
  %v3702 = vunpack.c.l.b16 %v1139
  %v3703 = vunpack.c.l.b16 %v1140
  %v3704 = vunpack.c.l.b16 %v1141
  %v3705 = vunpack.c.l.b16 %v1142
  %v3706 = vunpack.c.l.b16 %v1143
  %v3707 = vunpack.c.l.b16 %v1144
  %v3708 = vunpack.c.l.b16 %v1145
  %v3709 = vunpack.c.l.b16 %v1146
  %v3710 = vunpack.c.l.b16 %v1147
  %v3711 = vunpack.c.l.b16 %v1148
  %v3712 = vunpack.c.l.b16 %v1149
  %v3713 = vunpack.c.l.b16 %v1150
  %v3714 = vunpack.c.l.b16 %v1151
  %v3715 = vunpack.c.l.b16 %v1152
  %v3716 = vunpack.c.l.b16 %v1153
  %v3717 = vunpack.c.l.b16 %v1154
  %v3718 = vunpack.c.l.b16 %v1155
  %v3719 = vunpack.c.l.b16 %v1156
  %v3720 = vunpack.c.l.b16 %v1157
  %v3721 = vunpack.c.l.b16 %v1158
  %v3722 = vunpack.c.l.b16 %v1159
  %v3723 = vunpack.c.l.b16 %v1160
  %v3724 = vunpack.c.l.b16 %v1161
  %v3725 = vunpack.c.l.b16 %v1162
  %v3726 = vunpack.c.l.b16 %v1163
  %v3727 = vunpack.c.l.b16 %v1164
  %v3728 = vunpack.c.l.b16 %v1165
  %v3729 = vunpack.c.l.b16 %v1166
  %v3730 = vunpack.c.l.b16 %v1167
  %v3731 = vunpack.c.l.b16 %v1168
  %v3732 = vunpack.c.l.b16 %v1169
  %v3733 = vunpack.c.l.b16 %v1170
  %v3734 = vunpack.c.l.b16 %v1171
  %v3735 = vunpack.c.l.b16 %v1172
  %v3736 = vunpack.c.l.b16 %v1173
  %v3737 = vunpack.c.l.b16 %v1174
  %v3738 = vunpack.c.l.b16 %v1175
  %v3739 = vunpack.c.l.b16 %v1176
  %v3740 = vunpack.c.l.b16 %v1177
  %v3741 = vunpack.c.l.b16 %v1178
  %v3742 = vunpack.c.l.b16 %v1179
  %v3743 = vunpack.c.l.b16 %v1180
  %v3744 = vunpack.c.l.b16 %v1181
  %v3745 = vunpack.c.l.b16 %v1182
  %v3746 = vunpack.c.l.b16 %v1183
  %v3747 = vunpack.c.l.b16 %v1184
  %v3748 = vunpack.c.l.b16 %v1185
  %v3749 = vunpack.c.l.b16 %v1186
  %v3750 = vunpack.c.l.b16 %v1187
  %v3751 = vunpack.c.l.b16 %v1188
  %v3752 = vunpack.c.l.b16 %v1189
  %v3753 = vunpack.c.l.b16 %v1190
  %v3754 = vunpack.c.l.b16 %v1191
  %v3755 = vunpack.c.l.b16 %v1192
  %v3756 = vunpack.c.l.b16 %v1193
  %v3757 = vunpack.c.l.b16 %v1194
  %v3758 = vunpack.c.l.b16 %v1195
  %v3759 = vunpack.c.l.b16 %v1196
  %v3760 = vunpack.c.l.b16 %v1197
  %v3761 = vunpack.c.l.b16 %v1198
  %v3762 = vunpack.c.l.b16 %v1199
  %v3763 = vunpack.c.l.b16 %v1200
  %v3764 = vunpack.c.l.b16 %v1201
  %v3765 = vunpack.c.l.b16 %v1202
  %v3766 = vunpack.c.l.b16 %v1203
  %v3767 = vunpack.c.l.b16 %v1204
  %v3768 = vunpack.c.l.b16 %v1205
  %v3769 = vunpack.c.l.b16 %v1206
  %v3770 = vunpack.c.l.b16 %v1207
  %v3771 = vunpack.c.l.b16 %v1208
  %v3772 = vpack.c.b16 %v2621, %v2620
  %v3773 = vpack.c.b16 %v2623, %v2622
  %v3774 = vpack.c.b16 %v2625, %v2624
  %v3775 = vpack.c.b16 %v2627, %v2626
  %v3776 = vpack.c.b16 %v2629, %v2628
  %v3777 = vpack.c.b16 %v2631, %v2630
  %v3778 = vpack.c.b16 %v2633, %v2632
  %v3779 = vpack.c.b16 %v2635, %v2634
  %v3780 = vpack.c.b16 %v2637, %v2636
  %v3781 = vpack.c.b16 %v2639, %v2638
  %v3782 = vpack.c.b16 %v2641, %v2640
  %v3783 = vpack.c.b16 %v2643, %v2642
  %v3784 = vpack.c.b16 %v2645, %v2644
  %v3785 = vpack.c.b16 %v2647, %v2646
  %v3786 = vpack.c.b16 %v2649, %v2648
  %v3787 = vpack.c.b16 %v2651, %v2650
  %v3788 = vpack.c.b16 %v2653, %v2652
  %v3789 = vpack.c.b16 %v2655, %v2654
  %v3790 = vpack.c.b16 %v2657, %v2656
  %v3791 = vpack.c.b16 %v2659, %v2658
  %v3792 = vpack.c.b16 %v2661, %v2660
  %v3793 = vpack.c.b16 %v2663, %v2662
  %v3794 = vpack.c.b16 %v2665, %v2664
  %v3795 = vpack.c.b16 %v2667, %v2666
  %v3796 = vpack.c.b16 %v2669, %v2668
  %v3797 = vpack.c.b16 %v2671, %v2670
  %v3798 = vpack.c.b16 %v2673, %v2672
  %v3799 = vpack.c.b16 %v2675, %v2674
  %v3800 = vpack.c.b16 %v2677, %v2676
  %v3801 = vpack.c.b16 %v2679, %v2678
  %v3802 = vpack.c.b16 %v2681, %v2680
  %v3803 = vpack.c.b16 %v2683, %v2682
  %v3804 = vpack.c.b16 %v2685, %v2684
  %v3805 = vpack.c.b16 %v2687, %v2686
  %v3806 = vpack.c.b16 %v2689, %v2688
  %v3807 = vpack.c.b16 %v2691, %v2690
  %v3808 = vpack.c.b16 %v2693, %v2692
  %v3809 = vpack.c.b16 %v2695, %v2694
  %v3810 = vpack.c.b16 %v2697, %v2696
  %v3811 = vpack.c.b16 %v2699, %v2698
  %v3812 = vpack.c.b16 %v2701, %v2700
  %v3813 = vpack.c.b16 %v2703, %v2702
  %v3814 = vpack.c.b16 %v2705, %v2704
  %v3815 = vpack.c.b16 %v2707, %v2706
  %v3816 = vpack.c.b16 %v2709, %v2708
  %v3817 = vpack.c.b16 %v2711, %v2710
  %v3818 = vpack.c.b16 %v2713, %v2712
  %v3819 = vpack.c.b16 %v2715, %v2714
  %v3820 = vpack.c.b16 %v2717, %v2716
  %v3821 = vpack.c.b16 %v2719, %v2718
  %v3822 = vpack.c.b16 %v2721, %v2720
  %v3823 = vpack.c.b16 %v2723, %v2722
  %v3824 = vpack.c.b16 %v2725, %v2724
  %v3825 = vpack.c.b16 %v2727, %v2726
  %v3826 = vpack.c.b16 %v2729, %v2728
  %v3827 = vpack.c.b16 %v2731, %v2730
  %v3828 = vpack.c.b16 %v2733, %v2732
  %v3829 = vpack.c.b16 %v2735, %v2734
  %v3830 = vpack.c.b16 %v2737, %v2736
  %v3831 = vpack.c.b16 %v2739, %v2738
  %v3832 = vpack.c.b16 %v2741, %v2740
  %v3833 = vpack.c.b16 %v2743, %v2742
  %v3834 = vpack.c.b16 %v2745, %v2744
  %v3835 = vpack.c.b16 %v2747, %v2746
  %v3836 = vpack.c.b16 %v2749, %v2748
  %v3837 = vpack.c.b16 %v2751, %v2750
  %v3838 = vpack.c.b16 %v2753, %v2752
  %v3839 = vpack.c.b16 %v2755, %v2754
  %v3840 = vpack.c.b16 %v2757, %v2756
  %v3841 = vpack.c.b16 %v2759, %v2758
  %v3842 = vpack.c.b16 %v2761, %v2760
  %v3843 = vpack.c.b16 %v2763, %v2762
  %v3844 = vpack.c.b16 %v2765, %v2764
  %v3845 = vpack.c.b16 %v2767, %v2766
  %v3846 = vpack.c.b16 %v2769, %v2768
  %v3847 = vpack.c.b16 %v2771, %v2770
  %v3848 = vpack.c.b16 %v2773, %v2772
  %v3849 = vpack.c.b16 %v2775, %v2774
  %v3850 = vpack.c.b16 %v2777, %v2776
  %v3851 = vpack.c.b16 %v2779, %v2778
  %v3852 = vpack.c.b16 %v2781, %v2780
  %v3853 = vpack.c.b16 %v2783, %v2782
  %v3854 = vpack.c.b16 %v2785, %v2784
  %v3855 = vpack.c.b16 %v2787, %v2786
  %v3856 = vpack.c.b16 %v2789, %v2788
  %v3857 = vpack.c.b16 %v2791, %v2790
  %v3858 = vpack.c.b16 %v2793, %v2792
  %v3859 = vpack.c.b16 %v2795, %v2794
  %v3860 = vpack.c.b16 %v2797, %v2796
  %v3861 = vpack.c.b16 %v2799, %v2798
  %v3862 = vpack.c.b16 %v2801, %v2800
  %v3863 = vpack.c.b16 %v2803, %v2802
  %v3864 = vpack.c.b16 %v2805, %v2804
  %v3865 = vpack.c.b16 %v2807, %v2806
  %v3866 = vpack.c.b16 %v2809, %v2808
  %v3867 = vpack.c.b16 %v2811, %v2810
  %v3868 = vpack.c.b16 %v2813, %v2812
  %v3869 = vpack.c.b16 %v2815, %v2814
  %v3870 = vpack.c.b16 %v2817, %v2816
  %v3871 = vpack.c.b16 %v2819, %v2818
  %v3872 = vpack.c.b16 %v2821, %v2820
  %v3873 = vpack.c.b16 %v2823, %v2822
  %v3874 = vpack.c.b16 %v2825, %v2824
  %v3875 = vpack.c.b16 %v2827, %v2826
  %v3876 = vpack.c.b16 %v2829, %v2828
  %v3877 = vpack.c.b16 %v2831, %v2830
  %v3878 = vpack.c.b16 %v2833, %v2832
  %v3879 = vpack.c.b16 %v2835, %v2834
  %v3880 = vpack.c.b16 %v2837, %v2836
  %v3881 = vpack.c.b16 %v2839, %v2838
  %v3882 = vpack.c.b16 %v2841, %v2840
  %v3883 = vpack.c.b16 %v2843, %v2842
  %v3884 = vpack.c.b16 %v2845, %v2844
  %v3885 = vpack.c.b16 %v2847, %v2846
  %v3886 = vpack.c.b16 %v2849, %v2848
  %v3887 = vpack.c.b16 %v2851, %v2850
  %v3888 = vpack.c.b16 %v2853, %v2852
  %v3889 = vpack.c.b16 %v2855, %v2854
  %v3890 = vpack.c.b16 %v2857, %v2856
  %v3891 = vpack.c.b16 %v2859, %v2858
  %v3892 = vpack.c.b16 %v2861, %v2860
  %v3893 = vpack.c.b16 %v2863, %v2862
  %v3894 = vpack.c.b16 %v2865, %v2864
  %v3895 = vpack.c.b16 %v2867, %v2866
  %v3896 = vpack.c.b16 %v2869, %v2868
  %v3897 = vpack.c.b16 %v2871, %v2870
  %v3898 = vpack.c.b16 %v2873, %v2872
  %v3899 = vpack.c.b16 %v2875, %v2874
  %v3900 = vpack.c.b16 %v2877, %v2876
  %v3901 = vpack.c.b16 %v2879, %v2878
  %v3902 = vpack.c.b16 %v2881, %v2880
  %v3903 = vpack.c.b16 %v2883, %v2882
  %v3904 = vpack.c.b16 %v2885, %v2884
  %v3905 = vpack.c.b16 %v2887, %v2886
  %v3906 = vpack.c.b16 %v2889, %v2888
  %v3907 = vpack.c.b16 %v2891, %v2890
  %v3908 = vpack.c.b16 %v2893, %v2892
  %v3909 = vpack.c.b16 %v2895, %v2894
  %v3910 = vpack.c.b16 %v2897, %v2896
  %v3911 = vpack.c.b16 %v2899, %v2898
  %v3912 = vpack.c.b16 %v2901, %v2900
  %v3913 = vpack.c.b16 %v2903, %v2902
  %v3914 = vpack.c.b16 %v2905, %v2904
  %v3915 = vpack.c.b16 %v2907, %v2906
  %v3916 = vpack.c.b16 %v2909, %v2908
  %v3917 = vpack.c.b16 %v2911, %v2910
  %v3918 = vpack.c.b16 %v2913, %v2912
  %v3919 = vpack.c.b16 %v2915, %v2914
  %v3920 = vpack.c.b16 %v2917, %v2916
  %v3921 = vpack.c.b16 %v2919, %v2918
  %v3922 = vpack.c.b16 %v2921, %v2920
  %v3923 = vpack.c.b16 %v2923, %v2922
  %v3924 = vpack.c.b16 %v2925, %v2924
  %v3925 = vpack.c.b16 %v2927, %v2926
  %v3926 = vpack.c.b16 %v2929, %v2928
  %v3927 = vpack.c.b16 %v2931, %v2930
  %v3928 = vpack.c.b16 %v2933, %v2932
  %v3929 = vpack.c.b16 %v2935, %v2934
  %v3930 = vpack.c.b16 %v2937, %v2936
  %v3931 = vpack.c.b16 %v2939, %v2938
  %v3932 = vpack.c.b16 %v2941, %v2940
  %v3933 = vpack.c.b16 %v2943, %v2942
  %v3934 = vpack.c.b16 %v2945, %v2944
  %v3935 = vpack.c.b16 %v2947, %v2946
  %v3936 = vpack.c.b16 %v2949, %v2948
  %v3937 = vpack.c.b16 %v2951, %v2950
  %v3938 = vpack.c.b16 %v2953, %v2952
  %v3939 = vpack.c.b16 %v2955, %v2954
  %v3940 = vpack.c.b16 %v2957, %v2956
  %v3941 = vpack.c.b16 %v2959, %v2958
  %v3942 = vpack.c.b16 %v2961, %v2960
  %v3943 = vpack.c.b16 %v2963, %v2962
  %v3944 = vpack.c.b16 %v2965, %v2964
  %v3945 = vpack.c.b16 %v2967, %v2966
  %v3946 = vpack.c.b16 %v2969, %v2968
  %v3947 = vpack.c.b16 %v2971, %v2970
  %v3948 = vpack.c.b16 %v2973, %v2972
  %v3949 = vpack.c.b16 %v2975, %v2974
  %v3950 = vpack.c.b16 %v2977, %v2976
  %v3951 = vpack.c.b16 %v2979, %v2978
  %v3952 = vpack.c.b16 %v2981, %v2980
  %v3953 = vpack.c.b16 %v2983, %v2982
  %v3954 = vpack.c.b16 %v2985, %v2984
  %v3955 = vpack.c.b16 %v2987, %v2986
  %v3956 = vpack.c.b16 %v2989, %v2988
  %v3957 = vpack.c.b16 %v2991, %v2990
  %v3958 = vpack.c.b16 %v2993, %v2992
  %v3959 = vpack.c.b16 %v2995, %v2994
  %v3960 = vpack.c.b16 %v2997, %v2996
  %v3961 = vpack.c.b16 %v2999, %v2998
  %v3962 = vpack.c.b16 %v3001, %v3000
  %v3963 = vpack.c.b16 %v3003, %v3002
  %v3964 = vpack.c.b16 %v3005, %v3004
  %v3965 = vpack.c.b16 %v3007, %v3006
  %v3966 = vpack.c.b16 %v3009, %v3008
  %v3967 = vpack.c.b16 %v3011, %v3010
  %v3968 = vpack.c.b16 %v3013, %v3012
  %v3969 = vpack.c.b16 %v3015, %v3014
  %v3970 = vpack.c.b16 %v3017, %v3016
  %v3971 = vpack.c.b16 %v3019, %v3018
  %v3972 = vpack.c.b16 %v3021, %v3020
  %v3973 = vpack.c.b16 %v3023, %v3022
  %v3974 = vpack.c.b16 %v3025, %v3024
  %v3975 = vpack.c.b16 %v3027, %v3026
  %v3976 = vpack.c.b16 %v3029, %v3028
  %v3977 = vpack.c.b16 %v3031, %v3030
  %v3978 = vpack.c.b16 %v3033, %v3032
  %v3979 = vpack.c.b16 %v3035, %v3034
  %v3980 = vpack.c.b16 %v3037, %v3036
  %v3981 = vpack.c.b16 %v3039, %v3038
  %v3982 = vpack.c.b16 %v3041, %v3040
  %v3983 = vpack.c.b16 %v3043, %v3042
  %v3984 = vpack.c.b16 %v3045, %v3044
  %v3985 = vpack.c.b16 %v3047, %v3046
  %v3986 = vpack.c.b16 %v3049, %v3048
  %v3987 = vpack.c.b16 %v3051, %v3050
  %v3988 = vpack.c.b16 %v3053, %v3052
  %v3989 = vpack.c.b16 %v3055, %v3054
  %v3990 = vpack.c.b16 %v3057, %v3056
  %v3991 = vpack.c.b16 %v3059, %v3058
  %v3992 = vpack.c.b16 %v3061, %v3060
  %v3993 = vpack.c.b16 %v3063, %v3062
  %v3994 = vpack.c.b16 %v3065, %v3064
  %v3995 = vpack.c.b16 %v3067, %v3066
  %v3996 = vpack.c.b16 %v3069, %v3068
  %v3997 = vpack.c.b16 %v3071, %v3070
  %v3998 = vpack.c.b16 %v3073, %v3072
  %v3999 = vpack.c.b16 %v3075, %v3074
  %v4000 = vpack.c.b16 %v3077, %v3076
  %v4001 = vpack.c.b16 %v3079, %v3078
  %v4002 = vpack.c.b16 %v3081, %v3080
  %v4003 = vpack.c.b16 %v3083, %v3082
  %v4004 = vpack.c.b16 %v3085, %v3084
  %v4005 = vpack.c.b16 %v3087, %v3086
  %v4006 = vpack.c.b16 %v3089, %v3088
  %v4007 = vpack.c.b16 %v3091, %v3090
  %v4008 = vpack.c.b16 %v3093, %v3092
  %v4009 = vpack.c.b16 %v3095, %v3094
  %v4010 = vpack.c.b16 %v3097, %v3096
  %v4011 = vpack.c.b16 %v3099, %v3098
  %v4012 = vpack.c.b16 %v3101, %v3100
  %v4013 = vpack.c.b16 %v3103, %v3102
  %v4014 = vpack.c.b16 %v3105, %v3104
  %v4015 = vpack.c.b16 %v3107, %v3106
  %v4016 = vpack.c.b16 %v3109, %v3108
  %v4017 = vpack.c.b16 %v3111, %v3110
  %v4018 = vpack.c.b16 %v3113, %v3112
  %v4019 = vpack.c.b16 %v3115, %v3114
  %v4020 = vpack.c.b16 %v3117, %v3116
  %v4021 = vpack.c.b16 %v3119, %v3118
  %v4022 = vpack.c.b16 %v3121, %v3120
  %v4023 = vpack.c.b16 %v3123, %v3122
  %v4024 = vpack.c.b16 %v3125, %v3124
  %v4025 = vpack.c.b16 %v3127, %v3126
  %v4026 = vpack.c.b16 %v3129, %v3128
  %v4027 = vpack.c.b16 %v3131, %v3130
  %v4028 = vpack.c.b16 %v3133, %v3132
  %v4029 = vpack.c.b16 %v3135, %v3134
  %v4030 = vpack.c.b16 %v3137, %v3136
  %v4031 = vpack.c.b16 %v3139, %v3138
  %v4032 = vpack.c.b16 %v3141, %v3140
  %v4033 = vpack.c.b16 %v3143, %v3142
  %v4034 = vpack.c.b16 %v3145, %v3144
  %v4035 = vpack.c.b16 %v3147, %v3146
  %v4036 = vpack.c.b16 %v3149, %v3148
  %v4037 = vpack.c.b16 %v3151, %v3150
  %v4038 = vpack.c.b16 %v3153, %v3152
  %v4039 = vpack.c.b16 %v3155, %v3154
  %v4040 = vpack.c.b16 %v3157, %v3156
  %v4041 = vpack.c.b16 %v3159, %v3158
  %v4042 = vpack.c.b16 %v3161, %v3160
  %v4043 = vpack.c.b16 %v3163, %v3162
  %v4044 = vpack.c.b16 %v3165, %v3164
  %v4045 = vpack.c.b16 %v3167, %v3166
  %v4046 = vpack.c.b16 %v3169, %v3168
  %v4047 = vpack.c.b16 %v3171, %v3170
  %v4048 = vpack.c.b16 %v3173, %v3172
  %v4049 = vpack.c.b16 %v3175, %v3174
  %v4050 = vpack.c.b16 %v3177, %v3176
  %v4051 = vpack.c.b16 %v3179, %v3178
  %v4052 = vpack.c.b16 %v3181, %v3180
  %v4053 = vpack.c.b16 %v3183, %v3182
  %v4054 = vpack.c.b16 %v3185, %v3184
  %v4055 = vpack.c.b16 %v3187, %v3186
  %v4056 = vpack.c.b16 %v3189, %v3188
  %v4057 = vpack.c.b16 %v3191, %v3190
  %v4058 = vpack.c.b16 %v3193, %v3192
  %v4059 = vpack.c.b16 %v3195, %v3194
  %v4060 = vpack.c.b16 %v3197, %v3196
  %v4061 = vpack.c.b16 %v3199, %v3198
  %v4062 = vpack.c.b16 %v3201, %v3200
  %v4063 = vpack.c.b16 %v3203, %v3202
  %v4064 = vpack.c.b16 %v3205, %v3204
  %v4065 = vpack.c.b16 %v3207, %v3206
  %v4066 = vpack.c.b16 %v3209, %v3208
  %v4067 = vpack.c.b16 %v3211, %v3210
  %v4068 = vpack.c.b16 %v3213, %v3212
  %v4069 = vpack.c.b16 %v3215, %v3214
  %v4070 = vpack.c.b16 %v3217, %v3216
  %v4071 = vpack.c.b16 %v3219, %v3218
  %v4072 = vpack.c.b16 %v3221, %v3220
  %v4073 = vpack.c.b16 %v3223, %v3222
  %v4074 = vpack.c.b16 %v3225, %v3224
  %v4075 = vpack.c.b16 %v3227, %v3226
  %v4076 = vpack.c.b16 %v3229, %v3228
  %v4077 = vpack.c.b16 %v3231, %v3230
  %v4078 = vpack.c.b16 %v3233, %v3232
  %v4079 = vpack.c.b16 %v3235, %v3234
  %v4080 = vpack.c.b16 %v3237, %v3236
  %v4081 = vpack.c.b16 %v3239, %v3238
  %v4082 = vpack.c.b16 %v3241, %v3240
  %v4083 = vpack.c.b16 %v3243, %v3242
  %v4084 = vpack.c.b16 %v3245, %v3244
  %v4085 = vpack.c.b16 %v3247, %v3246
  %v4086 = vpack.c.b16 %v3249, %v3248
  %v4087 = vpack.c.b16 %v3251, %v3250
  %v4088 = vpack.c.b16 %v3253, %v3252
  %v4089 = vpack.c.b16 %v3255, %v3254
  %v4090 = vpack.c.b16 %v3257, %v3256
  %v4091 = vpack.c.b16 %v3259, %v3258
  %v4092 = vpack.c.b16 %v3261, %v3260
  %v4093 = vpack.c.b16 %v3263, %v3262
  %v4094 = vpack.c.b16 %v3265, %v3264
  %v4095 = vpack.c.b16 %v3267, %v3266
  %v4096 = vpack.c.b16 %v3269, %v3268
  %v4097 = vpack.c.b16 %v3271, %v3270
  %v4098 = vpack.c.b16 %v3273, %v3272
  %v4099 = vpack.c.b16 %v3275, %v3274
  %v4100 = vpack.c.b16 %v3277, %v3276
  %v4101 = vpack.c.b16 %v3279, %v3278
  %v4102 = vpack.c.b16 %v3281, %v3280
  %v4103 = vpack.c.b16 %v3283, %v3282
  %v4104 = vpack.c.b16 %v3285, %v3284
  %v4105 = vpack.c.b16 %v3287, %v3286
  %v4106 = vpack.c.b16 %v3289, %v3288
  %v4107 = vpack.c.b16 %v3291, %v3290
  %v4108 = vpack.c.b16 %v3293, %v3292
  %v4109 = vpack.c.b16 %v3295, %v3294
  %v4110 = vpack.c.b16 %v3297, %v3296
  %v4111 = vpack.c.b16 %v3299, %v3298
  %v4112 = vpack.c.b16 %v3301, %v3300
  %v4113 = vpack.c.b16 %v3303, %v3302
  %v4114 = vpack.c.b16 %v3305, %v3304
  %v4115 = vpack.c.b16 %v3307, %v3306
  %v4116 = vpack.c.b16 %v3309, %v3308
  %v4117 = vpack.c.b16 %v3311, %v3310
  %v4118 = vpack.c.b16 %v3313, %v3312
  %v4119 = vpack.c.b16 %v3315, %v3314
  %v4120 = vpack.c.b16 %v3317, %v3316
  %v4121 = vpack.c.b16 %v3319, %v3318
  %v4122 = vpack.c.b16 %v3321, %v3320
  %v4123 = vpack.c.b16 %v3323, %v3322
  %v4124 = vpack.c.b16 %v3325, %v3324
  %v4125 = vpack.c.b16 %v3327, %v3326
  %v4126 = vpack.c.b16 %v3329, %v3328
  %v4127 = vpack.c.b16 %v3331, %v3330
  %v4128 = vpack.c.b16 %v3333, %v3332
  %v4129 = vpack.c.b16 %v3335, %v3334
  %v4130 = vpack.c.b16 %v3337, %v3336
  %v4131 = vpack.c.b16 %v3339, %v3338
  %v4132 = vpack.c.b16 %v3341, %v3340
  %v4133 = vpack.c.b16 %v3343, %v3342
  %v4134 = vpack.c.b16 %v3345, %v3344
  %v4135 = vpack.c.b16 %v3347, %v3346
  %v4136 = vpack.c.b16 %v3349, %v3348
  %v4137 = vpack.c.b16 %v3351, %v3350
  %v4138 = vpack.c.b16 %v3353, %v3352
  %v4139 = vpack.c.b16 %v3355, %v3354
  %v4140 = vpack.c.b16 %v3357, %v3356
  %v4141 = vpack.c.b16 %v3359, %v3358
  %v4142 = vpack.c.b16 %v3361, %v3360
  %v4143 = vpack.c.b16 %v3363, %v3362
  %v4144 = vpack.c.b16 %v3365, %v3364
  %v4145 = vpack.c.b16 %v3367, %v3366
  %v4146 = vpack.c.b16 %v3369, %v3368
  %v4147 = vpack.c.b16 %v3371, %v3370
  %v4148 = vpack.c.b16 %v3373, %v3372
  %v4149 = vpack.c.b16 %v3375, %v3374
  %v4150 = vpack.c.b16 %v3377, %v3376
  %v4151 = vpack.c.b16 %v3379, %v3378
  %v4152 = vpack.c.b16 %v3381, %v3380
  %v4153 = vpack.c.b16 %v3383, %v3382
  %v4154 = vpack.c.b16 %v3385, %v3384
  %v4155 = vpack.c.b16 %v3387, %v3386
  %v4156 = vpack.c.b16 %v3389, %v3388
  %v4157 = vpack.c.b16 %v3391, %v3390
  %v4158 = vpack.c.b16 %v3393, %v3392
  %v4159 = vpack.c.b16 %v3395, %v3394
  %v4160 = vpack.c.b16 %v3397, %v3396
  %v4161 = vpack.c.b16 %v3399, %v3398
  %v4162 = vpack.c.b16 %v3401, %v3400
  %v4163 = vpack.c.b16 %v3403, %v3402
  %v4164 = vpack.c.b16 %v3405, %v3404
  %v4165 = vpack.c.b16 %v3407, %v3406
  %v4166 = vpack.c.b16 %v3409, %v3408
  %v4167 = vpack.c.b16 %v3411, %v3410
  %v4168 = vpack.c.b16 %v3413, %v3412
  %v4169 = vpack.c.b16 %v3415, %v3414
  %v4170 = vpack.c.b16 %v3417, %v3416
  %v4171 = vpack.c.b16 %v3419, %v3418
  %v4172 = vpack.c.b16 %v3421, %v3420
  %v4173 = vpack.c.b16 %v3423, %v3422
  %v4174 = vpack.c.b16 %v3425, %v3424
  %v4175 = vpack.c.b16 %v3427, %v3426
  %v4176 = vpack.c.b16 %v3429, %v3428
  %v4177 = vpack.c.b16 %v3431, %v3430
  %v4178 = vpack.c.b16 %v3433, %v3432
  %v4179 = vpack.c.b16 %v3435, %v3434
  %v4180 = vpack.c.b16 %v3437, %v3436
  %v4181 = vpack.c.b16 %v3439, %v3438
  %v4182 = vpack.c.b16 %v3441, %v3440
  %v4183 = vpack.c.b16 %v3443, %v3442
  %v4184 = vpack.c.b16 %v3445, %v3444
  %v4185 = vpack.c.b16 %v3447, %v3446
  %v4186 = vpack.c.b16 %v3449, %v3448
  %v4187 = vpack.c.b16 %v3451, %v3450
  %v4188 = vpack.c.b16 %v3453, %v3452
  %v4189 = vpack.c.b16 %v3455, %v3454
  %v4190 = vpack.c.b16 %v3457, %v3456
  %v4191 = vpack.c.b16 %v3459, %v3458
  %v4192 = vpack.c.b16 %v3461, %v3460
  %v4193 = vpack.c.b16 %v3463, %v3462
  %v4194 = vpack.c.b16 %v3465, %v3464
  %v4195 = vpack.c.b16 %v3467, %v3466
  %v4196 = vpack.c.b16 %v3469, %v3468
  %v4197 = vpack.c.b16 %v3471, %v3470
  %v4198 = vpack.c.b16 %v3473, %v3472
  %v4199 = vpack.c.b16 %v3475, %v3474
  %v4200 = vpack.c.b16 %v3477, %v3476
  %v4201 = vpack.c.b16 %v3479, %v3478
  %v4202 = vpack.c.b16 %v3481, %v3480
  %v4203 = vpack.c.b16 %v3483, %v3482
  %v4204 = vpack.c.b16 %v3485, %v3484
  %v4205 = vpack.c.b16 %v3487, %v3486
  %v4206 = vpack.c.b16 %v3489, %v3488
  %v4207 = vpack.c.b16 %v3491, %v3490
  %v4208 = vpack.c.b16 %v3493, %v3492
  %v4209 = vpack.c.b16 %v3495, %v3494
  %v4210 = vpack.c.b16 %v3497, %v3496
  %v4211 = vpack.c.b16 %v3499, %v3498
  %v4212 = vpack.c.b16 %v3501, %v3500
  %v4213 = vpack.c.b16 %v3503, %v3502
  %v4214 = vpack.c.b16 %v3505, %v3504
  %v4215 = vpack.c.b16 %v3507, %v3506
  %v4216 = vpack.c.b16 %v3509, %v3508
  %v4217 = vpack.c.b16 %v3511, %v3510
  %v4218 = vpack.c.b16 %v3513, %v3512
  %v4219 = vpack.c.b16 %v3515, %v3514
  %v4220 = vpack.c.b16 %v3517, %v3516
  %v4221 = vpack.c.b16 %v3519, %v3518
  %v4222 = vpack.c.b16 %v3521, %v3520
  %v4223 = vpack.c.b16 %v3523, %v3522
  %v4224 = vpack.c.b16 %v3525, %v3524
  %v4225 = vpack.c.b16 %v3527, %v3526
  %v4226 = vpack.c.b16 %v3529, %v3528
  %v4227 = vpack.c.b16 %v3531, %v3530
  %v4228 = vpack.c.b16 %v3533, %v3532
  %v4229 = vpack.c.b16 %v3535, %v3534
  %v4230 = vpack.c.b16 %v3537, %v3536
  %v4231 = vpack.c.b16 %v3539, %v3538
  %v4232 = vpack.c.b16 %v3541, %v3540
  %v4233 = vpack.c.b16 %v3543, %v3542
  %v4234 = vpack.c.b16 %v3545, %v3544
  %v4235 = vpack.c.b16 %v3547, %v3546
  %v4236 = vpack.c.b16 %v3549, %v3548
  %v4237 = vpack.c.b16 %v3551, %v3550
  %v4238 = vpack.c.b16 %v3553, %v3552
  %v4239 = vpack.c.b16 %v3555, %v3554
  %v4240 = vpack.c.b16 %v3557, %v3556
  %v4241 = vpack.c.b16 %v3559, %v3558
  %v4242 = vpack.c.b16 %v3561, %v3560
  %v4243 = vpack.c.b16 %v3563, %v3562
  %v4244 = vpack.c.b16 %v3565, %v3564
  %v4245 = vpack.c.b16 %v3567, %v3566
  %v4246 = vpack.c.b16 %v3569, %v3568
  %v4247 = vpack.c.b16 %v3571, %v3570
  %v4248 = vpack.c.b16 %v3573, %v3572
  %v4249 = vpack.c.b16 %v3575, %v3574
  %v4250 = vpack.c.b16 %v3577, %v3576
  %v4251 = vpack.c.b16 %v3579, %v3578
  %v4252 = vpack.c.b16 %v3581, %v3580
  %v4253 = vpack.c.b16 %v3583, %v3582
  %v4254 = vpack.c.b16 %v3585, %v3584
  %v4255 = vpack.c.b16 %v3587, %v3586
  %v4256 = vpack.c.b16 %v3589, %v3588
  %v4257 = vpack.c.b16 %v3591, %v3590
  %v4258 = vpack.c.b16 %v3593, %v3592
  %v4259 = vpack.c.b16 %v3595, %v3594
  %v4260 = vpack.c.b16 %v3597, %v3596
  %v4261 = vpack.c.b16 %v3599, %v3598
  %v4262 = vpack.c.b16 %v3601, %v3600
  %v4263 = vpack.c.b16 %v3603, %v3602
  %v4264 = vpack.c.b16 %v3605, %v3604
  %v4265 = vpack.c.b16 %v3607, %v3606
  %v4266 = vpack.c.b16 %v3609, %v3608
  %v4267 = vpack.c.b16 %v3611, %v3610
  %v4268 = vpack.c.b16 %v3613, %v3612
  %v4269 = vpack.c.b16 %v3615, %v3614
  %v4270 = vpack.c.b16 %v3617, %v3616
  %v4271 = vpack.c.b16 %v3619, %v3618
  %v4272 = vpack.c.b16 %v3621, %v3620
  %v4273 = vpack.c.b16 %v3623, %v3622
  %v4274 = vpack.c.b16 %v3625, %v3624
  %v4275 = vpack.c.b16 %v3627, %v3626
  %v4276 = vpack.c.b16 %v3629, %v3628
  %v4277 = vpack.c.b16 %v3631, %v3630
  %v4278 = vpack.c.b16 %v3633, %v3632
  %v4279 = vpack.c.b16 %v3635, %v3634
  %v4280 = vpack.c.b16 %v3637, %v3636
  %v4281 = vpack.c.b16 %v3639, %v3638
  %v4282 = vpack.c.b16 %v3641, %v3640
  %v4283 = vpack.c.b16 %v3643, %v3642
  %v4284 = vpack.c.b16 %v3645, %v3644
  %v4285 = vpack.c.b16 %v3647, %v3646
  %v4286 = vpack.c.b16 %v3649, %v3648
  %v4287 = vpack.c.b16 %v3651, %v3650
  %v4288 = vpack.c.b16 %v3653, %v3652
  %v4289 = vpack.c.b16 %v3655, %v3654
  %v4290 = vpack.c.b16 %v3657, %v3656
  %v4291 = vpack.c.b16 %v3659, %v3658
  %v4292 = vpack.c.b16 %v3661, %v3660
  %v4293 = vpack.c.b16 %v3663, %v3662
  %v4294 = vpack.c.b16 %v3665, %v3664
  %v4295 = vpack.c.b16 %v3667, %v3666
  %v4296 = vpack.c.b16 %v3669, %v3668
  %v4297 = vpack.c.b16 %v3671, %v3670
  %v4298 = vpack.c.b16 %v3673, %v3672
  %v4299 = vpack.c.b16 %v3675, %v3674
  %v4300 = vpack.c.b16 %v3677, %v3676
  %v4301 = vpack.c.b16 %v3679, %v3678
  %v4302 = vpack.c.b16 %v3681, %v3680
  %v4303 = vpack.c.b16 %v3683, %v3682
  %v4304 = vpack.c.b16 %v3685, %v3684
  %v4305 = vpack.c.b16 %v3687, %v3686
  %v4306 = vpack.c.b16 %v3689, %v3688
  %v4307 = vpack.c.b16 %v3691, %v3690
  %v4308 = vpack.c.b16 %v3693, %v3692
  %v4309 = vpack.c.b16 %v3695, %v3694
  %v4310 = vpack.c.b16 %v3697, %v3696
  %v4311 = vpack.c.b16 %v3699, %v3698
  %v4312 = vpack.c.b16 %v3701, %v3700
  %v4313 = vpack.c.b16 %v3703, %v3702
  %v4314 = vpack.c.b16 %v3705, %v3704
  %v4315 = vpack.c.b16 %v3707, %v3706
  %v4316 = vpack.c.b16 %v3709, %v3708
  %v4317 = vpack.c.b16 %v3711, %v3710
  %v4318 = vpack.c.b16 %v3713, %v3712
  %v4319 = vpack.c.b16 %v3715, %v3714
  %v4320 = vpack.c.b16 %v3717, %v3716
  %v4321 = vpack.c.b16 %v3719, %v3718
  %v4322 = vpack.c.b16 %v3721, %v3720
  %v4323 = vpack.c.b16 %v3723, %v3722
  %v4324 = vpack.c.b16 %v3725, %v3724
  %v4325 = vpack.c.b16 %v3727, %v3726
  %v4326 = vpack.c.b16 %v3729, %v3728
  %v4327 = vpack.c.b16 %v3731, %v3730
  %v4328 = vpack.c.b16 %v3733, %v3732
  %v4329 = vpack.c.b16 %v3735, %v3734
  %v4330 = vpack.c.b16 %v3737, %v3736
  %v4331 = vpack.c.b16 %v3739, %v3738
  %v4332 = vpack.c.b16 %v3741, %v3740
  %v4333 = vpack.c.b16 %v3743, %v3742
  %v4334 = vpack.c.b16 %v3745, %v3744
  %v4335 = vpack.c.b16 %v3747, %v3746
  %v4336 = vpack.c.b16 %v3749, %v3748
  %v4337 = vpack.c.b16 %v3751, %v3750
  %v4338 = vpack.c.b16 %v3753, %v3752
  %v4339 = vpack.c.b16 %v3755, %v3754
  %v4340 = vpack.c.b16 %v3757, %v3756
  %v4341 = vpack.c.b16 %v3759, %v3758
  %v4342 = vpack.c.b16 %v3761, %v3760
  %v4343 = vpack.c.b16 %v3763, %v3762
  %v4344 = vpack.c.b16 %v3765, %v3764
  %v4345 = vpack.c.b16 %v3767, %v3766
  %v4346 = vpack.c.b16 %v3769, %v3768
  %v4347 = vpack.c.b16 %v3771, %v3770
  %4924 = vmatprep.subr.bf16.mxu0 0
  %4925 = vmatpush1.bf16.msra.mxu0 %v3772
  %4926 = vmatprep.subr.bf16.mxu0 0
  %4927 = vmatpush1.bf16.msra.mxu0 %v3773
  %4928 = vmatprep.subr.bf16.mxu0 0
  %4929 = vmatpush1.bf16.msra.mxu0 %v3774
  %4930 = vmatprep.subr.bf16.mxu0 0
  %4931 = vmatpush1.bf16.msra.mxu0 %v3775
  %4932 = vmatprep.subr.bf16.mxu0 0
  %4933 = vmatpush1.bf16.msra.mxu0 %v3776
  %4934 = vmatprep.subr.bf16.mxu0 0
  %4935 = vmatpush1.bf16.msra.mxu0 %v3777
  %4936 = vmatprep.subr.bf16.mxu0 0
  %4937 = vmatpush1.bf16.msra.mxu0 %v3778
  %4938 = vmatprep.subr.bf16.mxu0 0
  %4939 = vmatpush1.bf16.msra.mxu0 %v3779
  %4940 = vmatprep.subr.bf16.mxu0 0
  %4941 = vmatpush1.bf16.msra.mxu0 %v3780
  %4942 = vmatprep.subr.bf16.mxu0 0
  %4943 = vmatpush1.bf16.msra.mxu0 %v3781
  %4944 = vmatprep.subr.bf16.mxu0 0
  %4945 = vmatpush1.bf16.msra.mxu0 %v3782
  %4946 = vmatprep.subr.bf16.mxu0 0
  %4947 = vmatpush1.bf16.msra.mxu0 %v3783
  %4948 = vmatprep.subr.bf16.mxu0 0
  %4949 = vmatpush1.bf16.msra.mxu0 %v3784
  %4950 = vmatprep.subr.bf16.mxu0 0
  %4951 = vmatpush1.bf16.msra.mxu0 %v3785
  %4952 = vmatprep.subr.bf16.mxu0 0
  %4953 = vmatpush1.bf16.msra.mxu0 %v3786
  %4954 = vmatprep.subr.bf16.mxu0 0
  %4955 = vmatpush1.bf16.msra.mxu0 %v3787
  %4956 = vmatprep.mubr.bf16.mxu0 %v1325
  %4957 = vmatmul.mubr.bf16.gmra.mrb[0].mxu0 %v1324
  %v4958 = vpop.f32.mrb[0].mxu0
  %v4959 = vadd.f32 %v1214, %v4958
  %v4960 = vpop.f32.mrb[0].mxu0
  %v4961 = vpop.f32.mrb[0].mxu0
  %v4962 = vpop.f32.mrb[0].mxu0
  %4963 = vdwg.mxu0
  %4964 = vmatprep.subr.bf16.mxu0 0
  %4965 = vmatpush1.bf16.msra.mxu0 %v3788
  %4966 = vmatprep.subr.bf16.mxu0 0
  %4967 = vmatpush1.bf16.msra.mxu0 %v3789
  %4968 = vmatprep.subr.bf16.mxu0 0
  %4969 = vmatpush1.bf16.msra.mxu0 %v3790
  %4970 = vmatprep.subr.bf16.mxu0 0
  %4971 = vmatpush1.bf16.msra.mxu0 %v3791
  %4972 = vmatprep.subr.bf16.mxu0 0
  %4973 = vmatpush1.bf16.msra.mxu0 %v3792
  %4974 = vmatprep.subr.bf16.mxu0 0
  %4975 = vmatpush1.bf16.msra.mxu0 %v3793
  %4976 = vmatprep.subr.bf16.mxu0 0
  %4977 = vmatpush1.bf16.msra.mxu0 %v3794
  %4978 = vmatprep.subr.bf16.mxu0 0
  %4979 = vmatpush1.bf16.msra.mxu0 %v3795
  %4980 = vmatprep.subr.bf16.mxu0 0
  %4981 = vmatpush1.bf16.msra.mxu0 %v3796
  %4982 = vmatprep.subr.bf16.mxu0 0
  %4983 = vmatpush1.bf16.msra.mxu0 %v3797
  %4984 = vmatprep.subr.bf16.mxu0 0
  %4985 = vmatpush1.bf16.msra.mxu0 %v3798
  %4986 = vmatprep.subr.bf16.mxu0 0
  %4987 = vmatpush1.bf16.msra.mxu0 %v3799
  %4988 = vmatprep.subr.bf16.mxu0 0
  %4989 = vmatpush1.bf16.msra.mxu0 %v3800
  %4990 = vmatprep.subr.bf16.mxu0 0
  %4991 = vmatpush1.bf16.msra.mxu0 %v3801
  %4992 = vmatprep.subr.bf16.mxu0 0
  %4993 = vmatpush1.bf16.msra.mxu0 %v3802
  %4994 = vmatprep.subr.bf16.mxu0 0
  %4995 = vmatpush1.bf16.msra.mxu0 %v3803
  %4996 = vmatprep.mubr.bf16.mxu0 %v1327
  %4997 = vmatmul.mubr.bf16.gmra.mrb[0].mxu0 %v1326
  %v4998 = vpop.f32.mrb[0].mxu0
  %v4999 = vadd.f32 %v4959, %v4998
  %v5000 = vpop.f32.mrb[0].mxu0
  %v5001 = vpop.f32.mrb[0].mxu0
  %v5002 = vpop.f32.mrb[0].mxu0
  %5003 = vdwg.mxu0
  %5004 = vmatprep.subr.bf16.mxu0 0
  %5005 = vmatpush1.bf16.msra.mxu0 %v3804
  %5006 = vmatprep.subr.bf16.mxu0 0
  %5007 = vmatpush1.bf16.msra.mxu0 %v3805
  %5008 = vmatprep.subr.bf16.mxu0 0
  %5009 = vmatpush1.bf16.msra.mxu0 %v3806
  %5010 = vmatprep.subr.bf16.mxu0 0
  %5011 = vmatpush1.bf16.msra.mxu0 %v3807
  %5012 = vmatprep.subr.bf16.mxu0 0
  %5013 = vmatpush1.bf16.msra.mxu0 %v3808
  %5014 = vmatprep.subr.bf16.mxu0 0
  %5015 = vmatpush1.bf16.msra.mxu0 %v3809
  %5016 = vmatprep.subr.bf16.mxu0 0
  %5017 = vmatpush1.bf16.msra.mxu0 %v3810
  %5018 = vmatprep.subr.bf16.mxu0 0
  %5019 = vmatpush1.bf16.msra.mxu0 %v3811
  %5020 = vmatprep.subr.bf16.mxu0 0
  %5021 = vmatpush1.bf16.msra.mxu0 %v3812
  %5022 = vmatprep.subr.bf16.mxu0 0
  %5023 = vmatpush1.bf16.msra.mxu0 %v3813
  %5024 = vmatprep.subr.bf16.mxu0 0
  %5025 = vmatpush1.bf16.msra.mxu0 %v3814
  %5026 = vmatprep.subr.bf16.mxu0 0
  %5027 = vmatpush1.bf16.msra.mxu0 %v3815
  %5028 = vmatprep.subr.bf16.mxu0 0
  %5029 = vmatpush1.bf16.msra.mxu0 %v3816
  %5030 = vmatprep.subr.bf16.mxu0 0
  %5031 = vmatpush1.bf16.msra.mxu0 %v3817
  %5032 = vmatprep.subr.bf16.mxu0 0
  %5033 = vmatpush1.bf16.msra.mxu0 %v3818
  %5034 = vmatprep.subr.bf16.mxu0 0
  %5035 = vmatpush1.bf16.msra.mxu0 %v3819
  %5036 = vmatprep.mubr.bf16.mxu0 %v1329
  %5037 = vmatmul.mubr.bf16.gmra.mrb[0].mxu0 %v1328
  %v5038 = vpop.f32.mrb[0].mxu0
  %v5039 = vadd.f32 %v4999, %v5038
  %v5040 = vpop.f32.mrb[0].mxu0
  %v5041 = vpop.f32.mrb[0].mxu0
  %v5042 = vpop.f32.mrb[0].mxu0
  %5043 = vdwg.mxu0
  %5044 = vmatprep.subr.bf16.mxu0 0
  %5045 = vmatpush1.bf16.msra.mxu0 %v3820
  %5046 = vmatprep.subr.bf16.mxu0 0
  %5047 = vmatpush1.bf16.msra.mxu0 %v3821
  %5048 = vmatprep.subr.bf16.mxu0 0
  %5049 = vmatpush1.bf16.msra.mxu0 %v3822
  %5050 = vmatprep.subr.bf16.mxu0 0
  %5051 = vmatpush1.bf16.msra.mxu0 %v3823
  %5052 = vmatprep.subr.bf16.mxu0 0
  %5053 = vmatpush1.bf16.msra.mxu0 %v3824
  %5054 = vmatprep.subr.bf16.mxu0 0
  %5055 = vmatpush1.bf16.msra.mxu0 %v3825
  %5056 = vmatprep.subr.bf16.mxu0 0
  %5057 = vmatpush1.bf16.msra.mxu0 %v3826
  %5058 = vmatprep.subr.bf16.mxu0 0
  %5059 = vmatpush1.bf16.msra.mxu0 %v3827
  %5060 = vmatprep.subr.bf16.mxu0 0
  %5061 = vmatpush1.bf16.msra.mxu0 %v3828
  %5062 = vmatprep.subr.bf16.mxu0 0
  %5063 = vmatpush1.bf16.msra.mxu0 %v3829
  %5064 = vmatprep.subr.bf16.mxu0 0
  %5065 = vmatpush1.bf16.msra.mxu0 %v3830
  %5066 = vmatprep.subr.bf16.mxu0 0
  %5067 = vmatpush1.bf16.msra.mxu0 %v3831
  %5068 = vmatprep.subr.bf16.mxu0 0
  %5069 = vmatpush1.bf16.msra.mxu0 %v3832
  %5070 = vmatprep.subr.bf16.mxu0 0
  %5071 = vmatpush1.bf16.msra.mxu0 %v3833
  %5072 = vmatprep.subr.bf16.mxu0 0
  %5073 = vmatpush1.bf16.msra.mxu0 %v3834
  %5074 = vmatprep.subr.bf16.mxu0 0
  %5075 = vmatpush1.bf16.msra.mxu0 %v3835
  %5076 = vmatprep.mubr.bf16.mxu0 %v1331
  %5077 = vmatmul.mubr.bf16.gmra.mrb[0].mxu0 %v1330
  %v5078 = vpop.f32.mrb[0].mxu0
  %v5079 = vadd.f32 %v5039, %v5078
  %v5080 = vpop.f32.mrb[0].mxu0
  %v5081 = vpop.f32.mrb[0].mxu0
  %v5082 = vpop.f32.mrb[0].mxu0
  %5083 = vdwg.mxu0
  %5084 = vmatprep.subr.bf16.mxu0 0
  %5085 = vmatpush1.bf16.msra.mxu0 %v3836
  %5086 = vmatprep.subr.bf16.mxu0 0
  %5087 = vmatpush1.bf16.msra.mxu0 %v3837
  %5088 = vmatprep.subr.bf16.mxu0 0
  %5089 = vmatpush1.bf16.msra.mxu0 %v3838
  %5090 = vmatprep.subr.bf16.mxu0 0
  %5091 = vmatpush1.bf16.msra.mxu0 %v3839
  %5092 = vmatprep.subr.bf16.mxu0 0
  %5093 = vmatpush1.bf16.msra.mxu0 %v3840
  %5094 = vmatprep.subr.bf16.mxu0 0
  %5095 = vmatpush1.bf16.msra.mxu0 %v3841
  %5096 = vmatprep.subr.bf16.mxu0 0
  %5097 = vmatpush1.bf16.msra.mxu0 %v3842
  %5098 = vmatprep.subr.bf16.mxu0 0
  %5099 = vmatpush1.bf16.msra.mxu0 %v3843
  %5100 = vmatprep.subr.bf16.mxu0 0
  %5101 = vmatpush1.bf16.msra.mxu0 %v3844
  %5102 = vmatprep.subr.bf16.mxu0 0
  %5103 = vmatpush1.bf16.msra.mxu0 %v3845
  %5104 = vmatprep.subr.bf16.mxu0 0
  %5105 = vmatpush1.bf16.msra.mxu0 %v3846
  %5106 = vmatprep.subr.bf16.mxu0 0
  %5107 = vmatpush1.bf16.msra.mxu0 %v3847
  %5108 = vmatprep.subr.bf16.mxu0 0
  %5109 = vmatpush1.bf16.msra.mxu0 %v3848
  %5110 = vmatprep.subr.bf16.mxu0 0
  %5111 = vmatpush1.bf16.msra.mxu0 %v3849
  %5112 = vmatprep.subr.bf16.mxu0 0
  %5113 = vmatpush1.bf16.msra.mxu0 %v3850
  %5114 = vmatprep.subr.bf16.mxu0 0
  %5115 = vmatpush1.bf16.msra.mxu0 %v3851
  %5116 = vmatprep.mubr.bf16.mxu0 %v1333
  %5117 = vmatmul.mubr.bf16.gmra.mrb[0].mxu0 %v1332
  %v5118 = vpop.f32.mrb[0].mxu0
  %v5119 = vadd.f32 %v5079, %v5118
  %v5120 = vpop.f32.mrb[0].mxu0
  %v5121 = vpop.f32.mrb[0].mxu0
  %v5122 = vpop.f32.mrb[0].mxu0
  %5123 = vdwg.mxu0
  %5124 = vmatprep.subr.bf16.mxu0 0
  %5125 = vmatpush1.bf16.msra.mxu0 %v3852
  %5126 = vmatprep.subr.bf16.mxu0 0
  %5127 = vmatpush1.bf16.msra.mxu0 %v3853
  %5128 = vmatprep.subr.bf16.mxu0 0
  %5129 = vmatpush1.bf16.msra.mxu0 %v3854
  %5130 = vmatprep.subr.bf16.mxu0 0
  %5131 = vmatpush1.bf16.msra.mxu0 %v3855
  %5132 = vmatprep.subr.bf16.mxu0 0
  %5133 = vmatpush1.bf16.msra.mxu0 %v3856
  %5134 = vmatprep.subr.bf16.mxu0 0
  %5135 = vmatpush1.bf16.msra.mxu0 %v3857
  %5136 = vmatprep.subr.bf16.mxu0 0
  %5137 = vmatpush1.bf16.msra.mxu0 %v3858
  %5138 = vmatprep.subr.bf16.mxu0 0
  %5139 = vmatpush1.bf16.msra.mxu0 %v3859
  %5140 = vmatprep.subr.bf16.mxu0 0
  %5141 = vmatpush1.bf16.msra.mxu0 %v3860
  %5142 = vmatprep.subr.bf16.mxu0 0
  %5143 = vmatpush1.bf16.msra.mxu0 %v3861
  %5144 = vmatprep.subr.bf16.mxu0 0
  %5145 = vmatpush1.bf16.msra.mxu0 %v3862
  %5146 = vmatprep.subr.bf16.mxu0 0
  %5147 = vmatpush1.bf16.msra.mxu0 %v3863
  %5148 = vmatprep.subr.bf16.mxu0 0
  %5149 = vmatpush1.bf16.msra.mxu0 %v3864
  %5150 = vmatprep.subr.bf16.mxu0 0
  %5151 = vmatpush1.bf16.msra.mxu0 %v3865
  %5152 = vmatprep.subr.bf16.mxu0 0
  %5153 = vmatpush1.bf16.msra.mxu0 %v3866
  %5154 = vmatprep.subr.bf16.mxu0 0
  %5155 = vmatpush1.bf16.msra.mxu0 %v3867
  %5156 = vmatprep.mubr.bf16.mxu0 %v1335
  %5157 = vmatmul.mubr.bf16.gmra.mrb[0].mxu0 %v1334
  %v5158 = vpop.f32.mrb[0].mxu0
  %v5159 = vadd.f32 %v5119, %v5158
  %v5160 = vpop.f32.mrb[0].mxu0
  %v5161 = vpop.f32.mrb[0].mxu0
  %v5162 = vpop.f32.mrb[0].mxu0
  %5163 = vdwg.mxu0
  %5164 = vmatprep.subr.bf16.mxu0 0
  %5165 = vmatpush1.bf16.msra.mxu0 %v3868
  %5166 = vmatprep.subr.bf16.mxu0 0
  %5167 = vmatpush1.bf16.msra.mxu0 %v3869
  %5168 = vmatprep.subr.bf16.mxu0 0
  %5169 = vmatpush1.bf16.msra.mxu0 %v3870
  %5170 = vmatprep.subr.bf16.mxu0 0
  %5171 = vmatpush1.bf16.msra.mxu0 %v3871
  %5172 = vmatprep.subr.bf16.mxu0 0
  %5173 = vmatpush1.bf16.msra.mxu0 %v3872
  %5174 = vmatprep.subr.bf16.mxu0 0
  %5175 = vmatpush1.bf16.msra.mxu0 %v3873
  %5176 = vmatprep.subr.bf16.mxu0 0
  %5177 = vmatpush1.bf16.msra.mxu0 %v3874
  %5178 = vmatprep.subr.bf16.mxu0 0
  %5179 = vmatpush1.bf16.msra.mxu0 %v3875
  %5180 = vmatprep.subr.bf16.mxu0 0
  %5181 = vmatpush1.bf16.msra.mxu0 %v3876
  %5182 = vmatprep.subr.bf16.mxu0 0
  %5183 = vmatpush1.bf16.msra.mxu0 %v3877
  %5184 = vmatprep.subr.bf16.mxu0 0
  %5185 = vmatpush1.bf16.msra.mxu0 %v3878
  %5186 = vmatprep.subr.bf16.mxu0 0
  %5187 = vmatpush1.bf16.msra.mxu0 %v3879
  %5188 = vmatprep.subr.bf16.mxu0 0
  %5189 = vmatpush1.bf16.msra.mxu0 %v3880
  %5190 = vmatprep.subr.bf16.mxu0 0
  %5191 = vmatpush1.bf16.msra.mxu0 %v3881
  %5192 = vmatprep.subr.bf16.mxu0 0
  %5193 = vmatpush1.bf16.msra.mxu0 %v3882
  %5194 = vmatprep.subr.bf16.mxu0 0
  %5195 = vmatpush1.bf16.msra.mxu0 %v3883
  %5196 = vmatprep.mubr.bf16.mxu0 %v1337
  %5197 = vmatmul.mubr.bf16.gmra.mrb[0].mxu0 %v1336
  %v5198 = vpop.f32.mrb[0].mxu0
  %v5199 = vadd.f32 %v5159, %v5198
  %v5200 = vpop.f32.mrb[0].mxu0
  %v5201 = vpop.f32.mrb[0].mxu0
  %v5202 = vpop.f32.mrb[0].mxu0
  %5203 = vdwg.mxu0
  %5204 = vmatprep.subr.bf16.mxu0 0
  %5205 = vmatpush1.bf16.msra.mxu0 %v3884
  %5206 = vmatprep.subr.bf16.mxu0 0
  %5207 = vmatpush1.bf16.msra.mxu0 %v3885
  %5208 = vmatprep.subr.bf16.mxu0 0
  %5209 = vmatpush1.bf16.msra.mxu0 %v3886
  %5210 = vmatprep.subr.bf16.mxu0 0
  %5211 = vmatpush1.bf16.msra.mxu0 %v3887
  %5212 = vmatprep.subr.bf16.mxu0 0
  %5213 = vmatpush1.bf16.msra.mxu0 %v3888
  %5214 = vmatprep.subr.bf16.mxu0 0
  %5215 = vmatpush1.bf16.msra.mxu0 %v3889
  %5216 = vmatprep.subr.bf16.mxu0 0
  %5217 = vmatpush1.bf16.msra.mxu0 %v3890
  %5218 = vmatprep.subr.bf16.mxu0 0
  %5219 = vmatpush1.bf16.msra.mxu0 %v3891
  %5220 = vmatprep.subr.bf16.mxu0 0
  %5221 = vmatpush1.bf16.msra.mxu0 %v3892
  %5222 = vmatprep.subr.bf16.mxu0 0
  %5223 = vmatpush1.bf16.msra.mxu0 %v3893
  %5224 = vmatprep.subr.bf16.mxu0 0
  %5225 = vmatpush1.bf16.msra.mxu0 %v3894
  %5226 = vmatprep.subr.bf16.mxu0 0
  %5227 = vmatpush1.bf16.msra.mxu0 %v3895
  %5228 = vmatprep.subr.bf16.mxu0 0
  %5229 = vmatpush1.bf16.msra.mxu0 %v3896
  %5230 = vmatprep.subr.bf16.mxu0 0
  %5231 = vmatpush1.bf16.msra.mxu0 %v3897
  %5232 = vmatprep.subr.bf16.mxu0 0
  %5233 = vmatpush1.bf16.msra.mxu0 %v3898
  %5234 = vmatprep.subr.bf16.mxu0 0
  %5235 = vmatpush1.bf16.msra.mxu0 %v3899
  %5236 = vmatprep.mubr.bf16.mxu0 %v1339
  %5237 = vmatmul.mubr.bf16.gmra.mrb[0].mxu0 %v1338
  %v5238 = vpop.f32.mrb[0].mxu0
  %v5239 = vadd.f32 %v5199, %v5238
  %v5240 = vpop.f32.mrb[0].mxu0
  %v5241 = vpop.f32.mrb[0].mxu0
  %v5242 = vpop.f32.mrb[0].mxu0
  %5243 = vdwg.mxu0
  %5244 = vmatprep.subr.bf16.mxu0 0
  %5245 = vmatpush1.bf16.msra.mxu0 %v3900
  %5246 = vmatprep.subr.bf16.mxu0 0
  %5247 = vmatpush1.bf16.msra.mxu0 %v3901
  %5248 = vmatprep.subr.bf16.mxu0 0
  %5249 = vmatpush1.bf16.msra.mxu0 %v3902
  %5250 = vmatprep.subr.bf16.mxu0 0
  %5251 = vmatpush1.bf16.msra.mxu0 %v3903
  %5252 = vmatprep.subr.bf16.mxu0 0
  %5253 = vmatpush1.bf16.msra.mxu0 %v3904
  %5254 = vmatprep.subr.bf16.mxu0 0
  %5255 = vmatpush1.bf16.msra.mxu0 %v3905
  %5256 = vmatprep.subr.bf16.mxu0 0
  %5257 = vmatpush1.bf16.msra.mxu0 %v3906
  %5258 = vmatprep.subr.bf16.mxu0 0
  %5259 = vmatpush1.bf16.msra.mxu0 %v3907
  %5260 = vmatprep.subr.bf16.mxu0 0
  %5261 = vmatpush1.bf16.msra.mxu0 %v3908
  %5262 = vmatprep.subr.bf16.mxu0 0
  %5263 = vmatpush1.bf16.msra.mxu0 %v3909
  %5264 = vmatprep.subr.bf16.mxu0 0
  %5265 = vmatpush1.bf16.msra.mxu0 %v3910
  %5266 = vmatprep.subr.bf16.mxu0 0
  %5267 = vmatpush1.bf16.msra.mxu0 %v3911
  %5268 = vmatprep.subr.bf16.mxu0 0
  %5269 = vmatpush1.bf16.msra.mxu0 %v3912
  %5270 = vmatprep.subr.bf16.mxu0 0
  %5271 = vmatpush1.bf16.msra.mxu0 %v3913
  %5272 = vmatprep.subr.bf16.mxu0 0
  %5273 = vmatpush1.bf16.msra.mxu0 %v3914
  %5274 = vmatprep.subr.bf16.mxu0 0
  %5275 = vmatpush1.bf16.msra.mxu0 %v3915
  %5276 = vmatprep.mubr.bf16.mxu0 %v1341
  %5277 = vmatmul.mubr.bf16.gmra.mrb[0].mxu0 %v1340
  %v5278 = vpop.f32.mrb[0].mxu0
  %v5279 = vadd.f32 %v5239, %v5278
  %v5280 = vpop.f32.mrb[0].mxu0
  %v5281 = vpop.f32.mrb[0].mxu0
  %v5282 = vpop.f32.mrb[0].mxu0
  %5283 = vdwg.mxu0
  %5284 = vmatprep.subr.bf16.mxu0 0
  %5285 = vmatpush1.bf16.msra.mxu0 %v3916
  %5286 = vmatprep.subr.bf16.mxu0 0
  %5287 = vmatpush1.bf16.msra.mxu0 %v3917
  %5288 = vmatprep.subr.bf16.mxu0 0
  %5289 = vmatpush1.bf16.msra.mxu0 %v3918
  %5290 = vmatprep.subr.bf16.mxu0 0
  %5291 = vmatpush1.bf16.msra.mxu0 %v3919
  %5292 = vmatprep.subr.bf16.mxu0 0
  %5293 = vmatpush1.bf16.msra.mxu0 %v3920
  %5294 = vmatprep.subr.bf16.mxu0 0
  %5295 = vmatpush1.bf16.msra.mxu0 %v3921
  %5296 = vmatprep.subr.bf16.mxu0 0
  %5297 = vmatpush1.bf16.msra.mxu0 %v3922
  %5298 = vmatprep.subr.bf16.mxu0 0
  %5299 = vmatpush1.bf16.msra.mxu0 %v3923
  %5300 = vmatprep.subr.bf16.mxu0 0
  %5301 = vmatpush1.bf16.msra.mxu0 %v3924
  %5302 = vmatprep.subr.bf16.mxu0 0
  %5303 = vmatpush1.bf16.msra.mxu0 %v3925
  %5304 = vmatprep.subr.bf16.mxu0 0
  %5305 = vmatpush1.bf16.msra.mxu0 %v3926
  %5306 = vmatprep.subr.bf16.mxu0 0
  %5307 = vmatpush1.bf16.msra.mxu0 %v3927
  %5308 = vmatprep.subr.bf16.mxu0 0
  %5309 = vmatpush1.bf16.msra.mxu0 %v3928
  %5310 = vmatprep.subr.bf16.mxu0 0
  %5311 = vmatpush1.bf16.msra.mxu0 %v3929
  %5312 = vmatprep.subr.bf16.mxu0 0
  %5313 = vmatpush1.bf16.msra.mxu0 %v3930
  %5314 = vmatprep.subr.bf16.mxu0 0
  %5315 = vmatpush1.bf16.msra.mxu0 %v3931
  %5316 = vmatprep.mubr.bf16.mxu0 %v1343
  %5317 = vmatmul.mubr.bf16.gmra.mrb[0].mxu0 %v1342
  %v5318 = vpop.f32.mrb[0].mxu0
  %v5319 = vadd.f32 %v5279, %v5318
  %v5320 = vpop.f32.mrb[0].mxu0
  %v5321 = vpop.f32.mrb[0].mxu0
  %v5322 = vpop.f32.mrb[0].mxu0
  %5323 = vdwg.mxu0
  %5324 = vmatprep.subr.bf16.mxu0 0
  %5325 = vmatpush1.bf16.msra.mxu0 %v3932
  %5326 = vmatprep.subr.bf16.mxu0 0
  %5327 = vmatpush1.bf16.msra.mxu0 %v3933
  %5328 = vmatprep.subr.bf16.mxu0 0
  %5329 = vmatpush1.bf16.msra.mxu0 %v3934
  %5330 = vmatprep.subr.bf16.mxu0 0
  %5331 = vmatpush1.bf16.msra.mxu0 %v3935
  %5332 = vmatprep.subr.bf16.mxu0 0
  %5333 = vmatpush1.bf16.msra.mxu0 %v3936
  %5334 = vmatprep.subr.bf16.mxu0 0
  %5335 = vmatpush1.bf16.msra.mxu0 %v3937
  %5336 = vmatprep.subr.bf16.mxu0 0
  %5337 = vmatpush1.bf16.msra.mxu0 %v3938
  %5338 = vmatprep.subr.bf16.mxu0 0
  %5339 = vmatpush1.bf16.msra.mxu0 %v3939
  %5340 = vmatprep.subr.bf16.mxu0 0
  %5341 = vmatpush1.bf16.msra.mxu0 %v3940
  %5342 = vmatprep.subr.bf16.mxu0 0
  %5343 = vmatpush1.bf16.msra.mxu0 %v3941
  %5344 = vmatprep.subr.bf16.mxu0 0
  %5345 = vmatpush1.bf16.msra.mxu0 %v3942
  %5346 = vmatprep.subr.bf16.mxu0 0
  %5347 = vmatpush1.bf16.msra.mxu0 %v3943
  %5348 = vmatprep.subr.bf16.mxu0 0
  %5349 = vmatpush1.bf16.msra.mxu0 %v3944
  %5350 = vmatprep.subr.bf16.mxu0 0
  %5351 = vmatpush1.bf16.msra.mxu0 %v3945
  %5352 = vmatprep.subr.bf16.mxu0 0
  %5353 = vmatpush1.bf16.msra.mxu0 %v3946
  %5354 = vmatprep.subr.bf16.mxu0 0
  %5355 = vmatpush1.bf16.msra.mxu0 %v3947
  %5356 = vmatprep.mubr.bf16.mxu0 %v1345
  %5357 = vmatmul.mubr.bf16.gmra.mrb[0].mxu0 %v1344
  %v5358 = vpop.f32.mrb[0].mxu0
  %v5359 = vadd.f32 %v5319, %v5358
  %v5360 = vpop.f32.mrb[0].mxu0
  %v5361 = vpop.f32.mrb[0].mxu0
  %v5362 = vpop.f32.mrb[0].mxu0
  %5363 = vdwg.mxu0
  %5364 = vmatprep.subr.bf16.mxu0 0
  %5365 = vmatpush1.bf16.msra.mxu0 %v3948
  %5366 = vmatprep.subr.bf16.mxu0 0
  %5367 = vmatpush1.bf16.msra.mxu0 %v3949
  %5368 = vmatprep.subr.bf16.mxu0 0
  %5369 = vmatpush1.bf16.msra.mxu0 %v3950
  %5370 = vmatprep.subr.bf16.mxu0 0
  %5371 = vmatpush1.bf16.msra.mxu0 %v3951
  %5372 = vmatprep.subr.bf16.mxu0 0
  %5373 = vmatpush1.bf16.msra.mxu0 %v3952
  %5374 = vmatprep.subr.bf16.mxu0 0
  %5375 = vmatpush1.bf16.msra.mxu0 %v3953
  %5376 = vmatprep.subr.bf16.mxu0 0
  %5377 = vmatpush1.bf16.msra.mxu0 %v3954
  %5378 = vmatprep.subr.bf16.mxu0 0
  %5379 = vmatpush1.bf16.msra.mxu0 %v3955
  %5380 = vmatprep.subr.bf16.mxu0 0
  %5381 = vmatpush1.bf16.msra.mxu0 %v3956
  %5382 = vmatprep.subr.bf16.mxu0 0
  %5383 = vmatpush1.bf16.msra.mxu0 %v3957
  %5384 = vmatprep.subr.bf16.mxu0 0
  %5385 = vmatpush1.bf16.msra.mxu0 %v3958
  %5386 = vmatprep.subr.bf16.mxu0 0
  %5387 = vmatpush1.bf16.msra.mxu0 %v3959
  %5388 = vmatprep.subr.bf16.mxu0 0
  %5389 = vmatpush1.bf16.msra.mxu0 %v3960
  %5390 = vmatprep.subr.bf16.mxu0 0
  %5391 = vmatpush1.bf16.msra.mxu0 %v3961
  %5392 = vmatprep.subr.bf16.mxu0 0
  %5393 = vmatpush1.bf16.msra.mxu0 %v3962
  %5394 = vmatprep.subr.bf16.mxu0 0
  %5395 = vmatpush1.bf16.msra.mxu0 %v3963
  %5396 = vmatprep.mubr.bf16.mxu0 %v1347
  %5397 = vmatmul.mubr.bf16.gmra.mrb[0].mxu0 %v1346
  %v5398 = vpop.f32.mrb[0].mxu0
  %v5399 = vadd.f32 %v5359, %v5398
  %v5400 = vpop.f32.mrb[0].mxu0
  %v5401 = vpop.f32.mrb[0].mxu0
  %v5402 = vpop.f32.mrb[0].mxu0
  %5403 = vdwg.mxu0
  %5404 = vmatprep.subr.bf16.mxu0 0
  %5405 = vmatpush1.bf16.msra.mxu0 %v3964
  %5406 = vmatprep.subr.bf16.mxu0 0
  %5407 = vmatpush1.bf16.msra.mxu0 %v3965
  %5408 = vmatprep.subr.bf16.mxu0 0
  %5409 = vmatpush1.bf16.msra.mxu0 %v3966
  %5410 = vmatprep.subr.bf16.mxu0 0
  %5411 = vmatpush1.bf16.msra.mxu0 %v3967
  %5412 = vmatprep.subr.bf16.mxu0 0
  %5413 = vmatpush1.bf16.msra.mxu0 %v3968
  %5414 = vmatprep.subr.bf16.mxu0 0
  %5415 = vmatpush1.bf16.msra.mxu0 %v3969
  %5416 = vmatprep.subr.bf16.mxu0 0
  %5417 = vmatpush1.bf16.msra.mxu0 %v3970
  %5418 = vmatprep.subr.bf16.mxu0 0
  %5419 = vmatpush1.bf16.msra.mxu0 %v3971
  %5420 = vmatprep.subr.bf16.mxu0 0
  %5421 = vmatpush1.bf16.msra.mxu0 %v3972
  %5422 = vmatprep.subr.bf16.mxu0 0
  %5423 = vmatpush1.bf16.msra.mxu0 %v3973
  %5424 = vmatprep.subr.bf16.mxu0 0
  %5425 = vmatpush1.bf16.msra.mxu0 %v3974
  %5426 = vmatprep.subr.bf16.mxu0 0
  %5427 = vmatpush1.bf16.msra.mxu0 %v3975
  %5428 = vmatprep.subr.bf16.mxu0 0
  %5429 = vmatpush1.bf16.msra.mxu0 %v3976
  %5430 = vmatprep.subr.bf16.mxu0 0
  %5431 = vmatpush1.bf16.msra.mxu0 %v3977
  %5432 = vmatprep.subr.bf16.mxu0 0
  %5433 = vmatpush1.bf16.msra.mxu0 %v3978
  %5434 = vmatprep.subr.bf16.mxu0 0
  %5435 = vmatpush1.bf16.msra.mxu0 %v3979
  %5436 = vmatprep.mubr.bf16.mxu0 %v1349
  %5437 = vmatmul.mubr.bf16.gmra.mrb[0].mxu0 %v1348
  %v5438 = vpop.f32.mrb[0].mxu0
  %v5439 = vadd.f32 %v5399, %v5438
  %v5440 = vpop.f32.mrb[0].mxu0
  %v5441 = vpop.f32.mrb[0].mxu0
  %v5442 = vpop.f32.mrb[0].mxu0
  %5443 = vdwg.mxu0
  %5444 = vmatprep.subr.bf16.mxu0 0
  %5445 = vmatpush1.bf16.msra.mxu0 %v3980
  %5446 = vmatprep.subr.bf16.mxu0 0
  %5447 = vmatpush1.bf16.msra.mxu0 %v3981
  %5448 = vmatprep.subr.bf16.mxu0 0
  %5449 = vmatpush1.bf16.msra.mxu0 %v3982
  %5450 = vmatprep.subr.bf16.mxu0 0
  %5451 = vmatpush1.bf16.msra.mxu0 %v3983
  %5452 = vmatprep.subr.bf16.mxu0 0
  %5453 = vmatpush1.bf16.msra.mxu0 %v3984
  %5454 = vmatprep.subr.bf16.mxu0 0
  %5455 = vmatpush1.bf16.msra.mxu0 %v3985
  %5456 = vmatprep.subr.bf16.mxu0 0
  %5457 = vmatpush1.bf16.msra.mxu0 %v3986
  %5458 = vmatprep.subr.bf16.mxu0 0
  %5459 = vmatpush1.bf16.msra.mxu0 %v3987
  %5460 = vmatprep.subr.bf16.mxu0 0
  %5461 = vmatpush1.bf16.msra.mxu0 %v3988
  %5462 = vmatprep.subr.bf16.mxu0 0
  %5463 = vmatpush1.bf16.msra.mxu0 %v3989
  %5464 = vmatprep.subr.bf16.mxu0 0
  %5465 = vmatpush1.bf16.msra.mxu0 %v3990
  %5466 = vmatprep.subr.bf16.mxu0 0
  %5467 = vmatpush1.bf16.msra.mxu0 %v3991
  %5468 = vmatprep.subr.bf16.mxu0 0
  %5469 = vmatpush1.bf16.msra.mxu0 %v3992
  %5470 = vmatprep.subr.bf16.mxu0 0
  %5471 = vmatpush1.bf16.msra.mxu0 %v3993
  %5472 = vmatprep.subr.bf16.mxu0 0
  %5473 = vmatpush1.bf16.msra.mxu0 %v3994
  %5474 = vmatprep.subr.bf16.mxu0 0
  %5475 = vmatpush1.bf16.msra.mxu0 %v3995
  %5476 = vmatprep.mubr.bf16.mxu0 %v1351
  %5477 = vmatmul.mubr.bf16.gmra.mrb[0].mxu0 %v1350
  %v5478 = vpop.f32.mrb[0].mxu0
  %v5479 = vadd.f32 %v5439, %v5478
  %v5480 = vpop.f32.mrb[0].mxu0
  %v5481 = vpop.f32.mrb[0].mxu0
  %v5482 = vpop.f32.mrb[0].mxu0
  %5483 = vdwg.mxu0
  %5484 = vmatprep.subr.bf16.mxu0 0
  %5485 = vmatpush1.bf16.msra.mxu0 %v3996
  %5486 = vmatprep.subr.bf16.mxu0 0
  %5487 = vmatpush1.bf16.msra.mxu0 %v3997
  %5488 = vmatprep.subr.bf16.mxu0 0
  %5489 = vmatpush1.bf16.msra.mxu0 %v3998
  %5490 = vmatprep.subr.bf16.mxu0 0
  %5491 = vmatpush1.bf16.msra.mxu0 %v3999
  %5492 = vmatprep.subr.bf16.mxu0 0
  %5493 = vmatpush1.bf16.msra.mxu0 %v4000
  %5494 = vmatprep.subr.bf16.mxu0 0
  %5495 = vmatpush1.bf16.msra.mxu0 %v4001
  %5496 = vmatprep.subr.bf16.mxu0 0
  %5497 = vmatpush1.bf16.msra.mxu0 %v4002
  %5498 = vmatprep.subr.bf16.mxu0 0
  %5499 = vmatpush1.bf16.msra.mxu0 %v4003
  %5500 = vmatprep.subr.bf16.mxu0 0
  %5501 = vmatpush1.bf16.msra.mxu0 %v4004
  %5502 = vmatprep.subr.bf16.mxu0 0
  %5503 = vmatpush1.bf16.msra.mxu0 %v4005
  %5504 = vmatprep.subr.bf16.mxu0 0
  %5505 = vmatpush1.bf16.msra.mxu0 %v4006
  %5506 = vmatprep.subr.bf16.mxu0 0
  %5507 = vmatpush1.bf16.msra.mxu0 %v4007
  %5508 = vmatprep.subr.bf16.mxu0 0
  %5509 = vmatpush1.bf16.msra.mxu0 %v4008
  %5510 = vmatprep.subr.bf16.mxu0 0
  %5511 = vmatpush1.bf16.msra.mxu0 %v4009
  %5512 = vmatprep.subr.bf16.mxu0 0
  %5513 = vmatpush1.bf16.msra.mxu0 %v4010
  %5514 = vmatprep.subr.bf16.mxu0 0
  %5515 = vmatpush1.bf16.msra.mxu0 %v4011
  %5516 = vmatprep.mubr.bf16.mxu0 %v1353
  %5517 = vmatmul.mubr.bf16.gmra.mrb[0].mxu0 %v1352
  %v5518 = vpop.f32.mrb[0].mxu0
  %v5519 = vadd.f32 %v5479, %v5518
  %v5520 = vpop.f32.mrb[0].mxu0
  %v5521 = vpop.f32.mrb[0].mxu0
  %v5522 = vpop.f32.mrb[0].mxu0
  %5523 = vdwg.mxu0
  %5524 = vmatprep.subr.bf16.mxu0 0
  %5525 = vmatpush1.bf16.msra.mxu0 %v4012
  %5526 = vmatprep.subr.bf16.mxu0 0
  %5527 = vmatpush1.bf16.msra.mxu0 %v4013
  %5528 = vmatprep.subr.bf16.mxu0 0
  %5529 = vmatpush1.bf16.msra.mxu0 %v4014
  %5530 = vmatprep.subr.bf16.mxu0 0
  %5531 = vmatpush1.bf16.msra.mxu0 %v4015
  %5532 = vmatprep.subr.bf16.mxu0 0
  %5533 = vmatpush1.bf16.msra.mxu0 %v4016
  %5534 = vmatprep.subr.bf16.mxu0 0
  %5535 = vmatpush1.bf16.msra.mxu0 %v4017
  %5536 = vmatprep.subr.bf16.mxu0 0
  %5537 = vmatpush1.bf16.msra.mxu0 %v4018
  %5538 = vmatprep.subr.bf16.mxu0 0
  %5539 = vmatpush1.bf16.msra.mxu0 %v4019
  %5540 = vmatprep.subr.bf16.mxu0 0
  %5541 = vmatpush1.bf16.msra.mxu0 %v4020
  %5542 = vmatprep.subr.bf16.mxu0 0
  %5543 = vmatpush1.bf16.msra.mxu0 %v4021
  %5544 = vmatprep.subr.bf16.mxu0 0
  %5545 = vmatpush1.bf16.msra.mxu0 %v4022
  %5546 = vmatprep.subr.bf16.mxu0 0
  %5547 = vmatpush1.bf16.msra.mxu0 %v4023
  %5548 = vmatprep.subr.bf16.mxu0 0
  %5549 = vmatpush1.bf16.msra.mxu0 %v4024
  %5550 = vmatprep.subr.bf16.mxu0 0
  %5551 = vmatpush1.bf16.msra.mxu0 %v4025
  %5552 = vmatprep.subr.bf16.mxu0 0
  %5553 = vmatpush1.bf16.msra.mxu0 %v4026
  %5554 = vmatprep.subr.bf16.mxu0 0
  %5555 = vmatpush1.bf16.msra.mxu0 %v4027
  %5556 = vmatprep.mubr.bf16.mxu0 %v1355
  %5557 = vmatmul.mubr.bf16.gmra.mrb[0].mxu0 %v1354
  %v5558 = vpop.f32.mrb[0].mxu0
  %v5559 = vadd.f32 %v5519, %v5558
  %v5560 = vpop.f32.mrb[0].mxu0
  %v5561 = vpop.f32.mrb[0].mxu0
  %v5562 = vpop.f32.mrb[0].mxu0
  %5563 = vdwg.mxu0
  %5564 = vmatprep.subr.bf16.mxu0 0
  %5565 = vmatpush1.bf16.msra.mxu0 %v4028
  %5566 = vmatprep.subr.bf16.mxu0 0
  %5567 = vmatpush1.bf16.msra.mxu0 %v4029
  %5568 = vmatprep.subr.bf16.mxu0 0
  %5569 = vmatpush1.bf16.msra.mxu0 %v4030
  %5570 = vmatprep.subr.bf16.mxu0 0
  %5571 = vmatpush1.bf16.msra.mxu0 %v4031
  %5572 = vmatprep.subr.bf16.mxu0 0
  %5573 = vmatpush1.bf16.msra.mxu0 %v4032
  %5574 = vmatprep.subr.bf16.mxu0 0
  %5575 = vmatpush1.bf16.msra.mxu0 %v4033
  %5576 = vmatprep.subr.bf16.mxu0 0
  %5577 = vmatpush1.bf16.msra.mxu0 %v4034
  %5578 = vmatprep.subr.bf16.mxu0 0
  %5579 = vmatpush1.bf16.msra.mxu0 %v4035
  %5580 = vmatprep.subr.bf16.mxu0 0
  %5581 = vmatpush1.bf16.msra.mxu0 %v4036
  %5582 = vmatprep.subr.bf16.mxu0 0
  %5583 = vmatpush1.bf16.msra.mxu0 %v4037
  %5584 = vmatprep.subr.bf16.mxu0 0
  %5585 = vmatpush1.bf16.msra.mxu0 %v4038
  %5586 = vmatprep.subr.bf16.mxu0 0
  %5587 = vmatpush1.bf16.msra.mxu0 %v4039
  %5588 = vmatprep.subr.bf16.mxu0 0
  %5589 = vmatpush1.bf16.msra.mxu0 %v4040
  %5590 = vmatprep.subr.bf16.mxu0 0
  %5591 = vmatpush1.bf16.msra.mxu0 %v4041
  %5592 = vmatprep.subr.bf16.mxu0 0
  %5593 = vmatpush1.bf16.msra.mxu0 %v4042
  %5594 = vmatprep.subr.bf16.mxu0 0
  %5595 = vmatpush1.bf16.msra.mxu0 %v4043
  %5596 = vmatprep.mubr.bf16.mxu0 %v1357
  %5597 = vmatmul.mubr.bf16.gmra.mrb[0].mxu0 %v1356
  %v5598 = vpop.f32.mrb[0].mxu0
  %v5599 = vadd.f32 %v5559, %v5598
  %v5600 = vpop.f32.mrb[0].mxu0
  %v5601 = vpop.f32.mrb[0].mxu0
  %v5602 = vpop.f32.mrb[0].mxu0
  %5603 = vdwg.mxu0
  %5604 = vmatprep.subr.bf16.mxu0 0
  %5605 = vmatpush1.bf16.msra.mxu0 %v4044
  %5606 = vmatprep.subr.bf16.mxu0 0
  %5607 = vmatpush1.bf16.msra.mxu0 %v4045
  %5608 = vmatprep.subr.bf16.mxu0 0
  %5609 = vmatpush1.bf16.msra.mxu0 %v4046
  %5610 = vmatprep.subr.bf16.mxu0 0
  %5611 = vmatpush1.bf16.msra.mxu0 %v4047
  %5612 = vmatprep.subr.bf16.mxu0 0
  %5613 = vmatpush1.bf16.msra.mxu0 %v4048
  %5614 = vmatprep.subr.bf16.mxu0 0
  %5615 = vmatpush1.bf16.msra.mxu0 %v4049
  %5616 = vmatprep.subr.bf16.mxu0 0
  %5617 = vmatpush1.bf16.msra.mxu0 %v4050
  %5618 = vmatprep.subr.bf16.mxu0 0
  %5619 = vmatpush1.bf16.msra.mxu0 %v4051
  %5620 = vmatprep.subr.bf16.mxu0 0
  %5621 = vmatpush1.bf16.msra.mxu0 %v4052
  %5622 = vmatprep.subr.bf16.mxu0 0
  %5623 = vmatpush1.bf16.msra.mxu0 %v4053
  %5624 = vmatprep.subr.bf16.mxu0 0
  %5625 = vmatpush1.bf16.msra.mxu0 %v4054
  %5626 = vmatprep.subr.bf16.mxu0 0
  %5627 = vmatpush1.bf16.msra.mxu0 %v4055
  %5628 = vmatprep.subr.bf16.mxu0 0
  %5629 = vmatpush1.bf16.msra.mxu0 %v4056
  %5630 = vmatprep.subr.bf16.mxu0 0
  %5631 = vmatpush1.bf16.msra.mxu0 %v4057
  %5632 = vmatprep.subr.bf16.mxu0 0
  %5633 = vmatpush1.bf16.msra.mxu0 %v4058
  %5634 = vmatprep.subr.bf16.mxu0 0
  %5635 = vmatpush1.bf16.msra.mxu0 %v4059
  %5636 = vmatprep.mubr.bf16.mxu0 %v1359
  %5637 = vmatmul.mubr.bf16.gmra.mrb[0].mxu0 %v1358
  %v5638 = vpop.f32.mrb[0].mxu0
  %v5639 = vadd.f32 %v5599, %v5638
  %v5640 = vpop.f32.mrb[0].mxu0
  %v5641 = vpop.f32.mrb[0].mxu0
  %v5642 = vpop.f32.mrb[0].mxu0
  %5643 = vdwg.mxu0
  %5644 = vmatprep.subr.bf16.mxu0 0
  %5645 = vmatpush1.bf16.msra.mxu0 %v4060
  %5646 = vmatprep.subr.bf16.mxu0 0
  %5647 = vmatpush1.bf16.msra.mxu0 %v4061
  %5648 = vmatprep.subr.bf16.mxu0 0
  %5649 = vmatpush1.bf16.msra.mxu0 %v4062
  %5650 = vmatprep.subr.bf16.mxu0 0
  %5651 = vmatpush1.bf16.msra.mxu0 %v4063
  %5652 = vmatprep.subr.bf16.mxu0 0
  %5653 = vmatpush1.bf16.msra.mxu0 %v4064
  %5654 = vmatprep.subr.bf16.mxu0 0
  %5655 = vmatpush1.bf16.msra.mxu0 %v4065
  %5656 = vmatprep.subr.bf16.mxu0 0
  %5657 = vmatpush1.bf16.msra.mxu0 %v4066
  %5658 = vmatprep.subr.bf16.mxu0 0
  %5659 = vmatpush1.bf16.msra.mxu0 %v4067
  %5660 = vmatprep.subr.bf16.mxu0 0
  %5661 = vmatpush1.bf16.msra.mxu0 %v4068
  %5662 = vmatprep.subr.bf16.mxu0 0
  %5663 = vmatpush1.bf16.msra.mxu0 %v4069
  %5664 = vmatprep.subr.bf16.mxu0 0
  %5665 = vmatpush1.bf16.msra.mxu0 %v4070
  %5666 = vmatprep.subr.bf16.mxu0 0
  %5667 = vmatpush1.bf16.msra.mxu0 %v4071
  %5668 = vmatprep.subr.bf16.mxu0 0
  %5669 = vmatpush1.bf16.msra.mxu0 %v4072
  %5670 = vmatprep.subr.bf16.mxu0 0
  %5671 = vmatpush1.bf16.msra.mxu0 %v4073
  %5672 = vmatprep.subr.bf16.mxu0 0
  %5673 = vmatpush1.bf16.msra.mxu0 %v4074
  %5674 = vmatprep.subr.bf16.mxu0 0
  %5675 = vmatpush1.bf16.msra.mxu0 %v4075
  %5676 = vmatprep.mubr.bf16.mxu0 %v1361
  %5677 = vmatmul.mubr.bf16.gmra.mrb[0].mxu0 %v1360
  %v5678 = vpop.f32.mrb[0].mxu0
  %v5679 = vadd.f32 %v5639, %v5678
  %v5680 = vpop.f32.mrb[0].mxu0
  %v5681 = vpop.f32.mrb[0].mxu0
  %v5682 = vpop.f32.mrb[0].mxu0
  %5683 = vdwg.mxu0
  %5684 = vmatprep.subr.bf16.mxu0 0
  %5685 = vmatpush1.bf16.msra.mxu0 %v4076
  %5686 = vmatprep.subr.bf16.mxu0 0
  %5687 = vmatpush1.bf16.msra.mxu0 %v4077
  %5688 = vmatprep.subr.bf16.mxu0 0
  %5689 = vmatpush1.bf16.msra.mxu0 %v4078
  %5690 = vmatprep.subr.bf16.mxu0 0
  %5691 = vmatpush1.bf16.msra.mxu0 %v4079
  %5692 = vmatprep.subr.bf16.mxu0 0
  %5693 = vmatpush1.bf16.msra.mxu0 %v4080
  %5694 = vmatprep.subr.bf16.mxu0 0
  %5695 = vmatpush1.bf16.msra.mxu0 %v4081
  %5696 = vmatprep.subr.bf16.mxu0 0
  %5697 = vmatpush1.bf16.msra.mxu0 %v4082
  %5698 = vmatprep.subr.bf16.mxu0 0
  %5699 = vmatpush1.bf16.msra.mxu0 %v4083
  %5700 = vmatprep.subr.bf16.mxu0 0
  %5701 = vmatpush1.bf16.msra.mxu0 %v4084
  %5702 = vmatprep.subr.bf16.mxu0 0
  %5703 = vmatpush1.bf16.msra.mxu0 %v4085
  %5704 = vmatprep.subr.bf16.mxu0 0
  %5705 = vmatpush1.bf16.msra.mxu0 %v4086
  %5706 = vmatprep.subr.bf16.mxu0 0
  %5707 = vmatpush1.bf16.msra.mxu0 %v4087
  %5708 = vmatprep.subr.bf16.mxu0 0
  %5709 = vmatpush1.bf16.msra.mxu0 %v4088
  %5710 = vmatprep.subr.bf16.mxu0 0
  %5711 = vmatpush1.bf16.msra.mxu0 %v4089
  %5712 = vmatprep.subr.bf16.mxu0 0
  %5713 = vmatpush1.bf16.msra.mxu0 %v4090
  %5714 = vmatprep.subr.bf16.mxu0 0
  %5715 = vmatpush1.bf16.msra.mxu0 %v4091
  %5716 = vmatprep.mubr.bf16.mxu0 %v1363
  %5717 = vmatmul.mubr.bf16.gmra.mrb[0].mxu0 %v1362
  %v5718 = vpop.f32.mrb[0].mxu0
  %v5719 = vadd.f32 %v5679, %v5718
  %v5720 = vpop.f32.mrb[0].mxu0
  %v5721 = vpop.f32.mrb[0].mxu0
  %v5722 = vpop.f32.mrb[0].mxu0
  %5723 = vdwg.mxu0
  %5724 = vmatprep.subr.bf16.mxu0 0
  %5725 = vmatpush1.bf16.msra.mxu0 %v4092
  %5726 = vmatprep.subr.bf16.mxu0 0
  %5727 = vmatpush1.bf16.msra.mxu0 %v4093
  %5728 = vmatprep.subr.bf16.mxu0 0
  %5729 = vmatpush1.bf16.msra.mxu0 %v4094
  %5730 = vmatprep.subr.bf16.mxu0 0
  %5731 = vmatpush1.bf16.msra.mxu0 %v4095
  %5732 = vmatprep.subr.bf16.mxu0 0
  %5733 = vmatpush1.bf16.msra.mxu0 %v4096
  %5734 = vmatprep.subr.bf16.mxu0 0
  %5735 = vmatpush1.bf16.msra.mxu0 %v4097
  %5736 = vmatprep.subr.bf16.mxu0 0
  %5737 = vmatpush1.bf16.msra.mxu0 %v4098
  %5738 = vmatprep.subr.bf16.mxu0 0
  %5739 = vmatpush1.bf16.msra.mxu0 %v4099
  %5740 = vmatprep.subr.bf16.mxu0 0
  %5741 = vmatpush1.bf16.msra.mxu0 %v4100
  %5742 = vmatprep.subr.bf16.mxu0 0
  %5743 = vmatpush1.bf16.msra.mxu0 %v4101
  %5744 = vmatprep.subr.bf16.mxu0 0
  %5745 = vmatpush1.bf16.msra.mxu0 %v4102
  %5746 = vmatprep.subr.bf16.mxu0 0
  %5747 = vmatpush1.bf16.msra.mxu0 %v4103
  %5748 = vmatprep.subr.bf16.mxu0 0
  %5749 = vmatpush1.bf16.msra.mxu0 %v4104
  %5750 = vmatprep.subr.bf16.mxu0 0
  %5751 = vmatpush1.bf16.msra.mxu0 %v4105
  %5752 = vmatprep.subr.bf16.mxu0 0
  %5753 = vmatpush1.bf16.msra.mxu0 %v4106
  %5754 = vmatprep.subr.bf16.mxu0 0
  %5755 = vmatpush1.bf16.msra.mxu0 %v4107
  %5756 = vmatprep.mubr.bf16.mxu0 %v1365
  %5757 = vmatmul.mubr.bf16.gmra.mrb[0].mxu0 %v1364
  %v5758 = vpop.f32.mrb[0].mxu0
  %v5759 = vadd.f32 %v5719, %v5758
  %v5760 = vpop.f32.mrb[0].mxu0
  %v5761 = vpop.f32.mrb[0].mxu0
  %v5762 = vpop.f32.mrb[0].mxu0
  %5763 = vdwg.mxu0
  %5764 = vmatprep.subr.bf16.mxu0 0
  %5765 = vmatpush1.bf16.msra.mxu0 %v4108
  %5766 = vmatprep.subr.bf16.mxu0 0
  %5767 = vmatpush1.bf16.msra.mxu0 %v4109
  %5768 = vmatprep.subr.bf16.mxu0 0
  %5769 = vmatpush1.bf16.msra.mxu0 %v4110
  %5770 = vmatprep.subr.bf16.mxu0 0
  %5771 = vmatpush1.bf16.msra.mxu0 %v4111
  %5772 = vmatprep.subr.bf16.mxu0 0
  %5773 = vmatpush1.bf16.msra.mxu0 %v4112
  %5774 = vmatprep.subr.bf16.mxu0 0
  %5775 = vmatpush1.bf16.msra.mxu0 %v4113
  %5776 = vmatprep.subr.bf16.mxu0 0
  %5777 = vmatpush1.bf16.msra.mxu0 %v4114
  %5778 = vmatprep.subr.bf16.mxu0 0
  %5779 = vmatpush1.bf16.msra.mxu0 %v4115
  %5780 = vmatprep.subr.bf16.mxu0 0
  %5781 = vmatpush1.bf16.msra.mxu0 %v4116
  %5782 = vmatprep.subr.bf16.mxu0 0
  %5783 = vmatpush1.bf16.msra.mxu0 %v4117
  %5784 = vmatprep.subr.bf16.mxu0 0
  %5785 = vmatpush1.bf16.msra.mxu0 %v4118
  %5786 = vmatprep.subr.bf16.mxu0 0
  %5787 = vmatpush1.bf16.msra.mxu0 %v4119
  %5788 = vmatprep.subr.bf16.mxu0 0
  %5789 = vmatpush1.bf16.msra.mxu0 %v4120
  %5790 = vmatprep.subr.bf16.mxu0 0
  %5791 = vmatpush1.bf16.msra.mxu0 %v4121
  %5792 = vmatprep.subr.bf16.mxu0 0
  %5793 = vmatpush1.bf16.msra.mxu0 %v4122
  %5794 = vmatprep.subr.bf16.mxu0 0
  %5795 = vmatpush1.bf16.msra.mxu0 %v4123
  %5796 = vmatprep.mubr.bf16.mxu0 %v1367
  %5797 = vmatmul.mubr.bf16.gmra.mrb[0].mxu0 %v1366
  %v5798 = vpop.f32.mrb[0].mxu0
  %v5799 = vadd.f32 %v5759, %v5798
  %v5800 = vpop.f32.mrb[0].mxu0
  %v5801 = vpop.f32.mrb[0].mxu0
  %v5802 = vpop.f32.mrb[0].mxu0
  %5803 = vdwg.mxu0
  %5804 = vmatprep.subr.bf16.mxu0 0
  %5805 = vmatpush1.bf16.msra.mxu0 %v4124
  %5806 = vmatprep.subr.bf16.mxu0 0
  %5807 = vmatpush1.bf16.msra.mxu0 %v4125
  %5808 = vmatprep.subr.bf16.mxu0 0
  %5809 = vmatpush1.bf16.msra.mxu0 %v4126
  %5810 = vmatprep.subr.bf16.mxu0 0
  %5811 = vmatpush1.bf16.msra.mxu0 %v4127
  %5812 = vmatprep.subr.bf16.mxu0 0
  %5813 = vmatpush1.bf16.msra.mxu0 %v4128
  %5814 = vmatprep.subr.bf16.mxu0 0
  %5815 = vmatpush1.bf16.msra.mxu0 %v4129
  %5816 = vmatprep.subr.bf16.mxu0 0
  %5817 = vmatpush1.bf16.msra.mxu0 %v4130
  %5818 = vmatprep.subr.bf16.mxu0 0
  %5819 = vmatpush1.bf16.msra.mxu0 %v4131
  %5820 = vmatprep.subr.bf16.mxu0 0
  %5821 = vmatpush1.bf16.msra.mxu0 %v4132
  %5822 = vmatprep.subr.bf16.mxu0 0
  %5823 = vmatpush1.bf16.msra.mxu0 %v4133
  %5824 = vmatprep.subr.bf16.mxu0 0
  %5825 = vmatpush1.bf16.msra.mxu0 %v4134
  %5826 = vmatprep.subr.bf16.mxu0 0
  %5827 = vmatpush1.bf16.msra.mxu0 %v4135
  %5828 = vmatprep.subr.bf16.mxu0 0
  %5829 = vmatpush1.bf16.msra.mxu0 %v4136
  %5830 = vmatprep.subr.bf16.mxu0 0
  %5831 = vmatpush1.bf16.msra.mxu0 %v4137
  %5832 = vmatprep.subr.bf16.mxu0 0
  %5833 = vmatpush1.bf16.msra.mxu0 %v4138
  %5834 = vmatprep.subr.bf16.mxu0 0
  %5835 = vmatpush1.bf16.msra.mxu0 %v4139
  %5836 = vmatprep.mubr.bf16.mxu0 %v1369
  %5837 = vmatmul.mubr.bf16.gmra.mrb[0].mxu0 %v1368
  %v5838 = vpop.f32.mrb[0].mxu0
  %v5839 = vadd.f32 %v5799, %v5838
  %v5840 = vpop.f32.mrb[0].mxu0
  %v5841 = vpop.f32.mrb[0].mxu0
  %v5842 = vpop.f32.mrb[0].mxu0
  %5843 = vdwg.mxu0
  %5844 = vmatprep.subr.bf16.mxu0 0
  %5845 = vmatpush1.bf16.msra.mxu0 %v4140
  %5846 = vmatprep.subr.bf16.mxu0 0
  %5847 = vmatpush1.bf16.msra.mxu0 %v4141
  %5848 = vmatprep.subr.bf16.mxu0 0
  %5849 = vmatpush1.bf16.msra.mxu0 %v4142
  %5850 = vmatprep.subr.bf16.mxu0 0
  %5851 = vmatpush1.bf16.msra.mxu0 %v4143
  %5852 = vmatprep.subr.bf16.mxu0 0
  %5853 = vmatpush1.bf16.msra.mxu0 %v4144
  %5854 = vmatprep.subr.bf16.mxu0 0
  %5855 = vmatpush1.bf16.msra.mxu0 %v4145
  %5856 = vmatprep.subr.bf16.mxu0 0
  %5857 = vmatpush1.bf16.msra.mxu0 %v4146
  %5858 = vmatprep.subr.bf16.mxu0 0
  %5859 = vmatpush1.bf16.msra.mxu0 %v4147
  %5860 = vmatprep.subr.bf16.mxu0 0
  %5861 = vmatpush1.bf16.msra.mxu0 %v4148
  %5862 = vmatprep.subr.bf16.mxu0 0
  %5863 = vmatpush1.bf16.msra.mxu0 %v4149
  %5864 = vmatprep.subr.bf16.mxu0 0
  %5865 = vmatpush1.bf16.msra.mxu0 %v4150
  %5866 = vmatprep.subr.bf16.mxu0 0
  %5867 = vmatpush1.bf16.msra.mxu0 %v4151
  %5868 = vmatprep.subr.bf16.mxu0 0
  %5869 = vmatpush1.bf16.msra.mxu0 %v4152
  %5870 = vmatprep.subr.bf16.mxu0 0
  %5871 = vmatpush1.bf16.msra.mxu0 %v4153
  %5872 = vmatprep.subr.bf16.mxu0 0
  %5873 = vmatpush1.bf16.msra.mxu0 %v4154
  %5874 = vmatprep.subr.bf16.mxu0 0
  %5875 = vmatpush1.bf16.msra.mxu0 %v4155
  %5876 = vmatprep.mubr.bf16.mxu0 %v1371
  %5877 = vmatmul.mubr.bf16.gmra.mrb[0].mxu0 %v1370
  %v5878 = vpop.f32.mrb[0].mxu0
  %v5879 = vadd.f32 %v5839, %v5878
  %v5880 = vpop.f32.mrb[0].mxu0
  %v5881 = vpop.f32.mrb[0].mxu0
  %v5882 = vpop.f32.mrb[0].mxu0
  %5883 = vdwg.mxu0
  %5884 = vmatprep.subr.bf16.mxu0 0
  %5885 = vmatpush1.bf16.msra.mxu0 %v4156
  %5886 = vmatprep.subr.bf16.mxu0 0
  %5887 = vmatpush1.bf16.msra.mxu0 %v4157
  %5888 = vmatprep.subr.bf16.mxu0 0
  %5889 = vmatpush1.bf16.msra.mxu0 %v4158
  %5890 = vmatprep.subr.bf16.mxu0 0
  %5891 = vmatpush1.bf16.msra.mxu0 %v4159
  %5892 = vmatprep.subr.bf16.mxu0 0
  %5893 = vmatpush1.bf16.msra.mxu0 %v4160
  %5894 = vmatprep.subr.bf16.mxu0 0
  %5895 = vmatpush1.bf16.msra.mxu0 %v4161
  %5896 = vmatprep.subr.bf16.mxu0 0
  %5897 = vmatpush1.bf16.msra.mxu0 %v4162
  %5898 = vmatprep.subr.bf16.mxu0 0
  %5899 = vmatpush1.bf16.msra.mxu0 %v4163
  %5900 = vmatprep.subr.bf16.mxu0 0
  %5901 = vmatpush1.bf16.msra.mxu0 %v4164
  %5902 = vmatprep.subr.bf16.mxu0 0
  %5903 = vmatpush1.bf16.msra.mxu0 %v4165
  %5904 = vmatprep.subr.bf16.mxu0 0
  %5905 = vmatpush1.bf16.msra.mxu0 %v4166
  %5906 = vmatprep.subr.bf16.mxu0 0
  %5907 = vmatpush1.bf16.msra.mxu0 %v4167
  %5908 = vmatprep.subr.bf16.mxu0 0
  %5909 = vmatpush1.bf16.msra.mxu0 %v4168
  %5910 = vmatprep.subr.bf16.mxu0 0
  %5911 = vmatpush1.bf16.msra.mxu0 %v4169
  %5912 = vmatprep.subr.bf16.mxu0 0
  %5913 = vmatpush1.bf16.msra.mxu0 %v4170
  %5914 = vmatprep.subr.bf16.mxu0 0
  %5915 = vmatpush1.bf16.msra.mxu0 %v4171
  %5916 = vmatprep.mubr.bf16.mxu0 %v1373
  %5917 = vmatmul.mubr.bf16.gmra.mrb[0].mxu0 %v1372
  %v5918 = vpop.f32.mrb[0].mxu0
  %v5919 = vadd.f32 %v5879, %v5918
  %v5920 = vpop.f32.mrb[0].mxu0
  %v5921 = vpop.f32.mrb[0].mxu0
  %v5922 = vpop.f32.mrb[0].mxu0
  %5923 = vdwg.mxu0
  %5924 = vmatprep.subr.bf16.mxu0 0
  %5925 = vmatpush1.bf16.msra.mxu0 %v4172
  %5926 = vmatprep.subr.bf16.mxu0 0
  %5927 = vmatpush1.bf16.msra.mxu0 %v4173
  %5928 = vmatprep.subr.bf16.mxu0 0
  %5929 = vmatpush1.bf16.msra.mxu0 %v4174
  %5930 = vmatprep.subr.bf16.mxu0 0
  %5931 = vmatpush1.bf16.msra.mxu0 %v4175
  %5932 = vmatprep.subr.bf16.mxu0 0
  %5933 = vmatpush1.bf16.msra.mxu0 %v4176
  %5934 = vmatprep.subr.bf16.mxu0 0
  %5935 = vmatpush1.bf16.msra.mxu0 %v4177
  %5936 = vmatprep.subr.bf16.mxu0 0
  %5937 = vmatpush1.bf16.msra.mxu0 %v4178
  %5938 = vmatprep.subr.bf16.mxu0 0
  %5939 = vmatpush1.bf16.msra.mxu0 %v4179
  %5940 = vmatprep.subr.bf16.mxu0 0
  %5941 = vmatpush1.bf16.msra.mxu0 %v4180
  %5942 = vmatprep.subr.bf16.mxu0 0
  %5943 = vmatpush1.bf16.msra.mxu0 %v4181
  %5944 = vmatprep.subr.bf16.mxu0 0
  %5945 = vmatpush1.bf16.msra.mxu0 %v4182
  %5946 = vmatprep.subr.bf16.mxu0 0
  %5947 = vmatpush1.bf16.msra.mxu0 %v4183
  %5948 = vmatprep.subr.bf16.mxu0 0
  %5949 = vmatpush1.bf16.msra.mxu0 %v4184
  %5950 = vmatprep.subr.bf16.mxu0 0
  %5951 = vmatpush1.bf16.msra.mxu0 %v4185
  %5952 = vmatprep.subr.bf16.mxu0 0
  %5953 = vmatpush1.bf16.msra.mxu0 %v4186
  %5954 = vmatprep.subr.bf16.mxu0 0
  %5955 = vmatpush1.bf16.msra.mxu0 %v4187
  %5956 = vmatprep.mubr.bf16.mxu0 %v1375
  %5957 = vmatmul.mubr.bf16.gmra.mrb[0].mxu0 %v1374
  %v5958 = vpop.f32.mrb[0].mxu0
  %v5959 = vadd.f32 %v5919, %v5958
  %v5960 = vpop.f32.mrb[0].mxu0
  %v5961 = vpop.f32.mrb[0].mxu0
  %v5962 = vpop.f32.mrb[0].mxu0
  %5963 = vdwg.mxu0
  %5964 = vmatprep.subr.bf16.mxu0 0
  %5965 = vmatpush1.bf16.msra.mxu0 %v4188
  %5966 = vmatprep.subr.bf16.mxu0 0
  %5967 = vmatpush1.bf16.msra.mxu0 %v4189
  %5968 = vmatprep.subr.bf16.mxu0 0
  %5969 = vmatpush1.bf16.msra.mxu0 %v4190
  %5970 = vmatprep.subr.bf16.mxu0 0
  %5971 = vmatpush1.bf16.msra.mxu0 %v4191
  %5972 = vmatprep.subr.bf16.mxu0 0
  %5973 = vmatpush1.bf16.msra.mxu0 %v4192
  %5974 = vmatprep.subr.bf16.mxu0 0
  %5975 = vmatpush1.bf16.msra.mxu0 %v4193
  %5976 = vmatprep.subr.bf16.mxu0 0
  %5977 = vmatpush1.bf16.msra.mxu0 %v4194
  %5978 = vmatprep.subr.bf16.mxu0 0
  %5979 = vmatpush1.bf16.msra.mxu0 %v4195
  %5980 = vmatprep.subr.bf16.mxu0 0
  %5981 = vmatpush1.bf16.msra.mxu0 %v4196
  %5982 = vmatprep.subr.bf16.mxu0 0
  %5983 = vmatpush1.bf16.msra.mxu0 %v4197
  %5984 = vmatprep.subr.bf16.mxu0 0
  %5985 = vmatpush1.bf16.msra.mxu0 %v4198
  %5986 = vmatprep.subr.bf16.mxu0 0
  %5987 = vmatpush1.bf16.msra.mxu0 %v4199
  %5988 = vmatprep.subr.bf16.mxu0 0
  %5989 = vmatpush1.bf16.msra.mxu0 %v4200
  %5990 = vmatprep.subr.bf16.mxu0 0
  %5991 = vmatpush1.bf16.msra.mxu0 %v4201
  %5992 = vmatprep.subr.bf16.mxu0 0
  %5993 = vmatpush1.bf16.msra.mxu0 %v4202
  %5994 = vmatprep.subr.bf16.mxu0 0
  %5995 = vmatpush1.bf16.msra.mxu0 %v4203
  %5996 = vmatprep.mubr.bf16.mxu0 %v1377
  %5997 = vmatmul.mubr.bf16.gmra.mrb[0].mxu0 %v1376
  %v5998 = vpop.f32.mrb[0].mxu0
  %v5999 = vadd.f32 %v5959, %v5998
  %v6000 = vpop.f32.mrb[0].mxu0
  %v6001 = vpop.f32.mrb[0].mxu0
  %v6002 = vpop.f32.mrb[0].mxu0
  %6003 = vdwg.mxu0
  %6004 = vmatprep.subr.bf16.mxu0 0
  %6005 = vmatpush1.bf16.msra.mxu0 %v4204
  %6006 = vmatprep.subr.bf16.mxu0 0
  %6007 = vmatpush1.bf16.msra.mxu0 %v4205
  %6008 = vmatprep.subr.bf16.mxu0 0
  %6009 = vmatpush1.bf16.msra.mxu0 %v4206
  %6010 = vmatprep.subr.bf16.mxu0 0
  %6011 = vmatpush1.bf16.msra.mxu0 %v4207
  %6012 = vmatprep.subr.bf16.mxu0 0
  %6013 = vmatpush1.bf16.msra.mxu0 %v4208
  %6014 = vmatprep.subr.bf16.mxu0 0
  %6015 = vmatpush1.bf16.msra.mxu0 %v4209
  %6016 = vmatprep.subr.bf16.mxu0 0
  %6017 = vmatpush1.bf16.msra.mxu0 %v4210
  %6018 = vmatprep.subr.bf16.mxu0 0
  %6019 = vmatpush1.bf16.msra.mxu0 %v4211
  %6020 = vmatprep.subr.bf16.mxu0 0
  %6021 = vmatpush1.bf16.msra.mxu0 %v4212
  %6022 = vmatprep.subr.bf16.mxu0 0
  %6023 = vmatpush1.bf16.msra.mxu0 %v4213
  %6024 = vmatprep.subr.bf16.mxu0 0
  %6025 = vmatpush1.bf16.msra.mxu0 %v4214
  %6026 = vmatprep.subr.bf16.mxu0 0
  %6027 = vmatpush1.bf16.msra.mxu0 %v4215
  %6028 = vmatprep.subr.bf16.mxu0 0
  %6029 = vmatpush1.bf16.msra.mxu0 %v4216
  %6030 = vmatprep.subr.bf16.mxu0 0
  %6031 = vmatpush1.bf16.msra.mxu0 %v4217
  %6032 = vmatprep.subr.bf16.mxu0 0
  %6033 = vmatpush1.bf16.msra.mxu0 %v4218
  %6034 = vmatprep.subr.bf16.mxu0 0
  %6035 = vmatpush1.bf16.msra.mxu0 %v4219
  %6036 = vmatprep.mubr.bf16.mxu0 %v1379
  %6037 = vmatmul.mubr.bf16.gmra.mrb[0].mxu0 %v1378
  %v6038 = vpop.f32.mrb[0].mxu0
  %v6039 = vadd.f32 %v5999, %v6038
  %v6040 = vpop.f32.mrb[0].mxu0
  %v6041 = vpop.f32.mrb[0].mxu0
  %v6042 = vpop.f32.mrb[0].mxu0
  %6043 = vdwg.mxu0
  %6044 = vmatprep.subr.bf16.mxu0 0
  %6045 = vmatpush1.bf16.msra.mxu0 %v4220
  %6046 = vmatprep.subr.bf16.mxu0 0
  %6047 = vmatpush1.bf16.msra.mxu0 %v4221
  %6048 = vmatprep.subr.bf16.mxu0 0
  %6049 = vmatpush1.bf16.msra.mxu0 %v4222
  %6050 = vmatprep.subr.bf16.mxu0 0
  %6051 = vmatpush1.bf16.msra.mxu0 %v4223
  %6052 = vmatprep.subr.bf16.mxu0 0
  %6053 = vmatpush1.bf16.msra.mxu0 %v4224
  %6054 = vmatprep.subr.bf16.mxu0 0
  %6055 = vmatpush1.bf16.msra.mxu0 %v4225
  %6056 = vmatprep.subr.bf16.mxu0 0
  %6057 = vmatpush1.bf16.msra.mxu0 %v4226
  %6058 = vmatprep.subr.bf16.mxu0 0
  %6059 = vmatpush1.bf16.msra.mxu0 %v4227
  %6060 = vmatprep.subr.bf16.mxu0 0
  %6061 = vmatpush1.bf16.msra.mxu0 %v4228
  %6062 = vmatprep.subr.bf16.mxu0 0
  %6063 = vmatpush1.bf16.msra.mxu0 %v4229
  %6064 = vmatprep.subr.bf16.mxu0 0
  %6065 = vmatpush1.bf16.msra.mxu0 %v4230
  %6066 = vmatprep.subr.bf16.mxu0 0
  %6067 = vmatpush1.bf16.msra.mxu0 %v4231
  %6068 = vmatprep.subr.bf16.mxu0 0
  %6069 = vmatpush1.bf16.msra.mxu0 %v4232
  %6070 = vmatprep.subr.bf16.mxu0 0
  %6071 = vmatpush1.bf16.msra.mxu0 %v4233
  %6072 = vmatprep.subr.bf16.mxu0 0
  %6073 = vmatpush1.bf16.msra.mxu0 %v4234
  %6074 = vmatprep.subr.bf16.mxu0 0
  %6075 = vmatpush1.bf16.msra.mxu0 %v4235
  %6076 = vmatprep.mubr.bf16.mxu0 %v1381
  %6077 = vmatmul.mubr.bf16.gmra.mrb[0].mxu0 %v1380
  %v6078 = vpop.f32.mrb[0].mxu0
  %v6079 = vadd.f32 %v6039, %v6078
  %v6080 = vpop.f32.mrb[0].mxu0
  %v6081 = vpop.f32.mrb[0].mxu0
  %v6082 = vpop.f32.mrb[0].mxu0
  %6083 = vdwg.mxu0
  %6084 = vmatprep.subr.bf16.mxu0 0
  %6085 = vmatpush1.bf16.msra.mxu0 %v4236
  %6086 = vmatprep.subr.bf16.mxu0 0
  %6087 = vmatpush1.bf16.msra.mxu0 %v4237
  %6088 = vmatprep.subr.bf16.mxu0 0
  %6089 = vmatpush1.bf16.msra.mxu0 %v4238
  %6090 = vmatprep.subr.bf16.mxu0 0
  %6091 = vmatpush1.bf16.msra.mxu0 %v4239
  %6092 = vmatprep.subr.bf16.mxu0 0
  %6093 = vmatpush1.bf16.msra.mxu0 %v4240
  %6094 = vmatprep.subr.bf16.mxu0 0
  %6095 = vmatpush1.bf16.msra.mxu0 %v4241
  %6096 = vmatprep.subr.bf16.mxu0 0
  %6097 = vmatpush1.bf16.msra.mxu0 %v4242
  %6098 = vmatprep.subr.bf16.mxu0 0
  %6099 = vmatpush1.bf16.msra.mxu0 %v4243
  %6100 = vmatprep.subr.bf16.mxu0 0
  %6101 = vmatpush1.bf16.msra.mxu0 %v4244
  %6102 = vmatprep.subr.bf16.mxu0 0
  %6103 = vmatpush1.bf16.msra.mxu0 %v4245
  %6104 = vmatprep.subr.bf16.mxu0 0
  %6105 = vmatpush1.bf16.msra.mxu0 %v4246
  %6106 = vmatprep.subr.bf16.mxu0 0
  %6107 = vmatpush1.bf16.msra.mxu0 %v4247
  %6108 = vmatprep.subr.bf16.mxu0 0
  %6109 = vmatpush1.bf16.msra.mxu0 %v4248
  %6110 = vmatprep.subr.bf16.mxu0 0
  %6111 = vmatpush1.bf16.msra.mxu0 %v4249
  %6112 = vmatprep.subr.bf16.mxu0 0
  %6113 = vmatpush1.bf16.msra.mxu0 %v4250
  %6114 = vmatprep.subr.bf16.mxu0 0
  %6115 = vmatpush1.bf16.msra.mxu0 %v4251
  %6116 = vmatprep.mubr.bf16.mxu0 %v1383
  %6117 = vmatmul.mubr.bf16.gmra.mrb[0].mxu0 %v1382
  %v6118 = vpop.f32.mrb[0].mxu0
  %v6119 = vadd.f32 %v6079, %v6118
  %v6120 = vpop.f32.mrb[0].mxu0
  %v6121 = vpop.f32.mrb[0].mxu0
  %v6122 = vpop.f32.mrb[0].mxu0
  %6123 = vdwg.mxu0
  %6124 = vmatprep.subr.bf16.mxu0 0
  %6125 = vmatpush1.bf16.msra.mxu0 %v4252
  %6126 = vmatprep.subr.bf16.mxu0 0
  %6127 = vmatpush1.bf16.msra.mxu0 %v4253
  %6128 = vmatprep.subr.bf16.mxu0 0
  %6129 = vmatpush1.bf16.msra.mxu0 %v4254
  %6130 = vmatprep.subr.bf16.mxu0 0
  %6131 = vmatpush1.bf16.msra.mxu0 %v4255
  %6132 = vmatprep.subr.bf16.mxu0 0
  %6133 = vmatpush1.bf16.msra.mxu0 %v4256
  %6134 = vmatprep.subr.bf16.mxu0 0
  %6135 = vmatpush1.bf16.msra.mxu0 %v4257
  %6136 = vmatprep.subr.bf16.mxu0 0
  %6137 = vmatpush1.bf16.msra.mxu0 %v4258
  %6138 = vmatprep.subr.bf16.mxu0 0
  %6139 = vmatpush1.bf16.msra.mxu0 %v4259
  %6140 = vmatprep.subr.bf16.mxu0 0
  %6141 = vmatpush1.bf16.msra.mxu0 %v4260
  %6142 = vmatprep.subr.bf16.mxu0 0
  %6143 = vmatpush1.bf16.msra.mxu0 %v4261
  %6144 = vmatprep.subr.bf16.mxu0 0
  %6145 = vmatpush1.bf16.msra.mxu0 %v4262
  %6146 = vmatprep.subr.bf16.mxu0 0
  %6147 = vmatpush1.bf16.msra.mxu0 %v4263
  %6148 = vmatprep.subr.bf16.mxu0 0
  %6149 = vmatpush1.bf16.msra.mxu0 %v4264
  %6150 = vmatprep.subr.bf16.mxu0 0
  %6151 = vmatpush1.bf16.msra.mxu0 %v4265
  %6152 = vmatprep.subr.bf16.mxu0 0
  %6153 = vmatpush1.bf16.msra.mxu0 %v4266
  %6154 = vmatprep.subr.bf16.mxu0 0
  %6155 = vmatpush1.bf16.msra.mxu0 %v4267
  %6156 = vmatprep.mubr.bf16.mxu0 %v1385
  %6157 = vmatmul.mubr.bf16.gmra.mrb[0].mxu0 %v1384
  %v6158 = vpop.f32.mrb[0].mxu0
  %v6159 = vadd.f32 %v6119, %v6158
  %v6160 = vpop.f32.mrb[0].mxu0
  %v6161 = vpop.f32.mrb[0].mxu0
  %v6162 = vpop.f32.mrb[0].mxu0
  %6163 = vdwg.mxu0
  %6164 = vmatprep.subr.bf16.mxu0 0
  %6165 = vmatpush1.bf16.msra.mxu0 %v4268
  %6166 = vmatprep.subr.bf16.mxu0 0
  %6167 = vmatpush1.bf16.msra.mxu0 %v4269
  %6168 = vmatprep.subr.bf16.mxu0 0
  %6169 = vmatpush1.bf16.msra.mxu0 %v4270
  %6170 = vmatprep.subr.bf16.mxu0 0
  %6171 = vmatpush1.bf16.msra.mxu0 %v4271
  %6172 = vmatprep.subr.bf16.mxu0 0
  %6173 = vmatpush1.bf16.msra.mxu0 %v4272
  %6174 = vmatprep.subr.bf16.mxu0 0
  %6175 = vmatpush1.bf16.msra.mxu0 %v4273
  %6176 = vmatprep.subr.bf16.mxu0 0
  %6177 = vmatpush1.bf16.msra.mxu0 %v4274
  %6178 = vmatprep.subr.bf16.mxu0 0
  %6179 = vmatpush1.bf16.msra.mxu0 %v4275
  %6180 = vmatprep.subr.bf16.mxu0 0
  %6181 = vmatpush1.bf16.msra.mxu0 %v4276
  %6182 = vmatprep.subr.bf16.mxu0 0
  %6183 = vmatpush1.bf16.msra.mxu0 %v4277
  %6184 = vmatprep.subr.bf16.mxu0 0
  %6185 = vmatpush1.bf16.msra.mxu0 %v4278
  %6186 = vmatprep.subr.bf16.mxu0 0
  %6187 = vmatpush1.bf16.msra.mxu0 %v4279
  %6188 = vmatprep.subr.bf16.mxu0 0
  %6189 = vmatpush1.bf16.msra.mxu0 %v4280
  %6190 = vmatprep.subr.bf16.mxu0 0
  %6191 = vmatpush1.bf16.msra.mxu0 %v4281
  %6192 = vmatprep.subr.bf16.mxu0 0
  %6193 = vmatpush1.bf16.msra.mxu0 %v4282
  %6194 = vmatprep.subr.bf16.mxu0 0
  %6195 = vmatpush1.bf16.msra.mxu0 %v4283
  %6196 = vmatprep.mubr.bf16.mxu0 %v1387
  %6197 = vmatmul.mubr.bf16.gmra.mrb[0].mxu0 %v1386
  %v6198 = vpop.f32.mrb[0].mxu0
  %v6199 = vadd.f32 %v6159, %v6198
  %v6200 = vpop.f32.mrb[0].mxu0
  %v6201 = vpop.f32.mrb[0].mxu0
  %v6202 = vpop.f32.mrb[0].mxu0
  %6203 = vdwg.mxu0
  %6204 = vmatprep.subr.bf16.mxu0 0
  %6205 = vmatpush1.bf16.msra.mxu0 %v4284
  %6206 = vmatprep.subr.bf16.mxu0 0
  %6207 = vmatpush1.bf16.msra.mxu0 %v4285
  %6208 = vmatprep.subr.bf16.mxu0 0
  %6209 = vmatpush1.bf16.msra.mxu0 %v4286
  %6210 = vmatprep.subr.bf16.mxu0 0
  %6211 = vmatpush1.bf16.msra.mxu0 %v4287
  %6212 = vmatprep.subr.bf16.mxu0 0
  %6213 = vmatpush1.bf16.msra.mxu0 %v4288
  %6214 = vmatprep.subr.bf16.mxu0 0
  %6215 = vmatpush1.bf16.msra.mxu0 %v4289
  %6216 = vmatprep.subr.bf16.mxu0 0
  %6217 = vmatpush1.bf16.msra.mxu0 %v4290
  %6218 = vmatprep.subr.bf16.mxu0 0
  %6219 = vmatpush1.bf16.msra.mxu0 %v4291
  %6220 = vmatprep.subr.bf16.mxu0 0
  %6221 = vmatpush1.bf16.msra.mxu0 %v4292
  %6222 = vmatprep.subr.bf16.mxu0 0
  %6223 = vmatpush1.bf16.msra.mxu0 %v4293
  %6224 = vmatprep.subr.bf16.mxu0 0
  %6225 = vmatpush1.bf16.msra.mxu0 %v4294
  %6226 = vmatprep.subr.bf16.mxu0 0
  %6227 = vmatpush1.bf16.msra.mxu0 %v4295
  %6228 = vmatprep.subr.bf16.mxu0 0
  %6229 = vmatpush1.bf16.msra.mxu0 %v4296
  %6230 = vmatprep.subr.bf16.mxu0 0
  %6231 = vmatpush1.bf16.msra.mxu0 %v4297
  %6232 = vmatprep.subr.bf16.mxu0 0
  %6233 = vmatpush1.bf16.msra.mxu0 %v4298
  %6234 = vmatprep.subr.bf16.mxu0 0
  %6235 = vmatpush1.bf16.msra.mxu0 %v4299
  %6236 = vmatprep.mubr.bf16.mxu0 %v1389
  %6237 = vmatmul.mubr.bf16.gmra.mrb[0].mxu0 %v1388
  %v6238 = vpop.f32.mrb[0].mxu0
  %v6239 = vadd.f32 %v6199, %v6238
  %v6240 = vpop.f32.mrb[0].mxu0
  %v6241 = vpop.f32.mrb[0].mxu0
  %v6242 = vpop.f32.mrb[0].mxu0
  %6243 = vdwg.mxu0
  %6244 = vmatprep.subr.bf16.mxu0 0
  %6245 = vmatpush1.bf16.msra.mxu0 %v4300
  %6246 = vmatprep.subr.bf16.mxu0 0
  %6247 = vmatpush1.bf16.msra.mxu0 %v4301
  %6248 = vmatprep.subr.bf16.mxu0 0
  %6249 = vmatpush1.bf16.msra.mxu0 %v4302
  %6250 = vmatprep.subr.bf16.mxu0 0
  %6251 = vmatpush1.bf16.msra.mxu0 %v4303
  %6252 = vmatprep.subr.bf16.mxu0 0
  %6253 = vmatpush1.bf16.msra.mxu0 %v4304
  %6254 = vmatprep.subr.bf16.mxu0 0
  %6255 = vmatpush1.bf16.msra.mxu0 %v4305
  %6256 = vmatprep.subr.bf16.mxu0 0
  %6257 = vmatpush1.bf16.msra.mxu0 %v4306
  %6258 = vmatprep.subr.bf16.mxu0 0
  %6259 = vmatpush1.bf16.msra.mxu0 %v4307
  %6260 = vmatprep.subr.bf16.mxu0 0
  %6261 = vmatpush1.bf16.msra.mxu0 %v4308
  %6262 = vmatprep.subr.bf16.mxu0 0
  %6263 = vmatpush1.bf16.msra.mxu0 %v4309
  %6264 = vmatprep.subr.bf16.mxu0 0
  %6265 = vmatpush1.bf16.msra.mxu0 %v4310
  %6266 = vmatprep.subr.bf16.mxu0 0
  %6267 = vmatpush1.bf16.msra.mxu0 %v4311
  %6268 = vmatprep.subr.bf16.mxu0 0
  %6269 = vmatpush1.bf16.msra.mxu0 %v4312
  %6270 = vmatprep.subr.bf16.mxu0 0
  %6271 = vmatpush1.bf16.msra.mxu0 %v4313
  %6272 = vmatprep.subr.bf16.mxu0 0
  %6273 = vmatpush1.bf16.msra.mxu0 %v4314
  %6274 = vmatprep.subr.bf16.mxu0 0
  %6275 = vmatpush1.bf16.msra.mxu0 %v4315
  %6276 = vmatprep.mubr.bf16.mxu0 %v1391
  %6277 = vmatmul.mubr.bf16.gmra.mrb[0].mxu0 %v1390
  %v6278 = vpop.f32.mrb[0].mxu0
  %v6279 = vadd.f32 %v6239, %v6278
  %v6280 = vpop.f32.mrb[0].mxu0
  %v6281 = vpop.f32.mrb[0].mxu0
  %v6282 = vpop.f32.mrb[0].mxu0
  %6283 = vdwg.mxu0
  %6284 = vmatprep.subr.bf16.mxu0 0
  %6285 = vmatpush1.bf16.msra.mxu0 %v4316
  %6286 = vmatprep.subr.bf16.mxu0 0
  %6287 = vmatpush1.bf16.msra.mxu0 %v4317
  %6288 = vmatprep.subr.bf16.mxu0 0
  %6289 = vmatpush1.bf16.msra.mxu0 %v4318
  %6290 = vmatprep.subr.bf16.mxu0 0
  %6291 = vmatpush1.bf16.msra.mxu0 %v4319
  %6292 = vmatprep.subr.bf16.mxu0 0
  %6293 = vmatpush1.bf16.msra.mxu0 %v4320
  %6294 = vmatprep.subr.bf16.mxu0 0
  %6295 = vmatpush1.bf16.msra.mxu0 %v4321
  %6296 = vmatprep.subr.bf16.mxu0 0
  %6297 = vmatpush1.bf16.msra.mxu0 %v4322
  %6298 = vmatprep.subr.bf16.mxu0 0
  %6299 = vmatpush1.bf16.msra.mxu0 %v4323
  %6300 = vmatprep.subr.bf16.mxu0 0
  %6301 = vmatpush1.bf16.msra.mxu0 %v4324
  %6302 = vmatprep.subr.bf16.mxu0 0
  %6303 = vmatpush1.bf16.msra.mxu0 %v4325
  %6304 = vmatprep.subr.bf16.mxu0 0
  %6305 = vmatpush1.bf16.msra.mxu0 %v4326
  %6306 = vmatprep.subr.bf16.mxu0 0
  %6307 = vmatpush1.bf16.msra.mxu0 %v4327
  %6308 = vmatprep.subr.bf16.mxu0 0
  %6309 = vmatpush1.bf16.msra.mxu0 %v4328
  %6310 = vmatprep.subr.bf16.mxu0 0
  %6311 = vmatpush1.bf16.msra.mxu0 %v4329
  %6312 = vmatprep.subr.bf16.mxu0 0
  %6313 = vmatpush1.bf16.msra.mxu0 %v4330
  %6314 = vmatprep.subr.bf16.mxu0 0
  %6315 = vmatpush1.bf16.msra.mxu0 %v4331
  %6316 = vmatprep.mubr.bf16.mxu0 %v1393
  %6317 = vmatmul.mubr.bf16.gmra.mrb[0].mxu0 %v1392
  %v6318 = vpop.f32.mrb[0].mxu0
  %v6319 = vadd.f32 %v6279, %v6318
  %v6320 = vpop.f32.mrb[0].mxu0
  %v6321 = vpop.f32.mrb[0].mxu0
  %v6322 = vpop.f32.mrb[0].mxu0
  %6323 = vdwg.mxu0
  %6324 = vmatprep.subr.bf16.mxu0 0
  %6325 = vmatpush1.bf16.msra.mxu0 %v4332
  %6326 = vmatprep.subr.bf16.mxu0 0
  %6327 = vmatpush1.bf16.msra.mxu0 %v4333
  %6328 = vmatprep.subr.bf16.mxu0 0
  %6329 = vmatpush1.bf16.msra.mxu0 %v4334
  %6330 = vmatprep.subr.bf16.mxu0 0
  %6331 = vmatpush1.bf16.msra.mxu0 %v4335
  %6332 = vmatprep.subr.bf16.mxu0 0
  %6333 = vmatpush1.bf16.msra.mxu0 %v4336
  %6334 = vmatprep.subr.bf16.mxu0 0
  %6335 = vmatpush1.bf16.msra.mxu0 %v4337
  %6336 = vmatprep.subr.bf16.mxu0 0
  %6337 = vmatpush1.bf16.msra.mxu0 %v4338
  %6338 = vmatprep.subr.bf16.mxu0 0
  %6339 = vmatpush1.bf16.msra.mxu0 %v4339
  %6340 = vmatprep.subr.bf16.mxu0 0
  %6341 = vmatpush1.bf16.msra.mxu0 %v4340
  %6342 = vmatprep.subr.bf16.mxu0 0
  %6343 = vmatpush1.bf16.msra.mxu0 %v4341
  %6344 = vmatprep.subr.bf16.mxu0 0
  %6345 = vmatpush1.bf16.msra.mxu0 %v4342
  %6346 = vmatprep.subr.bf16.mxu0 0
  %6347 = vmatpush1.bf16.msra.mxu0 %v4343
  %6348 = vmatprep.subr.bf16.mxu0 0
  %6349 = vmatpush1.bf16.msra.mxu0 %v4344
  %6350 = vmatprep.subr.bf16.mxu0 0
  %6351 = vmatpush1.bf16.msra.mxu0 %v4345
  %6352 = vmatprep.subr.bf16.mxu0 0
  %6353 = vmatpush1.bf16.msra.mxu0 %v4346
  %6354 = vmatprep.subr.bf16.mxu0 0
  %6355 = vmatpush1.bf16.msra.mxu0 %v4347
  %6356 = vmatprep.mubr.bf16.mxu0 %v1395
  %6357 = vmatmul.mubr.bf16.gmra.mrb[0].mxu0 %v1394
  %v6358 = vpop.f32.mrb[0].mxu0
  %v6359 = vadd.f32 %v6319, %v6358
  %v6360 = vpop.f32.mrb[0].mxu0
  %v6361 = vpop.f32.mrb[0].mxu0
  %v6362 = vpop.f32.mrb[0].mxu0
  %6363 = vdwg.mxu0
  %v6364 = vmax.f32 %v6359, 0.0
  %v6365 = vpack.c.bf16 %v6364, %v6364
  %v6366 = vld [vmem:[%s3] sm:$0xf]
  %v6367 = vld [vmem:[%s3 + $0x4] sm:$0xf]
  %v6368 = vld [vmem:[%s3 + $0x8] sm:$0xf]
  %v6369 = vld [vmem:[%s3 + $0xc] sm:$0xf]
  %v6370 = vld [vmem:[%s3 + $0x10] sm:$0xf]
  %v6371 = vld [vmem:[%s3 + $0x14] sm:$0xf]
  %v6372 = vld [vmem:[%s3 + $0x18] sm:$0xf]
  %v6373 = vld [vmem:[%s3 + $0x1c] sm:$0xf]
  %v6374 = vld [vmem:[%s3 + $0x20] sm:$0xf]
  %v6375 = vld [vmem:[%s3 + $0x24] sm:$0xf]
  %v6376 = vld [vmem:[%s3 + $0x28] sm:$0xf]
  %v6377 = vld [vmem:[%s3 + $0x2c] sm:$0xf]
  %v6378 = vld [vmem:[%s3 + $0x30] sm:$0xf]
  %v6379 = vld [vmem:[%s3 + $0x34] sm:$0xf]
  %v6380 = vld [vmem:[%s3 + $0x38] sm:$0xf]
  %v6381 = vld [vmem:[%s3 + $0x3c] sm:$0xf]
  %v6382 = vld [vmem:[%s4] sm:$0x1]
  %v6384 = vlaneseq
  %v6385 = vshrl.u32 %v6384, 7
  %v6386 = vsub.s32 0, %v6385
  %v6387 = vrot.slane %v6382, %v6386
  %v6405 = vunpack.c.l.b16 %v6366
  %v6406 = vunpack.c.l.b16 %v6367
  %v6407 = vunpack.c.l.b16 %v6368
  %v6408 = vunpack.c.l.b16 %v6369
  %v6409 = vunpack.c.l.b16 %v6370
  %v6410 = vunpack.c.l.b16 %v6371
  %v6411 = vunpack.c.l.b16 %v6372
  %v6412 = vunpack.c.l.b16 %v6373
  %v6413 = vunpack.c.l.b16 %v6374
  %v6414 = vunpack.c.l.b16 %v6375
  %v6415 = vunpack.c.l.b16 %v6376
  %v6416 = vunpack.c.l.b16 %v6377
  %v6417 = vunpack.c.l.b16 %v6378
  %v6418 = vunpack.c.l.b16 %v6379
  %v6419 = vunpack.c.l.b16 %v6380
  %v6420 = vunpack.c.l.b16 %v6381
  %v6421 = vpack.c.b16 %v6406, %v6405
  %v6422 = vpack.c.b16 %v6408, %v6407
  %v6423 = vpack.c.b16 %v6410, %v6409
  %v6424 = vpack.c.b16 %v6412, %v6411
  %v6425 = vpack.c.b16 %v6414, %v6413
  %v6426 = vpack.c.b16 %v6416, %v6415
  %v6427 = vpack.c.b16 %v6418, %v6417
  %v6428 = vpack.c.b16 %v6420, %v6419
  %6437 = vmatprep.subr.bf16.mxu0 0
  %6438 = vmatpush1.bf16.msra.mxu0 %v6421
  %6439 = vmatprep.subr.bf16.mxu0 0
  %6440 = vmatpush1.bf16.msra.mxu0 %v6422
  %6441 = vmatprep.subr.bf16.mxu0 0
  %6442 = vmatpush1.bf16.msra.mxu0 %v6423
  %6443 = vmatprep.subr.bf16.mxu0 0
  %6444 = vmatpush1.bf16.msra.mxu0 %v6424
  %6445 = vmatprep.subr.bf16.mxu0 0
  %6446 = vmatpush1.bf16.msra.mxu0 %v6425
  %6447 = vmatprep.subr.bf16.mxu0 0
  %6448 = vmatpush1.bf16.msra.mxu0 %v6426
  %6449 = vmatprep.subr.bf16.mxu0 0
  %6450 = vmatpush1.bf16.msra.mxu0 %v6427
  %6451 = vmatprep.subr.bf16.mxu0 0
  %6452 = vmatpush1.bf16.msra.mxu0 %v6428
  %6453 = vmatprep.subr.bf16.mxu0 0
  %6454 = vmatpush1.bf16.msra.mxu0 0
  %6455 = vmatprep.subr.bf16.mxu0 0
  %6456 = vmatpush1.bf16.msra.mxu0 0
  %6457 = vmatprep.subr.bf16.mxu0 0
  %6458 = vmatpush1.bf16.msra.mxu0 0
  %6459 = vmatprep.subr.bf16.mxu0 0
  %6460 = vmatpush1.bf16.msra.mxu0 0
  %6461 = vmatprep.subr.bf16.mxu0 0
  %6462 = vmatpush1.bf16.msra.mxu0 0
  %6463 = vmatprep.subr.bf16.mxu0 0
  %6464 = vmatpush1.bf16.msra.mxu0 0
  %6465 = vmatprep.subr.bf16.mxu0 0
  %6466 = vmatpush1.bf16.msra.mxu0 0
  %6467 = vmatprep.subr.bf16.mxu0 0
  %6468 = vmatpush1.bf16.msra.mxu0 0
  %6469 = vmatprep.mubr.bf16.mxu0 0
  %6470 = vmatmul.mubr.bf16.gmra.mrb[0].mxu0 %v6365
  %v6471 = vpop.f32.mrb[0].mxu0
  %v6472 = vadd.f32 %v6387, %v6471
  %v6473 = vpop.f32.mrb[0].mxu0
  %v6474 = vpop.f32.mrb[0].mxu0
  %v6475 = vpop.f32.mrb[0].mxu0
  %6476 = vdwg.mxu0
  %6477 = vmax.xlane.f32.xlu0 %v6472
  %v6478 = vpop.xlane.xlu0 %6477
  %v6479 = vsub.f32 %v6472, %v6478
  %v6480 = vmul.f32 %v6479, 1.442695
  %v6481 = vpow.pop %v6480
  %6482 = vadd.xlane.f32.xlu0 %v6481
  %v6483 = vpop.xlane.xlu0 %6482
  %v6484 = vlog2.pop %v6483
  %v6485 = vmul.f32 %v6484, 0.6931472
  %v6486 = vsub.f32 %v6479, %v6485
  %6487 = vst [vmem:[%s5] sm:$0xff] %v6486
  // Predicated region
  $region22: #{cnn_forward.7} parent=0 // pred_check
    _
  $region23: #{cnn_forward.7} parent=0 // pred_check_branch
    %6489 = sbr.rel (0) target = $region25
  $region24: #{cnn_forward.7} parent=0 // pred_region
    _
  $region25: #{cnn_forward.7} parent=0 // pred_fallthru
    _
  // Predicated region
  $region26: #{cnn_forward.7} parent=0 // pred_check
    _
  $region27: #{cnn_forward.7} parent=0 // pred_check_branch
    %6491 = sbr.rel (0) target = $region29
  $region28: #{cnn_forward.7} parent=0 // pred_region
    _
  $region29: #{cnn_forward.7} parent=0 // pred_fallthru
    _

</llo_original>
